<compile_context>
chip_gen: v7x
topology: tpu7x:2x2x1
jax: 0.10.0
libtpu: 0.0.40
codegen_flags: <defaults>
</compile_context>

<pallas_src>
import functools

import jax
import jax.numpy as jnp
from jax import lax
from jax.experimental import pallas as pl
from jax.experimental.pallas import tpu as pltpu


# --------------------------- Fused forward kernel ----------------------------
def _fused_sequence_kernel(x_ref, wi0_ref, wiL_ref, wh_ref, b_ref,
                           lw_ref, lb_ref, out_ref, xw_ref, *,
                           T, BC, H, L, interior_unroll):
    """Fused 4-layer LSTM + Linear for one batch chunk.

    refs (all VMEM):
      x_ref   : (T, BC, Ip)   time-major, padded input chunk
      wi0_ref : (Ip, 4H)      layer-0 input->gates weights (rows zero-padded)
      wiL_ref : (L-1, H, 4H)  input->gates weights for layers 1..L-1
      wh_ref  : (L, H, 4H)    hidden->gates weights
      b_ref   : (L, 1, 4H)    b_ih + b_hh per layer
      lw_ref  : (1, H)        final Linear weight (transposed)
      lb_ref  : (1, 1)        final Linear bias
      out_ref : (BC, 1)       output chunk
      xw_ref  : (T, BC, 4H)   scratch: layer-0 x@W_ih + b for every timestep
    """
    G = 4 * H
    f32 = jnp.float32

    # ---- Layer-0 input projection for ALL timesteps: one MXU matmul with the
    #      bias folded in.  Off the serial recurrence path. ----
    x2 = x_ref[...].reshape(T * BC, x_ref.shape[2])
    xw0 = jnp.dot(x2, wi0_ref[...], preferred_element_type=f32) + b_ref[0]
    xw_ref[...] = xw0.reshape(T, BC, G)

    # Hoist the (1,4H)->(BC,4H) bias broadcasts of the recurrent layers out of
    # every loop (broadcast_in_dim is not CSE'd by JAX).
    b_bc = [None] + [jnp.broadcast_to(b_ref[l], (BC, G)) for l in range(1, L)]

    def cell(l, gates_in, h, c):
        """One LSTM cell update; `gates_in` already contains x@W_ih + b."""
        gates = gates_in + jnp.dot(h, wh_ref[l], preferred_element_type=f32)
        # Full-width transcendentals over the whole (BC,4H) vreg, then lane
        # slices: 2 EUP passes instead of 4 quarter-width ones.
        sg = jax.nn.sigmoid(gates)
        th = jnp.tanh(gates)
        i_g = sg[:, 0 * H:1 * H]
        f_g = sg[:, 1 * H:2 * H]
        o_g = sg[:, 3 * H:4 * H]
        g_g = th[:, 2 * H:3 * H]
        c_new = f_g * c + i_g * g_g
        h_new = o_g * jnp.tanh(c_new)
        return h_new, c_new

    def rec_gates_in(l, h_below):
        # Input->gates projection for layers >= 1 (input is produced on the
        # fly by the layer below, one wavefront slot earlier).
        return (jnp.dot(h_below, wiL_ref[l - 1], preferred_element_type=f32)
                + b_bc[l])

    z = jnp.zeros((BC, H), f32)
    h = [z] * L
    c = [z] * L

    def static_slot(s, h, c):
        """Wavefront slot with a static slot index (ramp-up / ramp-down).
        All active cells read the INCOMING h/c -> mutually independent."""
        nh, nc = list(h), list(c)
        for l in range(L):
            t = s - l
            if 0 <= t < T:
                gi = xw_ref[t] if l == 0 else rec_gates_in(l, h[l - 1])
                nh[l], nc[l] = cell(l, gi, h[l], c[l])
        return nh, nc

    # Ramp-up slots: not all layers active yet.
    for s in range(L - 1):
        h, c = static_slot(s, h, c)

    # Interior slots: all L layers active.  fori_loop with capped unroll keeps
    # vreg pressure / code size bounded at large T.
    if T > L - 1:
        def body(s, carry):
            hh = list(carry[:L])
            cc = list(carry[L:])
            nh, nc = list(hh), list(cc)
            nh[0], nc[0] = cell(0, xw_ref[s], hh[0], cc[0])
            for l in range(1, L):
                nh[l], nc[l] = cell(l, rec_gates_in(l, hh[l - 1]),
                                    hh[l], cc[l])
            return (*nh, *nc)

        carry = lax.fori_loop(L - 1, T, body, (*h, *c),
                              unroll=interior_unroll)
        h, c = list(carry[:L]), list(carry[L:])

    # Ramp-down slots: upper layers drain their last timesteps.
    for s in range(max(T, L - 1), T + L - 1):
        h, c = static_slot(s, h, c)

    # Eval-mode dropout is identity.  Final Linear(H, 1): out_features == 1,
    # so use a VPU multiply + lane reduction instead of a degenerate MXU op.
    out = jnp.sum(h[L - 1] * lw_ref[...], axis=-1, keepdims=True) + lb_ref[...]
    out_ref[...] = out.astype(out_ref.dtype)


# ------------------------------- Full forward --------------------------------
@functools.partial(jax.jit, static_argnames=("hidden_size",))
def sequence_forward(x_bti, params, hidden_size):
    """x_bti: (B, T, I) batch_first, like PyTorch. Returns (B, 1)."""
    B, T, I = x_bti.shape
    H = hidden_size
    G = 4 * H
    L = len(params["lstm"])
    BC = 8                                     # batch chunk = one sublane tile
    Bp = -(-B // BC) * BC                      # pad batch to a multiple of BC
    Ip = max(8, -(-I // 8) * 8)                # pad features to sublane width

    # time-major + pad batch & feature dims so the kernel never sees ragged K.
    x = jnp.swapaxes(x_bti, 0, 1).astype(jnp.float32)        # (T, B, I)
    x = jnp.pad(x, ((0, 0), (0, Bp - B), (0, Ip - I)))       # (T, Bp, Ip)

    # Stack per-kind weights -> a handful of kernel refs instead of 3*L DMAs.
    wi0 = jnp.pad(params["lstm"][0][0].astype(jnp.float32),
                  ((0, Ip - I), (0, 0)))                     # (Ip, 4H)
    if L > 1:
        wiL = jnp.stack([params["lstm"][l][0] for l in range(1, L)])
    else:
        wiL = jnp.zeros((1, H, G), jnp.float32)
    wiL = wiL.astype(jnp.float32)                            # (max(L-1,1),H,4H)
    wh = jnp.stack([params["lstm"][l][1] for l in range(L)]
                   ).astype(jnp.float32)                     # (L, H, 4H)
    bs = jnp.stack([params["lstm"][l][2] for l in range(L)]
                   ).astype(jnp.float32)                     # (L, 1, 4H)
    lw = params["linear_w"].reshape(1, H).astype(jnp.float32)
    lb = params["linear_b"].astype(jnp.float32)              # (1, 1)

    n_interior = max(T - (L - 1), 0)
    kernel = functools.partial(
        _fused_sequence_kernel, T=T, BC=BC, H=H, L=L,
        interior_unroll=max(1, min(n_interior, 8)))

    # VMEM budget: the whole working set (input chunk, weights, xw scratch) is
    # pinned in VMEM; size the scoped limit from it (x2 for double buffering).
    vmem_needed = 4 * (T * BC * Ip + Ip * G + max(L - 1, 1) * H * G
                       + L * H * G + L * G + H + 1 + BC + T * BC * G)
    vmem_limit = int(min(64 << 20, max(16 << 20, 2 * vmem_needed + (2 << 20))))

    out = pl.pallas_call(
        kernel,
        out_shape=jax.ShapeDtypeStruct((Bp, 1), jnp.float32),
        grid_spec=pltpu.PrefetchScalarGridSpec(
            num_scalar_prefetch=0,
            grid=(Bp // BC,),
            in_specs=[
                pl.BlockSpec((T, BC, Ip), lambda b: (0, b, 0)),           # x
                pl.BlockSpec((Ip, G), lambda b: (0, 0)),                  # wi0
                pl.BlockSpec((max(L - 1, 1), H, G), lambda b: (0, 0, 0)), # wiL
                pl.BlockSpec((L, H, G), lambda b: (0, 0, 0)),             # wh
                pl.BlockSpec((L, 1, G), lambda b: (0, 0, 0)),             # b
                pl.BlockSpec((1, H), lambda b: (0, 0)),                   # lw
                pl.BlockSpec((1, 1), lambda b: (0, 0)),                   # lb
            ],
            out_specs=pl.BlockSpec((BC, 1), lambda b: (b, 0)),
            scratch_shapes=[pltpu.VMEM((T, BC, G), jnp.float32)],
        ),
        compiler_params=pltpu.CompilerParams(
            dimension_semantics=("parallel",),
            vmem_limit_bytes=vmem_limit),
    )(x, wi0, wiL, wh, bs, lw, lb)
    return out[:B]


# --------------------------- Deterministic params -----------------------------
def init_params(key, input_size, hidden_size, num_layers=4):
    H = hidden_size
    scale = 1.0 / jnp.sqrt(jnp.float32(H))
    lstm_params = []
    for layer in range(num_layers):
        in_dim = input_size if layer == 0 else H
        key, k1, k2, k3, k4 = jax.random.split(key, 5)
        # Stored pre-transposed: (in_dim, 4H) / (H, 4H); gate order [i, f, g, o].
        w_ih = jax.random.uniform(k1, (in_dim, 4 * H), jnp.float32, -scale, scale)
        w_hh = jax.random.uniform(k2, (H, 4 * H), jnp.float32, -scale, scale)
        b_ih = jax.random.uniform(k3, (4 * H,), jnp.float32, -scale, scale)
        b_hh = jax.random.uniform(k4, (4 * H,), jnp.float32, -scale, scale)
        lstm_params.append((w_ih, w_hh, (b_ih + b_hh)[None, :]))
    key, k5, k6 = jax.random.split(key, 3)
    lin_scale = 1.0 / jnp.sqrt(jnp.float32(H))
    linear_w = jax.random.uniform(k5, (H, 1), jnp.float32, -lin_scale, lin_scale)
    linear_b = jax.random.uniform(k6, (1, 1), jnp.float32, -lin_scale, lin_scale)
    return {"lstm": lstm_params, "linear_w": linear_w, "linear_b": linear_b}


# ------------------------------ Pure-JAX reference ----------------------------
def sequence_forward_ref(x_bti, params, hidden_size):
    H = hidden_size
    h_seq = x_bti  # (B, T, *)
    for (w_ih, w_hh, b) in params["lstm"]:
        B = h_seq.shape[0]

        def step(carry, x_t, w_ih=w_ih, w_hh=w_hh, b=b):
            h, c = carry
            gates = x_t @ w_ih + h @ w_hh + b
            i, f, g, o = jnp.split(gates, 4, axis=-1)
            i, f, o = jax.nn.sigmoid(i), jax.nn.sigmoid(f), jax.nn.sigmoid(o)
            g = jnp.tanh(g)
            c = f * c + i * g
            h = o * jnp.tanh(c)
            return (h, c), h

        init = (jnp.zeros((B, H), jnp.float32), jnp.zeros((B, H), jnp.float32))
        _, hs = jax.lax.scan(step, init, jnp.swapaxes(h_seq, 0, 1))
        h_seq = jnp.swapaxes(hs, 0, 1)     # (B, T, H)
    h_last = h_seq[:, -1, :]
    return h_last @ params["linear_w"] + params["linear_b"]


# ------------------------------------ Main ------------------------------------
if __name__ == "__main__":
    B, T, I, H = 2, 8, 4, 32

    key = jax.random.PRNGKey(0)
    key, kx, kp = jax.random.split(key, 3)
    x = jax.random.normal(kx, (B, T, I), jnp.float32)   # (batch, seq, features)
    params = init_params(kp, I, H, num_layers=4)

    out = sequence_forward(x, params, H)
    out = jax.block_until_ready(out)

    ref = sequence_forward_ref(x, params, H)
    assert out.shape == (B, 1)
    assert jnp.allclose(out, ref, atol=1e-4, rtol=1e-4), (out, ref)

    print("KERNEL_OK")
</pallas_src>

<mosaic_0001>
module attributes {stable_mosaic.version = 11 : i64} {
  func.func @_fused_sequence_kernel(%arg0: i32, %arg1: memref<8x8x8xf32, #tpu.memory_space<vmem>>, %arg2: memref<8x128xf32, #tpu.memory_space<vmem>>, %arg3: memref<3x32x128xf32, #tpu.memory_space<vmem>>, %arg4: memref<4x32x128xf32, #tpu.memory_space<vmem>>, %arg5: memref<4x1x128xf32, #tpu.memory_space<vmem>>, %arg6: memref<1x32xf32, #tpu.memory_space<vmem>>, %arg7: memref<1x1xf32, #tpu.memory_space<vmem>>, %arg8: memref<8x1xf32, #tpu.memory_space<vmem>>, %arg9: memref<8x8x128xf32, #tpu.memory_space<vmem>>) attributes {dimension_semantics = [#tpu.dimension_semantics<parallel>], iteration_bounds = array<i64: 1>, scalar_prefetch = 0 : i64, scratch_operands = 1 : i64, tpu.core_type = #tpu.core_type<tc>, window_params = [{transform_indices = @transform_0, window_bounds = array<i64: 8, 8, 8>}, {pipeline_mode = #tpu.pipeline_mode<synchronous>, transform_indices = @transform_1, window_bounds = array<i64: 8, 128>}, {pipeline_mode = #tpu.pipeline_mode<synchronous>, transform_indices = @transform_2, window_bounds = array<i64: 3, 32, 128>}, {pipeline_mode = #tpu.pipeline_mode<synchronous>, transform_indices = @transform_3, window_bounds = array<i64: 4, 32, 128>}, {pipeline_mode = #tpu.pipeline_mode<synchronous>, transform_indices = @transform_4, window_bounds = array<i64: 4, 1, 128>}, {pipeline_mode = #tpu.pipeline_mode<synchronous>, transform_indices = @transform_5, window_bounds = array<i64: 1, 32>}, {pipeline_mode = #tpu.pipeline_mode<synchronous>, transform_indices = @transform_6, window_bounds = array<i64: 1, 1>}, {transform_indices = @transform_7, window_bounds = array<i64: 8, 1>}]} {
    %c0 = arith.constant 0 : index
    %c0_0 = arith.constant 0 : index
    %c0_1 = arith.constant 0 : index
    %0 = vector.load %arg1[%c0, %c0_0, %c0_1] : memref<8x8x8xf32, #tpu.memory_space<vmem>>, vector<8x8x8xf32>
    %1 = vector.shape_cast %0 : vector<8x8x8xf32> to vector<64x8xf32>
    %c0_2 = arith.constant 0 : index
    %c0_3 = arith.constant 0 : index
    %2 = vector.load %arg2[%c0_2, %c0_3] : memref<8x128xf32, #tpu.memory_space<vmem>>, vector<8x128xf32>
    %cst = arith.constant dense<0.000000e+00> : vector<64x128xf32>
    %3 = tpu.matmul %1, %2, %cst {dimension_numbers = #tpu.dot_dimension_numbers<[1], [0], [0], [1], [0, 0, 1, 1], [], []>} : vector<64x8xf32>, vector<8x128xf32>, vector<64x128xf32> -> vector<64x128xf32>
    %c0_4 = arith.constant 0 : index
    %c0_5 = arith.constant 0 : index
    %c0_6 = arith.constant 0 : index
    %4 = vector.load %arg5[%c0_4, %c0_5, %c0_6] : memref<4x1x128xf32, #tpu.memory_space<vmem>>, vector<1x1x128xf32>
    %5 = vector.shape_cast %4 : vector<1x1x128xf32> to vector<1x128xf32>
    %6 = vector.broadcast %5 : vector<1x128xf32> to vector<64x128xf32>
    %7 = arith.addf %3, %6 : vector<64x128xf32>
    %8 = vector.shape_cast %7 : vector<64x128xf32> to vector<8x8x128xf32>
    %c0_7 = arith.constant 0 : index
    %c0_8 = arith.constant 0 : index
    %c0_9 = arith.constant 0 : index
    %9 = vector.load %arg9[%c0_7, %c0_8, %c0_9] : memref<8x8x128xf32, #tpu.memory_space<vmem>>, vector<8x8x128xf32>
    tpu.vector_store %arg9[%c0_7, %c0_8, %c0_9], %8 {strides = array<i32>} : memref<8x8x128xf32, #tpu.memory_space<vmem>>, vector<8x8x128xf32>,
    %c1 = arith.constant 1 : index
    %c0_10 = arith.constant 0 : index
    %c0_11 = arith.constant 0 : index
    %10 = vector.load %arg5[%c1, %c0_10, %c0_11] : memref<4x1x128xf32, #tpu.memory_space<vmem>>, vector<1x1x128xf32>
    %11 = vector.shape_cast %10 : vector<1x1x128xf32> to vector<1x128xf32>
    %12 = vector.shape_cast %11 : vector<1x128xf32> to vector<1x128xf32>
    %13 = vector.broadcast %12 : vector<1x128xf32> to vector<8x128xf32>
    %c2 = arith.constant 2 : index
    %c0_12 = arith.constant 0 : index
    %c0_13 = arith.constant 0 : index
    %14 = vector.load %arg5[%c2, %c0_12, %c0_13] : memref<4x1x128xf32, #tpu.memory_space<vmem>>, vector<1x1x128xf32>
    %15 = vector.shape_cast %14 : vector<1x1x128xf32> to vector<1x128xf32>
    %16 = vector.shape_cast %15 : vector<1x128xf32> to vector<1x128xf32>
    %17 = vector.broadcast %16 : vector<1x128xf32> to vector<8x128xf32>
    %c3 = arith.constant 3 : index
    %c0_14 = arith.constant 0 : index
    %c0_15 = arith.constant 0 : index
    %18 = vector.load %arg5[%c3, %c0_14, %c0_15] : memref<4x1x128xf32, #tpu.memory_space<vmem>>, vector<1x1x128xf32>
    %19 = vector.shape_cast %18 : vector<1x1x128xf32> to vector<1x128xf32>
    %20 = vector.shape_cast %19 : vector<1x128xf32> to vector<1x128xf32>
    %21 = vector.broadcast %20 : vector<1x128xf32> to vector<8x128xf32>
    %cst_16 = arith.constant 0.000000e+00 : f32
    %22 = vector.broadcast %cst_16 : f32 to vector<8x32xf32>
    %c0_17 = arith.constant 0 : index
    %c0_18 = arith.constant 0 : index
    %c0_19 = arith.constant 0 : index
    %23 = vector.load %arg9[%c0_17, %c0_18, %c0_19] : memref<8x8x128xf32, #tpu.memory_space<vmem>>, vector<1x8x128xf32>
    %24 = vector.shape_cast %23 : vector<1x8x128xf32> to vector<8x128xf32>
    %c0_20 = arith.constant 0 : index
    %c0_21 = arith.constant 0 : index
    %c0_22 = arith.constant 0 : index
    %25 = vector.load %arg4[%c0_20, %c0_21, %c0_22] : memref<4x32x128xf32, #tpu.memory_space<vmem>>, vector<1x32x128xf32>
    %26 = vector.shape_cast %25 : vector<1x32x128xf32> to vector<32x128xf32>
    %cst_23 = arith.constant dense<0.000000e+00> : vector<8x128xf32>
    %27 = tpu.matmul %22, %26, %cst_23 {dimension_numbers = #tpu.dot_dimension_numbers<[1], [0], [0], [1], [0, 0, 1, 1], [], []>} : vector<8x32xf32>, vector<32x128xf32>, vector<8x128xf32> -> vector<8x128xf32>
    %28 = arith.addf %24, %27 : vector<8x128xf32>
    %29 = arith.negf %28 : vector<8x128xf32>
    %30 = math.exp %29 : vector<8x128xf32>
    %cst_24 = arith.constant 1.000000e+00 : f32
    %31 = vector.broadcast %cst_24 : f32 to vector<8x128xf32>
    %32 = arith.addf %31, %30 : vector<8x128xf32>
    %33 = arith.divf %31, %32 : vector<8x128xf32>
    %34 = math.tanh %28 : vector<8x128xf32>
    %35 = vector.extract_strided_slice %33 {offsets = [0, 0], sizes = [8, 32], strides = [1, 1]} : vector<8x128xf32> to vector<8x32xf32>
    %36 = vector.extract_strided_slice %33 {offsets = [0, 32], sizes = [8, 32], strides = [1, 1]} : vector<8x128xf32> to vector<8x32xf32>
    %37 = vector.extract_strided_slice %33 {offsets = [0, 96], sizes = [8, 32], strides = [1, 1]} : vector<8x128xf32> to vector<8x32xf32>
    %38 = vector.extract_strided_slice %34 {offsets = [0, 64], sizes = [8, 32], strides = [1, 1]} : vector<8x128xf32> to vector<8x32xf32>
    %39 = arith.mulf %36, %22 : vector<8x32xf32>
    %40 = arith.mulf %35, %38 : vector<8x32xf32>
    %41 = arith.addf %39, %40 : vector<8x32xf32>
    %42 = math.tanh %41 : vector<8x32xf32>
    %43 = arith.mulf %37, %42 : vector<8x32xf32>
    %c1_25 = arith.constant 1 : index
    %c0_26 = arith.constant 0 : index
    %c0_27 = arith.constant 0 : index
    %44 = vector.load %arg9[%c1_25, %c0_26, %c0_27] : memref<8x8x128xf32, #tpu.memory_space<vmem>>, vector<1x8x128xf32>
    %45 = vector.shape_cast %44 : vector<1x8x128xf32> to vector<8x128xf32>
    %c0_28 = arith.constant 0 : index
    %c0_29 = arith.constant 0 : index
    %c0_30 = arith.constant 0 : index
    %46 = vector.load %arg4[%c0_28, %c0_29, %c0_30] : memref<4x32x128xf32, #tpu.memory_space<vmem>>, vector<1x32x128xf32>
    %47 = vector.shape_cast %46 : vector<1x32x128xf32> to vector<32x128xf32>
    %cst_31 = arith.constant dense<0.000000e+00> : vector<8x128xf32>
    %48 = tpu.matmul %43, %47, %cst_31 {dimension_numbers = #tpu.dot_dimension_numbers<[1], [0], [0], [1], [0, 0, 1, 1], [], []>} : vector<8x32xf32>, vector<32x128xf32>, vector<8x128xf32> -> vector<8x128xf32>
    %49 = arith.addf %45, %48 : vector<8x128xf32>
    %50 = arith.negf %49 : vector<8x128xf32>
    %51 = math.exp %50 : vector<8x128xf32>
    %cst_32 = arith.constant 1.000000e+00 : f32
    %52 = vector.broadcast %cst_32 : f32 to vector<8x128xf32>
    %53 = arith.addf %52, %51 : vector<8x128xf32>
    %54 = arith.divf %52, %53 : vector<8x128xf32>
    %55 = math.tanh %49 : vector<8x128xf32>
    %56 = vector.extract_strided_slice %54 {offsets = [0, 0], sizes = [8, 32], strides = [1, 1]} : vector<8x128xf32> to vector<8x32xf32>
    %57 = vector.extract_strided_slice %54 {offsets = [0, 32], sizes = [8, 32], strides = [1, 1]} : vector<8x128xf32> to vector<8x32xf32>
    %58 = vector.extract_strided_slice %54 {offsets = [0, 96], sizes = [8, 32], strides = [1, 1]} : vector<8x128xf32> to vector<8x32xf32>
    %59 = vector.extract_strided_slice %55 {offsets = [0, 64], sizes = [8, 32], strides = [1, 1]} : vector<8x128xf32> to vector<8x32xf32>
    %60 = arith.mulf %57, %41 : vector<8x32xf32>
    %61 = arith.mulf %56, %59 : vector<8x32xf32>
    %62 = arith.addf %60, %61 : vector<8x32xf32>
    %63 = math.tanh %62 : vector<8x32xf32>
    %64 = arith.mulf %58, %63 : vector<8x32xf32>
    %c0_33 = arith.constant 0 : index
    %c0_34 = arith.constant 0 : index
    %c0_35 = arith.constant 0 : index
    %65 = vector.load %arg3[%c0_33, %c0_34, %c0_35] : memref<3x32x128xf32, #tpu.memory_space<vmem>>, vector<1x32x128xf32>
    %66 = vector.shape_cast %65 : vector<1x32x128xf32> to vector<32x128xf32>
    %cst_36 = arith.constant dense<0.000000e+00> : vector<8x128xf32>
    %67 = tpu.matmul %43, %66, %cst_36 {dimension_numbers = #tpu.dot_dimension_numbers<[1], [0], [0], [1], [0, 0, 1, 1], [], []>} : vector<8x32xf32>, vector<32x128xf32>, vector<8x128xf32> -> vector<8x128xf32>
    %68 = arith.addf %67, %13 : vector<8x128xf32>
    %c1_37 = arith.constant 1 : index
    %c0_38 = arith.constant 0 : index
    %c0_39 = arith.constant 0 : index
    %69 = vector.load %arg4[%c1_37, %c0_38, %c0_39] : memref<4x32x128xf32, #tpu.memory_space<vmem>>, vector<1x32x128xf32>
    %70 = vector.shape_cast %69 : vector<1x32x128xf32> to vector<32x128xf32>
    %cst_40 = arith.constant dense<0.000000e+00> : vector<8x128xf32>
    %71 = tpu.matmul %22, %70, %cst_40 {dimension_numbers = #tpu.dot_dimension_numbers<[1], [0], [0], [1], [0, 0, 1, 1], [], []>} : vector<8x32xf32>, vector<32x128xf32>, vector<8x128xf32> -> vector<8x128xf32>
    %72 = arith.addf %68, %71 : vector<8x128xf32>
    %73 = arith.negf %72 : vector<8x128xf32>
    %74 = math.exp %73 : vector<8x128xf32>
    %cst_41 = arith.constant 1.000000e+00 : f32
    %75 = vector.broadcast %cst_41 : f32 to vector<8x128xf32>
    %76 = arith.addf %75, %74 : vector<8x128xf32>
    %77 = arith.divf %75, %76 : vector<8x128xf32>
    %78 = math.tanh %72 : vector<8x128xf32>
    %79 = vector.extract_strided_slice %77 {offsets = [0, 0], sizes = [8, 32], strides = [1, 1]} : vector<8x128xf32> to vector<8x32xf32>
    %80 = vector.extract_strided_slice %77 {offsets = [0, 32], sizes = [8, 32], strides = [1, 1]} : vector<8x128xf32> to vector<8x32xf32>
    %81 = vector.extract_strided_slice %77 {offsets = [0, 96], sizes = [8, 32], strides = [1, 1]} : vector<8x128xf32> to vector<8x32xf32>
    %82 = vector.extract_strided_slice %78 {offsets = [0, 64], sizes = [8, 32], strides = [1, 1]} : vector<8x128xf32> to vector<8x32xf32>
    %83 = arith.mulf %80, %22 : vector<8x32xf32>
    %84 = arith.mulf %79, %82 : vector<8x32xf32>
    %85 = arith.addf %83, %84 : vector<8x32xf32>
    %86 = math.tanh %85 : vector<8x32xf32>
    %87 = arith.mulf %81, %86 : vector<8x32xf32>
    %c2_42 = arith.constant 2 : index
    %c0_43 = arith.constant 0 : index
    %c0_44 = arith.constant 0 : index
    %88 = vector.load %arg9[%c2_42, %c0_43, %c0_44] : memref<8x8x128xf32, #tpu.memory_space<vmem>>, vector<1x8x128xf32>
    %89 = vector.shape_cast %88 : vector<1x8x128xf32> to vector<8x128xf32>
    %c0_45 = arith.constant 0 : index
    %c0_46 = arith.constant 0 : index
    %c0_47 = arith.constant 0 : index
    %90 = vector.load %arg4[%c0_45, %c0_46, %c0_47] : memref<4x32x128xf32, #tpu.memory_space<vmem>>, vector<1x32x128xf32>
    %91 = vector.shape_cast %90 : vector<1x32x128xf32> to vector<32x128xf32>
    %cst_48 = arith.constant dense<0.000000e+00> : vector<8x128xf32>
    %92 = tpu.matmul %64, %91, %cst_48 {dimension_numbers = #tpu.dot_dimension_numbers<[1], [0], [0], [1], [0, 0, 1, 1], [], []>} : vector<8x32xf32>, vector<32x128xf32>, vector<8x128xf32> -> vector<8x128xf32>
    %93 = arith.addf %89, %92 : vector<8x128xf32>
    %94 = arith.negf %93 : vector<8x128xf32>
    %95 = math.exp %94 : vector<8x128xf32>
    %cst_49 = arith.constant 1.000000e+00 : f32
    %96 = vector.broadcast %cst_49 : f32 to vector<8x128xf32>
    %97 = arith.addf %96, %95 : vector<8x128xf32>
    %98 = arith.divf %96, %97 : vector<8x128xf32>
    %99 = math.tanh %93 : vector<8x128xf32>
    %100 = vector.extract_strided_slice %98 {offsets = [0, 0], sizes = [8, 32], strides = [1, 1]} : vector<8x128xf32> to vector<8x32xf32>
    %101 = vector.extract_strided_slice %98 {offsets = [0, 32], sizes = [8, 32], strides = [1, 1]} : vector<8x128xf32> to vector<8x32xf32>
    %102 = vector.extract_strided_slice %98 {offsets = [0, 96], sizes = [8, 32], strides = [1, 1]} : vector<8x128xf32> to vector<8x32xf32>
    %103 = vector.extract_strided_slice %99 {offsets = [0, 64], sizes = [8, 32], strides = [1, 1]} : vector<8x128xf32> to vector<8x32xf32>
    %104 = arith.mulf %101, %62 : vector<8x32xf32>
    %105 = arith.mulf %100, %103 : vector<8x32xf32>
    %106 = arith.addf %104, %105 : vector<8x32xf32>
    %107 = math.tanh %106 : vector<8x32xf32>
    %108 = arith.mulf %102, %107 : vector<8x32xf32>
    %c0_50 = arith.constant 0 : index
    %c0_51 = arith.constant 0 : index
    %c0_52 = arith.constant 0 : index
    %109 = vector.load %arg3[%c0_50, %c0_51, %c0_52] : memref<3x32x128xf32, #tpu.memory_space<vmem>>, vector<1x32x128xf32>
    %110 = vector.shape_cast %109 : vector<1x32x128xf32> to vector<32x128xf32>
    %cst_53 = arith.constant dense<0.000000e+00> : vector<8x128xf32>
    %111 = tpu.matmul %64, %110, %cst_53 {dimension_numbers = #tpu.dot_dimension_numbers<[1], [0], [0], [1], [0, 0, 1, 1], [], []>} : vector<8x32xf32>, vector<32x128xf32>, vector<8x128xf32> -> vector<8x128xf32>
    %112 = arith.addf %111, %13 : vector<8x128xf32>
    %c1_54 = arith.constant 1 : index
    %c0_55 = arith.constant 0 : index
    %c0_56 = arith.constant 0 : index
    %113 = vector.load %arg4[%c1_54, %c0_55, %c0_56] : memref<4x32x128xf32, #tpu.memory_space<vmem>>, vector<1x32x128xf32>
    %114 = vector.shape_cast %113 : vector<1x32x128xf32> to vector<32x128xf32>
    %cst_57 = arith.constant dense<0.000000e+00> : vector<8x128xf32>
    %115 = tpu.matmul %87, %114, %cst_57 {dimension_numbers = #tpu.dot_dimension_numbers<[1], [0], [0], [1], [0, 0, 1, 1], [], []>} : vector<8x32xf32>, vector<32x128xf32>, vector<8x128xf32> -> vector<8x128xf32>
    %116 = arith.addf %112, %115 : vector<8x128xf32>
    %117 = arith.negf %116 : vector<8x128xf32>
    %118 = math.exp %117 : vector<8x128xf32>
    %cst_58 = arith.constant 1.000000e+00 : f32
    %119 = vector.broadcast %cst_58 : f32 to vector<8x128xf32>
    %120 = arith.addf %119, %118 : vector<8x128xf32>
    %121 = arith.divf %119, %120 : vector<8x128xf32>
    %122 = math.tanh %116 : vector<8x128xf32>
    %123 = vector.extract_strided_slice %121 {offsets = [0, 0], sizes = [8, 32], strides = [1, 1]} : vector<8x128xf32> to vector<8x32xf32>
    %124 = vector.extract_strided_slice %121 {offsets = [0, 32], sizes = [8, 32], strides = [1, 1]} : vector<8x128xf32> to vector<8x32xf32>
    %125 = vector.extract_strided_slice %121 {offsets = [0, 96], sizes = [8, 32], strides = [1, 1]} : vector<8x128xf32> to vector<8x32xf32>
    %126 = vector.extract_strided_slice %122 {offsets = [0, 64], sizes = [8, 32], strides = [1, 1]} : vector<8x128xf32> to vector<8x32xf32>
    %127 = arith.mulf %124, %85 : vector<8x32xf32>
    %128 = arith.mulf %123, %126 : vector<8x32xf32>
    %129 = arith.addf %127, %128 : vector<8x32xf32>
    %130 = math.tanh %129 : vector<8x32xf32>
    %131 = arith.mulf %125, %130 : vector<8x32xf32>
    %c1_59 = arith.constant 1 : index
    %c0_60 = arith.constant 0 : index
    %c0_61 = arith.constant 0 : index
    %132 = vector.load %arg3[%c1_59, %c0_60, %c0_61] : memref<3x32x128xf32, #tpu.memory_space<vmem>>, vector<1x32x128xf32>
    %133 = vector.shape_cast %132 : vector<1x32x128xf32> to vector<32x128xf32>
    %cst_62 = arith.constant dense<0.000000e+00> : vector<8x128xf32>
    %134 = tpu.matmul %87, %133, %cst_62 {dimension_numbers = #tpu.dot_dimension_numbers<[1], [0], [0], [1], [0, 0, 1, 1], [], []>} : vector<8x32xf32>, vector<32x128xf32>, vector<8x128xf32> -> vector<8x128xf32>
    %135 = arith.addf %134, %17 : vector<8x128xf32>
    %c2_63 = arith.constant 2 : index
    %c0_64 = arith.constant 0 : index
    %c0_65 = arith.constant 0 : index
    %136 = vector.load %arg4[%c2_63, %c0_64, %c0_65] : memref<4x32x128xf32, #tpu.memory_space<vmem>>, vector<1x32x128xf32>
    %137 = vector.shape_cast %136 : vector<1x32x128xf32> to vector<32x128xf32>
    %cst_66 = arith.constant dense<0.000000e+00> : vector<8x128xf32>
    %138 = tpu.matmul %22, %137, %cst_66 {dimension_numbers = #tpu.dot_dimension_numbers<[1], [0], [0], [1], [0, 0, 1, 1], [], []>} : vector<8x32xf32>, vector<32x128xf32>, vector<8x128xf32> -> vector<8x128xf32>
    %139 = arith.addf %135, %138 : vector<8x128xf32>
    %140 = arith.negf %139 : vector<8x128xf32>
    %141 = math.exp %140 : vector<8x128xf32>
    %cst_67 = arith.constant 1.000000e+00 : f32
    %142 = vector.broadcast %cst_67 : f32 to vector<8x128xf32>
    %143 = arith.addf %142, %141 : vector<8x128xf32>
    %144 = arith.divf %142, %143 : vector<8x128xf32>
    %145 = math.tanh %139 : vector<8x128xf32>
    %146 = vector.extract_strided_slice %144 {offsets = [0, 0], sizes = [8, 32], strides = [1, 1]} : vector<8x128xf32> to vector<8x32xf32>
    %147 = vector.extract_strided_slice %144 {offsets = [0, 32], sizes = [8, 32], strides = [1, 1]} : vector<8x128xf32> to vector<8x32xf32>
    %148 = vector.extract_strided_slice %144 {offsets = [0, 96], sizes = [8, 32], strides = [1, 1]} : vector<8x128xf32> to vector<8x32xf32>
    %149 = vector.extract_strided_slice %145 {offsets = [0, 64], sizes = [8, 32], strides = [1, 1]} : vector<8x128xf32> to vector<8x32xf32>
    %150 = arith.mulf %147, %22 : vector<8x32xf32>
    %151 = arith.mulf %146, %149 : vector<8x32xf32>
    %152 = arith.addf %150, %151 : vector<8x32xf32>
    %153 = math.tanh %152 : vector<8x32xf32>
    %154 = arith.mulf %148, %153 : vector<8x32xf32>
    %c3_i32 = arith.constant 3 : i32
    %155 = arith.index_cast %c3_i32 : i32 to index
    %c0_68 = arith.constant 0 : index
    %c0_69 = arith.constant 0 : index
    %156 = vector.load %arg9[%155, %c0_68, %c0_69] : memref<8x8x128xf32, #tpu.memory_space<vmem>>, vector<1x8x128xf32>
    %157 = vector.shape_cast %156 : vector<1x8x128xf32> to vector<8x128xf32>
    %c0_70 = arith.constant 0 : index
    %c0_71 = arith.constant 0 : index
    %c0_72 = arith.constant 0 : index
    %158 = vector.load %arg4[%c0_70, %c0_71, %c0_72] : memref<4x32x128xf32, #tpu.memory_space<vmem>>, vector<1x32x128xf32>
    %159 = vector.shape_cast %158 : vector<1x32x128xf32> to vector<32x128xf32>
    %cst_73 = arith.constant dense<0.000000e+00> : vector<8x128xf32>
    %160 = tpu.matmul %108, %159, %cst_73 {dimension_numbers = #tpu.dot_dimension_numbers<[1], [0], [0], [1], [0, 0, 1, 1], [], []>} : vector<8x32xf32>, vector<32x128xf32>, vector<8x128xf32> -> vector<8x128xf32>
    %161 = arith.addf %157, %160 : vector<8x128xf32>
    %162 = arith.negf %161 : vector<8x128xf32>
    %163 = math.exp %162 : vector<8x128xf32>
    %cst_74 = arith.constant 1.000000e+00 : f32
    %164 = vector.broadcast %cst_74 : f32 to vector<8x128xf32>
    %165 = arith.addf %164, %163 : vector<8x128xf32>
    %166 = arith.divf %164, %165 : vector<8x128xf32>
    %167 = math.tanh %161 : vector<8x128xf32>
    %168 = vector.extract_strided_slice %166 {offsets = [0, 0], sizes = [8, 32], strides = [1, 1]} : vector<8x128xf32> to vector<8x32xf32>
    %169 = vector.extract_strided_slice %166 {offsets = [0, 32], sizes = [8, 32], strides = [1, 1]} : vector<8x128xf32> to vector<8x32xf32>
    %170 = vector.extract_strided_slice %166 {offsets = [0, 96], sizes = [8, 32], strides = [1, 1]} : vector<8x128xf32> to vector<8x32xf32>
    %171 = vector.extract_strided_slice %167 {offsets = [0, 64], sizes = [8, 32], strides = [1, 1]} : vector<8x128xf32> to vector<8x32xf32>
    %172 = arith.mulf %169, %106 : vector<8x32xf32>
    %173 = arith.mulf %168, %171 : vector<8x32xf32>
    %174 = arith.addf %172, %173 : vector<8x32xf32>
    %175 = math.tanh %174 : vector<8x32xf32>
    %176 = arith.mulf %170, %175 : vector<8x32xf32>
    %c0_75 = arith.constant 0 : index
    %c0_76 = arith.constant 0 : index
    %c0_77 = arith.constant 0 : index
    %177 = vector.load %arg3[%c0_75, %c0_76, %c0_77] : memref<3x32x128xf32, #tpu.memory_space<vmem>>, vector<1x32x128xf32>
    %178 = vector.shape_cast %177 : vector<1x32x128xf32> to vector<32x128xf32>
    %cst_78 = arith.constant dense<0.000000e+00> : vector<8x128xf32>
    %179 = tpu.matmul %108, %178, %cst_78 {dimension_numbers = #tpu.dot_dimension_numbers<[1], [0], [0], [1], [0, 0, 1, 1], [], []>} : vector<8x32xf32>, vector<32x128xf32>, vector<8x128xf32> -> vector<8x128xf32>
    %180 = arith.addf %179, %13 : vector<8x128xf32>
    %c1_79 = arith.constant 1 : index
    %c0_80 = arith.constant 0 : index
    %c0_81 = arith.constant 0 : index
    %181 = vector.load %arg4[%c1_79, %c0_80, %c0_81] : memref<4x32x128xf32, #tpu.memory_space<vmem>>, vector<1x32x128xf32>
    %182 = vector.shape_cast %181 : vector<1x32x128xf32> to vector<32x128xf32>
    %cst_82 = arith.constant dense<0.000000e+00> : vector<8x128xf32>
    %183 = tpu.matmul %131, %182, %cst_82 {dimension_numbers = #tpu.dot_dimension_numbers<[1], [0], [0], [1], [0, 0, 1, 1], [], []>} : vector<8x32xf32>, vector<32x128xf32>, vector<8x128xf32> -> vector<8x128xf32>
    %184 = arith.addf %180, %183 : vector<8x128xf32>
    %185 = arith.negf %184 : vector<8x128xf32>
    %186 = math.exp %185 : vector<8x128xf32>
    %cst_83 = arith.constant 1.000000e+00 : f32
    %187 = vector.broadcast %cst_83 : f32 to vector<8x128xf32>
    %188 = arith.addf %187, %186 : vector<8x128xf32>
    %189 = arith.divf %187, %188 : vector<8x128xf32>
    %190 = math.tanh %184 : vector<8x128xf32>
    %191 = vector.extract_strided_slice %189 {offsets = [0, 0], sizes = [8, 32], strides = [1, 1]} : vector<8x128xf32> to vector<8x32xf32>
    %192 = vector.extract_strided_slice %189 {offsets = [0, 32], sizes = [8, 32], strides = [1, 1]} : vector<8x128xf32> to vector<8x32xf32>
    %193 = vector.extract_strided_slice %189 {offsets = [0, 96], sizes = [8, 32], strides = [1, 1]} : vector<8x128xf32> to vector<8x32xf32>
    %194 = vector.extract_strided_slice %190 {offsets = [0, 64], sizes = [8, 32], strides = [1, 1]} : vector<8x128xf32> to vector<8x32xf32>
    %195 = arith.mulf %192, %129 : vector<8x32xf32>
    %196 = arith.mulf %191, %194 : vector<8x32xf32>
    %197 = arith.addf %195, %196 : vector<8x32xf32>
    %198 = math.tanh %197 : vector<8x32xf32>
    %199 = arith.mulf %193, %198 : vector<8x32xf32>
    %c1_84 = arith.constant 1 : index
    %c0_85 = arith.constant 0 : index
    %c0_86 = arith.constant 0 : index
    %200 = vector.load %arg3[%c1_84, %c0_85, %c0_86] : memref<3x32x128xf32, #tpu.memory_space<vmem>>, vector<1x32x128xf32>
    %201 = vector.shape_cast %200 : vector<1x32x128xf32> to vector<32x128xf32>
    %cst_87 = arith.constant dense<0.000000e+00> : vector<8x128xf32>
    %202 = tpu.matmul %131, %201, %cst_87 {dimension_numbers = #tpu.dot_dimension_numbers<[1], [0], [0], [1], [0, 0, 1, 1], [], []>} : vector<8x32xf32>, vector<32x128xf32>, vector<8x128xf32> -> vector<8x128xf32>
    %203 = arith.addf %202, %17 : vector<8x128xf32>
    %c2_88 = arith.constant 2 : index
    %c0_89 = arith.constant 0 : index
    %c0_90 = arith.constant 0 : index
    %204 = vector.load %arg4[%c2_88, %c0_89, %c0_90] : memref<4x32x128xf32, #tpu.memory_space<vmem>>, vector<1x32x128xf32>
    %205 = vector.shape_cast %204 : vector<1x32x128xf32> to vector<32x128xf32>
    %cst_91 = arith.constant dense<0.000000e+00> : vector<8x128xf32>
    %206 = tpu.matmul %154, %205, %cst_91 {dimension_numbers = #tpu.dot_dimension_numbers<[1], [0], [0], [1], [0, 0, 1, 1], [], []>} : vector<8x32xf32>, vector<32x128xf32>, vector<8x128xf32> -> vector<8x128xf32>
    %207 = arith.addf %203, %206 : vector<8x128xf32>
    %208 = arith.negf %207 : vector<8x128xf32>
    %209 = math.exp %208 : vector<8x128xf32>
    %cst_92 = arith.constant 1.000000e+00 : f32
    %210 = vector.broadcast %cst_92 : f32 to vector<8x128xf32>
    %211 = arith.addf %210, %209 : vector<8x128xf32>
    %212 = arith.divf %210, %211 : vector<8x128xf32>
    %213 = math.tanh %207 : vector<8x128xf32>
    %214 = vector.extract_strided_slice %212 {offsets = [0, 0], sizes = [8, 32], strides = [1, 1]} : vector<8x128xf32> to vector<8x32xf32>
    %215 = vector.extract_strided_slice %212 {offsets = [0, 32], sizes = [8, 32], strides = [1, 1]} : vector<8x128xf32> to vector<8x32xf32>
    %216 = vector.extract_strided_slice %212 {offsets = [0, 96], sizes = [8, 32], strides = [1, 1]} : vector<8x128xf32> to vector<8x32xf32>
    %217 = vector.extract_strided_slice %213 {offsets = [0, 64], sizes = [8, 32], strides = [1, 1]} : vector<8x128xf32> to vector<8x32xf32>
    %218 = arith.mulf %215, %152 : vector<8x32xf32>
    %219 = arith.mulf %214, %217 : vector<8x32xf32>
    %220 = arith.addf %218, %219 : vector<8x32xf32>
    %221 = math.tanh %220 : vector<8x32xf32>
    %222 = arith.mulf %216, %221 : vector<8x32xf32>
    %c2_93 = arith.constant 2 : index
    %c0_94 = arith.constant 0 : index
    %c0_95 = arith.constant 0 : index
    %223 = vector.load %arg3[%c2_93, %c0_94, %c0_95] : memref<3x32x128xf32, #tpu.memory_space<vmem>>, vector<1x32x128xf32>
    %224 = vector.shape_cast %223 : vector<1x32x128xf32> to vector<32x128xf32>
    %cst_96 = arith.constant dense<0.000000e+00> : vector<8x128xf32>
    %225 = tpu.matmul %154, %224, %cst_96 {dimension_numbers = #tpu.dot_dimension_numbers<[1], [0], [0], [1], [0, 0, 1, 1], [], []>} : vector<8x32xf32>, vector<32x128xf32>, vector<8x128xf32> -> vector<8x128xf32>
    %226 = arith.addf %225, %21 : vector<8x128xf32>
    %c3_97 = arith.constant 3 : index
    %c0_98 = arith.constant 0 : index
    %c0_99 = arith.constant 0 : index
    %227 = vector.load %arg4[%c3_97, %c0_98, %c0_99] : memref<4x32x128xf32, #tpu.memory_space<vmem>>, vector<1x32x128xf32>
    %228 = vector.shape_cast %227 : vector<1x32x128xf32> to vector<32x128xf32>
    %cst_100 = arith.constant dense<0.000000e+00> : vector<8x128xf32>
    %229 = tpu.matmul %22, %228, %cst_100 {dimension_numbers = #tpu.dot_dimension_numbers<[1], [0], [0], [1], [0, 0, 1, 1], [], []>} : vector<8x32xf32>, vector<32x128xf32>, vector<8x128xf32> -> vector<8x128xf32>
    %230 = arith.addf %226, %229 : vector<8x128xf32>
    %231 = arith.negf %230 : vector<8x128xf32>
    %232 = math.exp %231 : vector<8x128xf32>
    %cst_101 = arith.constant 1.000000e+00 : f32
    %233 = vector.broadcast %cst_101 : f32 to vector<8x128xf32>
    %234 = arith.addf %233, %232 : vector<8x128xf32>
    %235 = arith.divf %233, %234 : vector<8x128xf32>
    %236 = math.tanh %230 : vector<8x128xf32>
    %237 = vector.extract_strided_slice %235 {offsets = [0, 0], sizes = [8, 32], strides = [1, 1]} : vector<8x128xf32> to vector<8x32xf32>
    %238 = vector.extract_strided_slice %235 {offsets = [0, 32], sizes = [8, 32], strides = [1, 1]} : vector<8x128xf32> to vector<8x32xf32>
    %239 = vector.extract_strided_slice %235 {offsets = [0, 96], sizes = [8, 32], strides = [1, 1]} : vector<8x128xf32> to vector<8x32xf32>
    %240 = vector.extract_strided_slice %236 {offsets = [0, 64], sizes = [8, 32], strides = [1, 1]} : vector<8x128xf32> to vector<8x32xf32>
    %241 = arith.mulf %238, %22 : vector<8x32xf32>
    %242 = arith.mulf %237, %240 : vector<8x32xf32>
    %243 = arith.addf %241, %242 : vector<8x32xf32>
    %244 = math.tanh %243 : vector<8x32xf32>
    %245 = arith.mulf %239, %244 : vector<8x32xf32>
    %c4_i32 = arith.constant 4 : i32
    %246 = arith.index_cast %c4_i32 : i32 to index
    %c0_102 = arith.constant 0 : index
    %c0_103 = arith.constant 0 : index
    %247 = vector.load %arg9[%246, %c0_102, %c0_103] : memref<8x8x128xf32, #tpu.memory_space<vmem>>, vector<1x8x128xf32>
    %248 = vector.shape_cast %247 : vector<1x8x128xf32> to vector<8x128xf32>
    %c0_104 = arith.constant 0 : index
    %c0_105 = arith.constant 0 : index
    %c0_106 = arith.constant 0 : index
    %249 = vector.load %arg4[%c0_104, %c0_105, %c0_106] : memref<4x32x128xf32, #tpu.memory_space<vmem>>, vector<1x32x128xf32>
    %250 = vector.shape_cast %249 : vector<1x32x128xf32> to vector<32x128xf32>
    %cst_107 = arith.constant dense<0.000000e+00> : vector<8x128xf32>
    %251 = tpu.matmul %176, %250, %cst_107 {dimension_numbers = #tpu.dot_dimension_numbers<[1], [0], [0], [1], [0, 0, 1, 1], [], []>} : vector<8x32xf32>, vector<32x128xf32>, vector<8x128xf32> -> vector<8x128xf32>
    %252 = arith.addf %248, %251 : vector<8x128xf32>
    %253 = arith.negf %252 : vector<8x128xf32>
    %254 = math.exp %253 : vector<8x128xf32>
    %cst_108 = arith.constant 1.000000e+00 : f32
    %255 = vector.broadcast %cst_108 : f32 to vector<8x128xf32>
    %256 = arith.addf %255, %254 : vector<8x128xf32>
    %257 = arith.divf %255, %256 : vector<8x128xf32>
    %258 = math.tanh %252 : vector<8x128xf32>
    %259 = vector.extract_strided_slice %257 {offsets = [0, 0], sizes = [8, 32], strides = [1, 1]} : vector<8x128xf32> to vector<8x32xf32>
    %260 = vector.extract_strided_slice %257 {offsets = [0, 32], sizes = [8, 32], strides = [1, 1]} : vector<8x128xf32> to vector<8x32xf32>
    %261 = vector.extract_strided_slice %257 {offsets = [0, 96], sizes = [8, 32], strides = [1, 1]} : vector<8x128xf32> to vector<8x32xf32>
    %262 = vector.extract_strided_slice %258 {offsets = [0, 64], sizes = [8, 32], strides = [1, 1]} : vector<8x128xf32> to vector<8x32xf32>
    %263 = arith.mulf %260, %174 : vector<8x32xf32>
    %264 = arith.mulf %259, %262 : vector<8x32xf32>
    %265 = arith.addf %263, %264 : vector<8x32xf32>
    %266 = math.tanh %265 : vector<8x32xf32>
    %267 = arith.mulf %261, %266 : vector<8x32xf32>
    %c0_109 = arith.constant 0 : index
    %c0_110 = arith.constant 0 : index
    %c0_111 = arith.constant 0 : index
    %268 = vector.load %arg3[%c0_109, %c0_110, %c0_111] : memref<3x32x128xf32, #tpu.memory_space<vmem>>, vector<1x32x128xf32>
    %269 = vector.shape_cast %268 : vector<1x32x128xf32> to vector<32x128xf32>
    %cst_112 = arith.constant dense<0.000000e+00> : vector<8x128xf32>
    %270 = tpu.matmul %176, %269, %cst_112 {dimension_numbers = #tpu.dot_dimension_numbers<[1], [0], [0], [1], [0, 0, 1, 1], [], []>} : vector<8x32xf32>, vector<32x128xf32>, vector<8x128xf32> -> vector<8x128xf32>
    %271 = arith.addf %270, %13 : vector<8x128xf32>
    %c1_113 = arith.constant 1 : index
    %c0_114 = arith.constant 0 : index
    %c0_115 = arith.constant 0 : index
    %272 = vector.load %arg4[%c1_113, %c0_114, %c0_115] : memref<4x32x128xf32, #tpu.memory_space<vmem>>, vector<1x32x128xf32>
    %273 = vector.shape_cast %272 : vector<1x32x128xf32> to vector<32x128xf32>
    %cst_116 = arith.constant dense<0.000000e+00> : vector<8x128xf32>
    %274 = tpu.matmul %199, %273, %cst_116 {dimension_numbers = #tpu.dot_dimension_numbers<[1], [0], [0], [1], [0, 0, 1, 1], [], []>} : vector<8x32xf32>, vector<32x128xf32>, vector<8x128xf32> -> vector<8x128xf32>
    %275 = arith.addf %271, %274 : vector<8x128xf32>
    %276 = arith.negf %275 : vector<8x128xf32>
    %277 = math.exp %276 : vector<8x128xf32>
    %cst_117 = arith.constant 1.000000e+00 : f32
    %278 = vector.broadcast %cst_117 : f32 to vector<8x128xf32>
    %279 = arith.addf %278, %277 : vector<8x128xf32>
    %280 = arith.divf %278, %279 : vector<8x128xf32>
    %281 = math.tanh %275 : vector<8x128xf32>
    %282 = vector.extract_strided_slice %280 {offsets = [0, 0], sizes = [8, 32], strides = [1, 1]} : vector<8x128xf32> to vector<8x32xf32>
    %283 = vector.extract_strided_slice %280 {offsets = [0, 32], sizes = [8, 32], strides = [1, 1]} : vector<8x128xf32> to vector<8x32xf32>
    %284 = vector.extract_strided_slice %280 {offsets = [0, 96], sizes = [8, 32], strides = [1, 1]} : vector<8x128xf32> to vector<8x32xf32>
    %285 = vector.extract_strided_slice %281 {offsets = [0, 64], sizes = [8, 32], strides = [1, 1]} : vector<8x128xf32> to vector<8x32xf32>
    %286 = arith.mulf %283, %197 : vector<8x32xf32>
    %287 = arith.mulf %282, %285 : vector<8x32xf32>
    %288 = arith.addf %286, %287 : vector<8x32xf32>
    %289 = math.tanh %288 : vector<8x32xf32>
    %290 = arith.mulf %284, %289 : vector<8x32xf32>
    %c1_118 = arith.constant 1 : index
    %c0_119 = arith.constant 0 : index
    %c0_120 = arith.constant 0 : index
    %291 = vector.load %arg3[%c1_118, %c0_119, %c0_120] : memref<3x32x128xf32, #tpu.memory_space<vmem>>, vector<1x32x128xf32>
    %292 = vector.shape_cast %291 : vector<1x32x128xf32> to vector<32x128xf32>
    %cst_121 = arith.constant dense<0.000000e+00> : vector<8x128xf32>
    %293 = tpu.matmul %199, %292, %cst_121 {dimension_numbers = #tpu.dot_dimension_numbers<[1], [0], [0], [1], [0, 0, 1, 1], [], []>} : vector<8x32xf32>, vector<32x128xf32>, vector<8x128xf32> -> vector<8x128xf32>
    %294 = arith.addf %293, %17 : vector<8x128xf32>
    %c2_122 = arith.constant 2 : index
    %c0_123 = arith.constant 0 : index
    %c0_124 = arith.constant 0 : index
    %295 = vector.load %arg4[%c2_122, %c0_123, %c0_124] : memref<4x32x128xf32, #tpu.memory_space<vmem>>, vector<1x32x128xf32>
    %296 = vector.shape_cast %295 : vector<1x32x128xf32> to vector<32x128xf32>
    %cst_125 = arith.constant dense<0.000000e+00> : vector<8x128xf32>
    %297 = tpu.matmul %222, %296, %cst_125 {dimension_numbers = #tpu.dot_dimension_numbers<[1], [0], [0], [1], [0, 0, 1, 1], [], []>} : vector<8x32xf32>, vector<32x128xf32>, vector<8x128xf32> -> vector<8x128xf32>
    %298 = arith.addf %294, %297 : vector<8x128xf32>
    %299 = arith.negf %298 : vector<8x128xf32>
    %300 = math.exp %299 : vector<8x128xf32>
    %cst_126 = arith.constant 1.000000e+00 : f32
    %301 = vector.broadcast %cst_126 : f32 to vector<8x128xf32>
    %302 = arith.addf %301, %300 : vector<8x128xf32>
    %303 = arith.divf %301, %302 : vector<8x128xf32>
    %304 = math.tanh %298 : vector<8x128xf32>
    %305 = vector.extract_strided_slice %303 {offsets = [0, 0], sizes = [8, 32], strides = [1, 1]} : vector<8x128xf32> to vector<8x32xf32>
    %306 = vector.extract_strided_slice %303 {offsets = [0, 32], sizes = [8, 32], strides = [1, 1]} : vector<8x128xf32> to vector<8x32xf32>
    %307 = vector.extract_strided_slice %303 {offsets = [0, 96], sizes = [8, 32], strides = [1, 1]} : vector<8x128xf32> to vector<8x32xf32>
    %308 = vector.extract_strided_slice %304 {offsets = [0, 64], sizes = [8, 32], strides = [1, 1]} : vector<8x128xf32> to vector<8x32xf32>
    %309 = arith.mulf %306, %220 : vector<8x32xf32>
    %310 = arith.mulf %305, %308 : vector<8x32xf32>
    %311 = arith.addf %309, %310 : vector<8x32xf32>
    %312 = math.tanh %311 : vector<8x32xf32>
    %313 = arith.mulf %307, %312 : vector<8x32xf32>
    %c2_127 = arith.constant 2 : index
    %c0_128 = arith.constant 0 : index
    %c0_129 = arith.constant 0 : index
    %314 = vector.load %arg3[%c2_127, %c0_128, %c0_129] : memref<3x32x128xf32, #tpu.memory_space<vmem>>, vector<1x32x128xf32>
    %315 = vector.shape_cast %314 : vector<1x32x128xf32> to vector<32x128xf32>
    %cst_130 = arith.constant dense<0.000000e+00> : vector<8x128xf32>
    %316 = tpu.matmul %222, %315, %cst_130 {dimension_numbers = #tpu.dot_dimension_numbers<[1], [0], [0], [1], [0, 0, 1, 1], [], []>} : vector<8x32xf32>, vector<32x128xf32>, vector<8x128xf32> -> vector<8x128xf32>
    %317 = arith.addf %316, %21 : vector<8x128xf32>
    %c3_131 = arith.constant 3 : index
    %c0_132 = arith.constant 0 : index
    %c0_133 = arith.constant 0 : index
    %318 = vector.load %arg4[%c3_131, %c0_132, %c0_133] : memref<4x32x128xf32, #tpu.memory_space<vmem>>, vector<1x32x128xf32>
    %319 = vector.shape_cast %318 : vector<1x32x128xf32> to vector<32x128xf32>
    %cst_134 = arith.constant dense<0.000000e+00> : vector<8x128xf32>
    %320 = tpu.matmul %245, %319, %cst_134 {dimension_numbers = #tpu.dot_dimension_numbers<[1], [0], [0], [1], [0, 0, 1, 1], [], []>} : vector<8x32xf32>, vector<32x128xf32>, vector<8x128xf32> -> vector<8x128xf32>
    %321 = arith.addf %317, %320 : vector<8x128xf32>
    %322 = arith.negf %321 : vector<8x128xf32>
    %323 = math.exp %322 : vector<8x128xf32>
    %cst_135 = arith.constant 1.000000e+00 : f32
    %324 = vector.broadcast %cst_135 : f32 to vector<8x128xf32>
    %325 = arith.addf %324, %323 : vector<8x128xf32>
    %326 = arith.divf %324, %325 : vector<8x128xf32>
    %327 = math.tanh %321 : vector<8x128xf32>
    %328 = vector.extract_strided_slice %326 {offsets = [0, 0], sizes = [8, 32], strides = [1, 1]} : vector<8x128xf32> to vector<8x32xf32>
    %329 = vector.extract_strided_slice %326 {offsets = [0, 32], sizes = [8, 32], strides = [1, 1]} : vector<8x128xf32> to vector<8x32xf32>
    %330 = vector.extract_strided_slice %326 {offsets = [0, 96], sizes = [8, 32], strides = [1, 1]} : vector<8x128xf32> to vector<8x32xf32>
    %331 = vector.extract_strided_slice %327 {offsets = [0, 64], sizes = [8, 32], strides = [1, 1]} : vector<8x128xf32> to vector<8x32xf32>
    %332 = arith.mulf %329, %243 : vector<8x32xf32>
    %333 = arith.mulf %328, %331 : vector<8x32xf32>
    %334 = arith.addf %332, %333 : vector<8x32xf32>
    %335 = math.tanh %334 : vector<8x32xf32>
    %336 = arith.mulf %330, %335 : vector<8x32xf32>
    %c5_i32 = arith.constant 5 : i32
    %337 = arith.index_cast %c5_i32 : i32 to index
    %c0_136 = arith.constant 0 : index
    %c0_137 = arith.constant 0 : index
    %338 = vector.load %arg9[%337, %c0_136, %c0_137] : memref<8x8x128xf32, #tpu.memory_space<vmem>>, vector<1x8x128xf32>
    %339 = vector.shape_cast %338 : vector<1x8x128xf32> to vector<8x128xf32>
    %c0_138 = arith.constant 0 : index
    %c0_139 = arith.constant 0 : index
    %c0_140 = arith.constant 0 : index
    %340 = vector.load %arg4[%c0_138, %c0_139, %c0_140] : memref<4x32x128xf32, #tpu.memory_space<vmem>>, vector<1x32x128xf32>
    %341 = vector.shape_cast %340 : vector<1x32x128xf32> to vector<32x128xf32>
    %cst_141 = arith.constant dense<0.000000e+00> : vector<8x128xf32>
    %342 = tpu.matmul %267, %341, %cst_141 {dimension_numbers = #tpu.dot_dimension_numbers<[1], [0], [0], [1], [0, 0, 1, 1], [], []>} : vector<8x32xf32>, vector<32x128xf32>, vector<8x128xf32> -> vector<8x128xf32>
    %343 = arith.addf %339, %342 : vector<8x128xf32>
    %344 = arith.negf %343 : vector<8x128xf32>
    %345 = math.exp %344 : vector<8x128xf32>
    %cst_142 = arith.constant 1.000000e+00 : f32
    %346 = vector.broadcast %cst_142 : f32 to vector<8x128xf32>
    %347 = arith.addf %346, %345 : vector<8x128xf32>
    %348 = arith.divf %346, %347 : vector<8x128xf32>
    %349 = math.tanh %343 : vector<8x128xf32>
    %350 = vector.extract_strided_slice %348 {offsets = [0, 0], sizes = [8, 32], strides = [1, 1]} : vector<8x128xf32> to vector<8x32xf32>
    %351 = vector.extract_strided_slice %348 {offsets = [0, 32], sizes = [8, 32], strides = [1, 1]} : vector<8x128xf32> to vector<8x32xf32>
    %352 = vector.extract_strided_slice %348 {offsets = [0, 96], sizes = [8, 32], strides = [1, 1]} : vector<8x128xf32> to vector<8x32xf32>
    %353 = vector.extract_strided_slice %349 {offsets = [0, 64], sizes = [8, 32], strides = [1, 1]} : vector<8x128xf32> to vector<8x32xf32>
    %354 = arith.mulf %351, %265 : vector<8x32xf32>
    %355 = arith.mulf %350, %353 : vector<8x32xf32>
    %356 = arith.addf %354, %355 : vector<8x32xf32>
    %357 = math.tanh %356 : vector<8x32xf32>
    %358 = arith.mulf %352, %357 : vector<8x32xf32>
    %c0_143 = arith.constant 0 : index
    %c0_144 = arith.constant 0 : index
    %c0_145 = arith.constant 0 : index
    %359 = vector.load %arg3[%c0_143, %c0_144, %c0_145] : memref<3x32x128xf32, #tpu.memory_space<vmem>>, vector<1x32x128xf32>
    %360 = vector.shape_cast %359 : vector<1x32x128xf32> to vector<32x128xf32>
    %cst_146 = arith.constant dense<0.000000e+00> : vector<8x128xf32>
    %361 = tpu.matmul %267, %360, %cst_146 {dimension_numbers = #tpu.dot_dimension_numbers<[1], [0], [0], [1], [0, 0, 1, 1], [], []>} : vector<8x32xf32>, vector<32x128xf32>, vector<8x128xf32> -> vector<8x128xf32>
    %362 = arith.addf %361, %13 : vector<8x128xf32>
    %c1_147 = arith.constant 1 : index
    %c0_148 = arith.constant 0 : index
    %c0_149 = arith.constant 0 : index
    %363 = vector.load %arg4[%c1_147, %c0_148, %c0_149] : memref<4x32x128xf32, #tpu.memory_space<vmem>>, vector<1x32x128xf32>
    %364 = vector.shape_cast %363 : vector<1x32x128xf32> to vector<32x128xf32>
    %cst_150 = arith.constant dense<0.000000e+00> : vector<8x128xf32>
    %365 = tpu.matmul %290, %364, %cst_150 {dimension_numbers = #tpu.dot_dimension_numbers<[1], [0], [0], [1], [0, 0, 1, 1], [], []>} : vector<8x32xf32>, vector<32x128xf32>, vector<8x128xf32> -> vector<8x128xf32>
    %366 = arith.addf %362, %365 : vector<8x128xf32>
    %367 = arith.negf %366 : vector<8x128xf32>
    %368 = math.exp %367 : vector<8x128xf32>
    %cst_151 = arith.constant 1.000000e+00 : f32
    %369 = vector.broadcast %cst_151 : f32 to vector<8x128xf32>
    %370 = arith.addf %369, %368 : vector<8x128xf32>
    %371 = arith.divf %369, %370 : vector<8x128xf32>
    %372 = math.tanh %366 : vector<8x128xf32>
    %373 = vector.extract_strided_slice %371 {offsets = [0, 0], sizes = [8, 32], strides = [1, 1]} : vector<8x128xf32> to vector<8x32xf32>
    %374 = vector.extract_strided_slice %371 {offsets = [0, 32], sizes = [8, 32], strides = [1, 1]} : vector<8x128xf32> to vector<8x32xf32>
    %375 = vector.extract_strided_slice %371 {offsets = [0, 96], sizes = [8, 32], strides = [1, 1]} : vector<8x128xf32> to vector<8x32xf32>
    %376 = vector.extract_strided_slice %372 {offsets = [0, 64], sizes = [8, 32], strides = [1, 1]} : vector<8x128xf32> to vector<8x32xf32>
    %377 = arith.mulf %374, %288 : vector<8x32xf32>
    %378 = arith.mulf %373, %376 : vector<8x32xf32>
    %379 = arith.addf %377, %378 : vector<8x32xf32>
    %380 = math.tanh %379 : vector<8x32xf32>
    %381 = arith.mulf %375, %380 : vector<8x32xf32>
    %c1_152 = arith.constant 1 : index
    %c0_153 = arith.constant 0 : index
    %c0_154 = arith.constant 0 : index
    %382 = vector.load %arg3[%c1_152, %c0_153, %c0_154] : memref<3x32x128xf32, #tpu.memory_space<vmem>>, vector<1x32x128xf32>
    %383 = vector.shape_cast %382 : vector<1x32x128xf32> to vector<32x128xf32>
    %cst_155 = arith.constant dense<0.000000e+00> : vector<8x128xf32>
    %384 = tpu.matmul %290, %383, %cst_155 {dimension_numbers = #tpu.dot_dimension_numbers<[1], [0], [0], [1], [0, 0, 1, 1], [], []>} : vector<8x32xf32>, vector<32x128xf32>, vector<8x128xf32> -> vector<8x128xf32>
    %385 = arith.addf %384, %17 : vector<8x128xf32>
    %c2_156 = arith.constant 2 : index
    %c0_157 = arith.constant 0 : index
    %c0_158 = arith.constant 0 : index
    %386 = vector.load %arg4[%c2_156, %c0_157, %c0_158] : memref<4x32x128xf32, #tpu.memory_space<vmem>>, vector<1x32x128xf32>
    %387 = vector.shape_cast %386 : vector<1x32x128xf32> to vector<32x128xf32>
    %cst_159 = arith.constant dense<0.000000e+00> : vector<8x128xf32>
    %388 = tpu.matmul %313, %387, %cst_159 {dimension_numbers = #tpu.dot_dimension_numbers<[1], [0], [0], [1], [0, 0, 1, 1], [], []>} : vector<8x32xf32>, vector<32x128xf32>, vector<8x128xf32> -> vector<8x128xf32>
    %389 = arith.addf %385, %388 : vector<8x128xf32>
    %390 = arith.negf %389 : vector<8x128xf32>
    %391 = math.exp %390 : vector<8x128xf32>
    %cst_160 = arith.constant 1.000000e+00 : f32
    %392 = vector.broadcast %cst_160 : f32 to vector<8x128xf32>
    %393 = arith.addf %392, %391 : vector<8x128xf32>
    %394 = arith.divf %392, %393 : vector<8x128xf32>
    %395 = math.tanh %389 : vector<8x128xf32>
    %396 = vector.extract_strided_slice %394 {offsets = [0, 0], sizes = [8, 32], strides = [1, 1]} : vector<8x128xf32> to vector<8x32xf32>
    %397 = vector.extract_strided_slice %394 {offsets = [0, 32], sizes = [8, 32], strides = [1, 1]} : vector<8x128xf32> to vector<8x32xf32>
    %398 = vector.extract_strided_slice %394 {offsets = [0, 96], sizes = [8, 32], strides = [1, 1]} : vector<8x128xf32> to vector<8x32xf32>
    %399 = vector.extract_strided_slice %395 {offsets = [0, 64], sizes = [8, 32], strides = [1, 1]} : vector<8x128xf32> to vector<8x32xf32>
    %400 = arith.mulf %397, %311 : vector<8x32xf32>
    %401 = arith.mulf %396, %399 : vector<8x32xf32>
    %402 = arith.addf %400, %401 : vector<8x32xf32>
    %403 = math.tanh %402 : vector<8x32xf32>
    %404 = arith.mulf %398, %403 : vector<8x32xf32>
    %c2_161 = arith.constant 2 : index
    %c0_162 = arith.constant 0 : index
    %c0_163 = arith.constant 0 : index
    %405 = vector.load %arg3[%c2_161, %c0_162, %c0_163] : memref<3x32x128xf32, #tpu.memory_space<vmem>>, vector<1x32x128xf32>
    %406 = vector.shape_cast %405 : vector<1x32x128xf32> to vector<32x128xf32>
    %cst_164 = arith.constant dense<0.000000e+00> : vector<8x128xf32>
    %407 = tpu.matmul %313, %406, %cst_164 {dimension_numbers = #tpu.dot_dimension_numbers<[1], [0], [0], [1], [0, 0, 1, 1], [], []>} : vector<8x32xf32>, vector<32x128xf32>, vector<8x128xf32> -> vector<8x128xf32>
    %408 = arith.addf %407, %21 : vector<8x128xf32>
    %c3_165 = arith.constant 3 : index
    %c0_166 = arith.constant 0 : index
    %c0_167 = arith.constant 0 : index
    %409 = vector.load %arg4[%c3_165, %c0_166, %c0_167] : memref<4x32x128xf32, #tpu.memory_space<vmem>>, vector<1x32x128xf32>
    %410 = vector.shape_cast %409 : vector<1x32x128xf32> to vector<32x128xf32>
    %cst_168 = arith.constant dense<0.000000e+00> : vector<8x128xf32>
    %411 = tpu.matmul %336, %410, %cst_168 {dimension_numbers = #tpu.dot_dimension_numbers<[1], [0], [0], [1], [0, 0, 1, 1], [], []>} : vector<8x32xf32>, vector<32x128xf32>, vector<8x128xf32> -> vector<8x128xf32>
    %412 = arith.addf %408, %411 : vector<8x128xf32>
    %413 = arith.negf %412 : vector<8x128xf32>
    %414 = math.exp %413 : vector<8x128xf32>
    %cst_169 = arith.constant 1.000000e+00 : f32
    %415 = vector.broadcast %cst_169 : f32 to vector<8x128xf32>
    %416 = arith.addf %415, %414 : vector<8x128xf32>
    %417 = arith.divf %415, %416 : vector<8x128xf32>
    %418 = math.tanh %412 : vector<8x128xf32>
    %419 = vector.extract_strided_slice %417 {offsets = [0, 0], sizes = [8, 32], strides = [1, 1]} : vector<8x128xf32> to vector<8x32xf32>
    %420 = vector.extract_strided_slice %417 {offsets = [0, 32], sizes = [8, 32], strides = [1, 1]} : vector<8x128xf32> to vector<8x32xf32>
    %421 = vector.extract_strided_slice %417 {offsets = [0, 96], sizes = [8, 32], strides = [1, 1]} : vector<8x128xf32> to vector<8x32xf32>
    %422 = vector.extract_strided_slice %418 {offsets = [0, 64], sizes = [8, 32], strides = [1, 1]} : vector<8x128xf32> to vector<8x32xf32>
    %423 = arith.mulf %420, %334 : vector<8x32xf32>
    %424 = arith.mulf %419, %422 : vector<8x32xf32>
    %425 = arith.addf %423, %424 : vector<8x32xf32>
    %426 = math.tanh %425 : vector<8x32xf32>
    %427 = arith.mulf %421, %426 : vector<8x32xf32>
    %c6_i32 = arith.constant 6 : i32
    %428 = arith.index_cast %c6_i32 : i32 to index
    %c0_170 = arith.constant 0 : index
    %c0_171 = arith.constant 0 : index
    %429 = vector.load %arg9[%428, %c0_170, %c0_171] : memref<8x8x128xf32, #tpu.memory_space<vmem>>, vector<1x8x128xf32>
    %430 = vector.shape_cast %429 : vector<1x8x128xf32> to vector<8x128xf32>
    %c0_172 = arith.constant 0 : index
    %c0_173 = arith.constant 0 : index
    %c0_174 = arith.constant 0 : index
    %431 = vector.load %arg4[%c0_172, %c0_173, %c0_174] : memref<4x32x128xf32, #tpu.memory_space<vmem>>, vector<1x32x128xf32>
    %432 = vector.shape_cast %431 : vector<1x32x128xf32> to vector<32x128xf32>
    %cst_175 = arith.constant dense<0.000000e+00> : vector<8x128xf32>
    %433 = tpu.matmul %358, %432, %cst_175 {dimension_numbers = #tpu.dot_dimension_numbers<[1], [0], [0], [1], [0, 0, 1, 1], [], []>} : vector<8x32xf32>, vector<32x128xf32>, vector<8x128xf32> -> vector<8x128xf32>
    %434 = arith.addf %430, %433 : vector<8x128xf32>
    %435 = arith.negf %434 : vector<8x128xf32>
    %436 = math.exp %435 : vector<8x128xf32>
    %cst_176 = arith.constant 1.000000e+00 : f32
    %437 = vector.broadcast %cst_176 : f32 to vector<8x128xf32>
    %438 = arith.addf %437, %436 : vector<8x128xf32>
    %439 = arith.divf %437, %438 : vector<8x128xf32>
    %440 = math.tanh %434 : vector<8x128xf32>
    %441 = vector.extract_strided_slice %439 {offsets = [0, 0], sizes = [8, 32], strides = [1, 1]} : vector<8x128xf32> to vector<8x32xf32>
    %442 = vector.extract_strided_slice %439 {offsets = [0, 32], sizes = [8, 32], strides = [1, 1]} : vector<8x128xf32> to vector<8x32xf32>
    %443 = vector.extract_strided_slice %439 {offsets = [0, 96], sizes = [8, 32], strides = [1, 1]} : vector<8x128xf32> to vector<8x32xf32>
    %444 = vector.extract_strided_slice %440 {offsets = [0, 64], sizes = [8, 32], strides = [1, 1]} : vector<8x128xf32> to vector<8x32xf32>
    %445 = arith.mulf %442, %356 : vector<8x32xf32>
    %446 = arith.mulf %441, %444 : vector<8x32xf32>
    %447 = arith.addf %445, %446 : vector<8x32xf32>
    %448 = math.tanh %447 : vector<8x32xf32>
    %449 = arith.mulf %443, %448 : vector<8x32xf32>
    %c0_177 = arith.constant 0 : index
    %c0_178 = arith.constant 0 : index
    %c0_179 = arith.constant 0 : index
    %450 = vector.load %arg3[%c0_177, %c0_178, %c0_179] : memref<3x32x128xf32, #tpu.memory_space<vmem>>, vector<1x32x128xf32>
    %451 = vector.shape_cast %450 : vector<1x32x128xf32> to vector<32x128xf32>
    %cst_180 = arith.constant dense<0.000000e+00> : vector<8x128xf32>
    %452 = tpu.matmul %358, %451, %cst_180 {dimension_numbers = #tpu.dot_dimension_numbers<[1], [0], [0], [1], [0, 0, 1, 1], [], []>} : vector<8x32xf32>, vector<32x128xf32>, vector<8x128xf32> -> vector<8x128xf32>
    %453 = arith.addf %452, %13 : vector<8x128xf32>
    %c1_181 = arith.constant 1 : index
    %c0_182 = arith.constant 0 : index
    %c0_183 = arith.constant 0 : index
    %454 = vector.load %arg4[%c1_181, %c0_182, %c0_183] : memref<4x32x128xf32, #tpu.memory_space<vmem>>, vector<1x32x128xf32>
    %455 = vector.shape_cast %454 : vector<1x32x128xf32> to vector<32x128xf32>
    %cst_184 = arith.constant dense<0.000000e+00> : vector<8x128xf32>
    %456 = tpu.matmul %381, %455, %cst_184 {dimension_numbers = #tpu.dot_dimension_numbers<[1], [0], [0], [1], [0, 0, 1, 1], [], []>} : vector<8x32xf32>, vector<32x128xf32>, vector<8x128xf32> -> vector<8x128xf32>
    %457 = arith.addf %453, %456 : vector<8x128xf32>
    %458 = arith.negf %457 : vector<8x128xf32>
    %459 = math.exp %458 : vector<8x128xf32>
    %cst_185 = arith.constant 1.000000e+00 : f32
    %460 = vector.broadcast %cst_185 : f32 to vector<8x128xf32>
    %461 = arith.addf %460, %459 : vector<8x128xf32>
    %462 = arith.divf %460, %461 : vector<8x128xf32>
    %463 = math.tanh %457 : vector<8x128xf32>
    %464 = vector.extract_strided_slice %462 {offsets = [0, 0], sizes = [8, 32], strides = [1, 1]} : vector<8x128xf32> to vector<8x32xf32>
    %465 = vector.extract_strided_slice %462 {offsets = [0, 32], sizes = [8, 32], strides = [1, 1]} : vector<8x128xf32> to vector<8x32xf32>
    %466 = vector.extract_strided_slice %462 {offsets = [0, 96], sizes = [8, 32], strides = [1, 1]} : vector<8x128xf32> to vector<8x32xf32>
    %467 = vector.extract_strided_slice %463 {offsets = [0, 64], sizes = [8, 32], strides = [1, 1]} : vector<8x128xf32> to vector<8x32xf32>
    %468 = arith.mulf %465, %379 : vector<8x32xf32>
    %469 = arith.mulf %464, %467 : vector<8x32xf32>
    %470 = arith.addf %468, %469 : vector<8x32xf32>
    %471 = math.tanh %470 : vector<8x32xf32>
    %472 = arith.mulf %466, %471 : vector<8x32xf32>
    %c1_186 = arith.constant 1 : index
    %c0_187 = arith.constant 0 : index
    %c0_188 = arith.constant 0 : index
    %473 = vector.load %arg3[%c1_186, %c0_187, %c0_188] : memref<3x32x128xf32, #tpu.memory_space<vmem>>, vector<1x32x128xf32>
    %474 = vector.shape_cast %473 : vector<1x32x128xf32> to vector<32x128xf32>
    %cst_189 = arith.constant dense<0.000000e+00> : vector<8x128xf32>
    %475 = tpu.matmul %381, %474, %cst_189 {dimension_numbers = #tpu.dot_dimension_numbers<[1], [0], [0], [1], [0, 0, 1, 1], [], []>} : vector<8x32xf32>, vector<32x128xf32>, vector<8x128xf32> -> vector<8x128xf32>
    %476 = arith.addf %475, %17 : vector<8x128xf32>
    %c2_190 = arith.constant 2 : index
    %c0_191 = arith.constant 0 : index
    %c0_192 = arith.constant 0 : index
    %477 = vector.load %arg4[%c2_190, %c0_191, %c0_192] : memref<4x32x128xf32, #tpu.memory_space<vmem>>, vector<1x32x128xf32>
    %478 = vector.shape_cast %477 : vector<1x32x128xf32> to vector<32x128xf32>
    %cst_193 = arith.constant dense<0.000000e+00> : vector<8x128xf32>
    %479 = tpu.matmul %404, %478, %cst_193 {dimension_numbers = #tpu.dot_dimension_numbers<[1], [0], [0], [1], [0, 0, 1, 1], [], []>} : vector<8x32xf32>, vector<32x128xf32>, vector<8x128xf32> -> vector<8x128xf32>
    %480 = arith.addf %476, %479 : vector<8x128xf32>
    %481 = arith.negf %480 : vector<8x128xf32>
    %482 = math.exp %481 : vector<8x128xf32>
    %cst_194 = arith.constant 1.000000e+00 : f32
    %483 = vector.broadcast %cst_194 : f32 to vector<8x128xf32>
    %484 = arith.addf %483, %482 : vector<8x128xf32>
    %485 = arith.divf %483, %484 : vector<8x128xf32>
    %486 = math.tanh %480 : vector<8x128xf32>
    %487 = vector.extract_strided_slice %485 {offsets = [0, 0], sizes = [8, 32], strides = [1, 1]} : vector<8x128xf32> to vector<8x32xf32>
    %488 = vector.extract_strided_slice %485 {offsets = [0, 32], sizes = [8, 32], strides = [1, 1]} : vector<8x128xf32> to vector<8x32xf32>
    %489 = vector.extract_strided_slice %485 {offsets = [0, 96], sizes = [8, 32], strides = [1, 1]} : vector<8x128xf32> to vector<8x32xf32>
    %490 = vector.extract_strided_slice %486 {offsets = [0, 64], sizes = [8, 32], strides = [1, 1]} : vector<8x128xf32> to vector<8x32xf32>
    %491 = arith.mulf %488, %402 : vector<8x32xf32>
    %492 = arith.mulf %487, %490 : vector<8x32xf32>
    %493 = arith.addf %491, %492 : vector<8x32xf32>
    %494 = math.tanh %493 : vector<8x32xf32>
    %495 = arith.mulf %489, %494 : vector<8x32xf32>
    %c2_195 = arith.constant 2 : index
    %c0_196 = arith.constant 0 : index
    %c0_197 = arith.constant 0 : index
    %496 = vector.load %arg3[%c2_195, %c0_196, %c0_197] : memref<3x32x128xf32, #tpu.memory_space<vmem>>, vector<1x32x128xf32>
    %497 = vector.shape_cast %496 : vector<1x32x128xf32> to vector<32x128xf32>
    %cst_198 = arith.constant dense<0.000000e+00> : vector<8x128xf32>
    %498 = tpu.matmul %404, %497, %cst_198 {dimension_numbers = #tpu.dot_dimension_numbers<[1], [0], [0], [1], [0, 0, 1, 1], [], []>} : vector<8x32xf32>, vector<32x128xf32>, vector<8x128xf32> -> vector<8x128xf32>
    %499 = arith.addf %498, %21 : vector<8x128xf32>
    %c3_199 = arith.constant 3 : index
    %c0_200 = arith.constant 0 : index
    %c0_201 = arith.constant 0 : index
    %500 = vector.load %arg4[%c3_199, %c0_200, %c0_201] : memref<4x32x128xf32, #tpu.memory_space<vmem>>, vector<1x32x128xf32>
    %501 = vector.shape_cast %500 : vector<1x32x128xf32> to vector<32x128xf32>
    %cst_202 = arith.constant dense<0.000000e+00> : vector<8x128xf32>
    %502 = tpu.matmul %427, %501, %cst_202 {dimension_numbers = #tpu.dot_dimension_numbers<[1], [0], [0], [1], [0, 0, 1, 1], [], []>} : vector<8x32xf32>, vector<32x128xf32>, vector<8x128xf32> -> vector<8x128xf32>
    %503 = arith.addf %499, %502 : vector<8x128xf32>
    %504 = arith.negf %503 : vector<8x128xf32>
    %505 = math.exp %504 : vector<8x128xf32>
    %cst_203 = arith.constant 1.000000e+00 : f32
    %506 = vector.broadcast %cst_203 : f32 to vector<8x128xf32>
    %507 = arith.addf %506, %505 : vector<8x128xf32>
    %508 = arith.divf %506, %507 : vector<8x128xf32>
    %509 = math.tanh %503 : vector<8x128xf32>
    %510 = vector.extract_strided_slice %508 {offsets = [0, 0], sizes = [8, 32], strides = [1, 1]} : vector<8x128xf32> to vector<8x32xf32>
    %511 = vector.extract_strided_slice %508 {offsets = [0, 32], sizes = [8, 32], strides = [1, 1]} : vector<8x128xf32> to vector<8x32xf32>
    %512 = vector.extract_strided_slice %508 {offsets = [0, 96], sizes = [8, 32], strides = [1, 1]} : vector<8x128xf32> to vector<8x32xf32>
    %513 = vector.extract_strided_slice %509 {offsets = [0, 64], sizes = [8, 32], strides = [1, 1]} : vector<8x128xf32> to vector<8x32xf32>
    %514 = arith.mulf %511, %425 : vector<8x32xf32>
    %515 = arith.mulf %510, %513 : vector<8x32xf32>
    %516 = arith.addf %514, %515 : vector<8x32xf32>
    %517 = math.tanh %516 : vector<8x32xf32>
    %518 = arith.mulf %512, %517 : vector<8x32xf32>
    %c7_i32 = arith.constant 7 : i32
    %519 = arith.index_cast %c7_i32 : i32 to index
    %c0_204 = arith.constant 0 : index
    %c0_205 = arith.constant 0 : index
    %520 = vector.load %arg9[%519, %c0_204, %c0_205] : memref<8x8x128xf32, #tpu.memory_space<vmem>>, vector<1x8x128xf32>
    %521 = vector.shape_cast %520 : vector<1x8x128xf32> to vector<8x128xf32>
    %c0_206 = arith.constant 0 : index
    %c0_207 = arith.constant 0 : index
    %c0_208 = arith.constant 0 : index
    %522 = vector.load %arg4[%c0_206, %c0_207, %c0_208] : memref<4x32x128xf32, #tpu.memory_space<vmem>>, vector<1x32x128xf32>
    %523 = vector.shape_cast %522 : vector<1x32x128xf32> to vector<32x128xf32>
    %cst_209 = arith.constant dense<0.000000e+00> : vector<8x128xf32>
    %524 = tpu.matmul %449, %523, %cst_209 {dimension_numbers = #tpu.dot_dimension_numbers<[1], [0], [0], [1], [0, 0, 1, 1], [], []>} : vector<8x32xf32>, vector<32x128xf32>, vector<8x128xf32> -> vector<8x128xf32>
    %525 = arith.addf %521, %524 : vector<8x128xf32>
    %526 = arith.negf %525 : vector<8x128xf32>
    %527 = math.exp %526 : vector<8x128xf32>
    %cst_210 = arith.constant 1.000000e+00 : f32
    %528 = vector.broadcast %cst_210 : f32 to vector<8x128xf32>
    %529 = arith.addf %528, %527 : vector<8x128xf32>
    %530 = arith.divf %528, %529 : vector<8x128xf32>
    %531 = math.tanh %525 : vector<8x128xf32>
    %532 = vector.extract_strided_slice %530 {offsets = [0, 0], sizes = [8, 32], strides = [1, 1]} : vector<8x128xf32> to vector<8x32xf32>
    %533 = vector.extract_strided_slice %530 {offsets = [0, 32], sizes = [8, 32], strides = [1, 1]} : vector<8x128xf32> to vector<8x32xf32>
    %534 = vector.extract_strided_slice %530 {offsets = [0, 96], sizes = [8, 32], strides = [1, 1]} : vector<8x128xf32> to vector<8x32xf32>
    %535 = vector.extract_strided_slice %531 {offsets = [0, 64], sizes = [8, 32], strides = [1, 1]} : vector<8x128xf32> to vector<8x32xf32>
    %536 = arith.mulf %533, %447 : vector<8x32xf32>
    %537 = arith.mulf %532, %535 : vector<8x32xf32>
    %538 = arith.addf %536, %537 : vector<8x32xf32>
    %539 = math.tanh %538 : vector<8x32xf32>
    %540 = arith.mulf %534, %539 : vector<8x32xf32>
    %c0_211 = arith.constant 0 : index
    %c0_212 = arith.constant 0 : index
    %c0_213 = arith.constant 0 : index
    %541 = vector.load %arg3[%c0_211, %c0_212, %c0_213] : memref<3x32x128xf32, #tpu.memory_space<vmem>>, vector<1x32x128xf32>
    %542 = vector.shape_cast %541 : vector<1x32x128xf32> to vector<32x128xf32>
    %cst_214 = arith.constant dense<0.000000e+00> : vector<8x128xf32>
    %543 = tpu.matmul %449, %542, %cst_214 {dimension_numbers = #tpu.dot_dimension_numbers<[1], [0], [0], [1], [0, 0, 1, 1], [], []>} : vector<8x32xf32>, vector<32x128xf32>, vector<8x128xf32> -> vector<8x128xf32>
    %544 = arith.addf %543, %13 : vector<8x128xf32>
    %c1_215 = arith.constant 1 : index
    %c0_216 = arith.constant 0 : index
    %c0_217 = arith.constant 0 : index
    %545 = vector.load %arg4[%c1_215, %c0_216, %c0_217] : memref<4x32x128xf32, #tpu.memory_space<vmem>>, vector<1x32x128xf32>
    %546 = vector.shape_cast %545 : vector<1x32x128xf32> to vector<32x128xf32>
    %cst_218 = arith.constant dense<0.000000e+00> : vector<8x128xf32>
    %547 = tpu.matmul %472, %546, %cst_218 {dimension_numbers = #tpu.dot_dimension_numbers<[1], [0], [0], [1], [0, 0, 1, 1], [], []>} : vector<8x32xf32>, vector<32x128xf32>, vector<8x128xf32> -> vector<8x128xf32>
    %548 = arith.addf %544, %547 : vector<8x128xf32>
    %549 = arith.negf %548 : vector<8x128xf32>
    %550 = math.exp %549 : vector<8x128xf32>
    %cst_219 = arith.constant 1.000000e+00 : f32
    %551 = vector.broadcast %cst_219 : f32 to vector<8x128xf32>
    %552 = arith.addf %551, %550 : vector<8x128xf32>
    %553 = arith.divf %551, %552 : vector<8x128xf32>
    %554 = math.tanh %548 : vector<8x128xf32>
    %555 = vector.extract_strided_slice %553 {offsets = [0, 0], sizes = [8, 32], strides = [1, 1]} : vector<8x128xf32> to vector<8x32xf32>
    %556 = vector.extract_strided_slice %553 {offsets = [0, 32], sizes = [8, 32], strides = [1, 1]} : vector<8x128xf32> to vector<8x32xf32>
    %557 = vector.extract_strided_slice %553 {offsets = [0, 96], sizes = [8, 32], strides = [1, 1]} : vector<8x128xf32> to vector<8x32xf32>
    %558 = vector.extract_strided_slice %554 {offsets = [0, 64], sizes = [8, 32], strides = [1, 1]} : vector<8x128xf32> to vector<8x32xf32>
    %559 = arith.mulf %556, %470 : vector<8x32xf32>
    %560 = arith.mulf %555, %558 : vector<8x32xf32>
    %561 = arith.addf %559, %560 : vector<8x32xf32>
    %562 = math.tanh %561 : vector<8x32xf32>
    %563 = arith.mulf %557, %562 : vector<8x32xf32>
    %c1_220 = arith.constant 1 : index
    %c0_221 = arith.constant 0 : index
    %c0_222 = arith.constant 0 : index
    %564 = vector.load %arg3[%c1_220, %c0_221, %c0_222] : memref<3x32x128xf32, #tpu.memory_space<vmem>>, vector<1x32x128xf32>
    %565 = vector.shape_cast %564 : vector<1x32x128xf32> to vector<32x128xf32>
    %cst_223 = arith.constant dense<0.000000e+00> : vector<8x128xf32>
    %566 = tpu.matmul %472, %565, %cst_223 {dimension_numbers = #tpu.dot_dimension_numbers<[1], [0], [0], [1], [0, 0, 1, 1], [], []>} : vector<8x32xf32>, vector<32x128xf32>, vector<8x128xf32> -> vector<8x128xf32>
    %567 = arith.addf %566, %17 : vector<8x128xf32>
    %c2_224 = arith.constant 2 : index
    %c0_225 = arith.constant 0 : index
    %c0_226 = arith.constant 0 : index
    %568 = vector.load %arg4[%c2_224, %c0_225, %c0_226] : memref<4x32x128xf32, #tpu.memory_space<vmem>>, vector<1x32x128xf32>
    %569 = vector.shape_cast %568 : vector<1x32x128xf32> to vector<32x128xf32>
    %cst_227 = arith.constant dense<0.000000e+00> : vector<8x128xf32>
    %570 = tpu.matmul %495, %569, %cst_227 {dimension_numbers = #tpu.dot_dimension_numbers<[1], [0], [0], [1], [0, 0, 1, 1], [], []>} : vector<8x32xf32>, vector<32x128xf32>, vector<8x128xf32> -> vector<8x128xf32>
    %571 = arith.addf %567, %570 : vector<8x128xf32>
    %572 = arith.negf %571 : vector<8x128xf32>
    %573 = math.exp %572 : vector<8x128xf32>
    %cst_228 = arith.constant 1.000000e+00 : f32
    %574 = vector.broadcast %cst_228 : f32 to vector<8x128xf32>
    %575 = arith.addf %574, %573 : vector<8x128xf32>
    %576 = arith.divf %574, %575 : vector<8x128xf32>
    %577 = math.tanh %571 : vector<8x128xf32>
    %578 = vector.extract_strided_slice %576 {offsets = [0, 0], sizes = [8, 32], strides = [1, 1]} : vector<8x128xf32> to vector<8x32xf32>
    %579 = vector.extract_strided_slice %576 {offsets = [0, 32], sizes = [8, 32], strides = [1, 1]} : vector<8x128xf32> to vector<8x32xf32>
    %580 = vector.extract_strided_slice %576 {offsets = [0, 96], sizes = [8, 32], strides = [1, 1]} : vector<8x128xf32> to vector<8x32xf32>
    %581 = vector.extract_strided_slice %577 {offsets = [0, 64], sizes = [8, 32], strides = [1, 1]} : vector<8x128xf32> to vector<8x32xf32>
    %582 = arith.mulf %579, %493 : vector<8x32xf32>
    %583 = arith.mulf %578, %581 : vector<8x32xf32>
    %584 = arith.addf %582, %583 : vector<8x32xf32>
    %585 = math.tanh %584 : vector<8x32xf32>
    %586 = arith.mulf %580, %585 : vector<8x32xf32>
    %c2_229 = arith.constant 2 : index
    %c0_230 = arith.constant 0 : index
    %c0_231 = arith.constant 0 : index
    %587 = vector.load %arg3[%c2_229, %c0_230, %c0_231] : memref<3x32x128xf32, #tpu.memory_space<vmem>>, vector<1x32x128xf32>
    %588 = vector.shape_cast %587 : vector<1x32x128xf32> to vector<32x128xf32>
    %cst_232 = arith.constant dense<0.000000e+00> : vector<8x128xf32>
    %589 = tpu.matmul %495, %588, %cst_232 {dimension_numbers = #tpu.dot_dimension_numbers<[1], [0], [0], [1], [0, 0, 1, 1], [], []>} : vector<8x32xf32>, vector<32x128xf32>, vector<8x128xf32> -> vector<8x128xf32>
    %590 = arith.addf %589, %21 : vector<8x128xf32>
    %c3_233 = arith.constant 3 : index
    %c0_234 = arith.constant 0 : index
    %c0_235 = arith.constant 0 : index
    %591 = vector.load %arg4[%c3_233, %c0_234, %c0_235] : memref<4x32x128xf32, #tpu.memory_space<vmem>>, vector<1x32x128xf32>
    %592 = vector.shape_cast %591 : vector<1x32x128xf32> to vector<32x128xf32>
    %cst_236 = arith.constant dense<0.000000e+00> : vector<8x128xf32>
    %593 = tpu.matmul %518, %592, %cst_236 {dimension_numbers = #tpu.dot_dimension_numbers<[1], [0], [0], [1], [0, 0, 1, 1], [], []>} : vector<8x32xf32>, vector<32x128xf32>, vector<8x128xf32> -> vector<8x128xf32>
    %594 = arith.addf %590, %593 : vector<8x128xf32>
    %595 = arith.negf %594 : vector<8x128xf32>
    %596 = math.exp %595 : vector<8x128xf32>
    %cst_237 = arith.constant 1.000000e+00 : f32
    %597 = vector.broadcast %cst_237 : f32 to vector<8x128xf32>
    %598 = arith.addf %597, %596 : vector<8x128xf32>
    %599 = arith.divf %597, %598 : vector<8x128xf32>
    %600 = math.tanh %594 : vector<8x128xf32>
    %601 = vector.extract_strided_slice %599 {offsets = [0, 0], sizes = [8, 32], strides = [1, 1]} : vector<8x128xf32> to vector<8x32xf32>
    %602 = vector.extract_strided_slice %599 {offsets = [0, 32], sizes = [8, 32], strides = [1, 1]} : vector<8x128xf32> to vector<8x32xf32>
    %603 = vector.extract_strided_slice %599 {offsets = [0, 96], sizes = [8, 32], strides = [1, 1]} : vector<8x128xf32> to vector<8x32xf32>
    %604 = vector.extract_strided_slice %600 {offsets = [0, 64], sizes = [8, 32], strides = [1, 1]} : vector<8x128xf32> to vector<8x32xf32>
    %605 = arith.mulf %602, %516 : vector<8x32xf32>
    %606 = arith.mulf %601, %604 : vector<8x32xf32>
    %607 = arith.addf %605, %606 : vector<8x32xf32>
    %608 = math.tanh %607 : vector<8x32xf32>
    %609 = arith.mulf %603, %608 : vector<8x32xf32>
    %c5_i32_238 = arith.constant 5 : i32
    %c0_239 = arith.constant 0 : index
    %c0_240 = arith.constant 0 : index
    %c0_241 = arith.constant 0 : index
    %610 = vector.load %arg3[%c0_239, %c0_240, %c0_241] : memref<3x32x128xf32, #tpu.memory_space<vmem>>, vector<1x32x128xf32>
    %611 = vector.shape_cast %610 : vector<1x32x128xf32> to vector<32x128xf32>
    %cst_242 = arith.constant dense<0.000000e+00> : vector<8x128xf32>
    %612 = tpu.matmul %540, %611, %cst_242 {dimension_numbers = #tpu.dot_dimension_numbers<[1], [0], [0], [1], [0, 0, 1, 1], [], []>} : vector<8x32xf32>, vector<32x128xf32>, vector<8x128xf32> -> vector<8x128xf32>
    %613 = arith.addf %612, %13 : vector<8x128xf32>
    %c1_243 = arith.constant 1 : index
    %c0_244 = arith.constant 0 : index
    %c0_245 = arith.constant 0 : index
    %614 = vector.load %arg4[%c1_243, %c0_244, %c0_245] : memref<4x32x128xf32, #tpu.memory_space<vmem>>, vector<1x32x128xf32>
    %615 = vector.shape_cast %614 : vector<1x32x128xf32> to vector<32x128xf32>
    %cst_246 = arith.constant dense<0.000000e+00> : vector<8x128xf32>
    %616 = tpu.matmul %563, %615, %cst_246 {dimension_numbers = #tpu.dot_dimension_numbers<[1], [0], [0], [1], [0, 0, 1, 1], [], []>} : vector<8x32xf32>, vector<32x128xf32>, vector<8x128xf32> -> vector<8x128xf32>
    %617 = arith.addf %613, %616 : vector<8x128xf32>
    %618 = arith.negf %617 : vector<8x128xf32>
    %619 = math.exp %618 : vector<8x128xf32>
    %cst_247 = arith.constant 1.000000e+00 : f32
    %620 = vector.broadcast %cst_247 : f32 to vector<8x128xf32>
    %621 = arith.addf %620, %619 : vector<8x128xf32>
    %622 = arith.divf %620, %621 : vector<8x128xf32>
    %623 = math.tanh %617 : vector<8x128xf32>
    %624 = vector.extract_strided_slice %622 {offsets = [0, 0], sizes = [8, 32], strides = [1, 1]} : vector<8x128xf32> to vector<8x32xf32>
    %625 = vector.extract_strided_slice %622 {offsets = [0, 32], sizes = [8, 32], strides = [1, 1]} : vector<8x128xf32> to vector<8x32xf32>
    %626 = vector.extract_strided_slice %622 {offsets = [0, 96], sizes = [8, 32], strides = [1, 1]} : vector<8x128xf32> to vector<8x32xf32>
    %627 = vector.extract_strided_slice %623 {offsets = [0, 64], sizes = [8, 32], strides = [1, 1]} : vector<8x128xf32> to vector<8x32xf32>
    %628 = arith.mulf %625, %561 : vector<8x32xf32>
    %629 = arith.mulf %624, %627 : vector<8x32xf32>
    %630 = arith.addf %628, %629 : vector<8x32xf32>
    %631 = math.tanh %630 : vector<8x32xf32>
    %632 = arith.mulf %626, %631 : vector<8x32xf32>
    %c1_248 = arith.constant 1 : index
    %c0_249 = arith.constant 0 : index
    %c0_250 = arith.constant 0 : index
    %633 = vector.load %arg3[%c1_248, %c0_249, %c0_250] : memref<3x32x128xf32, #tpu.memory_space<vmem>>, vector<1x32x128xf32>
    %634 = vector.shape_cast %633 : vector<1x32x128xf32> to vector<32x128xf32>
    %cst_251 = arith.constant dense<0.000000e+00> : vector<8x128xf32>
    %635 = tpu.matmul %563, %634, %cst_251 {dimension_numbers = #tpu.dot_dimension_numbers<[1], [0], [0], [1], [0, 0, 1, 1], [], []>} : vector<8x32xf32>, vector<32x128xf32>, vector<8x128xf32> -> vector<8x128xf32>
    %636 = arith.addf %635, %17 : vector<8x128xf32>
    %c2_252 = arith.constant 2 : index
    %c0_253 = arith.constant 0 : index
    %c0_254 = arith.constant 0 : index
    %637 = vector.load %arg4[%c2_252, %c0_253, %c0_254] : memref<4x32x128xf32, #tpu.memory_space<vmem>>, vector<1x32x128xf32>
    %638 = vector.shape_cast %637 : vector<1x32x128xf32> to vector<32x128xf32>
    %cst_255 = arith.constant dense<0.000000e+00> : vector<8x128xf32>
    %639 = tpu.matmul %586, %638, %cst_255 {dimension_numbers = #tpu.dot_dimension_numbers<[1], [0], [0], [1], [0, 0, 1, 1], [], []>} : vector<8x32xf32>, vector<32x128xf32>, vector<8x128xf32> -> vector<8x128xf32>
    %640 = arith.addf %636, %639 : vector<8x128xf32>
    %641 = arith.negf %640 : vector<8x128xf32>
    %642 = math.exp %641 : vector<8x128xf32>
    %cst_256 = arith.constant 1.000000e+00 : f32
    %643 = vector.broadcast %cst_256 : f32 to vector<8x128xf32>
    %644 = arith.addf %643, %642 : vector<8x128xf32>
    %645 = arith.divf %643, %644 : vector<8x128xf32>
    %646 = math.tanh %640 : vector<8x128xf32>
    %647 = vector.extract_strided_slice %645 {offsets = [0, 0], sizes = [8, 32], strides = [1, 1]} : vector<8x128xf32> to vector<8x32xf32>
    %648 = vector.extract_strided_slice %645 {offsets = [0, 32], sizes = [8, 32], strides = [1, 1]} : vector<8x128xf32> to vector<8x32xf32>
    %649 = vector.extract_strided_slice %645 {offsets = [0, 96], sizes = [8, 32], strides = [1, 1]} : vector<8x128xf32> to vector<8x32xf32>
    %650 = vector.extract_strided_slice %646 {offsets = [0, 64], sizes = [8, 32], strides = [1, 1]} : vector<8x128xf32> to vector<8x32xf32>
    %651 = arith.mulf %648, %584 : vector<8x32xf32>
    %652 = arith.mulf %647, %650 : vector<8x32xf32>
    %653 = arith.addf %651, %652 : vector<8x32xf32>
    %654 = math.tanh %653 : vector<8x32xf32>
    %655 = arith.mulf %649, %654 : vector<8x32xf32>
    %c2_257 = arith.constant 2 : index
    %c0_258 = arith.constant 0 : index
    %c0_259 = arith.constant 0 : index
    %656 = vector.load %arg3[%c2_257, %c0_258, %c0_259] : memref<3x32x128xf32, #tpu.memory_space<vmem>>, vector<1x32x128xf32>
    %657 = vector.shape_cast %656 : vector<1x32x128xf32> to vector<32x128xf32>
    %cst_260 = arith.constant dense<0.000000e+00> : vector<8x128xf32>
    %658 = tpu.matmul %586, %657, %cst_260 {dimension_numbers = #tpu.dot_dimension_numbers<[1], [0], [0], [1], [0, 0, 1, 1], [], []>} : vector<8x32xf32>, vector<32x128xf32>, vector<8x128xf32> -> vector<8x128xf32>
    %659 = arith.addf %658, %21 : vector<8x128xf32>
    %c3_261 = arith.constant 3 : index
    %c0_262 = arith.constant 0 : index
    %c0_263 = arith.constant 0 : index
    %660 = vector.load %arg4[%c3_261, %c0_262, %c0_263] : memref<4x32x128xf32, #tpu.memory_space<vmem>>, vector<1x32x128xf32>
    %661 = vector.shape_cast %660 : vector<1x32x128xf32> to vector<32x128xf32>
    %cst_264 = arith.constant dense<0.000000e+00> : vector<8x128xf32>
    %662 = tpu.matmul %609, %661, %cst_264 {dimension_numbers = #tpu.dot_dimension_numbers<[1], [0], [0], [1], [0, 0, 1, 1], [], []>} : vector<8x32xf32>, vector<32x128xf32>, vector<8x128xf32> -> vector<8x128xf32>
    %663 = arith.addf %659, %662 : vector<8x128xf32>
    %664 = arith.negf %663 : vector<8x128xf32>
    %665 = math.exp %664 : vector<8x128xf32>
    %cst_265 = arith.constant 1.000000e+00 : f32
    %666 = vector.broadcast %cst_265 : f32 to vector<8x128xf32>
    %667 = arith.addf %666, %665 : vector<8x128xf32>
    %668 = arith.divf %666, %667 : vector<8x128xf32>
    %669 = math.tanh %663 : vector<8x128xf32>
    %670 = vector.extract_strided_slice %668 {offsets = [0, 0], sizes = [8, 32], strides = [1, 1]} : vector<8x128xf32> to vector<8x32xf32>
    %671 = vector.extract_strided_slice %668 {offsets = [0, 32], sizes = [8, 32], strides = [1, 1]} : vector<8x128xf32> to vector<8x32xf32>
    %672 = vector.extract_strided_slice %668 {offsets = [0, 96], sizes = [8, 32], strides = [1, 1]} : vector<8x128xf32> to vector<8x32xf32>
    %673 = vector.extract_strided_slice %669 {offsets = [0, 64], sizes = [8, 32], strides = [1, 1]} : vector<8x128xf32> to vector<8x32xf32>
    %674 = arith.mulf %671, %607 : vector<8x32xf32>
    %675 = arith.mulf %670, %673 : vector<8x32xf32>
    %676 = arith.addf %674, %675 : vector<8x32xf32>
    %677 = math.tanh %676 : vector<8x32xf32>
    %678 = arith.mulf %672, %677 : vector<8x32xf32>
    %c1_266 = arith.constant 1 : index
    %c0_267 = arith.constant 0 : index
    %c0_268 = arith.constant 0 : index
    %679 = vector.load %arg3[%c1_266, %c0_267, %c0_268] : memref<3x32x128xf32, #tpu.memory_space<vmem>>, vector<1x32x128xf32>
    %680 = vector.shape_cast %679 : vector<1x32x128xf32> to vector<32x128xf32>
    %cst_269 = arith.constant dense<0.000000e+00> : vector<8x128xf32>
    %681 = tpu.matmul %632, %680, %cst_269 {dimension_numbers = #tpu.dot_dimension_numbers<[1], [0], [0], [1], [0, 0, 1, 1], [], []>} : vector<8x32xf32>, vector<32x128xf32>, vector<8x128xf32> -> vector<8x128xf32>
    %682 = arith.addf %681, %17 : vector<8x128xf32>
    %c2_270 = arith.constant 2 : index
    %c0_271 = arith.constant 0 : index
    %c0_272 = arith.constant 0 : index
    %683 = vector.load %arg4[%c2_270, %c0_271, %c0_272] : memref<4x32x128xf32, #tpu.memory_space<vmem>>, vector<1x32x128xf32>
    %684 = vector.shape_cast %683 : vector<1x32x128xf32> to vector<32x128xf32>
    %cst_273 = arith.constant dense<0.000000e+00> : vector<8x128xf32>
    %685 = tpu.matmul %655, %684, %cst_273 {dimension_numbers = #tpu.dot_dimension_numbers<[1], [0], [0], [1], [0, 0, 1, 1], [], []>} : vector<8x32xf32>, vector<32x128xf32>, vector<8x128xf32> -> vector<8x128xf32>
    %686 = arith.addf %682, %685 : vector<8x128xf32>
    %687 = arith.negf %686 : vector<8x128xf32>
    %688 = math.exp %687 : vector<8x128xf32>
    %cst_274 = arith.constant 1.000000e+00 : f32
    %689 = vector.broadcast %cst_274 : f32 to vector<8x128xf32>
    %690 = arith.addf %689, %688 : vector<8x128xf32>
    %691 = arith.divf %689, %690 : vector<8x128xf32>
    %692 = math.tanh %686 : vector<8x128xf32>
    %693 = vector.extract_strided_slice %691 {offsets = [0, 0], sizes = [8, 32], strides = [1, 1]} : vector<8x128xf32> to vector<8x32xf32>
    %694 = vector.extract_strided_slice %691 {offsets = [0, 32], sizes = [8, 32], strides = [1, 1]} : vector<8x128xf32> to vector<8x32xf32>
    %695 = vector.extract_strided_slice %691 {offsets = [0, 96], sizes = [8, 32], strides = [1, 1]} : vector<8x128xf32> to vector<8x32xf32>
    %696 = vector.extract_strided_slice %692 {offsets = [0, 64], sizes = [8, 32], strides = [1, 1]} : vector<8x128xf32> to vector<8x32xf32>
    %697 = arith.mulf %694, %653 : vector<8x32xf32>
    %698 = arith.mulf %693, %696 : vector<8x32xf32>
    %699 = arith.addf %697, %698 : vector<8x32xf32>
    %700 = math.tanh %699 : vector<8x32xf32>
    %701 = arith.mulf %695, %700 : vector<8x32xf32>
    %c2_275 = arith.constant 2 : index
    %c0_276 = arith.constant 0 : index
    %c0_277 = arith.constant 0 : index
    %702 = vector.load %arg3[%c2_275, %c0_276, %c0_277] : memref<3x32x128xf32, #tpu.memory_space<vmem>>, vector<1x32x128xf32>
    %703 = vector.shape_cast %702 : vector<1x32x128xf32> to vector<32x128xf32>
    %cst_278 = arith.constant dense<0.000000e+00> : vector<8x128xf32>
    %704 = tpu.matmul %655, %703, %cst_278 {dimension_numbers = #tpu.dot_dimension_numbers<[1], [0], [0], [1], [0, 0, 1, 1], [], []>} : vector<8x32xf32>, vector<32x128xf32>, vector<8x128xf32> -> vector<8x128xf32>
    %705 = arith.addf %704, %21 : vector<8x128xf32>
    %c3_279 = arith.constant 3 : index
    %c0_280 = arith.constant 0 : index
    %c0_281 = arith.constant 0 : index
    %706 = vector.load %arg4[%c3_279, %c0_280, %c0_281] : memref<4x32x128xf32, #tpu.memory_space<vmem>>, vector<1x32x128xf32>
    %707 = vector.shape_cast %706 : vector<1x32x128xf32> to vector<32x128xf32>
    %cst_282 = arith.constant dense<0.000000e+00> : vector<8x128xf32>
    %708 = tpu.matmul %678, %707, %cst_282 {dimension_numbers = #tpu.dot_dimension_numbers<[1], [0], [0], [1], [0, 0, 1, 1], [], []>} : vector<8x32xf32>, vector<32x128xf32>, vector<8x128xf32> -> vector<8x128xf32>
    %709 = arith.addf %705, %708 : vector<8x128xf32>
    %710 = arith.negf %709 : vector<8x128xf32>
    %711 = math.exp %710 : vector<8x128xf32>
    %cst_283 = arith.constant 1.000000e+00 : f32
    %712 = vector.broadcast %cst_283 : f32 to vector<8x128xf32>
    %713 = arith.addf %712, %711 : vector<8x128xf32>
    %714 = arith.divf %712, %713 : vector<8x128xf32>
    %715 = math.tanh %709 : vector<8x128xf32>
    %716 = vector.extract_strided_slice %714 {offsets = [0, 0], sizes = [8, 32], strides = [1, 1]} : vector<8x128xf32> to vector<8x32xf32>
    %717 = vector.extract_strided_slice %714 {offsets = [0, 32], sizes = [8, 32], strides = [1, 1]} : vector<8x128xf32> to vector<8x32xf32>
    %718 = vector.extract_strided_slice %714 {offsets = [0, 96], sizes = [8, 32], strides = [1, 1]} : vector<8x128xf32> to vector<8x32xf32>
    %719 = vector.extract_strided_slice %715 {offsets = [0, 64], sizes = [8, 32], strides = [1, 1]} : vector<8x128xf32> to vector<8x32xf32>
    %720 = arith.mulf %717, %676 : vector<8x32xf32>
    %721 = arith.mulf %716, %719 : vector<8x32xf32>
    %722 = arith.addf %720, %721 : vector<8x32xf32>
    %723 = math.tanh %722 : vector<8x32xf32>
    %724 = arith.mulf %718, %723 : vector<8x32xf32>
    %c2_284 = arith.constant 2 : index
    %c0_285 = arith.constant 0 : index
    %c0_286 = arith.constant 0 : index
    %725 = vector.load %arg3[%c2_284, %c0_285, %c0_286] : memref<3x32x128xf32, #tpu.memory_space<vmem>>, vector<1x32x128xf32>
    %726 = vector.shape_cast %725 : vector<1x32x128xf32> to vector<32x128xf32>
    %cst_287 = arith.constant dense<0.000000e+00> : vector<8x128xf32>
    %727 = tpu.matmul %701, %726, %cst_287 {dimension_numbers = #tpu.dot_dimension_numbers<[1], [0], [0], [1], [0, 0, 1, 1], [], []>} : vector<8x32xf32>, vector<32x128xf32>, vector<8x128xf32> -> vector<8x128xf32>
    %728 = arith.addf %727, %21 : vector<8x128xf32>
    %c3_288 = arith.constant 3 : index
    %c0_289 = arith.constant 0 : index
    %c0_290 = arith.constant 0 : index
    %729 = vector.load %arg4[%c3_288, %c0_289, %c0_290] : memref<4x32x128xf32, #tpu.memory_space<vmem>>, vector<1x32x128xf32>
    %730 = vector.shape_cast %729 : vector<1x32x128xf32> to vector<32x128xf32>
    %cst_291 = arith.constant dense<0.000000e+00> : vector<8x128xf32>
    %731 = tpu.matmul %724, %730, %cst_291 {dimension_numbers = #tpu.dot_dimension_numbers<[1], [0], [0], [1], [0, 0, 1, 1], [], []>} : vector<8x32xf32>, vector<32x128xf32>, vector<8x128xf32> -> vector<8x128xf32>
    %732 = arith.addf %728, %731 : vector<8x128xf32>
    %733 = arith.negf %732 : vector<8x128xf32>
    %734 = math.exp %733 : vector<8x128xf32>
    %cst_292 = arith.constant 1.000000e+00 : f32
    %735 = vector.broadcast %cst_292 : f32 to vector<8x128xf32>
    %736 = arith.addf %735, %734 : vector<8x128xf32>
    %737 = arith.divf %735, %736 : vector<8x128xf32>
    %738 = math.tanh %732 : vector<8x128xf32>
    %739 = vector.extract_strided_slice %737 {offsets = [0, 0], sizes = [8, 32], strides = [1, 1]} : vector<8x128xf32> to vector<8x32xf32>
    %740 = vector.extract_strided_slice %737 {offsets = [0, 32], sizes = [8, 32], strides = [1, 1]} : vector<8x128xf32> to vector<8x32xf32>
    %741 = vector.extract_strided_slice %737 {offsets = [0, 96], sizes = [8, 32], strides = [1, 1]} : vector<8x128xf32> to vector<8x32xf32>
    %742 = vector.extract_strided_slice %738 {offsets = [0, 64], sizes = [8, 32], strides = [1, 1]} : vector<8x128xf32> to vector<8x32xf32>
    %743 = arith.mulf %740, %722 : vector<8x32xf32>
    %744 = arith.mulf %739, %742 : vector<8x32xf32>
    %745 = arith.addf %743, %744 : vector<8x32xf32>
    %746 = math.tanh %745 : vector<8x32xf32>
    %747 = arith.mulf %741, %746 : vector<8x32xf32>
    %c0_293 = arith.constant 0 : index
    %c0_294 = arith.constant 0 : index
    %748 = vector.load %arg6[%c0_293, %c0_294] : memref<1x32xf32, #tpu.memory_space<vmem>>, vector<1x32xf32>
    %749 = vector.broadcast %748 : vector<1x32xf32> to vector<8x32xf32>
    %750 = arith.mulf %747, %749 : vector<8x32xf32>
    %cst_295 = arith.constant dense<0.000000e+00> : vector<8xf32>
    %751 = vector.multi_reduction <add>, %750, %cst_295 [1] : vector<8x32xf32> to vector<8xf32>
    %752 = vector.shape_cast %751 : vector<8xf32> to vector<8x1xf32>
    %c0_296 = arith.constant 0 : index
    %c0_297 = arith.constant 0 : index
    %753 = vector.load %arg7[%c0_296, %c0_297] : memref<1x1xf32, #tpu.memory_space<vmem>>, vector<1x1xf32>
    %754 = vector.broadcast %753 : vector<1x1xf32> to vector<8x1xf32>
    %755 = arith.addf %752, %754 : vector<8x1xf32>
    %c0_298 = arith.constant 0 : index
    %c0_299 = arith.constant 0 : index
    %756 = vector.load %arg8[%c0_298, %c0_299] : memref<8x1xf32, #tpu.memory_space<vmem>>, vector<8x1xf32>
    tpu.vector_store %arg8[%c0_298, %c0_299], %755 {strides = array<i32>} : memref<8x1xf32, #tpu.memory_space<vmem>>, vector<8x1xf32>,
    return
  }
  func.func @transform_0(%arg0: i32) -> (i32, i32, i32) {
    %c0_i32 = arith.constant 0 : i32
    %c0_i32_0 = arith.constant 0 : i32
    %c0_i32_1 = arith.constant 0 : i32
    return %c0_i32, %arg0, %c0_i32_0 : i32, i32, i32
  }
  func.func @transform_1(%arg0: i32) -> (i32, i32) {
    %c0_i32 = arith.constant 0 : i32
    %c0_i32_0 = arith.constant 0 : i32
    %c0_i32_1 = arith.constant 0 : i32
    return %c0_i32, %c0_i32_0 : i32, i32
  }
  func.func @transform_2(%arg0: i32) -> (i32, i32, i32) {
    %c0_i32 = arith.constant 0 : i32
    %c0_i32_0 = arith.constant 0 : i32
    %c0_i32_1 = arith.constant 0 : i32
    %c0_i32_2 = arith.constant 0 : i32
    return %c0_i32, %c0_i32_0, %c0_i32_1 : i32, i32, i32
  }
  func.func @transform_3(%arg0: i32) -> (i32, i32, i32) {
    %c0_i32 = arith.constant 0 : i32
    %c0_i32_0 = arith.constant 0 : i32
    %c0_i32_1 = arith.constant 0 : i32
    %c0_i32_2 = arith.constant 0 : i32
    return %c0_i32, %c0_i32_0, %c0_i32_1 : i32, i32, i32
  }
  func.func @transform_4(%arg0: i32) -> (i32, i32, i32) {
    %c0_i32 = arith.constant 0 : i32
    %c0_i32_0 = arith.constant 0 : i32
    %c0_i32_1 = arith.constant 0 : i32
    %c0_i32_2 = arith.constant 0 : i32
    return %c0_i32, %c0_i32_0, %c0_i32_1 : i32, i32, i32
  }
  func.func @transform_5(%arg0: i32) -> (i32, i32) {
    %c0_i32 = arith.constant 0 : i32
    %c0_i32_0 = arith.constant 0 : i32
    %c0_i32_1 = arith.constant 0 : i32
    return %c0_i32, %c0_i32_0 : i32, i32
  }
  func.func @transform_6(%arg0: i32) -> (i32, i32) {
    %c0_i32 = arith.constant 0 : i32
    %c0_i32_0 = arith.constant 0 : i32
    %c0_i32_1 = arith.constant 0 : i32
    return %c0_i32, %c0_i32_0 : i32, i32
  }
  func.func @transform_7(%arg0: i32) -> (i32, i32) {
    %c0_i32 = arith.constant 0 : i32
    %c0_i32_0 = arith.constant 0 : i32
    return %arg0, %c0_i32 : i32, i32
  }
}

</mosaic_0001>

<llo_original>
// kernel: sequence_forward.1
$region0: #{sequence_forward.1}
  #allocation0 [shape = 'u32[]', space=smem, size = 0x4, offset = 0x4, fixed_abs, tag = 'smem constant byte address 0x4 - core index']
  #allocation1 [shape = 'u32[144,128]{1,0:T(1,128)}', space=vmem, size = 0x12000, scoped, tag = 'internal scratch']
  #allocation2 [shape = 'f32[8,8,128]{2,1,0:T(8,128)}', space=vmem, size = 0x8000, scoped, tag = 'scratch operand']
  #allocation3 [shape = 'f32[1,1]{1,0:T(1,128)S(1)}', space=vmem, size = 0x200, scoped, tag = 'scoped memory for sequence_forward.1']
  %s0 = inlined_call_operand.vmem [shape: f32[8,8,8], index: 0, kind: input, shape index: {}]
  %s1 = inlined_call_operand.vmem [shape: f32[8,128], index: 1, kind: input, shape index: {}]
  %s2 = inlined_call_operand.vmem [shape: f32[3,32,128], index: 2, kind: input, shape index: {}]
  %s3 = inlined_call_operand.vmem [shape: f32[4,32,128], index: 3, kind: input, shape index: {}]
  %s4 = inlined_call_operand.vmem [shape: f32[4,1,128], index: 4, kind: input, shape index: {}]
  %s5 = inlined_call_operand.vmem [shape: f32[1,32], index: 5, kind: input, shape index: {}]
  %s6 = inlined_call_operand.<no memory space> [shape: f32[1,1], index: 6, kind: input, shape index: {}]
  %s7 = inlined_call_operand.vmem [shape: f32[8,1], index: 7, kind: output, shape index: {}]
  %s8 = sld [smem:[#allocation0]]
  $region38: #{sequence_forward.1} parent=0
    _
  %s10 = ssub.s32 1, %s8
  %s11 = scalar_select 0, %s10, %s8
  %v12 = vstv %s6
  %13 = vst [vmem:[#allocation3] sm:$0x1] %v12
  // Predicated region
  $region2: #{sequence_forward.1} parent=0 // pred_check
    _
  $region3: #{sequence_forward.1} parent=0 // pred_check_branch
    %15 = sbr.rel (0) target = $region5
  $region4: #{sequence_forward.1} parent=0 // pred_region
    _
  $region5: #{sequence_forward.1} parent=0 // pred_fallthru
    _
  // Predicated region
  $region6: #{sequence_forward.1} parent=0 // pred_check
    _
  $region7: #{sequence_forward.1} parent=0 // pred_check_branch
    %17 = sbr.rel (0) target = $region9
  $region8: #{sequence_forward.1} parent=0 // pred_region
    _
  $region9: #{sequence_forward.1} parent=0 // pred_fallthru
    _
  // Predicated region
  $region10: #{sequence_forward.1} parent=0 // pred_check
    _
  $region11: #{sequence_forward.1} parent=0 // pred_check_branch
    %19 = sbr.rel (0) target = $region13
  $region12: #{sequence_forward.1} parent=0 // pred_region
    _
  $region13: #{sequence_forward.1} parent=0 // pred_fallthru
    _
  // Predicated region
  $region14: #{sequence_forward.1} parent=0 // pred_check
    _
  $region15: #{sequence_forward.1} parent=0 // pred_check_branch
    %21 = sbr.rel (0) target = $region17
  $region16: #{sequence_forward.1} parent=0 // pred_region
    _
  $region17: #{sequence_forward.1} parent=0 // pred_fallthru
    _
  // Predicated region
  $region18: #{sequence_forward.1} parent=0 // pred_check
    _
  $region19: #{sequence_forward.1} parent=0 // pred_check_branch
    %23 = sbr.rel (0) target = $region21
  $region20: #{sequence_forward.1} parent=0 // pred_region
    _
  $region21: #{sequence_forward.1} parent=0 // pred_fallthru
    _
  // Predicated region
  $region22: #{sequence_forward.1} parent=0 // pred_check
    _
  $region23: #{sequence_forward.1} parent=0 // pred_check_branch
    %25 = sbr.rel (0) target = $region25
  $region24: #{sequence_forward.1} parent=0 // pred_region
    _
  $region25: #{sequence_forward.1} parent=0 // pred_fallthru
    _
  // Predicated region
  $region26: #{sequence_forward.1} parent=0 // pred_check
    _
  $region27: #{sequence_forward.1} parent=0 // pred_check_branch
    %27 = sbr.rel (0) target = $region29
  $region28: #{sequence_forward.1} parent=0 // pred_region
    _
  $region29: #{sequence_forward.1} parent=0 // pred_fallthru
    _
  %v28 = vld [vmem:[%s0] sm:$0xff]
  %v29 = vld [vmem:[%s0 + $0x8] sm:$0xff]
  %v30 = vld [vmem:[%s0 + $0x10] sm:$0xff]
  %v31 = vld [vmem:[%s0 + $0x18] sm:$0xff]
  %v32 = vld [vmem:[%s0 + $0x20] sm:$0xff]
  %v33 = vld [vmem:[%s0 + $0x28] sm:$0xff]
  %v34 = vld [vmem:[%s0 + $0x30] sm:$0xff]
  %v35 = vld [vmem:[%s0 + $0x38] sm:$0xff]
  %v36 = vld [vmem:[%s1] sm:$0xff]
  %v37 = vld [vmem:[%s4] sm:$0x1]
  %v39 = vlaneseq
  %v40 = vshrl.u32 %v39, 7
  %v41 = vsub.s32 0, %v40
  %v42 = vrot.slane %v37, %v41
  %vm44 = vcmask 64512
  %v46 = vsel %vm44, %v28, 0
  %v49 = vsel %vm44, %v29, 0
  %v52 = vsel %vm44, %v30, 0
  %v55 = vsel %vm44, %v31, 0
  %v58 = vsel %vm44, %v32, 0
  %v61 = vsel %vm44, %v33, 0
  %v64 = vsel %vm44, %v34, 0
  %v67 = vsel %vm44, %v35, 0
  %69 = vmatprep.subr.mxu0 0.0
  %70 = vmatpush1.msra.mxu0 %v36
  %71 = vmatprep.subr.mxu0 0.0
  %72 = vmatpush1.msra.mxu0 0.0
  %73 = vmatprep.subr.mxu0 0.0
  %74 = vmatpush1.msra.mxu0 0.0
  %75 = vmatprep.subr.mxu0 0.0
  %76 = vmatpush1.msra.mxu0 0.0
  %77 = vmatprep.subr.mxu0 0.0
  %78 = vmatpush1.msra.mxu0 0.0
  %79 = vmatprep.subr.mxu0 0.0
  %80 = vmatpush1.msra.mxu0 0.0
  %81 = vmatprep.subr.mxu0 0.0
  %82 = vmatpush1.msra.mxu0 0.0
  %83 = vmatprep.subr.mxu0 0.0
  %84 = vmatpush1.msra.mxu0 0.0
  %85 = vmatprep.subr.mxu0 0.0
  %86 = vmatpush1.msra.mxu0 0.0
  %87 = vmatprep.subr.mxu0 0.0
  %88 = vmatpush1.msra.mxu0 0.0
  %89 = vmatprep.subr.mxu0 0.0
  %90 = vmatpush1.msra.mxu0 0.0
  %91 = vmatprep.subr.mxu0 0.0
  %92 = vmatpush1.msra.mxu0 0.0
  %93 = vmatprep.subr.mxu0 0.0
  %94 = vmatpush1.msra.mxu0 0.0
  %95 = vmatprep.subr.mxu0 0.0
  %96 = vmatpush1.msra.mxu0 0.0
  %97 = vmatprep.subr.mxu0 0.0
  %98 = vmatpush1.msra.mxu0 0.0
  %99 = vmatprep.subr.mxu0 0.0
  %100 = vmatpush1.msra.mxu0 0.0
  %101 = vmatprep.subr.mxu0 0.0
  %102 = vmatpush1.msra.mxu0 0.0
  %103 = vmatprep.subr.mxu0 0.0
  %104 = vmatpush1.msra.mxu0 0.0
  %105 = vmatprep.subr.mxu0 0.0
  %106 = vmatpush1.msra.mxu0 0.0
  %107 = vmatprep.subr.mxu0 0.0
  %108 = vmatpush1.msra.mxu0 0.0
  %109 = vmatprep.subr.mxu0 0.0
  %110 = vmatpush1.msra.mxu0 0.0
  %111 = vmatprep.subr.mxu0 0.0
  %112 = vmatpush1.msra.mxu0 0.0
  %113 = vmatprep.subr.mxu0 0.0
  %114 = vmatpush1.msra.mxu0 0.0
  %115 = vmatprep.subr.mxu0 0.0
  %116 = vmatpush1.msra.mxu0 0.0
  %117 = vmatprep.subr.mxu0 0.0
  %118 = vmatpush1.msra.mxu0 0.0
  %119 = vmatprep.subr.mxu0 0.0
  %120 = vmatpush1.msra.mxu0 0.0
  %121 = vmatprep.subr.mxu0 0.0
  %122 = vmatpush1.msra.mxu0 0.0
  %123 = vmatprep.subr.mxu0 0.0
  %124 = vmatpush1.msra.mxu0 0.0
  %125 = vmatprep.subr.mxu0 0.0
  %126 = vmatpush1.msra.mxu0 0.0
  %127 = vmatprep.subr.mxu0 0.0
  %128 = vmatpush1.msra.mxu0 0.0
  %129 = vmatprep.subr.mxu0 0.0
  %130 = vmatpush1.msra.mxu0 0.0
  %131 = vmatprep.subr.mxu0 0.0
  %132 = vmatpush1.msra.mxu0 0.0
  %133 = vmatprep.mubr.f32.mxu0 0.0
  %134 = vmatmul.mubr.f32.gmra.mrb[0].mxu0 %v46
  %v135 = vpop.f32.mrb[0].mxu0
  %v136 = vadd.f32 %v42, %v135
  %v137 = vpop.f32.mrb[0].mxu0
  %138 = vmatprep.mubr.f32.mxu0 0.0
  %139 = vmatmul.mubr.f32.gmra.mrb[0].mxu0 %v49
  %v140 = vpop.f32.mrb[0].mxu0
  %v141 = vadd.f32 %v42, %v140
  %v142 = vpop.f32.mrb[0].mxu0
  %143 = vmatprep.mubr.f32.mxu0 0.0
  %144 = vmatmul.mubr.f32.gmra.mrb[0].mxu0 %v52
  %v145 = vpop.f32.mrb[0].mxu0
  %v146 = vadd.f32 %v42, %v145
  %v147 = vpop.f32.mrb[0].mxu0
  %148 = vmatprep.mubr.f32.mxu0 0.0
  %149 = vmatmul.mubr.f32.gmra.mrb[0].mxu0 %v55
  %v150 = vpop.f32.mrb[0].mxu0
  %v151 = vadd.f32 %v42, %v150
  %v152 = vpop.f32.mrb[0].mxu0
  %153 = vmatprep.mubr.f32.mxu0 0.0
  %154 = vmatmul.mubr.f32.gmra.mrb[0].mxu0 %v58
  %v155 = vpop.f32.mrb[0].mxu0
  %v156 = vadd.f32 %v42, %v155
  %v157 = vpop.f32.mrb[0].mxu0
  %158 = vmatprep.mubr.f32.mxu0 0.0
  %159 = vmatmul.mubr.f32.gmra.mrb[0].mxu0 %v61
  %v160 = vpop.f32.mrb[0].mxu0
  %v161 = vadd.f32 %v42, %v160
  %v162 = vpop.f32.mrb[0].mxu0
  %163 = vmatprep.mubr.f32.mxu0 0.0
  %164 = vmatmul.mubr.f32.gmra.mrb[0].mxu0 %v64
  %v165 = vpop.f32.mrb[0].mxu0
  %v166 = vadd.f32 %v42, %v165
  %v167 = vpop.f32.mrb[0].mxu0
  %168 = vmatprep.mubr.f32.mxu0 0.0
  %169 = vmatmul.mubr.f32.gmra.mrb[0].mxu0 %v67
  %v170 = vpop.f32.mrb[0].mxu0
  %v171 = vadd.f32 %v42, %v170
  %v172 = vpop.f32.mrb[0].mxu0
  %173 = vdwg.mxu0
  %174 = vst [vmem:[#allocation2] sm:$0xff] %v136
  %175 = vst [vmem:[#allocation2 + $0x8] sm:$0xff] %v141
  %176 = vst [vmem:[#allocation2 + $0x10] sm:$0xff] %v146
  %177 = vst [vmem:[#allocation2 + $0x18] sm:$0xff] %v151
  %178 = vst [vmem:[#allocation2 + $0x20] sm:$0xff] %v156
  %179 = vst [vmem:[#allocation2 + $0x28] sm:$0xff] %v161
  %180 = vst [vmem:[#allocation2 + $0x30] sm:$0xff] %v166
  %181 = vst [vmem:[#allocation2 + $0x38] sm:$0xff] %v171
  %s182 = scalar_lea.vmem %s4, 1
  %v183 = vld [vmem:[%s182] sm:$0x1]
  %v185 = vlaneseq
  %v186 = vshrl.u32 %v185, 7
  %v187 = vsub.s32 0, %v186
  %v188 = vrot.slane %v183, %v187
  %s190 = scalar_lea.vmem %s4, 2
  %v191 = vld [vmem:[%s190] sm:$0x1]
  %v193 = vlaneseq
  %v194 = vshrl.u32 %v193, 7
  %v195 = vsub.s32 0, %v194
  %v196 = vrot.slane %v191, %v195
  %s198 = scalar_lea.vmem %s4, 3
  %v199 = vld [vmem:[%s198] sm:$0x1]
  %v201 = vlaneseq
  %v202 = vshrl.u32 %v201, 7
  %v203 = vsub.s32 0, %v202
  %v204 = vrot.slane %v199, %v203
  %v206 = vld [vmem:[#allocation2] sm:$0xff]
  %v207 = vld [vmem:[%s3] sm:$0xff]
  %v208 = vld [vmem:[%s3 + $0x8] sm:$0xff]
  %v209 = vld [vmem:[%s3 + $0x10] sm:$0xff]
  %v210 = vld [vmem:[%s3 + $0x18] sm:$0xff]
  %vm211 = vcmask 261120
  %v213 = vsel %vm211, 0.0, 0
  %215 = vmatprep.subr.mxu0 0.0
  %216 = vmatpush1.msra.mxu0 %v207
  %217 = vmatprep.subr.mxu0 0.0
  %218 = vmatpush1.msra.mxu0 %v208
  %219 = vmatprep.subr.mxu0 0.0
  %220 = vmatpush1.msra.mxu0 %v209
  %221 = vmatprep.subr.mxu0 0.0
  %222 = vmatpush1.msra.mxu0 %v210
  %223 = vmatprep.subr.mxu0 0.0
  %224 = vmatpush1.msra.mxu0 0.0
  %225 = vmatprep.subr.mxu0 0.0
  %226 = vmatpush1.msra.mxu0 0.0
  %227 = vmatprep.subr.mxu0 0.0
  %228 = vmatpush1.msra.mxu0 0.0
  %229 = vmatprep.subr.mxu0 0.0
  %230 = vmatpush1.msra.mxu0 0.0
  %231 = vmatprep.subr.mxu0 0.0
  %232 = vmatpush1.msra.mxu0 0.0
  %233 = vmatprep.subr.mxu0 0.0
  %234 = vmatpush1.msra.mxu0 0.0
  %235 = vmatprep.subr.mxu0 0.0
  %236 = vmatpush1.msra.mxu0 0.0
  %237 = vmatprep.subr.mxu0 0.0
  %238 = vmatpush1.msra.mxu0 0.0
  %239 = vmatprep.subr.mxu0 0.0
  %240 = vmatpush1.msra.mxu0 0.0
  %241 = vmatprep.subr.mxu0 0.0
  %242 = vmatpush1.msra.mxu0 0.0
  %243 = vmatprep.subr.mxu0 0.0
  %244 = vmatpush1.msra.mxu0 0.0
  %245 = vmatprep.subr.mxu0 0.0
  %246 = vmatpush1.msra.mxu0 0.0
  %247 = vmatprep.subr.mxu0 0.0
  %248 = vmatpush1.msra.mxu0 0.0
  %249 = vmatprep.subr.mxu0 0.0
  %250 = vmatpush1.msra.mxu0 0.0
  %251 = vmatprep.subr.mxu0 0.0
  %252 = vmatpush1.msra.mxu0 0.0
  %253 = vmatprep.subr.mxu0 0.0
  %254 = vmatpush1.msra.mxu0 0.0
  %255 = vmatprep.subr.mxu0 0.0
  %256 = vmatpush1.msra.mxu0 0.0
  %257 = vmatprep.subr.mxu0 0.0
  %258 = vmatpush1.msra.mxu0 0.0
  %259 = vmatprep.subr.mxu0 0.0
  %260 = vmatpush1.msra.mxu0 0.0
  %261 = vmatprep.subr.mxu0 0.0
  %262 = vmatpush1.msra.mxu0 0.0
  %263 = vmatprep.subr.mxu0 0.0
  %264 = vmatpush1.msra.mxu0 0.0
  %265 = vmatprep.subr.mxu0 0.0
  %266 = vmatpush1.msra.mxu0 0.0
  %267 = vmatprep.subr.mxu0 0.0
  %268 = vmatpush1.msra.mxu0 0.0
  %269 = vmatprep.subr.mxu0 0.0
  %270 = vmatpush1.msra.mxu0 0.0
  %271 = vmatprep.subr.mxu0 0.0
  %272 = vmatpush1.msra.mxu0 0.0
  %273 = vmatprep.subr.mxu0 0.0
  %274 = vmatpush1.msra.mxu0 0.0
  %275 = vmatprep.subr.mxu0 0.0
  %276 = vmatpush1.msra.mxu0 0.0
  %277 = vmatprep.subr.mxu0 0.0
  %278 = vmatpush1.msra.mxu0 0.0
  %279 = vmatprep.mubr.f32.mxu0 0.0
  %280 = vmatmul.mubr.f32.gmra.mrb[0].mxu0 %v213
  %v281 = vpop.f32.mrb[0].mxu0
  %v282 = vadd.f32 0.0, %v281
  %v283 = vpop.f32.mrb[0].mxu0
  %284 = vdwg.mxu0
  %v285 = vadd.f32 %v206, %v282
  %v286 = vxor.u32 %v285, 2147483648
  %v287 = vmul.f32 %v286, 1.442695
  %v288 = vpow.pop %v287
  %v289 = vadd.f32 %v288, 1.0
  %v290 = vrcp.pop %v289
  %v291 = vmul.f32 1.0, %v290
  %v292 = vtanh.pop %v285
  %v293 = vmul.f32 %v291, 0.0
  %295 = vrot.lane.b32.xlu0 %v292, 64
  %v296 = vpop.permute.xlu0 %295
  %v298 = vmul.f32 %v291, %v296
  %300 = vrot.lane.b32.xlu0 %v298, 32
  %v301 = vpop.permute.xlu0 %300
  %v303 = vadd.f32 %v293, %v301
  %v304 = vtanh.pop %v303
  %306 = vrot.lane.b32.xlu0 %v304, 64
  %v307 = vpop.permute.xlu0 %306
  %v309 = vmul.f32 %v291, %v307
  %s310 = scalar_lea.vmem [#allocation2], 8
  %v311 = vld [vmem:[%s310] sm:$0xff]
  %313 = vrot.lane.b32.xlu0 %v309, 32
  %v314 = vpop.permute.xlu0 %313
  %v315 = vsel %vm211, %v314, 0
  %317 = vmatprep.subr.mxu0 0.0
  %318 = vmatpush1.msra.mxu0 %v207
  %319 = vmatprep.subr.mxu0 0.0
  %320 = vmatpush1.msra.mxu0 %v208
  %321 = vmatprep.subr.mxu0 0.0
  %322 = vmatpush1.msra.mxu0 %v209
  %323 = vmatprep.subr.mxu0 0.0
  %324 = vmatpush1.msra.mxu0 %v210
  %325 = vmatprep.subr.mxu0 0.0
  %326 = vmatpush1.msra.mxu0 0.0
  %327 = vmatprep.subr.mxu0 0.0
  %328 = vmatpush1.msra.mxu0 0.0
  %329 = vmatprep.subr.mxu0 0.0
  %330 = vmatpush1.msra.mxu0 0.0
  %331 = vmatprep.subr.mxu0 0.0
  %332 = vmatpush1.msra.mxu0 0.0
  %333 = vmatprep.subr.mxu0 0.0
  %334 = vmatpush1.msra.mxu0 0.0
  %335 = vmatprep.subr.mxu0 0.0
  %336 = vmatpush1.msra.mxu0 0.0
  %337 = vmatprep.subr.mxu0 0.0
  %338 = vmatpush1.msra.mxu0 0.0
  %339 = vmatprep.subr.mxu0 0.0
  %340 = vmatpush1.msra.mxu0 0.0
  %341 = vmatprep.subr.mxu0 0.0
  %342 = vmatpush1.msra.mxu0 0.0
  %343 = vmatprep.subr.mxu0 0.0
  %344 = vmatpush1.msra.mxu0 0.0
  %345 = vmatprep.subr.mxu0 0.0
  %346 = vmatpush1.msra.mxu0 0.0
  %347 = vmatprep.subr.mxu0 0.0
  %348 = vmatpush1.msra.mxu0 0.0
  %349 = vmatprep.subr.mxu0 0.0
  %350 = vmatpush1.msra.mxu0 0.0
  %351 = vmatprep.subr.mxu0 0.0
  %352 = vmatpush1.msra.mxu0 0.0
  %353 = vmatprep.subr.mxu0 0.0
  %354 = vmatpush1.msra.mxu0 0.0
  %355 = vmatprep.subr.mxu0 0.0
  %356 = vmatpush1.msra.mxu0 0.0
  %357 = vmatprep.subr.mxu0 0.0
  %358 = vmatpush1.msra.mxu0 0.0
  %359 = vmatprep.subr.mxu0 0.0
  %360 = vmatpush1.msra.mxu0 0.0
  %361 = vmatprep.subr.mxu0 0.0
  %362 = vmatpush1.msra.mxu0 0.0
  %363 = vmatprep.subr.mxu0 0.0
  %364 = vmatpush1.msra.mxu0 0.0
  %365 = vmatprep.subr.mxu0 0.0
  %366 = vmatpush1.msra.mxu0 0.0
  %367 = vmatprep.subr.mxu0 0.0
  %368 = vmatpush1.msra.mxu0 0.0
  %369 = vmatprep.subr.mxu0 0.0
  %370 = vmatpush1.msra.mxu0 0.0
  %371 = vmatprep.subr.mxu0 0.0
  %372 = vmatpush1.msra.mxu0 0.0
  %373 = vmatprep.subr.mxu0 0.0
  %374 = vmatpush1.msra.mxu0 0.0
  %375 = vmatprep.subr.mxu0 0.0
  %376 = vmatpush1.msra.mxu0 0.0
  %377 = vmatprep.subr.mxu0 0.0
  %378 = vmatpush1.msra.mxu0 0.0
  %379 = vmatprep.subr.mxu0 0.0
  %380 = vmatpush1.msra.mxu0 0.0
  %381 = vmatprep.mubr.f32.mxu0 0.0
  %382 = vmatmul.mubr.f32.gmra.mrb[0].mxu0 %v315
  %v383 = vpop.f32.mrb[0].mxu0
  %v384 = vadd.f32 0.0, %v383
  %v385 = vpop.f32.mrb[0].mxu0
  %386 = vdwg.mxu0
  %v387 = vadd.f32 %v311, %v384
  %v388 = vxor.u32 %v387, 2147483648
  %v389 = vmul.f32 %v388, 1.442695
  %v390 = vpow.pop %v389
  %v391 = vadd.f32 %v390, 1.0
  %v392 = vrcp.pop %v391
  %v393 = vmul.f32 1.0, %v392
  %v394 = vtanh.pop %v387
  %v395 = vmul.f32 %v393, %v303
  %397 = vrot.lane.b32.xlu0 %v394, 64
  %v398 = vpop.permute.xlu0 %397
  %v400 = vmul.f32 %v393, %v398
  %402 = vrot.lane.b32.xlu0 %v400, 32
  %v403 = vpop.permute.xlu0 %402
  %v405 = vadd.f32 %v395, %v403
  %v406 = vtanh.pop %v405
  %408 = vrot.lane.b32.xlu0 %v406, 64
  %v409 = vpop.permute.xlu0 %408
  %v411 = vmul.f32 %v393, %v409
  %v412 = vld [vmem:[%s2] sm:$0xff]
  %v413 = vld [vmem:[%s2 + $0x8] sm:$0xff]
  %v414 = vld [vmem:[%s2 + $0x10] sm:$0xff]
  %v415 = vld [vmem:[%s2 + $0x18] sm:$0xff]
  %416 = vmatprep.subr.mxu0 0.0
  %417 = vmatpush1.msra.mxu0 %v412
  %418 = vmatprep.subr.mxu0 0.0
  %419 = vmatpush1.msra.mxu0 %v413
  %420 = vmatprep.subr.mxu0 0.0
  %421 = vmatpush1.msra.mxu0 %v414
  %422 = vmatprep.subr.mxu0 0.0
  %423 = vmatpush1.msra.mxu0 %v415
  %424 = vmatprep.subr.mxu0 0.0
  %425 = vmatpush1.msra.mxu0 0.0
  %426 = vmatprep.subr.mxu0 0.0
  %427 = vmatpush1.msra.mxu0 0.0
  %428 = vmatprep.subr.mxu0 0.0
  %429 = vmatpush1.msra.mxu0 0.0
  %430 = vmatprep.subr.mxu0 0.0
  %431 = vmatpush1.msra.mxu0 0.0
  %432 = vmatprep.subr.mxu0 0.0
  %433 = vmatpush1.msra.mxu0 0.0
  %434 = vmatprep.subr.mxu0 0.0
  %435 = vmatpush1.msra.mxu0 0.0
  %436 = vmatprep.subr.mxu0 0.0
  %437 = vmatpush1.msra.mxu0 0.0
  %438 = vmatprep.subr.mxu0 0.0
  %439 = vmatpush1.msra.mxu0 0.0
  %440 = vmatprep.subr.mxu0 0.0
  %441 = vmatpush1.msra.mxu0 0.0
  %442 = vmatprep.subr.mxu0 0.0
  %443 = vmatpush1.msra.mxu0 0.0
  %444 = vmatprep.subr.mxu0 0.0
  %445 = vmatpush1.msra.mxu0 0.0
  %446 = vmatprep.subr.mxu0 0.0
  %447 = vmatpush1.msra.mxu0 0.0
  %448 = vmatprep.subr.mxu0 0.0
  %449 = vmatpush1.msra.mxu0 0.0
  %450 = vmatprep.subr.mxu0 0.0
  %451 = vmatpush1.msra.mxu0 0.0
  %452 = vmatprep.subr.mxu0 0.0
  %453 = vmatpush1.msra.mxu0 0.0
  %454 = vmatprep.subr.mxu0 0.0
  %455 = vmatpush1.msra.mxu0 0.0
  %456 = vmatprep.subr.mxu0 0.0
  %457 = vmatpush1.msra.mxu0 0.0
  %458 = vmatprep.subr.mxu0 0.0
  %459 = vmatpush1.msra.mxu0 0.0
  %460 = vmatprep.subr.mxu0 0.0
  %461 = vmatpush1.msra.mxu0 0.0
  %462 = vmatprep.subr.mxu0 0.0
  %463 = vmatpush1.msra.mxu0 0.0
  %464 = vmatprep.subr.mxu0 0.0
  %465 = vmatpush1.msra.mxu0 0.0
  %466 = vmatprep.subr.mxu0 0.0
  %467 = vmatpush1.msra.mxu0 0.0
  %468 = vmatprep.subr.mxu0 0.0
  %469 = vmatpush1.msra.mxu0 0.0
  %470 = vmatprep.subr.mxu0 0.0
  %471 = vmatpush1.msra.mxu0 0.0
  %472 = vmatprep.subr.mxu0 0.0
  %473 = vmatpush1.msra.mxu0 0.0
  %474 = vmatprep.subr.mxu0 0.0
  %475 = vmatpush1.msra.mxu0 0.0
  %476 = vmatprep.subr.mxu0 0.0
  %477 = vmatpush1.msra.mxu0 0.0
  %478 = vmatprep.subr.mxu0 0.0
  %479 = vmatpush1.msra.mxu0 0.0
  %480 = vmatprep.mubr.f32.mxu0 0.0
  %481 = vmatmul.mubr.f32.gmra.mrb[0].mxu0 %v315
  %v482 = vpop.f32.mrb[0].mxu0
  %v483 = vadd.f32 %v188, %v482
  %v484 = vpop.f32.mrb[0].mxu0
  %485 = vdwg.mxu0
  %s486 = scalar_lea.vmem %s3, 32
  %v487 = vld [vmem:[%s486] sm:$0xff]
  %v488 = vld [vmem:[%s486 + $0x8] sm:$0xff]
  %v489 = vld [vmem:[%s486 + $0x10] sm:$0xff]
  %v490 = vld [vmem:[%s486 + $0x18] sm:$0xff]
  %491 = vmatprep.subr.mxu0 0.0
  %492 = vmatpush1.msra.mxu0 %v487
  %493 = vmatprep.subr.mxu0 0.0
  %494 = vmatpush1.msra.mxu0 %v488
  %495 = vmatprep.subr.mxu0 0.0
  %496 = vmatpush1.msra.mxu0 %v489
  %497 = vmatprep.subr.mxu0 0.0
  %498 = vmatpush1.msra.mxu0 %v490
  %499 = vmatprep.subr.mxu0 0.0
  %500 = vmatpush1.msra.mxu0 0.0
  %501 = vmatprep.subr.mxu0 0.0
  %502 = vmatpush1.msra.mxu0 0.0
  %503 = vmatprep.subr.mxu0 0.0
  %504 = vmatpush1.msra.mxu0 0.0
  %505 = vmatprep.subr.mxu0 0.0
  %506 = vmatpush1.msra.mxu0 0.0
  %507 = vmatprep.subr.mxu0 0.0
  %508 = vmatpush1.msra.mxu0 0.0
  %509 = vmatprep.subr.mxu0 0.0
  %510 = vmatpush1.msra.mxu0 0.0
  %511 = vmatprep.subr.mxu0 0.0
  %512 = vmatpush1.msra.mxu0 0.0
  %513 = vmatprep.subr.mxu0 0.0
  %514 = vmatpush1.msra.mxu0 0.0
  %515 = vmatprep.subr.mxu0 0.0
  %516 = vmatpush1.msra.mxu0 0.0
  %517 = vmatprep.subr.mxu0 0.0
  %518 = vmatpush1.msra.mxu0 0.0
  %519 = vmatprep.subr.mxu0 0.0
  %520 = vmatpush1.msra.mxu0 0.0
  %521 = vmatprep.subr.mxu0 0.0
  %522 = vmatpush1.msra.mxu0 0.0
  %523 = vmatprep.subr.mxu0 0.0
  %524 = vmatpush1.msra.mxu0 0.0
  %525 = vmatprep.subr.mxu0 0.0
  %526 = vmatpush1.msra.mxu0 0.0
  %527 = vmatprep.subr.mxu0 0.0
  %528 = vmatpush1.msra.mxu0 0.0
  %529 = vmatprep.subr.mxu0 0.0
  %530 = vmatpush1.msra.mxu0 0.0
  %531 = vmatprep.subr.mxu0 0.0
  %532 = vmatpush1.msra.mxu0 0.0
  %533 = vmatprep.subr.mxu0 0.0
  %534 = vmatpush1.msra.mxu0 0.0
  %535 = vmatprep.subr.mxu0 0.0
  %536 = vmatpush1.msra.mxu0 0.0
  %537 = vmatprep.subr.mxu0 0.0
  %538 = vmatpush1.msra.mxu0 0.0
  %539 = vmatprep.subr.mxu0 0.0
  %540 = vmatpush1.msra.mxu0 0.0
  %541 = vmatprep.subr.mxu0 0.0
  %542 = vmatpush1.msra.mxu0 0.0
  %543 = vmatprep.subr.mxu0 0.0
  %544 = vmatpush1.msra.mxu0 0.0
  %545 = vmatprep.subr.mxu0 0.0
  %546 = vmatpush1.msra.mxu0 0.0
  %547 = vmatprep.subr.mxu0 0.0
  %548 = vmatpush1.msra.mxu0 0.0
  %549 = vmatprep.subr.mxu0 0.0
  %550 = vmatpush1.msra.mxu0 0.0
  %551 = vmatprep.subr.mxu0 0.0
  %552 = vmatpush1.msra.mxu0 0.0
  %553 = vmatprep.subr.mxu0 0.0
  %554 = vmatpush1.msra.mxu0 0.0
  %555 = vmatprep.mubr.f32.mxu0 0.0
  %556 = vmatmul.mubr.f32.gmra.mrb[0].mxu0 %v213
  %v557 = vpop.f32.mrb[0].mxu0
  %v558 = vadd.f32 0.0, %v557
  %v559 = vpop.f32.mrb[0].mxu0
  %560 = vdwg.mxu0
  %v561 = vadd.f32 %v483, %v558
  %v562 = vxor.u32 %v561, 2147483648
  %v563 = vmul.f32 %v562, 1.442695
  %v564 = vpow.pop %v563
  %v565 = vadd.f32 %v564, 1.0
  %v566 = vrcp.pop %v565
  %v567 = vmul.f32 1.0, %v566
  %v568 = vtanh.pop %v561
  %v569 = vmul.f32 %v567, 0.0
  %571 = vrot.lane.b32.xlu0 %v568, 64
  %v572 = vpop.permute.xlu0 %571
  %v574 = vmul.f32 %v567, %v572
  %576 = vrot.lane.b32.xlu0 %v574, 32
  %v577 = vpop.permute.xlu0 %576
  %v579 = vadd.f32 %v569, %v577
  %v580 = vtanh.pop %v579
  %582 = vrot.lane.b32.xlu0 %v580, 64
  %v583 = vpop.permute.xlu0 %582
  %v585 = vmul.f32 %v567, %v583
  %s586 = scalar_lea.vmem [#allocation2], 16
  %v587 = vld [vmem:[%s586] sm:$0xff]
  %589 = vrot.lane.b32.xlu0 %v411, 32
  %v590 = vpop.permute.xlu0 %589
  %v591 = vsel %vm211, %v590, 0
  %593 = vmatprep.subr.mxu0 0.0
  %594 = vmatpush1.msra.mxu0 %v207
  %595 = vmatprep.subr.mxu0 0.0
  %596 = vmatpush1.msra.mxu0 %v208
  %597 = vmatprep.subr.mxu0 0.0
  %598 = vmatpush1.msra.mxu0 %v209
  %599 = vmatprep.subr.mxu0 0.0
  %600 = vmatpush1.msra.mxu0 %v210
  %601 = vmatprep.subr.mxu0 0.0
  %602 = vmatpush1.msra.mxu0 0.0
  %603 = vmatprep.subr.mxu0 0.0
  %604 = vmatpush1.msra.mxu0 0.0
  %605 = vmatprep.subr.mxu0 0.0
  %606 = vmatpush1.msra.mxu0 0.0
  %607 = vmatprep.subr.mxu0 0.0
  %608 = vmatpush1.msra.mxu0 0.0
  %609 = vmatprep.subr.mxu0 0.0
  %610 = vmatpush1.msra.mxu0 0.0
  %611 = vmatprep.subr.mxu0 0.0
  %612 = vmatpush1.msra.mxu0 0.0
  %613 = vmatprep.subr.mxu0 0.0
  %614 = vmatpush1.msra.mxu0 0.0
  %615 = vmatprep.subr.mxu0 0.0
  %616 = vmatpush1.msra.mxu0 0.0
  %617 = vmatprep.subr.mxu0 0.0
  %618 = vmatpush1.msra.mxu0 0.0
  %619 = vmatprep.subr.mxu0 0.0
  %620 = vmatpush1.msra.mxu0 0.0
  %621 = vmatprep.subr.mxu0 0.0
  %622 = vmatpush1.msra.mxu0 0.0
  %623 = vmatprep.subr.mxu0 0.0
  %624 = vmatpush1.msra.mxu0 0.0
  %625 = vmatprep.subr.mxu0 0.0
  %626 = vmatpush1.msra.mxu0 0.0
  %627 = vmatprep.subr.mxu0 0.0
  %628 = vmatpush1.msra.mxu0 0.0
  %629 = vmatprep.subr.mxu0 0.0
  %630 = vmatpush1.msra.mxu0 0.0
  %631 = vmatprep.subr.mxu0 0.0
  %632 = vmatpush1.msra.mxu0 0.0
  %633 = vmatprep.subr.mxu0 0.0
  %634 = vmatpush1.msra.mxu0 0.0
  %635 = vmatprep.subr.mxu0 0.0
  %636 = vmatpush1.msra.mxu0 0.0
  %637 = vmatprep.subr.mxu0 0.0
  %638 = vmatpush1.msra.mxu0 0.0
  %639 = vmatprep.subr.mxu0 0.0
  %640 = vmatpush1.msra.mxu0 0.0
  %641 = vmatprep.subr.mxu0 0.0
  %642 = vmatpush1.msra.mxu0 0.0
  %643 = vmatprep.subr.mxu0 0.0
  %644 = vmatpush1.msra.mxu0 0.0
  %645 = vmatprep.subr.mxu0 0.0
  %646 = vmatpush1.msra.mxu0 0.0
  %647 = vmatprep.subr.mxu0 0.0
  %648 = vmatpush1.msra.mxu0 0.0
  %649 = vmatprep.subr.mxu0 0.0
  %650 = vmatpush1.msra.mxu0 0.0
  %651 = vmatprep.subr.mxu0 0.0
  %652 = vmatpush1.msra.mxu0 0.0
  %653 = vmatprep.subr.mxu0 0.0
  %654 = vmatpush1.msra.mxu0 0.0
  %655 = vmatprep.subr.mxu0 0.0
  %656 = vmatpush1.msra.mxu0 0.0
  %657 = vmatprep.mubr.f32.mxu0 0.0
  %658 = vmatmul.mubr.f32.gmra.mrb[0].mxu0 %v591
  %v659 = vpop.f32.mrb[0].mxu0
  %v660 = vadd.f32 0.0, %v659
  %v661 = vpop.f32.mrb[0].mxu0
  %662 = vdwg.mxu0
  %v663 = vadd.f32 %v587, %v660
  %v664 = vxor.u32 %v663, 2147483648
  %v665 = vmul.f32 %v664, 1.442695
  %v666 = vpow.pop %v665
  %v667 = vadd.f32 %v666, 1.0
  %v668 = vrcp.pop %v667
  %v669 = vmul.f32 1.0, %v668
  %v670 = vtanh.pop %v663
  %v671 = vmul.f32 %v669, %v405
  %673 = vrot.lane.b32.xlu0 %v670, 64
  %v674 = vpop.permute.xlu0 %673
  %v676 = vmul.f32 %v669, %v674
  %678 = vrot.lane.b32.xlu0 %v676, 32
  %v679 = vpop.permute.xlu0 %678
  %v681 = vadd.f32 %v671, %v679
  %v682 = vtanh.pop %v681
  %684 = vrot.lane.b32.xlu0 %v682, 64
  %v685 = vpop.permute.xlu0 %684
  %v687 = vmul.f32 %v669, %v685
  %688 = vmatprep.subr.mxu0 0.0
  %689 = vmatpush1.msra.mxu0 %v412
  %690 = vmatprep.subr.mxu0 0.0
  %691 = vmatpush1.msra.mxu0 %v413
  %692 = vmatprep.subr.mxu0 0.0
  %693 = vmatpush1.msra.mxu0 %v414
  %694 = vmatprep.subr.mxu0 0.0
  %695 = vmatpush1.msra.mxu0 %v415
  %696 = vmatprep.subr.mxu0 0.0
  %697 = vmatpush1.msra.mxu0 0.0
  %698 = vmatprep.subr.mxu0 0.0
  %699 = vmatpush1.msra.mxu0 0.0
  %700 = vmatprep.subr.mxu0 0.0
  %701 = vmatpush1.msra.mxu0 0.0
  %702 = vmatprep.subr.mxu0 0.0
  %703 = vmatpush1.msra.mxu0 0.0
  %704 = vmatprep.subr.mxu0 0.0
  %705 = vmatpush1.msra.mxu0 0.0
  %706 = vmatprep.subr.mxu0 0.0
  %707 = vmatpush1.msra.mxu0 0.0
  %708 = vmatprep.subr.mxu0 0.0
  %709 = vmatpush1.msra.mxu0 0.0
  %710 = vmatprep.subr.mxu0 0.0
  %711 = vmatpush1.msra.mxu0 0.0
  %712 = vmatprep.subr.mxu0 0.0
  %713 = vmatpush1.msra.mxu0 0.0
  %714 = vmatprep.subr.mxu0 0.0
  %715 = vmatpush1.msra.mxu0 0.0
  %716 = vmatprep.subr.mxu0 0.0
  %717 = vmatpush1.msra.mxu0 0.0
  %718 = vmatprep.subr.mxu0 0.0
  %719 = vmatpush1.msra.mxu0 0.0
  %720 = vmatprep.subr.mxu0 0.0
  %721 = vmatpush1.msra.mxu0 0.0
  %722 = vmatprep.subr.mxu0 0.0
  %723 = vmatpush1.msra.mxu0 0.0
  %724 = vmatprep.subr.mxu0 0.0
  %725 = vmatpush1.msra.mxu0 0.0
  %726 = vmatprep.subr.mxu0 0.0
  %727 = vmatpush1.msra.mxu0 0.0
  %728 = vmatprep.subr.mxu0 0.0
  %729 = vmatpush1.msra.mxu0 0.0
  %730 = vmatprep.subr.mxu0 0.0
  %731 = vmatpush1.msra.mxu0 0.0
  %732 = vmatprep.subr.mxu0 0.0
  %733 = vmatpush1.msra.mxu0 0.0
  %734 = vmatprep.subr.mxu0 0.0
  %735 = vmatpush1.msra.mxu0 0.0
  %736 = vmatprep.subr.mxu0 0.0
  %737 = vmatpush1.msra.mxu0 0.0
  %738 = vmatprep.subr.mxu0 0.0
  %739 = vmatpush1.msra.mxu0 0.0
  %740 = vmatprep.subr.mxu0 0.0
  %741 = vmatpush1.msra.mxu0 0.0
  %742 = vmatprep.subr.mxu0 0.0
  %743 = vmatpush1.msra.mxu0 0.0
  %744 = vmatprep.subr.mxu0 0.0
  %745 = vmatpush1.msra.mxu0 0.0
  %746 = vmatprep.subr.mxu0 0.0
  %747 = vmatpush1.msra.mxu0 0.0
  %748 = vmatprep.subr.mxu0 0.0
  %749 = vmatpush1.msra.mxu0 0.0
  %750 = vmatprep.subr.mxu0 0.0
  %751 = vmatpush1.msra.mxu0 0.0
  %752 = vmatprep.mubr.f32.mxu0 0.0
  %753 = vmatmul.mubr.f32.gmra.mrb[0].mxu0 %v591
  %v754 = vpop.f32.mrb[0].mxu0
  %v755 = vadd.f32 %v188, %v754
  %v756 = vpop.f32.mrb[0].mxu0
  %757 = vdwg.mxu0
  %759 = vrot.lane.b32.xlu0 %v585, 32
  %v760 = vpop.permute.xlu0 %759
  %v761 = vsel %vm211, %v760, 0
  %763 = vmatprep.subr.mxu0 0.0
  %764 = vmatpush1.msra.mxu0 %v487
  %765 = vmatprep.subr.mxu0 0.0
  %766 = vmatpush1.msra.mxu0 %v488
  %767 = vmatprep.subr.mxu0 0.0
  %768 = vmatpush1.msra.mxu0 %v489
  %769 = vmatprep.subr.mxu0 0.0
  %770 = vmatpush1.msra.mxu0 %v490
  %771 = vmatprep.subr.mxu0 0.0
  %772 = vmatpush1.msra.mxu0 0.0
  %773 = vmatprep.subr.mxu0 0.0
  %774 = vmatpush1.msra.mxu0 0.0
  %775 = vmatprep.subr.mxu0 0.0
  %776 = vmatpush1.msra.mxu0 0.0
  %777 = vmatprep.subr.mxu0 0.0
  %778 = vmatpush1.msra.mxu0 0.0
  %779 = vmatprep.subr.mxu0 0.0
  %780 = vmatpush1.msra.mxu0 0.0
  %781 = vmatprep.subr.mxu0 0.0
  %782 = vmatpush1.msra.mxu0 0.0
  %783 = vmatprep.subr.mxu0 0.0
  %784 = vmatpush1.msra.mxu0 0.0
  %785 = vmatprep.subr.mxu0 0.0
  %786 = vmatpush1.msra.mxu0 0.0
  %787 = vmatprep.subr.mxu0 0.0
  %788 = vmatpush1.msra.mxu0 0.0
  %789 = vmatprep.subr.mxu0 0.0
  %790 = vmatpush1.msra.mxu0 0.0
  %791 = vmatprep.subr.mxu0 0.0
  %792 = vmatpush1.msra.mxu0 0.0
  %793 = vmatprep.subr.mxu0 0.0
  %794 = vmatpush1.msra.mxu0 0.0
  %795 = vmatprep.subr.mxu0 0.0
  %796 = vmatpush1.msra.mxu0 0.0
  %797 = vmatprep.subr.mxu0 0.0
  %798 = vmatpush1.msra.mxu0 0.0
  %799 = vmatprep.subr.mxu0 0.0
  %800 = vmatpush1.msra.mxu0 0.0
  %801 = vmatprep.subr.mxu0 0.0
  %802 = vmatpush1.msra.mxu0 0.0
  %803 = vmatprep.subr.mxu0 0.0
  %804 = vmatpush1.msra.mxu0 0.0
  %805 = vmatprep.subr.mxu0 0.0
  %806 = vmatpush1.msra.mxu0 0.0
  %807 = vmatprep.subr.mxu0 0.0
  %808 = vmatpush1.msra.mxu0 0.0
  %809 = vmatprep.subr.mxu0 0.0
  %810 = vmatpush1.msra.mxu0 0.0
  %811 = vmatprep.subr.mxu0 0.0
  %812 = vmatpush1.msra.mxu0 0.0
  %813 = vmatprep.subr.mxu0 0.0
  %814 = vmatpush1.msra.mxu0 0.0
  %815 = vmatprep.subr.mxu0 0.0
  %816 = vmatpush1.msra.mxu0 0.0
  %817 = vmatprep.subr.mxu0 0.0
  %818 = vmatpush1.msra.mxu0 0.0
  %819 = vmatprep.subr.mxu0 0.0
  %820 = vmatpush1.msra.mxu0 0.0
  %821 = vmatprep.subr.mxu0 0.0
  %822 = vmatpush1.msra.mxu0 0.0
  %823 = vmatprep.subr.mxu0 0.0
  %824 = vmatpush1.msra.mxu0 0.0
  %825 = vmatprep.subr.mxu0 0.0
  %826 = vmatpush1.msra.mxu0 0.0
  %827 = vmatprep.mubr.f32.mxu0 0.0
  %828 = vmatmul.mubr.f32.gmra.mrb[0].mxu0 %v761
  %v829 = vpop.f32.mrb[0].mxu0
  %v830 = vadd.f32 0.0, %v829
  %v831 = vpop.f32.mrb[0].mxu0
  %832 = vdwg.mxu0
  %v833 = vadd.f32 %v755, %v830
  %v834 = vxor.u32 %v833, 2147483648
  %v835 = vmul.f32 %v834, 1.442695
  %v836 = vpow.pop %v835
  %v837 = vadd.f32 %v836, 1.0
  %v838 = vrcp.pop %v837
  %v839 = vmul.f32 1.0, %v838
  %v840 = vtanh.pop %v833
  %v841 = vmul.f32 %v839, %v579
  %843 = vrot.lane.b32.xlu0 %v840, 64
  %v844 = vpop.permute.xlu0 %843
  %v846 = vmul.f32 %v839, %v844
  %848 = vrot.lane.b32.xlu0 %v846, 32
  %v849 = vpop.permute.xlu0 %848
  %v851 = vadd.f32 %v841, %v849
  %v852 = vtanh.pop %v851
  %854 = vrot.lane.b32.xlu0 %v852, 64
  %v855 = vpop.permute.xlu0 %854
  %v857 = vmul.f32 %v839, %v855
  %s858 = scalar_lea.vmem %s2, 32
  %v859 = vld [vmem:[%s858] sm:$0xff]
  %v860 = vld [vmem:[%s858 + $0x8] sm:$0xff]
  %v861 = vld [vmem:[%s858 + $0x10] sm:$0xff]
  %v862 = vld [vmem:[%s858 + $0x18] sm:$0xff]
  %863 = vmatprep.subr.mxu0 0.0
  %864 = vmatpush1.msra.mxu0 %v859
  %865 = vmatprep.subr.mxu0 0.0
  %866 = vmatpush1.msra.mxu0 %v860
  %867 = vmatprep.subr.mxu0 0.0
  %868 = vmatpush1.msra.mxu0 %v861
  %869 = vmatprep.subr.mxu0 0.0
  %870 = vmatpush1.msra.mxu0 %v862
  %871 = vmatprep.subr.mxu0 0.0
  %872 = vmatpush1.msra.mxu0 0.0
  %873 = vmatprep.subr.mxu0 0.0
  %874 = vmatpush1.msra.mxu0 0.0
  %875 = vmatprep.subr.mxu0 0.0
  %876 = vmatpush1.msra.mxu0 0.0
  %877 = vmatprep.subr.mxu0 0.0
  %878 = vmatpush1.msra.mxu0 0.0
  %879 = vmatprep.subr.mxu0 0.0
  %880 = vmatpush1.msra.mxu0 0.0
  %881 = vmatprep.subr.mxu0 0.0
  %882 = vmatpush1.msra.mxu0 0.0
  %883 = vmatprep.subr.mxu0 0.0
  %884 = vmatpush1.msra.mxu0 0.0
  %885 = vmatprep.subr.mxu0 0.0
  %886 = vmatpush1.msra.mxu0 0.0
  %887 = vmatprep.subr.mxu0 0.0
  %888 = vmatpush1.msra.mxu0 0.0
  %889 = vmatprep.subr.mxu0 0.0
  %890 = vmatpush1.msra.mxu0 0.0
  %891 = vmatprep.subr.mxu0 0.0
  %892 = vmatpush1.msra.mxu0 0.0
  %893 = vmatprep.subr.mxu0 0.0
  %894 = vmatpush1.msra.mxu0 0.0
  %895 = vmatprep.subr.mxu0 0.0
  %896 = vmatpush1.msra.mxu0 0.0
  %897 = vmatprep.subr.mxu0 0.0
  %898 = vmatpush1.msra.mxu0 0.0
  %899 = vmatprep.subr.mxu0 0.0
  %900 = vmatpush1.msra.mxu0 0.0
  %901 = vmatprep.subr.mxu0 0.0
  %902 = vmatpush1.msra.mxu0 0.0
  %903 = vmatprep.subr.mxu0 0.0
  %904 = vmatpush1.msra.mxu0 0.0
  %905 = vmatprep.subr.mxu0 0.0
  %906 = vmatpush1.msra.mxu0 0.0
  %907 = vmatprep.subr.mxu0 0.0
  %908 = vmatpush1.msra.mxu0 0.0
  %909 = vmatprep.subr.mxu0 0.0
  %910 = vmatpush1.msra.mxu0 0.0
  %911 = vmatprep.subr.mxu0 0.0
  %912 = vmatpush1.msra.mxu0 0.0
  %913 = vmatprep.subr.mxu0 0.0
  %914 = vmatpush1.msra.mxu0 0.0
  %915 = vmatprep.subr.mxu0 0.0
  %916 = vmatpush1.msra.mxu0 0.0
  %917 = vmatprep.subr.mxu0 0.0
  %918 = vmatpush1.msra.mxu0 0.0
  %919 = vmatprep.subr.mxu0 0.0
  %920 = vmatpush1.msra.mxu0 0.0
  %921 = vmatprep.subr.mxu0 0.0
  %922 = vmatpush1.msra.mxu0 0.0
  %923 = vmatprep.subr.mxu0 0.0
  %924 = vmatpush1.msra.mxu0 0.0
  %925 = vmatprep.subr.mxu0 0.0
  %926 = vmatpush1.msra.mxu0 0.0
  %927 = vmatprep.mubr.f32.mxu0 0.0
  %928 = vmatmul.mubr.f32.gmra.mrb[0].mxu0 %v761
  %v929 = vpop.f32.mrb[0].mxu0
  %v930 = vadd.f32 %v196, %v929
  %v931 = vpop.f32.mrb[0].mxu0
  %932 = vdwg.mxu0
  %s933 = scalar_lea.vmem %s3, 64
  %v934 = vld [vmem:[%s933] sm:$0xff]
  %v935 = vld [vmem:[%s933 + $0x8] sm:$0xff]
  %v936 = vld [vmem:[%s933 + $0x10] sm:$0xff]
  %v937 = vld [vmem:[%s933 + $0x18] sm:$0xff]
  %938 = vmatprep.subr.mxu0 0.0
  %939 = vmatpush1.msra.mxu0 %v934
  %940 = vmatprep.subr.mxu0 0.0
  %941 = vmatpush1.msra.mxu0 %v935
  %942 = vmatprep.subr.mxu0 0.0
  %943 = vmatpush1.msra.mxu0 %v936
  %944 = vmatprep.subr.mxu0 0.0
  %945 = vmatpush1.msra.mxu0 %v937
  %946 = vmatprep.subr.mxu0 0.0
  %947 = vmatpush1.msra.mxu0 0.0
  %948 = vmatprep.subr.mxu0 0.0
  %949 = vmatpush1.msra.mxu0 0.0
  %950 = vmatprep.subr.mxu0 0.0
  %951 = vmatpush1.msra.mxu0 0.0
  %952 = vmatprep.subr.mxu0 0.0
  %953 = vmatpush1.msra.mxu0 0.0
  %954 = vmatprep.subr.mxu0 0.0
  %955 = vmatpush1.msra.mxu0 0.0
  %956 = vmatprep.subr.mxu0 0.0
  %957 = vmatpush1.msra.mxu0 0.0
  %958 = vmatprep.subr.mxu0 0.0
  %959 = vmatpush1.msra.mxu0 0.0
  %960 = vmatprep.subr.mxu0 0.0
  %961 = vmatpush1.msra.mxu0 0.0
  %962 = vmatprep.subr.mxu0 0.0
  %963 = vmatpush1.msra.mxu0 0.0
  %964 = vmatprep.subr.mxu0 0.0
  %965 = vmatpush1.msra.mxu0 0.0
  %966 = vmatprep.subr.mxu0 0.0
  %967 = vmatpush1.msra.mxu0 0.0
  %968 = vmatprep.subr.mxu0 0.0
  %969 = vmatpush1.msra.mxu0 0.0
  %970 = vmatprep.subr.mxu0 0.0
  %971 = vmatpush1.msra.mxu0 0.0
  %972 = vmatprep.subr.mxu0 0.0
  %973 = vmatpush1.msra.mxu0 0.0
  %974 = vmatprep.subr.mxu0 0.0
  %975 = vmatpush1.msra.mxu0 0.0
  %976 = vmatprep.subr.mxu0 0.0
  %977 = vmatpush1.msra.mxu0 0.0
  %978 = vmatprep.subr.mxu0 0.0
  %979 = vmatpush1.msra.mxu0 0.0
  %980 = vmatprep.subr.mxu0 0.0
  %981 = vmatpush1.msra.mxu0 0.0
  %982 = vmatprep.subr.mxu0 0.0
  %983 = vmatpush1.msra.mxu0 0.0
  %984 = vmatprep.subr.mxu0 0.0
  %985 = vmatpush1.msra.mxu0 0.0
  %986 = vmatprep.subr.mxu0 0.0
  %987 = vmatpush1.msra.mxu0 0.0
  %988 = vmatprep.subr.mxu0 0.0
  %989 = vmatpush1.msra.mxu0 0.0
  %990 = vmatprep.subr.mxu0 0.0
  %991 = vmatpush1.msra.mxu0 0.0
  %992 = vmatprep.subr.mxu0 0.0
  %993 = vmatpush1.msra.mxu0 0.0
  %994 = vmatprep.subr.mxu0 0.0
  %995 = vmatpush1.msra.mxu0 0.0
  %996 = vmatprep.subr.mxu0 0.0
  %997 = vmatpush1.msra.mxu0 0.0
  %998 = vmatprep.subr.mxu0 0.0
  %999 = vmatpush1.msra.mxu0 0.0
  %1000 = vmatprep.subr.mxu0 0.0
  %1001 = vmatpush1.msra.mxu0 0.0
  %1002 = vmatprep.mubr.f32.mxu0 0.0
  %1003 = vmatmul.mubr.f32.gmra.mrb[0].mxu0 %v213
  %v1004 = vpop.f32.mrb[0].mxu0
  %v1005 = vadd.f32 0.0, %v1004
  %v1006 = vpop.f32.mrb[0].mxu0
  %1007 = vdwg.mxu0
  %v1008 = vadd.f32 %v930, %v1005
  %v1009 = vxor.u32 %v1008, 2147483648
  %v1010 = vmul.f32 %v1009, 1.442695
  %v1011 = vpow.pop %v1010
  %v1012 = vadd.f32 %v1011, 1.0
  %v1013 = vrcp.pop %v1012
  %v1014 = vmul.f32 1.0, %v1013
  %v1015 = vtanh.pop %v1008
  %v1016 = vmul.f32 %v1014, 0.0
  %1018 = vrot.lane.b32.xlu0 %v1015, 64
  %v1019 = vpop.permute.xlu0 %1018
  %v1021 = vmul.f32 %v1014, %v1019
  %1023 = vrot.lane.b32.xlu0 %v1021, 32
  %v1024 = vpop.permute.xlu0 %1023
  %v1026 = vadd.f32 %v1016, %v1024
  %v1027 = vtanh.pop %v1026
  %1029 = vrot.lane.b32.xlu0 %v1027, 64
  %v1030 = vpop.permute.xlu0 %1029
  %v1032 = vmul.f32 %v1014, %v1030
  %s1033 = scalar_lea.vmem [#allocation2], 24
  %v1034 = vld [vmem:[%s1033] sm:$0xff]
  %1036 = vrot.lane.b32.xlu0 %v687, 32
  %v1037 = vpop.permute.xlu0 %1036
  %v1038 = vsel %vm211, %v1037, 0
  %1040 = vmatprep.subr.mxu0 0.0
  %1041 = vmatpush1.msra.mxu0 %v207
  %1042 = vmatprep.subr.mxu0 0.0
  %1043 = vmatpush1.msra.mxu0 %v208
  %1044 = vmatprep.subr.mxu0 0.0
  %1045 = vmatpush1.msra.mxu0 %v209
  %1046 = vmatprep.subr.mxu0 0.0
  %1047 = vmatpush1.msra.mxu0 %v210
  %1048 = vmatprep.subr.mxu0 0.0
  %1049 = vmatpush1.msra.mxu0 0.0
  %1050 = vmatprep.subr.mxu0 0.0
  %1051 = vmatpush1.msra.mxu0 0.0
  %1052 = vmatprep.subr.mxu0 0.0
  %1053 = vmatpush1.msra.mxu0 0.0
  %1054 = vmatprep.subr.mxu0 0.0
  %1055 = vmatpush1.msra.mxu0 0.0
  %1056 = vmatprep.subr.mxu0 0.0
  %1057 = vmatpush1.msra.mxu0 0.0
  %1058 = vmatprep.subr.mxu0 0.0
  %1059 = vmatpush1.msra.mxu0 0.0
  %1060 = vmatprep.subr.mxu0 0.0
  %1061 = vmatpush1.msra.mxu0 0.0
  %1062 = vmatprep.subr.mxu0 0.0
  %1063 = vmatpush1.msra.mxu0 0.0
  %1064 = vmatprep.subr.mxu0 0.0
  %1065 = vmatpush1.msra.mxu0 0.0
  %1066 = vmatprep.subr.mxu0 0.0
  %1067 = vmatpush1.msra.mxu0 0.0
  %1068 = vmatprep.subr.mxu0 0.0
  %1069 = vmatpush1.msra.mxu0 0.0
  %1070 = vmatprep.subr.mxu0 0.0
  %1071 = vmatpush1.msra.mxu0 0.0
  %1072 = vmatprep.subr.mxu0 0.0
  %1073 = vmatpush1.msra.mxu0 0.0
  %1074 = vmatprep.subr.mxu0 0.0
  %1075 = vmatpush1.msra.mxu0 0.0
  %1076 = vmatprep.subr.mxu0 0.0
  %1077 = vmatpush1.msra.mxu0 0.0
  %1078 = vmatprep.subr.mxu0 0.0
  %1079 = vmatpush1.msra.mxu0 0.0
  %1080 = vmatprep.subr.mxu0 0.0
  %1081 = vmatpush1.msra.mxu0 0.0
  %1082 = vmatprep.subr.mxu0 0.0
  %1083 = vmatpush1.msra.mxu0 0.0
  %1084 = vmatprep.subr.mxu0 0.0
  %1085 = vmatpush1.msra.mxu0 0.0
  %1086 = vmatprep.subr.mxu0 0.0
  %1087 = vmatpush1.msra.mxu0 0.0
  %1088 = vmatprep.subr.mxu0 0.0
  %1089 = vmatpush1.msra.mxu0 0.0
  %1090 = vmatprep.subr.mxu0 0.0
  %1091 = vmatpush1.msra.mxu0 0.0
  %1092 = vmatprep.subr.mxu0 0.0
  %1093 = vmatpush1.msra.mxu0 0.0
  %1094 = vmatprep.subr.mxu0 0.0
  %1095 = vmatpush1.msra.mxu0 0.0
  %1096 = vmatprep.subr.mxu0 0.0
  %1097 = vmatpush1.msra.mxu0 0.0
  %1098 = vmatprep.subr.mxu0 0.0
  %1099 = vmatpush1.msra.mxu0 0.0
  %1100 = vmatprep.subr.mxu0 0.0
  %1101 = vmatpush1.msra.mxu0 0.0
  %1102 = vmatprep.subr.mxu0 0.0
  %1103 = vmatpush1.msra.mxu0 0.0
  %1104 = vmatprep.mubr.f32.mxu0 0.0
  %1105 = vmatmul.mubr.f32.gmra.mrb[0].mxu0 %v1038
  %v1106 = vpop.f32.mrb[0].mxu0
  %v1107 = vadd.f32 0.0, %v1106
  %v1108 = vpop.f32.mrb[0].mxu0
  %1109 = vdwg.mxu0
  %v1110 = vadd.f32 %v1034, %v1107
  %v1111 = vxor.u32 %v1110, 2147483648
  %v1112 = vmul.f32 %v1111, 1.442695
  %v1113 = vpow.pop %v1112
  %v1114 = vadd.f32 %v1113, 1.0
  %v1115 = vrcp.pop %v1114
  %v1116 = vmul.f32 1.0, %v1115
  %v1117 = vtanh.pop %v1110
  %v1118 = vmul.f32 %v1116, %v681
  %1120 = vrot.lane.b32.xlu0 %v1117, 64
  %v1121 = vpop.permute.xlu0 %1120
  %v1123 = vmul.f32 %v1116, %v1121
  %1125 = vrot.lane.b32.xlu0 %v1123, 32
  %v1126 = vpop.permute.xlu0 %1125
  %v1128 = vadd.f32 %v1118, %v1126
  %v1129 = vtanh.pop %v1128
  %1131 = vrot.lane.b32.xlu0 %v1129, 64
  %v1132 = vpop.permute.xlu0 %1131
  %v1134 = vmul.f32 %v1116, %v1132
  %1135 = vmatprep.subr.mxu0 0.0
  %1136 = vmatpush1.msra.mxu0 %v412
  %1137 = vmatprep.subr.mxu0 0.0
  %1138 = vmatpush1.msra.mxu0 %v413
  %1139 = vmatprep.subr.mxu0 0.0
  %1140 = vmatpush1.msra.mxu0 %v414
  %1141 = vmatprep.subr.mxu0 0.0
  %1142 = vmatpush1.msra.mxu0 %v415
  %1143 = vmatprep.subr.mxu0 0.0
  %1144 = vmatpush1.msra.mxu0 0.0
  %1145 = vmatprep.subr.mxu0 0.0
  %1146 = vmatpush1.msra.mxu0 0.0
  %1147 = vmatprep.subr.mxu0 0.0
  %1148 = vmatpush1.msra.mxu0 0.0
  %1149 = vmatprep.subr.mxu0 0.0
  %1150 = vmatpush1.msra.mxu0 0.0
  %1151 = vmatprep.subr.mxu0 0.0
  %1152 = vmatpush1.msra.mxu0 0.0
  %1153 = vmatprep.subr.mxu0 0.0
  %1154 = vmatpush1.msra.mxu0 0.0
  %1155 = vmatprep.subr.mxu0 0.0
  %1156 = vmatpush1.msra.mxu0 0.0
  %1157 = vmatprep.subr.mxu0 0.0
  %1158 = vmatpush1.msra.mxu0 0.0
  %1159 = vmatprep.subr.mxu0 0.0
  %1160 = vmatpush1.msra.mxu0 0.0
  %1161 = vmatprep.subr.mxu0 0.0
  %1162 = vmatpush1.msra.mxu0 0.0
  %1163 = vmatprep.subr.mxu0 0.0
  %1164 = vmatpush1.msra.mxu0 0.0
  %1165 = vmatprep.subr.mxu0 0.0
  %1166 = vmatpush1.msra.mxu0 0.0
  %1167 = vmatprep.subr.mxu0 0.0
  %1168 = vmatpush1.msra.mxu0 0.0
  %1169 = vmatprep.subr.mxu0 0.0
  %1170 = vmatpush1.msra.mxu0 0.0
  %1171 = vmatprep.subr.mxu0 0.0
  %1172 = vmatpush1.msra.mxu0 0.0
  %1173 = vmatprep.subr.mxu0 0.0
  %1174 = vmatpush1.msra.mxu0 0.0
  %1175 = vmatprep.subr.mxu0 0.0
  %1176 = vmatpush1.msra.mxu0 0.0
  %1177 = vmatprep.subr.mxu0 0.0
  %1178 = vmatpush1.msra.mxu0 0.0
  %1179 = vmatprep.subr.mxu0 0.0
  %1180 = vmatpush1.msra.mxu0 0.0
  %1181 = vmatprep.subr.mxu0 0.0
  %1182 = vmatpush1.msra.mxu0 0.0
  %1183 = vmatprep.subr.mxu0 0.0
  %1184 = vmatpush1.msra.mxu0 0.0
  %1185 = vmatprep.subr.mxu0 0.0
  %1186 = vmatpush1.msra.mxu0 0.0
  %1187 = vmatprep.subr.mxu0 0.0
  %1188 = vmatpush1.msra.mxu0 0.0
  %1189 = vmatprep.subr.mxu0 0.0
  %1190 = vmatpush1.msra.mxu0 0.0
  %1191 = vmatprep.subr.mxu0 0.0
  %1192 = vmatpush1.msra.mxu0 0.0
  %1193 = vmatprep.subr.mxu0 0.0
  %1194 = vmatpush1.msra.mxu0 0.0
  %1195 = vmatprep.subr.mxu0 0.0
  %1196 = vmatpush1.msra.mxu0 0.0
  %1197 = vmatprep.subr.mxu0 0.0
  %1198 = vmatpush1.msra.mxu0 0.0
  %1199 = vmatprep.mubr.f32.mxu0 0.0
  %1200 = vmatmul.mubr.f32.gmra.mrb[0].mxu0 %v1038
  %v1201 = vpop.f32.mrb[0].mxu0
  %v1202 = vadd.f32 %v188, %v1201
  %v1203 = vpop.f32.mrb[0].mxu0
  %1204 = vdwg.mxu0
  %1206 = vrot.lane.b32.xlu0 %v857, 32
  %v1207 = vpop.permute.xlu0 %1206
  %v1208 = vsel %vm211, %v1207, 0
  %1210 = vmatprep.subr.mxu0 0.0
  %1211 = vmatpush1.msra.mxu0 %v487
  %1212 = vmatprep.subr.mxu0 0.0
  %1213 = vmatpush1.msra.mxu0 %v488
  %1214 = vmatprep.subr.mxu0 0.0
  %1215 = vmatpush1.msra.mxu0 %v489
  %1216 = vmatprep.subr.mxu0 0.0
  %1217 = vmatpush1.msra.mxu0 %v490
  %1218 = vmatprep.subr.mxu0 0.0
  %1219 = vmatpush1.msra.mxu0 0.0
  %1220 = vmatprep.subr.mxu0 0.0
  %1221 = vmatpush1.msra.mxu0 0.0
  %1222 = vmatprep.subr.mxu0 0.0
  %1223 = vmatpush1.msra.mxu0 0.0
  %1224 = vmatprep.subr.mxu0 0.0
  %1225 = vmatpush1.msra.mxu0 0.0
  %1226 = vmatprep.subr.mxu0 0.0
  %1227 = vmatpush1.msra.mxu0 0.0
  %1228 = vmatprep.subr.mxu0 0.0
  %1229 = vmatpush1.msra.mxu0 0.0
  %1230 = vmatprep.subr.mxu0 0.0
  %1231 = vmatpush1.msra.mxu0 0.0
  %1232 = vmatprep.subr.mxu0 0.0
  %1233 = vmatpush1.msra.mxu0 0.0
  %1234 = vmatprep.subr.mxu0 0.0
  %1235 = vmatpush1.msra.mxu0 0.0
  %1236 = vmatprep.subr.mxu0 0.0
  %1237 = vmatpush1.msra.mxu0 0.0
  %1238 = vmatprep.subr.mxu0 0.0
  %1239 = vmatpush1.msra.mxu0 0.0
  %1240 = vmatprep.subr.mxu0 0.0
  %1241 = vmatpush1.msra.mxu0 0.0
  %1242 = vmatprep.subr.mxu0 0.0
  %1243 = vmatpush1.msra.mxu0 0.0
  %1244 = vmatprep.subr.mxu0 0.0
  %1245 = vmatpush1.msra.mxu0 0.0
  %1246 = vmatprep.subr.mxu0 0.0
  %1247 = vmatpush1.msra.mxu0 0.0
  %1248 = vmatprep.subr.mxu0 0.0
  %1249 = vmatpush1.msra.mxu0 0.0
  %1250 = vmatprep.subr.mxu0 0.0
  %1251 = vmatpush1.msra.mxu0 0.0
  %1252 = vmatprep.subr.mxu0 0.0
  %1253 = vmatpush1.msra.mxu0 0.0
  %1254 = vmatprep.subr.mxu0 0.0
  %1255 = vmatpush1.msra.mxu0 0.0
  %1256 = vmatprep.subr.mxu0 0.0
  %1257 = vmatpush1.msra.mxu0 0.0
  %1258 = vmatprep.subr.mxu0 0.0
  %1259 = vmatpush1.msra.mxu0 0.0
  %1260 = vmatprep.subr.mxu0 0.0
  %1261 = vmatpush1.msra.mxu0 0.0
  %1262 = vmatprep.subr.mxu0 0.0
  %1263 = vmatpush1.msra.mxu0 0.0
  %1264 = vmatprep.subr.mxu0 0.0
  %1265 = vmatpush1.msra.mxu0 0.0
  %1266 = vmatprep.subr.mxu0 0.0
  %1267 = vmatpush1.msra.mxu0 0.0
  %1268 = vmatprep.subr.mxu0 0.0
  %1269 = vmatpush1.msra.mxu0 0.0
  %1270 = vmatprep.subr.mxu0 0.0
  %1271 = vmatpush1.msra.mxu0 0.0
  %1272 = vmatprep.subr.mxu0 0.0
  %1273 = vmatpush1.msra.mxu0 0.0
  %1274 = vmatprep.mubr.f32.mxu0 0.0
  %1275 = vmatmul.mubr.f32.gmra.mrb[0].mxu0 %v1208
  %v1276 = vpop.f32.mrb[0].mxu0
  %v1277 = vadd.f32 0.0, %v1276
  %v1278 = vpop.f32.mrb[0].mxu0
  %1279 = vdwg.mxu0
  %v1280 = vadd.f32 %v1202, %v1277
  %v1281 = vxor.u32 %v1280, 2147483648
  %v1282 = vmul.f32 %v1281, 1.442695
  %v1283 = vpow.pop %v1282
  %v1284 = vadd.f32 %v1283, 1.0
  %v1285 = vrcp.pop %v1284
  %v1286 = vmul.f32 1.0, %v1285
  %v1287 = vtanh.pop %v1280
  %v1288 = vmul.f32 %v1286, %v851
  %1290 = vrot.lane.b32.xlu0 %v1287, 64
  %v1291 = vpop.permute.xlu0 %1290
  %v1293 = vmul.f32 %v1286, %v1291
  %1295 = vrot.lane.b32.xlu0 %v1293, 32
  %v1296 = vpop.permute.xlu0 %1295
  %v1298 = vadd.f32 %v1288, %v1296
  %v1299 = vtanh.pop %v1298
  %1301 = vrot.lane.b32.xlu0 %v1299, 64
  %v1302 = vpop.permute.xlu0 %1301
  %v1304 = vmul.f32 %v1286, %v1302
  %1305 = vmatprep.subr.mxu0 0.0
  %1306 = vmatpush1.msra.mxu0 %v859
  %1307 = vmatprep.subr.mxu0 0.0
  %1308 = vmatpush1.msra.mxu0 %v860
  %1309 = vmatprep.subr.mxu0 0.0
  %1310 = vmatpush1.msra.mxu0 %v861
  %1311 = vmatprep.subr.mxu0 0.0
  %1312 = vmatpush1.msra.mxu0 %v862
  %1313 = vmatprep.subr.mxu0 0.0
  %1314 = vmatpush1.msra.mxu0 0.0
  %1315 = vmatprep.subr.mxu0 0.0
  %1316 = vmatpush1.msra.mxu0 0.0
  %1317 = vmatprep.subr.mxu0 0.0
  %1318 = vmatpush1.msra.mxu0 0.0
  %1319 = vmatprep.subr.mxu0 0.0
  %1320 = vmatpush1.msra.mxu0 0.0
  %1321 = vmatprep.subr.mxu0 0.0
  %1322 = vmatpush1.msra.mxu0 0.0
  %1323 = vmatprep.subr.mxu0 0.0
  %1324 = vmatpush1.msra.mxu0 0.0
  %1325 = vmatprep.subr.mxu0 0.0
  %1326 = vmatpush1.msra.mxu0 0.0
  %1327 = vmatprep.subr.mxu0 0.0
  %1328 = vmatpush1.msra.mxu0 0.0
  %1329 = vmatprep.subr.mxu0 0.0
  %1330 = vmatpush1.msra.mxu0 0.0
  %1331 = vmatprep.subr.mxu0 0.0
  %1332 = vmatpush1.msra.mxu0 0.0
  %1333 = vmatprep.subr.mxu0 0.0
  %1334 = vmatpush1.msra.mxu0 0.0
  %1335 = vmatprep.subr.mxu0 0.0
  %1336 = vmatpush1.msra.mxu0 0.0
  %1337 = vmatprep.subr.mxu0 0.0
  %1338 = vmatpush1.msra.mxu0 0.0
  %1339 = vmatprep.subr.mxu0 0.0
  %1340 = vmatpush1.msra.mxu0 0.0
  %1341 = vmatprep.subr.mxu0 0.0
  %1342 = vmatpush1.msra.mxu0 0.0
  %1343 = vmatprep.subr.mxu0 0.0
  %1344 = vmatpush1.msra.mxu0 0.0
  %1345 = vmatprep.subr.mxu0 0.0
  %1346 = vmatpush1.msra.mxu0 0.0
  %1347 = vmatprep.subr.mxu0 0.0
  %1348 = vmatpush1.msra.mxu0 0.0
  %1349 = vmatprep.subr.mxu0 0.0
  %1350 = vmatpush1.msra.mxu0 0.0
  %1351 = vmatprep.subr.mxu0 0.0
  %1352 = vmatpush1.msra.mxu0 0.0
  %1353 = vmatprep.subr.mxu0 0.0
  %1354 = vmatpush1.msra.mxu0 0.0
  %1355 = vmatprep.subr.mxu0 0.0
  %1356 = vmatpush1.msra.mxu0 0.0
  %1357 = vmatprep.subr.mxu0 0.0
  %1358 = vmatpush1.msra.mxu0 0.0
  %1359 = vmatprep.subr.mxu0 0.0
  %1360 = vmatpush1.msra.mxu0 0.0
  %1361 = vmatprep.subr.mxu0 0.0
  %1362 = vmatpush1.msra.mxu0 0.0
  %1363 = vmatprep.subr.mxu0 0.0
  %1364 = vmatpush1.msra.mxu0 0.0
  %1365 = vmatprep.subr.mxu0 0.0
  %1366 = vmatpush1.msra.mxu0 0.0
  %1367 = vmatprep.subr.mxu0 0.0
  %1368 = vmatpush1.msra.mxu0 0.0
  %1369 = vmatprep.mubr.f32.mxu0 0.0
  %1370 = vmatmul.mubr.f32.gmra.mrb[0].mxu0 %v1208
  %v1371 = vpop.f32.mrb[0].mxu0
  %v1372 = vadd.f32 %v196, %v1371
  %v1373 = vpop.f32.mrb[0].mxu0
  %1374 = vdwg.mxu0
  %1376 = vrot.lane.b32.xlu0 %v1032, 32
  %v1377 = vpop.permute.xlu0 %1376
  %v1378 = vsel %vm211, %v1377, 0
  %1380 = vmatprep.subr.mxu0 0.0
  %1381 = vmatpush1.msra.mxu0 %v934
  %1382 = vmatprep.subr.mxu0 0.0
  %1383 = vmatpush1.msra.mxu0 %v935
  %1384 = vmatprep.subr.mxu0 0.0
  %1385 = vmatpush1.msra.mxu0 %v936
  %1386 = vmatprep.subr.mxu0 0.0
  %1387 = vmatpush1.msra.mxu0 %v937
  %1388 = vmatprep.subr.mxu0 0.0
  %1389 = vmatpush1.msra.mxu0 0.0
  %1390 = vmatprep.subr.mxu0 0.0
  %1391 = vmatpush1.msra.mxu0 0.0
  %1392 = vmatprep.subr.mxu0 0.0
  %1393 = vmatpush1.msra.mxu0 0.0
  %1394 = vmatprep.subr.mxu0 0.0
  %1395 = vmatpush1.msra.mxu0 0.0
  %1396 = vmatprep.subr.mxu0 0.0
  %1397 = vmatpush1.msra.mxu0 0.0
  %1398 = vmatprep.subr.mxu0 0.0
  %1399 = vmatpush1.msra.mxu0 0.0
  %1400 = vmatprep.subr.mxu0 0.0
  %1401 = vmatpush1.msra.mxu0 0.0
  %1402 = vmatprep.subr.mxu0 0.0
  %1403 = vmatpush1.msra.mxu0 0.0
  %1404 = vmatprep.subr.mxu0 0.0
  %1405 = vmatpush1.msra.mxu0 0.0
  %1406 = vmatprep.subr.mxu0 0.0
  %1407 = vmatpush1.msra.mxu0 0.0
  %1408 = vmatprep.subr.mxu0 0.0
  %1409 = vmatpush1.msra.mxu0 0.0
  %1410 = vmatprep.subr.mxu0 0.0
  %1411 = vmatpush1.msra.mxu0 0.0
  %1412 = vmatprep.subr.mxu0 0.0
  %1413 = vmatpush1.msra.mxu0 0.0
  %1414 = vmatprep.subr.mxu0 0.0
  %1415 = vmatpush1.msra.mxu0 0.0
  %1416 = vmatprep.subr.mxu0 0.0
  %1417 = vmatpush1.msra.mxu0 0.0
  %1418 = vmatprep.subr.mxu0 0.0
  %1419 = vmatpush1.msra.mxu0 0.0
  %1420 = vmatprep.subr.mxu0 0.0
  %1421 = vmatpush1.msra.mxu0 0.0
  %1422 = vmatprep.subr.mxu0 0.0
  %1423 = vmatpush1.msra.mxu0 0.0
  %1424 = vmatprep.subr.mxu0 0.0
  %1425 = vmatpush1.msra.mxu0 0.0
  %1426 = vmatprep.subr.mxu0 0.0
  %1427 = vmatpush1.msra.mxu0 0.0
  %1428 = vmatprep.subr.mxu0 0.0
  %1429 = vmatpush1.msra.mxu0 0.0
  %1430 = vmatprep.subr.mxu0 0.0
  %1431 = vmatpush1.msra.mxu0 0.0
  %1432 = vmatprep.subr.mxu0 0.0
  %1433 = vmatpush1.msra.mxu0 0.0
  %1434 = vmatprep.subr.mxu0 0.0
  %1435 = vmatpush1.msra.mxu0 0.0
  %1436 = vmatprep.subr.mxu0 0.0
  %1437 = vmatpush1.msra.mxu0 0.0
  %1438 = vmatprep.subr.mxu0 0.0
  %1439 = vmatpush1.msra.mxu0 0.0
  %1440 = vmatprep.subr.mxu0 0.0
  %1441 = vmatpush1.msra.mxu0 0.0
  %1442 = vmatprep.subr.mxu0 0.0
  %1443 = vmatpush1.msra.mxu0 0.0
  %1444 = vmatprep.mubr.f32.mxu0 0.0
  %1445 = vmatmul.mubr.f32.gmra.mrb[0].mxu0 %v1378
  %v1446 = vpop.f32.mrb[0].mxu0
  %v1447 = vadd.f32 0.0, %v1446
  %v1448 = vpop.f32.mrb[0].mxu0
  %1449 = vdwg.mxu0
  %v1450 = vadd.f32 %v1372, %v1447
  %v1451 = vxor.u32 %v1450, 2147483648
  %v1452 = vmul.f32 %v1451, 1.442695
  %v1453 = vpow.pop %v1452
  %v1454 = vadd.f32 %v1453, 1.0
  %v1455 = vrcp.pop %v1454
  %v1456 = vmul.f32 1.0, %v1455
  %v1457 = vtanh.pop %v1450
  %v1458 = vmul.f32 %v1456, %v1026
  %1460 = vrot.lane.b32.xlu0 %v1457, 64
  %v1461 = vpop.permute.xlu0 %1460
  %v1463 = vmul.f32 %v1456, %v1461
  %1465 = vrot.lane.b32.xlu0 %v1463, 32
  %v1466 = vpop.permute.xlu0 %1465
  %v1468 = vadd.f32 %v1458, %v1466
  %v1469 = vtanh.pop %v1468
  %1471 = vrot.lane.b32.xlu0 %v1469, 64
  %v1472 = vpop.permute.xlu0 %1471
  %v1474 = vmul.f32 %v1456, %v1472
  %s1475 = scalar_lea.vmem %s2, 64
  %v1476 = vld [vmem:[%s1475] sm:$0xff]
  %v1477 = vld [vmem:[%s1475 + $0x8] sm:$0xff]
  %v1478 = vld [vmem:[%s1475 + $0x10] sm:$0xff]
  %v1479 = vld [vmem:[%s1475 + $0x18] sm:$0xff]
  %1480 = vmatprep.subr.mxu0 0.0
  %1481 = vmatpush1.msra.mxu0 %v1476
  %1482 = vmatprep.subr.mxu0 0.0
  %1483 = vmatpush1.msra.mxu0 %v1477
  %1484 = vmatprep.subr.mxu0 0.0
  %1485 = vmatpush1.msra.mxu0 %v1478
  %1486 = vmatprep.subr.mxu0 0.0
  %1487 = vmatpush1.msra.mxu0 %v1479
  %1488 = vmatprep.subr.mxu0 0.0
  %1489 = vmatpush1.msra.mxu0 0.0
  %1490 = vmatprep.subr.mxu0 0.0
  %1491 = vmatpush1.msra.mxu0 0.0
  %1492 = vmatprep.subr.mxu0 0.0
  %1493 = vmatpush1.msra.mxu0 0.0
  %1494 = vmatprep.subr.mxu0 0.0
  %1495 = vmatpush1.msra.mxu0 0.0
  %1496 = vmatprep.subr.mxu0 0.0
  %1497 = vmatpush1.msra.mxu0 0.0
  %1498 = vmatprep.subr.mxu0 0.0
  %1499 = vmatpush1.msra.mxu0 0.0
  %1500 = vmatprep.subr.mxu0 0.0
  %1501 = vmatpush1.msra.mxu0 0.0
  %1502 = vmatprep.subr.mxu0 0.0
  %1503 = vmatpush1.msra.mxu0 0.0
  %1504 = vmatprep.subr.mxu0 0.0
  %1505 = vmatpush1.msra.mxu0 0.0
  %1506 = vmatprep.subr.mxu0 0.0
  %1507 = vmatpush1.msra.mxu0 0.0
  %1508 = vmatprep.subr.mxu0 0.0
  %1509 = vmatpush1.msra.mxu0 0.0
  %1510 = vmatprep.subr.mxu0 0.0
  %1511 = vmatpush1.msra.mxu0 0.0
  %1512 = vmatprep.subr.mxu0 0.0
  %1513 = vmatpush1.msra.mxu0 0.0
  %1514 = vmatprep.subr.mxu0 0.0
  %1515 = vmatpush1.msra.mxu0 0.0
  %1516 = vmatprep.subr.mxu0 0.0
  %1517 = vmatpush1.msra.mxu0 0.0
  %1518 = vmatprep.subr.mxu0 0.0
  %1519 = vmatpush1.msra.mxu0 0.0
  %1520 = vmatprep.subr.mxu0 0.0
  %1521 = vmatpush1.msra.mxu0 0.0
  %1522 = vmatprep.subr.mxu0 0.0
  %1523 = vmatpush1.msra.mxu0 0.0
  %1524 = vmatprep.subr.mxu0 0.0
  %1525 = vmatpush1.msra.mxu0 0.0
  %1526 = vmatprep.subr.mxu0 0.0
  %1527 = vmatpush1.msra.mxu0 0.0
  %1528 = vmatprep.subr.mxu0 0.0
  %1529 = vmatpush1.msra.mxu0 0.0
  %1530 = vmatprep.subr.mxu0 0.0
  %1531 = vmatpush1.msra.mxu0 0.0
  %1532 = vmatprep.subr.mxu0 0.0
  %1533 = vmatpush1.msra.mxu0 0.0
  %1534 = vmatprep.subr.mxu0 0.0
  %1535 = vmatpush1.msra.mxu0 0.0
  %1536 = vmatprep.subr.mxu0 0.0
  %1537 = vmatpush1.msra.mxu0 0.0
  %1538 = vmatprep.subr.mxu0 0.0
  %1539 = vmatpush1.msra.mxu0 0.0
  %1540 = vmatprep.subr.mxu0 0.0
  %1541 = vmatpush1.msra.mxu0 0.0
  %1542 = vmatprep.subr.mxu0 0.0
  %1543 = vmatpush1.msra.mxu0 0.0
  %1544 = vmatprep.mubr.f32.mxu0 0.0
  %1545 = vmatmul.mubr.f32.gmra.mrb[0].mxu0 %v1378
  %v1546 = vpop.f32.mrb[0].mxu0
  %v1547 = vadd.f32 %v204, %v1546
  %v1548 = vpop.f32.mrb[0].mxu0
  %1549 = vdwg.mxu0
  %s1550 = scalar_lea.vmem %s3, 96
  %v1551 = vld [vmem:[%s1550] sm:$0xff]
  %v1552 = vld [vmem:[%s1550 + $0x8] sm:$0xff]
  %v1553 = vld [vmem:[%s1550 + $0x10] sm:$0xff]
  %v1554 = vld [vmem:[%s1550 + $0x18] sm:$0xff]
  %1555 = vmatprep.subr.mxu0 0.0
  %1556 = vmatpush1.msra.mxu0 %v1551
  %1557 = vmatprep.subr.mxu0 0.0
  %1558 = vmatpush1.msra.mxu0 %v1552
  %1559 = vmatprep.subr.mxu0 0.0
  %1560 = vmatpush1.msra.mxu0 %v1553
  %1561 = vmatprep.subr.mxu0 0.0
  %1562 = vmatpush1.msra.mxu0 %v1554
  %1563 = vmatprep.subr.mxu0 0.0
  %1564 = vmatpush1.msra.mxu0 0.0
  %1565 = vmatprep.subr.mxu0 0.0
  %1566 = vmatpush1.msra.mxu0 0.0
  %1567 = vmatprep.subr.mxu0 0.0
  %1568 = vmatpush1.msra.mxu0 0.0
  %1569 = vmatprep.subr.mxu0 0.0
  %1570 = vmatpush1.msra.mxu0 0.0
  %1571 = vmatprep.subr.mxu0 0.0
  %1572 = vmatpush1.msra.mxu0 0.0
  %1573 = vmatprep.subr.mxu0 0.0
  %1574 = vmatpush1.msra.mxu0 0.0
  %1575 = vmatprep.subr.mxu0 0.0
  %1576 = vmatpush1.msra.mxu0 0.0
  %1577 = vmatprep.subr.mxu0 0.0
  %1578 = vmatpush1.msra.mxu0 0.0
  %1579 = vmatprep.subr.mxu0 0.0
  %1580 = vmatpush1.msra.mxu0 0.0
  %1581 = vmatprep.subr.mxu0 0.0
  %1582 = vmatpush1.msra.mxu0 0.0
  %1583 = vmatprep.subr.mxu0 0.0
  %1584 = vmatpush1.msra.mxu0 0.0
  %1585 = vmatprep.subr.mxu0 0.0
  %1586 = vmatpush1.msra.mxu0 0.0
  %1587 = vmatprep.subr.mxu0 0.0
  %1588 = vmatpush1.msra.mxu0 0.0
  %1589 = vmatprep.subr.mxu0 0.0
  %1590 = vmatpush1.msra.mxu0 0.0
  %1591 = vmatprep.subr.mxu0 0.0
  %1592 = vmatpush1.msra.mxu0 0.0
  %1593 = vmatprep.subr.mxu0 0.0
  %1594 = vmatpush1.msra.mxu0 0.0
  %1595 = vmatprep.subr.mxu0 0.0
  %1596 = vmatpush1.msra.mxu0 0.0
  %1597 = vmatprep.subr.mxu0 0.0
  %1598 = vmatpush1.msra.mxu0 0.0
  %1599 = vmatprep.subr.mxu0 0.0
  %1600 = vmatpush1.msra.mxu0 0.0
  %1601 = vmatprep.subr.mxu0 0.0
  %1602 = vmatpush1.msra.mxu0 0.0
  %1603 = vmatprep.subr.mxu0 0.0
  %1604 = vmatpush1.msra.mxu0 0.0
  %1605 = vmatprep.subr.mxu0 0.0
  %1606 = vmatpush1.msra.mxu0 0.0
  %1607 = vmatprep.subr.mxu0 0.0
  %1608 = vmatpush1.msra.mxu0 0.0
  %1609 = vmatprep.subr.mxu0 0.0
  %1610 = vmatpush1.msra.mxu0 0.0
  %1611 = vmatprep.subr.mxu0 0.0
  %1612 = vmatpush1.msra.mxu0 0.0
  %1613 = vmatprep.subr.mxu0 0.0
  %1614 = vmatpush1.msra.mxu0 0.0
  %1615 = vmatprep.subr.mxu0 0.0
  %1616 = vmatpush1.msra.mxu0 0.0
  %1617 = vmatprep.subr.mxu0 0.0
  %1618 = vmatpush1.msra.mxu0 0.0
  %1619 = vmatprep.mubr.f32.mxu0 0.0
  %1620 = vmatmul.mubr.f32.gmra.mrb[0].mxu0 %v213
  %v1621 = vpop.f32.mrb[0].mxu0
  %v1622 = vadd.f32 0.0, %v1621
  %v1623 = vpop.f32.mrb[0].mxu0
  %1624 = vdwg.mxu0
  %v1625 = vadd.f32 %v1547, %v1622
  %v1626 = vxor.u32 %v1625, 2147483648
  %v1627 = vmul.f32 %v1626, 1.442695
  %v1628 = vpow.pop %v1627
  %v1629 = vadd.f32 %v1628, 1.0
  %v1630 = vrcp.pop %v1629
  %v1631 = vmul.f32 1.0, %v1630
  %v1632 = vtanh.pop %v1625
  %v1633 = vmul.f32 %v1631, 0.0
  %1635 = vrot.lane.b32.xlu0 %v1632, 64
  %v1636 = vpop.permute.xlu0 %1635
  %v1638 = vmul.f32 %v1631, %v1636
  %1640 = vrot.lane.b32.xlu0 %v1638, 32
  %v1641 = vpop.permute.xlu0 %1640
  %v1643 = vadd.f32 %v1633, %v1641
  %v1644 = vtanh.pop %v1643
  %1646 = vrot.lane.b32.xlu0 %v1644, 64
  %v1647 = vpop.permute.xlu0 %1646
  %v1649 = vmul.f32 %v1631, %v1647
  %s1650 = scalar_lea.vmem [#allocation2], 32
  %v1651 = vld [vmem:[%s1650] sm:$0xff]
  %1653 = vrot.lane.b32.xlu0 %v1134, 32
  %v1654 = vpop.permute.xlu0 %1653
  %v1655 = vsel %vm211, %v1654, 0
  %1657 = vmatprep.subr.mxu0 0.0
  %1658 = vmatpush1.msra.mxu0 %v207
  %1659 = vmatprep.subr.mxu0 0.0
  %1660 = vmatpush1.msra.mxu0 %v208
  %1661 = vmatprep.subr.mxu0 0.0
  %1662 = vmatpush1.msra.mxu0 %v209
  %1663 = vmatprep.subr.mxu0 0.0
  %1664 = vmatpush1.msra.mxu0 %v210
  %1665 = vmatprep.subr.mxu0 0.0
  %1666 = vmatpush1.msra.mxu0 0.0
  %1667 = vmatprep.subr.mxu0 0.0
  %1668 = vmatpush1.msra.mxu0 0.0
  %1669 = vmatprep.subr.mxu0 0.0
  %1670 = vmatpush1.msra.mxu0 0.0
  %1671 = vmatprep.subr.mxu0 0.0
  %1672 = vmatpush1.msra.mxu0 0.0
  %1673 = vmatprep.subr.mxu0 0.0
  %1674 = vmatpush1.msra.mxu0 0.0
  %1675 = vmatprep.subr.mxu0 0.0
  %1676 = vmatpush1.msra.mxu0 0.0
  %1677 = vmatprep.subr.mxu0 0.0
  %1678 = vmatpush1.msra.mxu0 0.0
  %1679 = vmatprep.subr.mxu0 0.0
  %1680 = vmatpush1.msra.mxu0 0.0
  %1681 = vmatprep.subr.mxu0 0.0
  %1682 = vmatpush1.msra.mxu0 0.0
  %1683 = vmatprep.subr.mxu0 0.0
  %1684 = vmatpush1.msra.mxu0 0.0
  %1685 = vmatprep.subr.mxu0 0.0
  %1686 = vmatpush1.msra.mxu0 0.0
  %1687 = vmatprep.subr.mxu0 0.0
  %1688 = vmatpush1.msra.mxu0 0.0
  %1689 = vmatprep.subr.mxu0 0.0
  %1690 = vmatpush1.msra.mxu0 0.0
  %1691 = vmatprep.subr.mxu0 0.0
  %1692 = vmatpush1.msra.mxu0 0.0
  %1693 = vmatprep.subr.mxu0 0.0
  %1694 = vmatpush1.msra.mxu0 0.0
  %1695 = vmatprep.subr.mxu0 0.0
  %1696 = vmatpush1.msra.mxu0 0.0
  %1697 = vmatprep.subr.mxu0 0.0
  %1698 = vmatpush1.msra.mxu0 0.0
  %1699 = vmatprep.subr.mxu0 0.0
  %1700 = vmatpush1.msra.mxu0 0.0
  %1701 = vmatprep.subr.mxu0 0.0
  %1702 = vmatpush1.msra.mxu0 0.0
  %1703 = vmatprep.subr.mxu0 0.0
  %1704 = vmatpush1.msra.mxu0 0.0
  %1705 = vmatprep.subr.mxu0 0.0
  %1706 = vmatpush1.msra.mxu0 0.0
  %1707 = vmatprep.subr.mxu0 0.0
  %1708 = vmatpush1.msra.mxu0 0.0
  %1709 = vmatprep.subr.mxu0 0.0
  %1710 = vmatpush1.msra.mxu0 0.0
  %1711 = vmatprep.subr.mxu0 0.0
  %1712 = vmatpush1.msra.mxu0 0.0
  %1713 = vmatprep.subr.mxu0 0.0
  %1714 = vmatpush1.msra.mxu0 0.0
  %1715 = vmatprep.subr.mxu0 0.0
  %1716 = vmatpush1.msra.mxu0 0.0
  %1717 = vmatprep.subr.mxu0 0.0
  %1718 = vmatpush1.msra.mxu0 0.0
  %1719 = vmatprep.subr.mxu0 0.0
  %1720 = vmatpush1.msra.mxu0 0.0
  %1721 = vmatprep.mubr.f32.mxu0 0.0
  %1722 = vmatmul.mubr.f32.gmra.mrb[0].mxu0 %v1655
  %v1723 = vpop.f32.mrb[0].mxu0
  %v1724 = vadd.f32 0.0, %v1723
  %v1725 = vpop.f32.mrb[0].mxu0
  %1726 = vdwg.mxu0
  %v1727 = vadd.f32 %v1651, %v1724
  %v1728 = vxor.u32 %v1727, 2147483648
  %v1729 = vmul.f32 %v1728, 1.442695
  %v1730 = vpow.pop %v1729
  %v1731 = vadd.f32 %v1730, 1.0
  %v1732 = vrcp.pop %v1731
  %v1733 = vmul.f32 1.0, %v1732
  %v1734 = vtanh.pop %v1727
  %v1735 = vmul.f32 %v1733, %v1128
  %1737 = vrot.lane.b32.xlu0 %v1734, 64
  %v1738 = vpop.permute.xlu0 %1737
  %v1740 = vmul.f32 %v1733, %v1738
  %1742 = vrot.lane.b32.xlu0 %v1740, 32
  %v1743 = vpop.permute.xlu0 %1742
  %v1745 = vadd.f32 %v1735, %v1743
  %v1746 = vtanh.pop %v1745
  %1748 = vrot.lane.b32.xlu0 %v1746, 64
  %v1749 = vpop.permute.xlu0 %1748
  %v1751 = vmul.f32 %v1733, %v1749
  %1752 = vmatprep.subr.mxu0 0.0
  %1753 = vmatpush1.msra.mxu0 %v412
  %1754 = vmatprep.subr.mxu0 0.0
  %1755 = vmatpush1.msra.mxu0 %v413
  %1756 = vmatprep.subr.mxu0 0.0
  %1757 = vmatpush1.msra.mxu0 %v414
  %1758 = vmatprep.subr.mxu0 0.0
  %1759 = vmatpush1.msra.mxu0 %v415
  %1760 = vmatprep.subr.mxu0 0.0
  %1761 = vmatpush1.msra.mxu0 0.0
  %1762 = vmatprep.subr.mxu0 0.0
  %1763 = vmatpush1.msra.mxu0 0.0
  %1764 = vmatprep.subr.mxu0 0.0
  %1765 = vmatpush1.msra.mxu0 0.0
  %1766 = vmatprep.subr.mxu0 0.0
  %1767 = vmatpush1.msra.mxu0 0.0
  %1768 = vmatprep.subr.mxu0 0.0
  %1769 = vmatpush1.msra.mxu0 0.0
  %1770 = vmatprep.subr.mxu0 0.0
  %1771 = vmatpush1.msra.mxu0 0.0
  %1772 = vmatprep.subr.mxu0 0.0
  %1773 = vmatpush1.msra.mxu0 0.0
  %1774 = vmatprep.subr.mxu0 0.0
  %1775 = vmatpush1.msra.mxu0 0.0
  %1776 = vmatprep.subr.mxu0 0.0
  %1777 = vmatpush1.msra.mxu0 0.0
  %1778 = vmatprep.subr.mxu0 0.0
  %1779 = vmatpush1.msra.mxu0 0.0
  %1780 = vmatprep.subr.mxu0 0.0
  %1781 = vmatpush1.msra.mxu0 0.0
  %1782 = vmatprep.subr.mxu0 0.0
  %1783 = vmatpush1.msra.mxu0 0.0
  %1784 = vmatprep.subr.mxu0 0.0
  %1785 = vmatpush1.msra.mxu0 0.0
  %1786 = vmatprep.subr.mxu0 0.0
  %1787 = vmatpush1.msra.mxu0 0.0
  %1788 = vmatprep.subr.mxu0 0.0
  %1789 = vmatpush1.msra.mxu0 0.0
  %1790 = vmatprep.subr.mxu0 0.0
  %1791 = vmatpush1.msra.mxu0 0.0
  %1792 = vmatprep.subr.mxu0 0.0
  %1793 = vmatpush1.msra.mxu0 0.0
  %1794 = vmatprep.subr.mxu0 0.0
  %1795 = vmatpush1.msra.mxu0 0.0
  %1796 = vmatprep.subr.mxu0 0.0
  %1797 = vmatpush1.msra.mxu0 0.0
  %1798 = vmatprep.subr.mxu0 0.0
  %1799 = vmatpush1.msra.mxu0 0.0
  %1800 = vmatprep.subr.mxu0 0.0
  %1801 = vmatpush1.msra.mxu0 0.0
  %1802 = vmatprep.subr.mxu0 0.0
  %1803 = vmatpush1.msra.mxu0 0.0
  %1804 = vmatprep.subr.mxu0 0.0
  %1805 = vmatpush1.msra.mxu0 0.0
  %1806 = vmatprep.subr.mxu0 0.0
  %1807 = vmatpush1.msra.mxu0 0.0
  %1808 = vmatprep.subr.mxu0 0.0
  %1809 = vmatpush1.msra.mxu0 0.0
  %1810 = vmatprep.subr.mxu0 0.0
  %1811 = vmatpush1.msra.mxu0 0.0
  %1812 = vmatprep.subr.mxu0 0.0
  %1813 = vmatpush1.msra.mxu0 0.0
  %1814 = vmatprep.subr.mxu0 0.0
  %1815 = vmatpush1.msra.mxu0 0.0
  %1816 = vmatprep.mubr.f32.mxu0 0.0
  %1817 = vmatmul.mubr.f32.gmra.mrb[0].mxu0 %v1655
  %v1818 = vpop.f32.mrb[0].mxu0
  %v1819 = vadd.f32 %v188, %v1818
  %v1820 = vpop.f32.mrb[0].mxu0
  %1821 = vdwg.mxu0
  %1823 = vrot.lane.b32.xlu0 %v1304, 32
  %v1824 = vpop.permute.xlu0 %1823
  %v1825 = vsel %vm211, %v1824, 0
  %1827 = vmatprep.subr.mxu0 0.0
  %1828 = vmatpush1.msra.mxu0 %v487
  %1829 = vmatprep.subr.mxu0 0.0
  %1830 = vmatpush1.msra.mxu0 %v488
  %1831 = vmatprep.subr.mxu0 0.0
  %1832 = vmatpush1.msra.mxu0 %v489
  %1833 = vmatprep.subr.mxu0 0.0
  %1834 = vmatpush1.msra.mxu0 %v490
  %1835 = vmatprep.subr.mxu0 0.0
  %1836 = vmatpush1.msra.mxu0 0.0
  %1837 = vmatprep.subr.mxu0 0.0
  %1838 = vmatpush1.msra.mxu0 0.0
  %1839 = vmatprep.subr.mxu0 0.0
  %1840 = vmatpush1.msra.mxu0 0.0
  %1841 = vmatprep.subr.mxu0 0.0
  %1842 = vmatpush1.msra.mxu0 0.0
  %1843 = vmatprep.subr.mxu0 0.0
  %1844 = vmatpush1.msra.mxu0 0.0
  %1845 = vmatprep.subr.mxu0 0.0
  %1846 = vmatpush1.msra.mxu0 0.0
  %1847 = vmatprep.subr.mxu0 0.0
  %1848 = vmatpush1.msra.mxu0 0.0
  %1849 = vmatprep.subr.mxu0 0.0
  %1850 = vmatpush1.msra.mxu0 0.0
  %1851 = vmatprep.subr.mxu0 0.0
  %1852 = vmatpush1.msra.mxu0 0.0
  %1853 = vmatprep.subr.mxu0 0.0
  %1854 = vmatpush1.msra.mxu0 0.0
  %1855 = vmatprep.subr.mxu0 0.0
  %1856 = vmatpush1.msra.mxu0 0.0
  %1857 = vmatprep.subr.mxu0 0.0
  %1858 = vmatpush1.msra.mxu0 0.0
  %1859 = vmatprep.subr.mxu0 0.0
  %1860 = vmatpush1.msra.mxu0 0.0
  %1861 = vmatprep.subr.mxu0 0.0
  %1862 = vmatpush1.msra.mxu0 0.0
  %1863 = vmatprep.subr.mxu0 0.0
  %1864 = vmatpush1.msra.mxu0 0.0
  %1865 = vmatprep.subr.mxu0 0.0
  %1866 = vmatpush1.msra.mxu0 0.0
  %1867 = vmatprep.subr.mxu0 0.0
  %1868 = vmatpush1.msra.mxu0 0.0
  %1869 = vmatprep.subr.mxu0 0.0
  %1870 = vmatpush1.msra.mxu0 0.0
  %1871 = vmatprep.subr.mxu0 0.0
  %1872 = vmatpush1.msra.mxu0 0.0
  %1873 = vmatprep.subr.mxu0 0.0
  %1874 = vmatpush1.msra.mxu0 0.0
  %1875 = vmatprep.subr.mxu0 0.0
  %1876 = vmatpush1.msra.mxu0 0.0
  %1877 = vmatprep.subr.mxu0 0.0
  %1878 = vmatpush1.msra.mxu0 0.0
  %1879 = vmatprep.subr.mxu0 0.0
  %1880 = vmatpush1.msra.mxu0 0.0
  %1881 = vmatprep.subr.mxu0 0.0
  %1882 = vmatpush1.msra.mxu0 0.0
  %1883 = vmatprep.subr.mxu0 0.0
  %1884 = vmatpush1.msra.mxu0 0.0
  %1885 = vmatprep.subr.mxu0 0.0
  %1886 = vmatpush1.msra.mxu0 0.0
  %1887 = vmatprep.subr.mxu0 0.0
  %1888 = vmatpush1.msra.mxu0 0.0
  %1889 = vmatprep.subr.mxu0 0.0
  %1890 = vmatpush1.msra.mxu0 0.0
  %1891 = vmatprep.mubr.f32.mxu0 0.0
  %1892 = vmatmul.mubr.f32.gmra.mrb[0].mxu0 %v1825
  %v1893 = vpop.f32.mrb[0].mxu0
  %v1894 = vadd.f32 0.0, %v1893
  %v1895 = vpop.f32.mrb[0].mxu0
  %1896 = vdwg.mxu0
  %v1897 = vadd.f32 %v1819, %v1894
  %v1898 = vxor.u32 %v1897, 2147483648
  %v1899 = vmul.f32 %v1898, 1.442695
  %v1900 = vpow.pop %v1899
  %v1901 = vadd.f32 %v1900, 1.0
  %v1902 = vrcp.pop %v1901
  %v1903 = vmul.f32 1.0, %v1902
  %v1904 = vtanh.pop %v1897
  %v1905 = vmul.f32 %v1903, %v1298
  %1907 = vrot.lane.b32.xlu0 %v1904, 64
  %v1908 = vpop.permute.xlu0 %1907
  %v1910 = vmul.f32 %v1903, %v1908
  %1912 = vrot.lane.b32.xlu0 %v1910, 32
  %v1913 = vpop.permute.xlu0 %1912
  %v1915 = vadd.f32 %v1905, %v1913
  %v1916 = vtanh.pop %v1915
  %1918 = vrot.lane.b32.xlu0 %v1916, 64
  %v1919 = vpop.permute.xlu0 %1918
  %v1921 = vmul.f32 %v1903, %v1919
  %1922 = vmatprep.subr.mxu0 0.0
  %1923 = vmatpush1.msra.mxu0 %v859
  %1924 = vmatprep.subr.mxu0 0.0
  %1925 = vmatpush1.msra.mxu0 %v860
  %1926 = vmatprep.subr.mxu0 0.0
  %1927 = vmatpush1.msra.mxu0 %v861
  %1928 = vmatprep.subr.mxu0 0.0
  %1929 = vmatpush1.msra.mxu0 %v862
  %1930 = vmatprep.subr.mxu0 0.0
  %1931 = vmatpush1.msra.mxu0 0.0
  %1932 = vmatprep.subr.mxu0 0.0
  %1933 = vmatpush1.msra.mxu0 0.0
  %1934 = vmatprep.subr.mxu0 0.0
  %1935 = vmatpush1.msra.mxu0 0.0
  %1936 = vmatprep.subr.mxu0 0.0
  %1937 = vmatpush1.msra.mxu0 0.0
  %1938 = vmatprep.subr.mxu0 0.0
  %1939 = vmatpush1.msra.mxu0 0.0
  %1940 = vmatprep.subr.mxu0 0.0
  %1941 = vmatpush1.msra.mxu0 0.0
  %1942 = vmatprep.subr.mxu0 0.0
  %1943 = vmatpush1.msra.mxu0 0.0
  %1944 = vmatprep.subr.mxu0 0.0
  %1945 = vmatpush1.msra.mxu0 0.0
  %1946 = vmatprep.subr.mxu0 0.0
  %1947 = vmatpush1.msra.mxu0 0.0
  %1948 = vmatprep.subr.mxu0 0.0
  %1949 = vmatpush1.msra.mxu0 0.0
  %1950 = vmatprep.subr.mxu0 0.0
  %1951 = vmatpush1.msra.mxu0 0.0
  %1952 = vmatprep.subr.mxu0 0.0
  %1953 = vmatpush1.msra.mxu0 0.0
  %1954 = vmatprep.subr.mxu0 0.0
  %1955 = vmatpush1.msra.mxu0 0.0
  %1956 = vmatprep.subr.mxu0 0.0
  %1957 = vmatpush1.msra.mxu0 0.0
  %1958 = vmatprep.subr.mxu0 0.0
  %1959 = vmatpush1.msra.mxu0 0.0
  %1960 = vmatprep.subr.mxu0 0.0
  %1961 = vmatpush1.msra.mxu0 0.0
  %1962 = vmatprep.subr.mxu0 0.0
  %1963 = vmatpush1.msra.mxu0 0.0
  %1964 = vmatprep.subr.mxu0 0.0
  %1965 = vmatpush1.msra.mxu0 0.0
  %1966 = vmatprep.subr.mxu0 0.0
  %1967 = vmatpush1.msra.mxu0 0.0
  %1968 = vmatprep.subr.mxu0 0.0
  %1969 = vmatpush1.msra.mxu0 0.0
  %1970 = vmatprep.subr.mxu0 0.0
  %1971 = vmatpush1.msra.mxu0 0.0
  %1972 = vmatprep.subr.mxu0 0.0
  %1973 = vmatpush1.msra.mxu0 0.0
  %1974 = vmatprep.subr.mxu0 0.0
  %1975 = vmatpush1.msra.mxu0 0.0
  %1976 = vmatprep.subr.mxu0 0.0
  %1977 = vmatpush1.msra.mxu0 0.0
  %1978 = vmatprep.subr.mxu0 0.0
  %1979 = vmatpush1.msra.mxu0 0.0
  %1980 = vmatprep.subr.mxu0 0.0
  %1981 = vmatpush1.msra.mxu0 0.0
  %1982 = vmatprep.subr.mxu0 0.0
  %1983 = vmatpush1.msra.mxu0 0.0
  %1984 = vmatprep.subr.mxu0 0.0
  %1985 = vmatpush1.msra.mxu0 0.0
  %1986 = vmatprep.mubr.f32.mxu0 0.0
  %1987 = vmatmul.mubr.f32.gmra.mrb[0].mxu0 %v1825
  %v1988 = vpop.f32.mrb[0].mxu0
  %v1989 = vadd.f32 %v196, %v1988
  %v1990 = vpop.f32.mrb[0].mxu0
  %1991 = vdwg.mxu0
  %1993 = vrot.lane.b32.xlu0 %v1474, 32
  %v1994 = vpop.permute.xlu0 %1993
  %v1995 = vsel %vm211, %v1994, 0
  %1997 = vmatprep.subr.mxu0 0.0
  %1998 = vmatpush1.msra.mxu0 %v934
  %1999 = vmatprep.subr.mxu0 0.0
  %2000 = vmatpush1.msra.mxu0 %v935
  %2001 = vmatprep.subr.mxu0 0.0
  %2002 = vmatpush1.msra.mxu0 %v936
  %2003 = vmatprep.subr.mxu0 0.0
  %2004 = vmatpush1.msra.mxu0 %v937
  %2005 = vmatprep.subr.mxu0 0.0
  %2006 = vmatpush1.msra.mxu0 0.0
  %2007 = vmatprep.subr.mxu0 0.0
  %2008 = vmatpush1.msra.mxu0 0.0
  %2009 = vmatprep.subr.mxu0 0.0
  %2010 = vmatpush1.msra.mxu0 0.0
  %2011 = vmatprep.subr.mxu0 0.0
  %2012 = vmatpush1.msra.mxu0 0.0
  %2013 = vmatprep.subr.mxu0 0.0
  %2014 = vmatpush1.msra.mxu0 0.0
  %2015 = vmatprep.subr.mxu0 0.0
  %2016 = vmatpush1.msra.mxu0 0.0
  %2017 = vmatprep.subr.mxu0 0.0
  %2018 = vmatpush1.msra.mxu0 0.0
  %2019 = vmatprep.subr.mxu0 0.0
  %2020 = vmatpush1.msra.mxu0 0.0
  %2021 = vmatprep.subr.mxu0 0.0
  %2022 = vmatpush1.msra.mxu0 0.0
  %2023 = vmatprep.subr.mxu0 0.0
  %2024 = vmatpush1.msra.mxu0 0.0
  %2025 = vmatprep.subr.mxu0 0.0
  %2026 = vmatpush1.msra.mxu0 0.0
  %2027 = vmatprep.subr.mxu0 0.0
  %2028 = vmatpush1.msra.mxu0 0.0
  %2029 = vmatprep.subr.mxu0 0.0
  %2030 = vmatpush1.msra.mxu0 0.0
  %2031 = vmatprep.subr.mxu0 0.0
  %2032 = vmatpush1.msra.mxu0 0.0
  %2033 = vmatprep.subr.mxu0 0.0
  %2034 = vmatpush1.msra.mxu0 0.0
  %2035 = vmatprep.subr.mxu0 0.0
  %2036 = vmatpush1.msra.mxu0 0.0
  %2037 = vmatprep.subr.mxu0 0.0
  %2038 = vmatpush1.msra.mxu0 0.0
  %2039 = vmatprep.subr.mxu0 0.0
  %2040 = vmatpush1.msra.mxu0 0.0
  %2041 = vmatprep.subr.mxu0 0.0
  %2042 = vmatpush1.msra.mxu0 0.0
  %2043 = vmatprep.subr.mxu0 0.0
  %2044 = vmatpush1.msra.mxu0 0.0
  %2045 = vmatprep.subr.mxu0 0.0
  %2046 = vmatpush1.msra.mxu0 0.0
  %2047 = vmatprep.subr.mxu0 0.0
  %2048 = vmatpush1.msra.mxu0 0.0
  %2049 = vmatprep.subr.mxu0 0.0
  %2050 = vmatpush1.msra.mxu0 0.0
  %2051 = vmatprep.subr.mxu0 0.0
  %2052 = vmatpush1.msra.mxu0 0.0
  %2053 = vmatprep.subr.mxu0 0.0
  %2054 = vmatpush1.msra.mxu0 0.0
  %2055 = vmatprep.subr.mxu0 0.0
  %2056 = vmatpush1.msra.mxu0 0.0
  %2057 = vmatprep.subr.mxu0 0.0
  %2058 = vmatpush1.msra.mxu0 0.0
  %2059 = vmatprep.subr.mxu0 0.0
  %2060 = vmatpush1.msra.mxu0 0.0
  %2061 = vmatprep.mubr.f32.mxu0 0.0
  %2062 = vmatmul.mubr.f32.gmra.mrb[0].mxu0 %v1995
  %v2063 = vpop.f32.mrb[0].mxu0
  %v2064 = vadd.f32 0.0, %v2063
  %v2065 = vpop.f32.mrb[0].mxu0
  %2066 = vdwg.mxu0
  %v2067 = vadd.f32 %v1989, %v2064
  %v2068 = vxor.u32 %v2067, 2147483648
  %v2069 = vmul.f32 %v2068, 1.442695
  %v2070 = vpow.pop %v2069
  %v2071 = vadd.f32 %v2070, 1.0
  %v2072 = vrcp.pop %v2071
  %v2073 = vmul.f32 1.0, %v2072
  %v2074 = vtanh.pop %v2067
  %v2075 = vmul.f32 %v2073, %v1468
  %2077 = vrot.lane.b32.xlu0 %v2074, 64
  %v2078 = vpop.permute.xlu0 %2077
  %v2080 = vmul.f32 %v2073, %v2078
  %2082 = vrot.lane.b32.xlu0 %v2080, 32
  %v2083 = vpop.permute.xlu0 %2082
  %v2085 = vadd.f32 %v2075, %v2083
  %v2086 = vtanh.pop %v2085
  %2088 = vrot.lane.b32.xlu0 %v2086, 64
  %v2089 = vpop.permute.xlu0 %2088
  %v2091 = vmul.f32 %v2073, %v2089
  %2092 = vmatprep.subr.mxu0 0.0
  %2093 = vmatpush1.msra.mxu0 %v1476
  %2094 = vmatprep.subr.mxu0 0.0
  %2095 = vmatpush1.msra.mxu0 %v1477
  %2096 = vmatprep.subr.mxu0 0.0
  %2097 = vmatpush1.msra.mxu0 %v1478
  %2098 = vmatprep.subr.mxu0 0.0
  %2099 = vmatpush1.msra.mxu0 %v1479
  %2100 = vmatprep.subr.mxu0 0.0
  %2101 = vmatpush1.msra.mxu0 0.0
  %2102 = vmatprep.subr.mxu0 0.0
  %2103 = vmatpush1.msra.mxu0 0.0
  %2104 = vmatprep.subr.mxu0 0.0
  %2105 = vmatpush1.msra.mxu0 0.0
  %2106 = vmatprep.subr.mxu0 0.0
  %2107 = vmatpush1.msra.mxu0 0.0
  %2108 = vmatprep.subr.mxu0 0.0
  %2109 = vmatpush1.msra.mxu0 0.0
  %2110 = vmatprep.subr.mxu0 0.0
  %2111 = vmatpush1.msra.mxu0 0.0
  %2112 = vmatprep.subr.mxu0 0.0
  %2113 = vmatpush1.msra.mxu0 0.0
  %2114 = vmatprep.subr.mxu0 0.0
  %2115 = vmatpush1.msra.mxu0 0.0
  %2116 = vmatprep.subr.mxu0 0.0
  %2117 = vmatpush1.msra.mxu0 0.0
  %2118 = vmatprep.subr.mxu0 0.0
  %2119 = vmatpush1.msra.mxu0 0.0
  %2120 = vmatprep.subr.mxu0 0.0
  %2121 = vmatpush1.msra.mxu0 0.0
  %2122 = vmatprep.subr.mxu0 0.0
  %2123 = vmatpush1.msra.mxu0 0.0
  %2124 = vmatprep.subr.mxu0 0.0
  %2125 = vmatpush1.msra.mxu0 0.0
  %2126 = vmatprep.subr.mxu0 0.0
  %2127 = vmatpush1.msra.mxu0 0.0
  %2128 = vmatprep.subr.mxu0 0.0
  %2129 = vmatpush1.msra.mxu0 0.0
  %2130 = vmatprep.subr.mxu0 0.0
  %2131 = vmatpush1.msra.mxu0 0.0
  %2132 = vmatprep.subr.mxu0 0.0
  %2133 = vmatpush1.msra.mxu0 0.0
  %2134 = vmatprep.subr.mxu0 0.0
  %2135 = vmatpush1.msra.mxu0 0.0
  %2136 = vmatprep.subr.mxu0 0.0
  %2137 = vmatpush1.msra.mxu0 0.0
  %2138 = vmatprep.subr.mxu0 0.0
  %2139 = vmatpush1.msra.mxu0 0.0
  %2140 = vmatprep.subr.mxu0 0.0
  %2141 = vmatpush1.msra.mxu0 0.0
  %2142 = vmatprep.subr.mxu0 0.0
  %2143 = vmatpush1.msra.mxu0 0.0
  %2144 = vmatprep.subr.mxu0 0.0
  %2145 = vmatpush1.msra.mxu0 0.0
  %2146 = vmatprep.subr.mxu0 0.0
  %2147 = vmatpush1.msra.mxu0 0.0
  %2148 = vmatprep.subr.mxu0 0.0
  %2149 = vmatpush1.msra.mxu0 0.0
  %2150 = vmatprep.subr.mxu0 0.0
  %2151 = vmatpush1.msra.mxu0 0.0
  %2152 = vmatprep.subr.mxu0 0.0
  %2153 = vmatpush1.msra.mxu0 0.0
  %2154 = vmatprep.subr.mxu0 0.0
  %2155 = vmatpush1.msra.mxu0 0.0
  %2156 = vmatprep.mubr.f32.mxu0 0.0
  %2157 = vmatmul.mubr.f32.gmra.mrb[0].mxu0 %v1995
  %v2158 = vpop.f32.mrb[0].mxu0
  %v2159 = vadd.f32 %v204, %v2158
  %v2160 = vpop.f32.mrb[0].mxu0
  %2161 = vdwg.mxu0
  %2163 = vrot.lane.b32.xlu0 %v1649, 32
  %v2164 = vpop.permute.xlu0 %2163
  %v2165 = vsel %vm211, %v2164, 0
  %2167 = vmatprep.subr.mxu0 0.0
  %2168 = vmatpush1.msra.mxu0 %v1551
  %2169 = vmatprep.subr.mxu0 0.0
  %2170 = vmatpush1.msra.mxu0 %v1552
  %2171 = vmatprep.subr.mxu0 0.0
  %2172 = vmatpush1.msra.mxu0 %v1553
  %2173 = vmatprep.subr.mxu0 0.0
  %2174 = vmatpush1.msra.mxu0 %v1554
  %2175 = vmatprep.subr.mxu0 0.0
  %2176 = vmatpush1.msra.mxu0 0.0
  %2177 = vmatprep.subr.mxu0 0.0
  %2178 = vmatpush1.msra.mxu0 0.0
  %2179 = vmatprep.subr.mxu0 0.0
  %2180 = vmatpush1.msra.mxu0 0.0
  %2181 = vmatprep.subr.mxu0 0.0
  %2182 = vmatpush1.msra.mxu0 0.0
  %2183 = vmatprep.subr.mxu0 0.0
  %2184 = vmatpush1.msra.mxu0 0.0
  %2185 = vmatprep.subr.mxu0 0.0
  %2186 = vmatpush1.msra.mxu0 0.0
  %2187 = vmatprep.subr.mxu0 0.0
  %2188 = vmatpush1.msra.mxu0 0.0
  %2189 = vmatprep.subr.mxu0 0.0
  %2190 = vmatpush1.msra.mxu0 0.0
  %2191 = vmatprep.subr.mxu0 0.0
  %2192 = vmatpush1.msra.mxu0 0.0
  %2193 = vmatprep.subr.mxu0 0.0
  %2194 = vmatpush1.msra.mxu0 0.0
  %2195 = vmatprep.subr.mxu0 0.0
  %2196 = vmatpush1.msra.mxu0 0.0
  %2197 = vmatprep.subr.mxu0 0.0
  %2198 = vmatpush1.msra.mxu0 0.0
  %2199 = vmatprep.subr.mxu0 0.0
  %2200 = vmatpush1.msra.mxu0 0.0
  %2201 = vmatprep.subr.mxu0 0.0
  %2202 = vmatpush1.msra.mxu0 0.0
  %2203 = vmatprep.subr.mxu0 0.0
  %2204 = vmatpush1.msra.mxu0 0.0
  %2205 = vmatprep.subr.mxu0 0.0
  %2206 = vmatpush1.msra.mxu0 0.0
  %2207 = vmatprep.subr.mxu0 0.0
  %2208 = vmatpush1.msra.mxu0 0.0
  %2209 = vmatprep.subr.mxu0 0.0
  %2210 = vmatpush1.msra.mxu0 0.0
  %2211 = vmatprep.subr.mxu0 0.0
  %2212 = vmatpush1.msra.mxu0 0.0
  %2213 = vmatprep.subr.mxu0 0.0
  %2214 = vmatpush1.msra.mxu0 0.0
  %2215 = vmatprep.subr.mxu0 0.0
  %2216 = vmatpush1.msra.mxu0 0.0
  %2217 = vmatprep.subr.mxu0 0.0
  %2218 = vmatpush1.msra.mxu0 0.0
  %2219 = vmatprep.subr.mxu0 0.0
  %2220 = vmatpush1.msra.mxu0 0.0
  %2221 = vmatprep.subr.mxu0 0.0
  %2222 = vmatpush1.msra.mxu0 0.0
  %2223 = vmatprep.subr.mxu0 0.0
  %2224 = vmatpush1.msra.mxu0 0.0
  %2225 = vmatprep.subr.mxu0 0.0
  %2226 = vmatpush1.msra.mxu0 0.0
  %2227 = vmatprep.subr.mxu0 0.0
  %2228 = vmatpush1.msra.mxu0 0.0
  %2229 = vmatprep.subr.mxu0 0.0
  %2230 = vmatpush1.msra.mxu0 0.0
  %2231 = vmatprep.mubr.f32.mxu0 0.0
  %2232 = vmatmul.mubr.f32.gmra.mrb[0].mxu0 %v2165
  %v2233 = vpop.f32.mrb[0].mxu0
  %v2234 = vadd.f32 0.0, %v2233
  %v2235 = vpop.f32.mrb[0].mxu0
  %2236 = vdwg.mxu0
  %v2237 = vadd.f32 %v2159, %v2234
  %v2238 = vxor.u32 %v2237, 2147483648
  %v2239 = vmul.f32 %v2238, 1.442695
  %v2240 = vpow.pop %v2239
  %v2241 = vadd.f32 %v2240, 1.0
  %v2242 = vrcp.pop %v2241
  %v2243 = vmul.f32 1.0, %v2242
  %v2244 = vtanh.pop %v2237
  %v2245 = vmul.f32 %v2243, %v1643
  %2247 = vrot.lane.b32.xlu0 %v2244, 64
  %v2248 = vpop.permute.xlu0 %2247
  %v2250 = vmul.f32 %v2243, %v2248
  %2252 = vrot.lane.b32.xlu0 %v2250, 32
  %v2253 = vpop.permute.xlu0 %2252
  %v2255 = vadd.f32 %v2245, %v2253
  %v2256 = vtanh.pop %v2255
  %2258 = vrot.lane.b32.xlu0 %v2256, 64
  %v2259 = vpop.permute.xlu0 %2258
  %v2261 = vmul.f32 %v2243, %v2259
  %s2262 = scalar_lea.vmem [#allocation2], 40
  %v2263 = vld [vmem:[%s2262] sm:$0xff]
  %2265 = vrot.lane.b32.xlu0 %v1751, 32
  %v2266 = vpop.permute.xlu0 %2265
  %v2267 = vsel %vm211, %v2266, 0
  %2269 = vmatprep.subr.mxu0 0.0
  %2270 = vmatpush1.msra.mxu0 %v207
  %2271 = vmatprep.subr.mxu0 0.0
  %2272 = vmatpush1.msra.mxu0 %v208
  %2273 = vmatprep.subr.mxu0 0.0
  %2274 = vmatpush1.msra.mxu0 %v209
  %2275 = vmatprep.subr.mxu0 0.0
  %2276 = vmatpush1.msra.mxu0 %v210
  %2277 = vmatprep.subr.mxu0 0.0
  %2278 = vmatpush1.msra.mxu0 0.0
  %2279 = vmatprep.subr.mxu0 0.0
  %2280 = vmatpush1.msra.mxu0 0.0
  %2281 = vmatprep.subr.mxu0 0.0
  %2282 = vmatpush1.msra.mxu0 0.0
  %2283 = vmatprep.subr.mxu0 0.0
  %2284 = vmatpush1.msra.mxu0 0.0
  %2285 = vmatprep.subr.mxu0 0.0
  %2286 = vmatpush1.msra.mxu0 0.0
  %2287 = vmatprep.subr.mxu0 0.0
  %2288 = vmatpush1.msra.mxu0 0.0
  %2289 = vmatprep.subr.mxu0 0.0
  %2290 = vmatpush1.msra.mxu0 0.0
  %2291 = vmatprep.subr.mxu0 0.0
  %2292 = vmatpush1.msra.mxu0 0.0
  %2293 = vmatprep.subr.mxu0 0.0
  %2294 = vmatpush1.msra.mxu0 0.0
  %2295 = vmatprep.subr.mxu0 0.0
  %2296 = vmatpush1.msra.mxu0 0.0
  %2297 = vmatprep.subr.mxu0 0.0
  %2298 = vmatpush1.msra.mxu0 0.0
  %2299 = vmatprep.subr.mxu0 0.0
  %2300 = vmatpush1.msra.mxu0 0.0
  %2301 = vmatprep.subr.mxu0 0.0
  %2302 = vmatpush1.msra.mxu0 0.0
  %2303 = vmatprep.subr.mxu0 0.0
  %2304 = vmatpush1.msra.mxu0 0.0
  %2305 = vmatprep.subr.mxu0 0.0
  %2306 = vmatpush1.msra.mxu0 0.0
  %2307 = vmatprep.subr.mxu0 0.0
  %2308 = vmatpush1.msra.mxu0 0.0
  %2309 = vmatprep.subr.mxu0 0.0
  %2310 = vmatpush1.msra.mxu0 0.0
  %2311 = vmatprep.subr.mxu0 0.0
  %2312 = vmatpush1.msra.mxu0 0.0
  %2313 = vmatprep.subr.mxu0 0.0
  %2314 = vmatpush1.msra.mxu0 0.0
  %2315 = vmatprep.subr.mxu0 0.0
  %2316 = vmatpush1.msra.mxu0 0.0
  %2317 = vmatprep.subr.mxu0 0.0
  %2318 = vmatpush1.msra.mxu0 0.0
  %2319 = vmatprep.subr.mxu0 0.0
  %2320 = vmatpush1.msra.mxu0 0.0
  %2321 = vmatprep.subr.mxu0 0.0
  %2322 = vmatpush1.msra.mxu0 0.0
  %2323 = vmatprep.subr.mxu0 0.0
  %2324 = vmatpush1.msra.mxu0 0.0
  %2325 = vmatprep.subr.mxu0 0.0
  %2326 = vmatpush1.msra.mxu0 0.0
  %2327 = vmatprep.subr.mxu0 0.0
  %2328 = vmatpush1.msra.mxu0 0.0
  %2329 = vmatprep.subr.mxu0 0.0
  %2330 = vmatpush1.msra.mxu0 0.0
  %2331 = vmatprep.subr.mxu0 0.0
  %2332 = vmatpush1.msra.mxu0 0.0
  %2333 = vmatprep.mubr.f32.mxu0 0.0
  %2334 = vmatmul.mubr.f32.gmra.mrb[0].mxu0 %v2267
  %v2335 = vpop.f32.mrb[0].mxu0
  %v2336 = vadd.f32 0.0, %v2335
  %v2337 = vpop.f32.mrb[0].mxu0
  %2338 = vdwg.mxu0
  %v2339 = vadd.f32 %v2263, %v2336
  %v2340 = vxor.u32 %v2339, 2147483648
  %v2341 = vmul.f32 %v2340, 1.442695
  %v2342 = vpow.pop %v2341
  %v2343 = vadd.f32 %v2342, 1.0
  %v2344 = vrcp.pop %v2343
  %v2345 = vmul.f32 1.0, %v2344
  %v2346 = vtanh.pop %v2339
  %v2347 = vmul.f32 %v2345, %v1745
  %2349 = vrot.lane.b32.xlu0 %v2346, 64
  %v2350 = vpop.permute.xlu0 %2349
  %v2352 = vmul.f32 %v2345, %v2350
  %2354 = vrot.lane.b32.xlu0 %v2352, 32
  %v2355 = vpop.permute.xlu0 %2354
  %v2357 = vadd.f32 %v2347, %v2355
  %v2358 = vtanh.pop %v2357
  %2360 = vrot.lane.b32.xlu0 %v2358, 64
  %v2361 = vpop.permute.xlu0 %2360
  %v2363 = vmul.f32 %v2345, %v2361
  %2364 = vmatprep.subr.mxu0 0.0
  %2365 = vmatpush1.msra.mxu0 %v412
  %2366 = vmatprep.subr.mxu0 0.0
  %2367 = vmatpush1.msra.mxu0 %v413
  %2368 = vmatprep.subr.mxu0 0.0
  %2369 = vmatpush1.msra.mxu0 %v414
  %2370 = vmatprep.subr.mxu0 0.0
  %2371 = vmatpush1.msra.mxu0 %v415
  %2372 = vmatprep.subr.mxu0 0.0
  %2373 = vmatpush1.msra.mxu0 0.0
  %2374 = vmatprep.subr.mxu0 0.0
  %2375 = vmatpush1.msra.mxu0 0.0
  %2376 = vmatprep.subr.mxu0 0.0
  %2377 = vmatpush1.msra.mxu0 0.0
  %2378 = vmatprep.subr.mxu0 0.0
  %2379 = vmatpush1.msra.mxu0 0.0
  %2380 = vmatprep.subr.mxu0 0.0
  %2381 = vmatpush1.msra.mxu0 0.0
  %2382 = vmatprep.subr.mxu0 0.0
  %2383 = vmatpush1.msra.mxu0 0.0
  %2384 = vmatprep.subr.mxu0 0.0
  %2385 = vmatpush1.msra.mxu0 0.0
  %2386 = vmatprep.subr.mxu0 0.0
  %2387 = vmatpush1.msra.mxu0 0.0
  %2388 = vmatprep.subr.mxu0 0.0
  %2389 = vmatpush1.msra.mxu0 0.0
  %2390 = vmatprep.subr.mxu0 0.0
  %2391 = vmatpush1.msra.mxu0 0.0
  %2392 = vmatprep.subr.mxu0 0.0
  %2393 = vmatpush1.msra.mxu0 0.0
  %2394 = vmatprep.subr.mxu0 0.0
  %2395 = vmatpush1.msra.mxu0 0.0
  %2396 = vmatprep.subr.mxu0 0.0
  %2397 = vmatpush1.msra.mxu0 0.0
  %2398 = vmatprep.subr.mxu0 0.0
  %2399 = vmatpush1.msra.mxu0 0.0
  %2400 = vmatprep.subr.mxu0 0.0
  %2401 = vmatpush1.msra.mxu0 0.0
  %2402 = vmatprep.subr.mxu0 0.0
  %2403 = vmatpush1.msra.mxu0 0.0
  %2404 = vmatprep.subr.mxu0 0.0
  %2405 = vmatpush1.msra.mxu0 0.0
  %2406 = vmatprep.subr.mxu0 0.0
  %2407 = vmatpush1.msra.mxu0 0.0
  %2408 = vmatprep.subr.mxu0 0.0
  %2409 = vmatpush1.msra.mxu0 0.0
  %2410 = vmatprep.subr.mxu0 0.0
  %2411 = vmatpush1.msra.mxu0 0.0
  %2412 = vmatprep.subr.mxu0 0.0
  %2413 = vmatpush1.msra.mxu0 0.0
  %2414 = vmatprep.subr.mxu0 0.0
  %2415 = vmatpush1.msra.mxu0 0.0
  %2416 = vmatprep.subr.mxu0 0.0
  %2417 = vmatpush1.msra.mxu0 0.0
  %2418 = vmatprep.subr.mxu0 0.0
  %2419 = vmatpush1.msra.mxu0 0.0
  %2420 = vmatprep.subr.mxu0 0.0
  %2421 = vmatpush1.msra.mxu0 0.0
  %2422 = vmatprep.subr.mxu0 0.0
  %2423 = vmatpush1.msra.mxu0 0.0
  %2424 = vmatprep.subr.mxu0 0.0
  %2425 = vmatpush1.msra.mxu0 0.0
  %2426 = vmatprep.subr.mxu0 0.0
  %2427 = vmatpush1.msra.mxu0 0.0
  %2428 = vmatprep.mubr.f32.mxu0 0.0
  %2429 = vmatmul.mubr.f32.gmra.mrb[0].mxu0 %v2267
  %v2430 = vpop.f32.mrb[0].mxu0
  %v2431 = vadd.f32 %v188, %v2430
  %v2432 = vpop.f32.mrb[0].mxu0
  %2433 = vdwg.mxu0
  %2435 = vrot.lane.b32.xlu0 %v1921, 32
  %v2436 = vpop.permute.xlu0 %2435
  %v2437 = vsel %vm211, %v2436, 0
  %2439 = vmatprep.subr.mxu0 0.0
  %2440 = vmatpush1.msra.mxu0 %v487
  %2441 = vmatprep.subr.mxu0 0.0
  %2442 = vmatpush1.msra.mxu0 %v488
  %2443 = vmatprep.subr.mxu0 0.0
  %2444 = vmatpush1.msra.mxu0 %v489
  %2445 = vmatprep.subr.mxu0 0.0
  %2446 = vmatpush1.msra.mxu0 %v490
  %2447 = vmatprep.subr.mxu0 0.0
  %2448 = vmatpush1.msra.mxu0 0.0
  %2449 = vmatprep.subr.mxu0 0.0
  %2450 = vmatpush1.msra.mxu0 0.0
  %2451 = vmatprep.subr.mxu0 0.0
  %2452 = vmatpush1.msra.mxu0 0.0
  %2453 = vmatprep.subr.mxu0 0.0
  %2454 = vmatpush1.msra.mxu0 0.0
  %2455 = vmatprep.subr.mxu0 0.0
  %2456 = vmatpush1.msra.mxu0 0.0
  %2457 = vmatprep.subr.mxu0 0.0
  %2458 = vmatpush1.msra.mxu0 0.0
  %2459 = vmatprep.subr.mxu0 0.0
  %2460 = vmatpush1.msra.mxu0 0.0
  %2461 = vmatprep.subr.mxu0 0.0
  %2462 = vmatpush1.msra.mxu0 0.0
  %2463 = vmatprep.subr.mxu0 0.0
  %2464 = vmatpush1.msra.mxu0 0.0
  %2465 = vmatprep.subr.mxu0 0.0
  %2466 = vmatpush1.msra.mxu0 0.0
  %2467 = vmatprep.subr.mxu0 0.0
  %2468 = vmatpush1.msra.mxu0 0.0
  %2469 = vmatprep.subr.mxu0 0.0
  %2470 = vmatpush1.msra.mxu0 0.0
  %2471 = vmatprep.subr.mxu0 0.0
  %2472 = vmatpush1.msra.mxu0 0.0
  %2473 = vmatprep.subr.mxu0 0.0
  %2474 = vmatpush1.msra.mxu0 0.0
  %2475 = vmatprep.subr.mxu0 0.0
  %2476 = vmatpush1.msra.mxu0 0.0
  %2477 = vmatprep.subr.mxu0 0.0
  %2478 = vmatpush1.msra.mxu0 0.0
  %2479 = vmatprep.subr.mxu0 0.0
  %2480 = vmatpush1.msra.mxu0 0.0
  %2481 = vmatprep.subr.mxu0 0.0
  %2482 = vmatpush1.msra.mxu0 0.0
  %2483 = vmatprep.subr.mxu0 0.0
  %2484 = vmatpush1.msra.mxu0 0.0
  %2485 = vmatprep.subr.mxu0 0.0
  %2486 = vmatpush1.msra.mxu0 0.0
  %2487 = vmatprep.subr.mxu0 0.0
  %2488 = vmatpush1.msra.mxu0 0.0
  %2489 = vmatprep.subr.mxu0 0.0
  %2490 = vmatpush1.msra.mxu0 0.0
  %2491 = vmatprep.subr.mxu0 0.0
  %2492 = vmatpush1.msra.mxu0 0.0
  %2493 = vmatprep.subr.mxu0 0.0
  %2494 = vmatpush1.msra.mxu0 0.0
  %2495 = vmatprep.subr.mxu0 0.0
  %2496 = vmatpush1.msra.mxu0 0.0
  %2497 = vmatprep.subr.mxu0 0.0
  %2498 = vmatpush1.msra.mxu0 0.0
  %2499 = vmatprep.subr.mxu0 0.0
  %2500 = vmatpush1.msra.mxu0 0.0
  %2501 = vmatprep.subr.mxu0 0.0
  %2502 = vmatpush1.msra.mxu0 0.0
  %2503 = vmatprep.mubr.f32.mxu0 0.0
  %2504 = vmatmul.mubr.f32.gmra.mrb[0].mxu0 %v2437
  %v2505 = vpop.f32.mrb[0].mxu0
  %v2506 = vadd.f32 0.0, %v2505
  %v2507 = vpop.f32.mrb[0].mxu0
  %2508 = vdwg.mxu0
  %v2509 = vadd.f32 %v2431, %v2506
  %v2510 = vxor.u32 %v2509, 2147483648
  %v2511 = vmul.f32 %v2510, 1.442695
  %v2512 = vpow.pop %v2511
  %v2513 = vadd.f32 %v2512, 1.0
  %v2514 = vrcp.pop %v2513
  %v2515 = vmul.f32 1.0, %v2514
  %v2516 = vtanh.pop %v2509
  %v2517 = vmul.f32 %v2515, %v1915
  %2519 = vrot.lane.b32.xlu0 %v2516, 64
  %v2520 = vpop.permute.xlu0 %2519
  %v2522 = vmul.f32 %v2515, %v2520
  %2524 = vrot.lane.b32.xlu0 %v2522, 32
  %v2525 = vpop.permute.xlu0 %2524
  %v2527 = vadd.f32 %v2517, %v2525
  %v2528 = vtanh.pop %v2527
  %2530 = vrot.lane.b32.xlu0 %v2528, 64
  %v2531 = vpop.permute.xlu0 %2530
  %v2533 = vmul.f32 %v2515, %v2531
  %2534 = vmatprep.subr.mxu0 0.0
  %2535 = vmatpush1.msra.mxu0 %v859
  %2536 = vmatprep.subr.mxu0 0.0
  %2537 = vmatpush1.msra.mxu0 %v860
  %2538 = vmatprep.subr.mxu0 0.0
  %2539 = vmatpush1.msra.mxu0 %v861
  %2540 = vmatprep.subr.mxu0 0.0
  %2541 = vmatpush1.msra.mxu0 %v862
  %2542 = vmatprep.subr.mxu0 0.0
  %2543 = vmatpush1.msra.mxu0 0.0
  %2544 = vmatprep.subr.mxu0 0.0
  %2545 = vmatpush1.msra.mxu0 0.0
  %2546 = vmatprep.subr.mxu0 0.0
  %2547 = vmatpush1.msra.mxu0 0.0
  %2548 = vmatprep.subr.mxu0 0.0
  %2549 = vmatpush1.msra.mxu0 0.0
  %2550 = vmatprep.subr.mxu0 0.0
  %2551 = vmatpush1.msra.mxu0 0.0
  %2552 = vmatprep.subr.mxu0 0.0
  %2553 = vmatpush1.msra.mxu0 0.0
  %2554 = vmatprep.subr.mxu0 0.0
  %2555 = vmatpush1.msra.mxu0 0.0
  %2556 = vmatprep.subr.mxu0 0.0
  %2557 = vmatpush1.msra.mxu0 0.0
  %2558 = vmatprep.subr.mxu0 0.0
  %2559 = vmatpush1.msra.mxu0 0.0
  %2560 = vmatprep.subr.mxu0 0.0
  %2561 = vmatpush1.msra.mxu0 0.0
  %2562 = vmatprep.subr.mxu0 0.0
  %2563 = vmatpush1.msra.mxu0 0.0
  %2564 = vmatprep.subr.mxu0 0.0
  %2565 = vmatpush1.msra.mxu0 0.0
  %2566 = vmatprep.subr.mxu0 0.0
  %2567 = vmatpush1.msra.mxu0 0.0
  %2568 = vmatprep.subr.mxu0 0.0
  %2569 = vmatpush1.msra.mxu0 0.0
  %2570 = vmatprep.subr.mxu0 0.0
  %2571 = vmatpush1.msra.mxu0 0.0
  %2572 = vmatprep.subr.mxu0 0.0
  %2573 = vmatpush1.msra.mxu0 0.0
  %2574 = vmatprep.subr.mxu0 0.0
  %2575 = vmatpush1.msra.mxu0 0.0
  %2576 = vmatprep.subr.mxu0 0.0
  %2577 = vmatpush1.msra.mxu0 0.0
  %2578 = vmatprep.subr.mxu0 0.0
  %2579 = vmatpush1.msra.mxu0 0.0
  %2580 = vmatprep.subr.mxu0 0.0
  %2581 = vmatpush1.msra.mxu0 0.0
  %2582 = vmatprep.subr.mxu0 0.0
  %2583 = vmatpush1.msra.mxu0 0.0
  %2584 = vmatprep.subr.mxu0 0.0
  %2585 = vmatpush1.msra.mxu0 0.0
  %2586 = vmatprep.subr.mxu0 0.0
  %2587 = vmatpush1.msra.mxu0 0.0
  %2588 = vmatprep.subr.mxu0 0.0
  %2589 = vmatpush1.msra.mxu0 0.0
  %2590 = vmatprep.subr.mxu0 0.0
  %2591 = vmatpush1.msra.mxu0 0.0
  %2592 = vmatprep.subr.mxu0 0.0
  %2593 = vmatpush1.msra.mxu0 0.0
  %2594 = vmatprep.subr.mxu0 0.0
  %2595 = vmatpush1.msra.mxu0 0.0
  %2596 = vmatprep.subr.mxu0 0.0
  %2597 = vmatpush1.msra.mxu0 0.0
  %2598 = vmatprep.mubr.f32.mxu0 0.0
  %2599 = vmatmul.mubr.f32.gmra.mrb[0].mxu0 %v2437
  %v2600 = vpop.f32.mrb[0].mxu0
  %v2601 = vadd.f32 %v196, %v2600
  %v2602 = vpop.f32.mrb[0].mxu0
  %2603 = vdwg.mxu0
  %2605 = vrot.lane.b32.xlu0 %v2091, 32
  %v2606 = vpop.permute.xlu0 %2605
  %v2607 = vsel %vm211, %v2606, 0
  %2609 = vmatprep.subr.mxu0 0.0
  %2610 = vmatpush1.msra.mxu0 %v934
  %2611 = vmatprep.subr.mxu0 0.0
  %2612 = vmatpush1.msra.mxu0 %v935
  %2613 = vmatprep.subr.mxu0 0.0
  %2614 = vmatpush1.msra.mxu0 %v936
  %2615 = vmatprep.subr.mxu0 0.0
  %2616 = vmatpush1.msra.mxu0 %v937
  %2617 = vmatprep.subr.mxu0 0.0
  %2618 = vmatpush1.msra.mxu0 0.0
  %2619 = vmatprep.subr.mxu0 0.0
  %2620 = vmatpush1.msra.mxu0 0.0
  %2621 = vmatprep.subr.mxu0 0.0
  %2622 = vmatpush1.msra.mxu0 0.0
  %2623 = vmatprep.subr.mxu0 0.0
  %2624 = vmatpush1.msra.mxu0 0.0
  %2625 = vmatprep.subr.mxu0 0.0
  %2626 = vmatpush1.msra.mxu0 0.0
  %2627 = vmatprep.subr.mxu0 0.0
  %2628 = vmatpush1.msra.mxu0 0.0
  %2629 = vmatprep.subr.mxu0 0.0
  %2630 = vmatpush1.msra.mxu0 0.0
  %2631 = vmatprep.subr.mxu0 0.0
  %2632 = vmatpush1.msra.mxu0 0.0
  %2633 = vmatprep.subr.mxu0 0.0
  %2634 = vmatpush1.msra.mxu0 0.0
  %2635 = vmatprep.subr.mxu0 0.0
  %2636 = vmatpush1.msra.mxu0 0.0
  %2637 = vmatprep.subr.mxu0 0.0
  %2638 = vmatpush1.msra.mxu0 0.0
  %2639 = vmatprep.subr.mxu0 0.0
  %2640 = vmatpush1.msra.mxu0 0.0
  %2641 = vmatprep.subr.mxu0 0.0
  %2642 = vmatpush1.msra.mxu0 0.0
  %2643 = vmatprep.subr.mxu0 0.0
  %2644 = vmatpush1.msra.mxu0 0.0
  %2645 = vmatprep.subr.mxu0 0.0
  %2646 = vmatpush1.msra.mxu0 0.0
  %2647 = vmatprep.subr.mxu0 0.0
  %2648 = vmatpush1.msra.mxu0 0.0
  %2649 = vmatprep.subr.mxu0 0.0
  %2650 = vmatpush1.msra.mxu0 0.0
  %2651 = vmatprep.subr.mxu0 0.0
  %2652 = vmatpush1.msra.mxu0 0.0
  %2653 = vmatprep.subr.mxu0 0.0
  %2654 = vmatpush1.msra.mxu0 0.0
  %2655 = vmatprep.subr.mxu0 0.0
  %2656 = vmatpush1.msra.mxu0 0.0
  %2657 = vmatprep.subr.mxu0 0.0
  %2658 = vmatpush1.msra.mxu0 0.0
  %2659 = vmatprep.subr.mxu0 0.0
  %2660 = vmatpush1.msra.mxu0 0.0
  %2661 = vmatprep.subr.mxu0 0.0
  %2662 = vmatpush1.msra.mxu0 0.0
  %2663 = vmatprep.subr.mxu0 0.0
  %2664 = vmatpush1.msra.mxu0 0.0
  %2665 = vmatprep.subr.mxu0 0.0
  %2666 = vmatpush1.msra.mxu0 0.0
  %2667 = vmatprep.subr.mxu0 0.0
  %2668 = vmatpush1.msra.mxu0 0.0
  %2669 = vmatprep.subr.mxu0 0.0
  %2670 = vmatpush1.msra.mxu0 0.0
  %2671 = vmatprep.subr.mxu0 0.0
  %2672 = vmatpush1.msra.mxu0 0.0
  %2673 = vmatprep.mubr.f32.mxu0 0.0
  %2674 = vmatmul.mubr.f32.gmra.mrb[0].mxu0 %v2607
  %v2675 = vpop.f32.mrb[0].mxu0
  %v2676 = vadd.f32 0.0, %v2675
  %v2677 = vpop.f32.mrb[0].mxu0
  %2678 = vdwg.mxu0
  %v2679 = vadd.f32 %v2601, %v2676
  %v2680 = vxor.u32 %v2679, 2147483648
  %v2681 = vmul.f32 %v2680, 1.442695
  %v2682 = vpow.pop %v2681
  %v2683 = vadd.f32 %v2682, 1.0
  %v2684 = vrcp.pop %v2683
  %v2685 = vmul.f32 1.0, %v2684
  %v2686 = vtanh.pop %v2679
  %v2687 = vmul.f32 %v2685, %v2085
  %2689 = vrot.lane.b32.xlu0 %v2686, 64
  %v2690 = vpop.permute.xlu0 %2689
  %v2692 = vmul.f32 %v2685, %v2690
  %2694 = vrot.lane.b32.xlu0 %v2692, 32
  %v2695 = vpop.permute.xlu0 %2694
  %v2697 = vadd.f32 %v2687, %v2695
  %v2698 = vtanh.pop %v2697
  %2700 = vrot.lane.b32.xlu0 %v2698, 64
  %v2701 = vpop.permute.xlu0 %2700
  %v2703 = vmul.f32 %v2685, %v2701
  %2704 = vmatprep.subr.mxu0 0.0
  %2705 = vmatpush1.msra.mxu0 %v1476
  %2706 = vmatprep.subr.mxu0 0.0
  %2707 = vmatpush1.msra.mxu0 %v1477
  %2708 = vmatprep.subr.mxu0 0.0
  %2709 = vmatpush1.msra.mxu0 %v1478
  %2710 = vmatprep.subr.mxu0 0.0
  %2711 = vmatpush1.msra.mxu0 %v1479
  %2712 = vmatprep.subr.mxu0 0.0
  %2713 = vmatpush1.msra.mxu0 0.0
  %2714 = vmatprep.subr.mxu0 0.0
  %2715 = vmatpush1.msra.mxu0 0.0
  %2716 = vmatprep.subr.mxu0 0.0
  %2717 = vmatpush1.msra.mxu0 0.0
  %2718 = vmatprep.subr.mxu0 0.0
  %2719 = vmatpush1.msra.mxu0 0.0
  %2720 = vmatprep.subr.mxu0 0.0
  %2721 = vmatpush1.msra.mxu0 0.0
  %2722 = vmatprep.subr.mxu0 0.0
  %2723 = vmatpush1.msra.mxu0 0.0
  %2724 = vmatprep.subr.mxu0 0.0
  %2725 = vmatpush1.msra.mxu0 0.0
  %2726 = vmatprep.subr.mxu0 0.0
  %2727 = vmatpush1.msra.mxu0 0.0
  %2728 = vmatprep.subr.mxu0 0.0
  %2729 = vmatpush1.msra.mxu0 0.0
  %2730 = vmatprep.subr.mxu0 0.0
  %2731 = vmatpush1.msra.mxu0 0.0
  %2732 = vmatprep.subr.mxu0 0.0
  %2733 = vmatpush1.msra.mxu0 0.0
  %2734 = vmatprep.subr.mxu0 0.0
  %2735 = vmatpush1.msra.mxu0 0.0
  %2736 = vmatprep.subr.mxu0 0.0
  %2737 = vmatpush1.msra.mxu0 0.0
  %2738 = vmatprep.subr.mxu0 0.0
  %2739 = vmatpush1.msra.mxu0 0.0
  %2740 = vmatprep.subr.mxu0 0.0
  %2741 = vmatpush1.msra.mxu0 0.0
  %2742 = vmatprep.subr.mxu0 0.0
  %2743 = vmatpush1.msra.mxu0 0.0
  %2744 = vmatprep.subr.mxu0 0.0
  %2745 = vmatpush1.msra.mxu0 0.0
  %2746 = vmatprep.subr.mxu0 0.0
  %2747 = vmatpush1.msra.mxu0 0.0
  %2748 = vmatprep.subr.mxu0 0.0
  %2749 = vmatpush1.msra.mxu0 0.0
  %2750 = vmatprep.subr.mxu0 0.0
  %2751 = vmatpush1.msra.mxu0 0.0
  %2752 = vmatprep.subr.mxu0 0.0
  %2753 = vmatpush1.msra.mxu0 0.0
  %2754 = vmatprep.subr.mxu0 0.0
  %2755 = vmatpush1.msra.mxu0 0.0
  %2756 = vmatprep.subr.mxu0 0.0
  %2757 = vmatpush1.msra.mxu0 0.0
  %2758 = vmatprep.subr.mxu0 0.0
  %2759 = vmatpush1.msra.mxu0 0.0
  %2760 = vmatprep.subr.mxu0 0.0
  %2761 = vmatpush1.msra.mxu0 0.0
  %2762 = vmatprep.subr.mxu0 0.0
  %2763 = vmatpush1.msra.mxu0 0.0
  %2764 = vmatprep.subr.mxu0 0.0
  %2765 = vmatpush1.msra.mxu0 0.0
  %2766 = vmatprep.subr.mxu0 0.0
  %2767 = vmatpush1.msra.mxu0 0.0
  %2768 = vmatprep.mubr.f32.mxu0 0.0
  %2769 = vmatmul.mubr.f32.gmra.mrb[0].mxu0 %v2607
  %v2770 = vpop.f32.mrb[0].mxu0
  %v2771 = vadd.f32 %v204, %v2770
  %v2772 = vpop.f32.mrb[0].mxu0
  %2773 = vdwg.mxu0
  %2775 = vrot.lane.b32.xlu0 %v2261, 32
  %v2776 = vpop.permute.xlu0 %2775
  %v2777 = vsel %vm211, %v2776, 0
  %2779 = vmatprep.subr.mxu0 0.0
  %2780 = vmatpush1.msra.mxu0 %v1551
  %2781 = vmatprep.subr.mxu0 0.0
  %2782 = vmatpush1.msra.mxu0 %v1552
  %2783 = vmatprep.subr.mxu0 0.0
  %2784 = vmatpush1.msra.mxu0 %v1553
  %2785 = vmatprep.subr.mxu0 0.0
  %2786 = vmatpush1.msra.mxu0 %v1554
  %2787 = vmatprep.subr.mxu0 0.0
  %2788 = vmatpush1.msra.mxu0 0.0
  %2789 = vmatprep.subr.mxu0 0.0
  %2790 = vmatpush1.msra.mxu0 0.0
  %2791 = vmatprep.subr.mxu0 0.0
  %2792 = vmatpush1.msra.mxu0 0.0
  %2793 = vmatprep.subr.mxu0 0.0
  %2794 = vmatpush1.msra.mxu0 0.0
  %2795 = vmatprep.subr.mxu0 0.0
  %2796 = vmatpush1.msra.mxu0 0.0
  %2797 = vmatprep.subr.mxu0 0.0
  %2798 = vmatpush1.msra.mxu0 0.0
  %2799 = vmatprep.subr.mxu0 0.0
  %2800 = vmatpush1.msra.mxu0 0.0
  %2801 = vmatprep.subr.mxu0 0.0
  %2802 = vmatpush1.msra.mxu0 0.0
  %2803 = vmatprep.subr.mxu0 0.0
  %2804 = vmatpush1.msra.mxu0 0.0
  %2805 = vmatprep.subr.mxu0 0.0
  %2806 = vmatpush1.msra.mxu0 0.0
  %2807 = vmatprep.subr.mxu0 0.0
  %2808 = vmatpush1.msra.mxu0 0.0
  %2809 = vmatprep.subr.mxu0 0.0
  %2810 = vmatpush1.msra.mxu0 0.0
  %2811 = vmatprep.subr.mxu0 0.0
  %2812 = vmatpush1.msra.mxu0 0.0
  %2813 = vmatprep.subr.mxu0 0.0
  %2814 = vmatpush1.msra.mxu0 0.0
  %2815 = vmatprep.subr.mxu0 0.0
  %2816 = vmatpush1.msra.mxu0 0.0
  %2817 = vmatprep.subr.mxu0 0.0
  %2818 = vmatpush1.msra.mxu0 0.0
  %2819 = vmatprep.subr.mxu0 0.0
  %2820 = vmatpush1.msra.mxu0 0.0
  %2821 = vmatprep.subr.mxu0 0.0
  %2822 = vmatpush1.msra.mxu0 0.0
  %2823 = vmatprep.subr.mxu0 0.0
  %2824 = vmatpush1.msra.mxu0 0.0
  %2825 = vmatprep.subr.mxu0 0.0
  %2826 = vmatpush1.msra.mxu0 0.0
  %2827 = vmatprep.subr.mxu0 0.0
  %2828 = vmatpush1.msra.mxu0 0.0
  %2829 = vmatprep.subr.mxu0 0.0
  %2830 = vmatpush1.msra.mxu0 0.0
  %2831 = vmatprep.subr.mxu0 0.0
  %2832 = vmatpush1.msra.mxu0 0.0
  %2833 = vmatprep.subr.mxu0 0.0
  %2834 = vmatpush1.msra.mxu0 0.0
  %2835 = vmatprep.subr.mxu0 0.0
  %2836 = vmatpush1.msra.mxu0 0.0
  %2837 = vmatprep.subr.mxu0 0.0
  %2838 = vmatpush1.msra.mxu0 0.0
  %2839 = vmatprep.subr.mxu0 0.0
  %2840 = vmatpush1.msra.mxu0 0.0
  %2841 = vmatprep.subr.mxu0 0.0
  %2842 = vmatpush1.msra.mxu0 0.0
  %2843 = vmatprep.mubr.f32.mxu0 0.0
  %2844 = vmatmul.mubr.f32.gmra.mrb[0].mxu0 %v2777
  %v2845 = vpop.f32.mrb[0].mxu0
  %v2846 = vadd.f32 0.0, %v2845
  %v2847 = vpop.f32.mrb[0].mxu0
  %2848 = vdwg.mxu0
  %v2849 = vadd.f32 %v2771, %v2846
  %v2850 = vxor.u32 %v2849, 2147483648
  %v2851 = vmul.f32 %v2850, 1.442695
  %v2852 = vpow.pop %v2851
  %v2853 = vadd.f32 %v2852, 1.0
  %v2854 = vrcp.pop %v2853
  %v2855 = vmul.f32 1.0, %v2854
  %v2856 = vtanh.pop %v2849
  %v2857 = vmul.f32 %v2855, %v2255
  %2859 = vrot.lane.b32.xlu0 %v2856, 64
  %v2860 = vpop.permute.xlu0 %2859
  %v2862 = vmul.f32 %v2855, %v2860
  %2864 = vrot.lane.b32.xlu0 %v2862, 32
  %v2865 = vpop.permute.xlu0 %2864
  %v2867 = vadd.f32 %v2857, %v2865
  %v2868 = vtanh.pop %v2867
  %2870 = vrot.lane.b32.xlu0 %v2868, 64
  %v2871 = vpop.permute.xlu0 %2870
  %v2873 = vmul.f32 %v2855, %v2871
  %s2874 = scalar_lea.vmem [#allocation2], 48
  %v2875 = vld [vmem:[%s2874] sm:$0xff]
  %2877 = vrot.lane.b32.xlu0 %v2363, 32
  %v2878 = vpop.permute.xlu0 %2877
  %v2879 = vsel %vm211, %v2878, 0
  %2881 = vmatprep.subr.mxu0 0.0
  %2882 = vmatpush1.msra.mxu0 %v207
  %2883 = vmatprep.subr.mxu0 0.0
  %2884 = vmatpush1.msra.mxu0 %v208
  %2885 = vmatprep.subr.mxu0 0.0
  %2886 = vmatpush1.msra.mxu0 %v209
  %2887 = vmatprep.subr.mxu0 0.0
  %2888 = vmatpush1.msra.mxu0 %v210
  %2889 = vmatprep.subr.mxu0 0.0
  %2890 = vmatpush1.msra.mxu0 0.0
  %2891 = vmatprep.subr.mxu0 0.0
  %2892 = vmatpush1.msra.mxu0 0.0
  %2893 = vmatprep.subr.mxu0 0.0
  %2894 = vmatpush1.msra.mxu0 0.0
  %2895 = vmatprep.subr.mxu0 0.0
  %2896 = vmatpush1.msra.mxu0 0.0
  %2897 = vmatprep.subr.mxu0 0.0
  %2898 = vmatpush1.msra.mxu0 0.0
  %2899 = vmatprep.subr.mxu0 0.0
  %2900 = vmatpush1.msra.mxu0 0.0
  %2901 = vmatprep.subr.mxu0 0.0
  %2902 = vmatpush1.msra.mxu0 0.0
  %2903 = vmatprep.subr.mxu0 0.0
  %2904 = vmatpush1.msra.mxu0 0.0
  %2905 = vmatprep.subr.mxu0 0.0
  %2906 = vmatpush1.msra.mxu0 0.0
  %2907 = vmatprep.subr.mxu0 0.0
  %2908 = vmatpush1.msra.mxu0 0.0
  %2909 = vmatprep.subr.mxu0 0.0
  %2910 = vmatpush1.msra.mxu0 0.0
  %2911 = vmatprep.subr.mxu0 0.0
  %2912 = vmatpush1.msra.mxu0 0.0
  %2913 = vmatprep.subr.mxu0 0.0
  %2914 = vmatpush1.msra.mxu0 0.0
  %2915 = vmatprep.subr.mxu0 0.0
  %2916 = vmatpush1.msra.mxu0 0.0
  %2917 = vmatprep.subr.mxu0 0.0
  %2918 = vmatpush1.msra.mxu0 0.0
  %2919 = vmatprep.subr.mxu0 0.0
  %2920 = vmatpush1.msra.mxu0 0.0
  %2921 = vmatprep.subr.mxu0 0.0
  %2922 = vmatpush1.msra.mxu0 0.0
  %2923 = vmatprep.subr.mxu0 0.0
  %2924 = vmatpush1.msra.mxu0 0.0
  %2925 = vmatprep.subr.mxu0 0.0
  %2926 = vmatpush1.msra.mxu0 0.0
  %2927 = vmatprep.subr.mxu0 0.0
  %2928 = vmatpush1.msra.mxu0 0.0
  %2929 = vmatprep.subr.mxu0 0.0
  %2930 = vmatpush1.msra.mxu0 0.0
  %2931 = vmatprep.subr.mxu0 0.0
  %2932 = vmatpush1.msra.mxu0 0.0
  %2933 = vmatprep.subr.mxu0 0.0
  %2934 = vmatpush1.msra.mxu0 0.0
  %2935 = vmatprep.subr.mxu0 0.0
  %2936 = vmatpush1.msra.mxu0 0.0
  %2937 = vmatprep.subr.mxu0 0.0
  %2938 = vmatpush1.msra.mxu0 0.0
  %2939 = vmatprep.subr.mxu0 0.0
  %2940 = vmatpush1.msra.mxu0 0.0
  %2941 = vmatprep.subr.mxu0 0.0
  %2942 = vmatpush1.msra.mxu0 0.0
  %2943 = vmatprep.subr.mxu0 0.0
  %2944 = vmatpush1.msra.mxu0 0.0
  %2945 = vmatprep.mubr.f32.mxu0 0.0
  %2946 = vmatmul.mubr.f32.gmra.mrb[0].mxu0 %v2879
  %v2947 = vpop.f32.mrb[0].mxu0
  %v2948 = vadd.f32 0.0, %v2947
  %v2949 = vpop.f32.mrb[0].mxu0
  %2950 = vdwg.mxu0
  %v2951 = vadd.f32 %v2875, %v2948
  %v2952 = vxor.u32 %v2951, 2147483648
  %v2953 = vmul.f32 %v2952, 1.442695
  %v2954 = vpow.pop %v2953
  %v2955 = vadd.f32 %v2954, 1.0
  %v2956 = vrcp.pop %v2955
  %v2957 = vmul.f32 1.0, %v2956
  %v2958 = vtanh.pop %v2951
  %v2959 = vmul.f32 %v2957, %v2357
  %2961 = vrot.lane.b32.xlu0 %v2958, 64
  %v2962 = vpop.permute.xlu0 %2961
  %v2964 = vmul.f32 %v2957, %v2962
  %2966 = vrot.lane.b32.xlu0 %v2964, 32
  %v2967 = vpop.permute.xlu0 %2966
  %v2969 = vadd.f32 %v2959, %v2967
  %v2970 = vtanh.pop %v2969
  %2972 = vrot.lane.b32.xlu0 %v2970, 64
  %v2973 = vpop.permute.xlu0 %2972
  %v2975 = vmul.f32 %v2957, %v2973
  %2976 = vmatprep.subr.mxu0 0.0
  %2977 = vmatpush1.msra.mxu0 %v412
  %2978 = vmatprep.subr.mxu0 0.0
  %2979 = vmatpush1.msra.mxu0 %v413
  %2980 = vmatprep.subr.mxu0 0.0
  %2981 = vmatpush1.msra.mxu0 %v414
  %2982 = vmatprep.subr.mxu0 0.0
  %2983 = vmatpush1.msra.mxu0 %v415
  %2984 = vmatprep.subr.mxu0 0.0
  %2985 = vmatpush1.msra.mxu0 0.0
  %2986 = vmatprep.subr.mxu0 0.0
  %2987 = vmatpush1.msra.mxu0 0.0
  %2988 = vmatprep.subr.mxu0 0.0
  %2989 = vmatpush1.msra.mxu0 0.0
  %2990 = vmatprep.subr.mxu0 0.0
  %2991 = vmatpush1.msra.mxu0 0.0
  %2992 = vmatprep.subr.mxu0 0.0
  %2993 = vmatpush1.msra.mxu0 0.0
  %2994 = vmatprep.subr.mxu0 0.0
  %2995 = vmatpush1.msra.mxu0 0.0
  %2996 = vmatprep.subr.mxu0 0.0
  %2997 = vmatpush1.msra.mxu0 0.0
  %2998 = vmatprep.subr.mxu0 0.0
  %2999 = vmatpush1.msra.mxu0 0.0
  %3000 = vmatprep.subr.mxu0 0.0
  %3001 = vmatpush1.msra.mxu0 0.0
  %3002 = vmatprep.subr.mxu0 0.0
  %3003 = vmatpush1.msra.mxu0 0.0
  %3004 = vmatprep.subr.mxu0 0.0
  %3005 = vmatpush1.msra.mxu0 0.0
  %3006 = vmatprep.subr.mxu0 0.0
  %3007 = vmatpush1.msra.mxu0 0.0
  %3008 = vmatprep.subr.mxu0 0.0
  %3009 = vmatpush1.msra.mxu0 0.0
  %3010 = vmatprep.subr.mxu0 0.0
  %3011 = vmatpush1.msra.mxu0 0.0
  %3012 = vmatprep.subr.mxu0 0.0
  %3013 = vmatpush1.msra.mxu0 0.0
  %3014 = vmatprep.subr.mxu0 0.0
  %3015 = vmatpush1.msra.mxu0 0.0
  %3016 = vmatprep.subr.mxu0 0.0
  %3017 = vmatpush1.msra.mxu0 0.0
  %3018 = vmatprep.subr.mxu0 0.0
  %3019 = vmatpush1.msra.mxu0 0.0
  %3020 = vmatprep.subr.mxu0 0.0
  %3021 = vmatpush1.msra.mxu0 0.0
  %3022 = vmatprep.subr.mxu0 0.0
  %3023 = vmatpush1.msra.mxu0 0.0
  %3024 = vmatprep.subr.mxu0 0.0
  %3025 = vmatpush1.msra.mxu0 0.0
  %3026 = vmatprep.subr.mxu0 0.0
  %3027 = vmatpush1.msra.mxu0 0.0
  %3028 = vmatprep.subr.mxu0 0.0
  %3029 = vmatpush1.msra.mxu0 0.0
  %3030 = vmatprep.subr.mxu0 0.0
  %3031 = vmatpush1.msra.mxu0 0.0
  %3032 = vmatprep.subr.mxu0 0.0
  %3033 = vmatpush1.msra.mxu0 0.0
  %3034 = vmatprep.subr.mxu0 0.0
  %3035 = vmatpush1.msra.mxu0 0.0
  %3036 = vmatprep.subr.mxu0 0.0
  %3037 = vmatpush1.msra.mxu0 0.0
  %3038 = vmatprep.subr.mxu0 0.0
  %3039 = vmatpush1.msra.mxu0 0.0
  %3040 = vmatprep.mubr.f32.mxu0 0.0
  %3041 = vmatmul.mubr.f32.gmra.mrb[0].mxu0 %v2879
  %v3042 = vpop.f32.mrb[0].mxu0
  %v3043 = vadd.f32 %v188, %v3042
  %v3044 = vpop.f32.mrb[0].mxu0
  %3045 = vdwg.mxu0
  %3047 = vrot.lane.b32.xlu0 %v2533, 32
  %v3048 = vpop.permute.xlu0 %3047
  %v3049 = vsel %vm211, %v3048, 0
  %3051 = vmatprep.subr.mxu0 0.0
  %3052 = vmatpush1.msra.mxu0 %v487
  %3053 = vmatprep.subr.mxu0 0.0
  %3054 = vmatpush1.msra.mxu0 %v488
  %3055 = vmatprep.subr.mxu0 0.0
  %3056 = vmatpush1.msra.mxu0 %v489
  %3057 = vmatprep.subr.mxu0 0.0
  %3058 = vmatpush1.msra.mxu0 %v490
  %3059 = vmatprep.subr.mxu0 0.0
  %3060 = vmatpush1.msra.mxu0 0.0
  %3061 = vmatprep.subr.mxu0 0.0
  %3062 = vmatpush1.msra.mxu0 0.0
  %3063 = vmatprep.subr.mxu0 0.0
  %3064 = vmatpush1.msra.mxu0 0.0
  %3065 = vmatprep.subr.mxu0 0.0
  %3066 = vmatpush1.msra.mxu0 0.0
  %3067 = vmatprep.subr.mxu0 0.0
  %3068 = vmatpush1.msra.mxu0 0.0
  %3069 = vmatprep.subr.mxu0 0.0
  %3070 = vmatpush1.msra.mxu0 0.0
  %3071 = vmatprep.subr.mxu0 0.0
  %3072 = vmatpush1.msra.mxu0 0.0
  %3073 = vmatprep.subr.mxu0 0.0
  %3074 = vmatpush1.msra.mxu0 0.0
  %3075 = vmatprep.subr.mxu0 0.0
  %3076 = vmatpush1.msra.mxu0 0.0
  %3077 = vmatprep.subr.mxu0 0.0
  %3078 = vmatpush1.msra.mxu0 0.0
  %3079 = vmatprep.subr.mxu0 0.0
  %3080 = vmatpush1.msra.mxu0 0.0
  %3081 = vmatprep.subr.mxu0 0.0
  %3082 = vmatpush1.msra.mxu0 0.0
  %3083 = vmatprep.subr.mxu0 0.0
  %3084 = vmatpush1.msra.mxu0 0.0
  %3085 = vmatprep.subr.mxu0 0.0
  %3086 = vmatpush1.msra.mxu0 0.0
  %3087 = vmatprep.subr.mxu0 0.0
  %3088 = vmatpush1.msra.mxu0 0.0
  %3089 = vmatprep.subr.mxu0 0.0
  %3090 = vmatpush1.msra.mxu0 0.0
  %3091 = vmatprep.subr.mxu0 0.0
  %3092 = vmatpush1.msra.mxu0 0.0
  %3093 = vmatprep.subr.mxu0 0.0
  %3094 = vmatpush1.msra.mxu0 0.0
  %3095 = vmatprep.subr.mxu0 0.0
  %3096 = vmatpush1.msra.mxu0 0.0
  %3097 = vmatprep.subr.mxu0 0.0
  %3098 = vmatpush1.msra.mxu0 0.0
  %3099 = vmatprep.subr.mxu0 0.0
  %3100 = vmatpush1.msra.mxu0 0.0
  %3101 = vmatprep.subr.mxu0 0.0
  %3102 = vmatpush1.msra.mxu0 0.0
  %3103 = vmatprep.subr.mxu0 0.0
  %3104 = vmatpush1.msra.mxu0 0.0
  %3105 = vmatprep.subr.mxu0 0.0
  %3106 = vmatpush1.msra.mxu0 0.0
  %3107 = vmatprep.subr.mxu0 0.0
  %3108 = vmatpush1.msra.mxu0 0.0
  %3109 = vmatprep.subr.mxu0 0.0
  %3110 = vmatpush1.msra.mxu0 0.0
  %3111 = vmatprep.subr.mxu0 0.0
  %3112 = vmatpush1.msra.mxu0 0.0
  %3113 = vmatprep.subr.mxu0 0.0
  %3114 = vmatpush1.msra.mxu0 0.0
  %3115 = vmatprep.mubr.f32.mxu0 0.0
  %3116 = vmatmul.mubr.f32.gmra.mrb[0].mxu0 %v3049
  %v3117 = vpop.f32.mrb[0].mxu0
  %v3118 = vadd.f32 0.0, %v3117
  %v3119 = vpop.f32.mrb[0].mxu0
  %3120 = vdwg.mxu0
  %v3121 = vadd.f32 %v3043, %v3118
  %v3122 = vxor.u32 %v3121, 2147483648
  %v3123 = vmul.f32 %v3122, 1.442695
  %v3124 = vpow.pop %v3123
  %v3125 = vadd.f32 %v3124, 1.0
  %v3126 = vrcp.pop %v3125
  %v3127 = vmul.f32 1.0, %v3126
  %v3128 = vtanh.pop %v3121
  %v3129 = vmul.f32 %v3127, %v2527
  %3131 = vrot.lane.b32.xlu0 %v3128, 64
  %v3132 = vpop.permute.xlu0 %3131
  %v3134 = vmul.f32 %v3127, %v3132
  %3136 = vrot.lane.b32.xlu0 %v3134, 32
  %v3137 = vpop.permute.xlu0 %3136
  %v3139 = vadd.f32 %v3129, %v3137
  %v3140 = vtanh.pop %v3139
  %3142 = vrot.lane.b32.xlu0 %v3140, 64
  %v3143 = vpop.permute.xlu0 %3142
  %v3145 = vmul.f32 %v3127, %v3143
  %3146 = vmatprep.subr.mxu0 0.0
  %3147 = vmatpush1.msra.mxu0 %v859
  %3148 = vmatprep.subr.mxu0 0.0
  %3149 = vmatpush1.msra.mxu0 %v860
  %3150 = vmatprep.subr.mxu0 0.0
  %3151 = vmatpush1.msra.mxu0 %v861
  %3152 = vmatprep.subr.mxu0 0.0
  %3153 = vmatpush1.msra.mxu0 %v862
  %3154 = vmatprep.subr.mxu0 0.0
  %3155 = vmatpush1.msra.mxu0 0.0
  %3156 = vmatprep.subr.mxu0 0.0
  %3157 = vmatpush1.msra.mxu0 0.0
  %3158 = vmatprep.subr.mxu0 0.0
  %3159 = vmatpush1.msra.mxu0 0.0
  %3160 = vmatprep.subr.mxu0 0.0
  %3161 = vmatpush1.msra.mxu0 0.0
  %3162 = vmatprep.subr.mxu0 0.0
  %3163 = vmatpush1.msra.mxu0 0.0
  %3164 = vmatprep.subr.mxu0 0.0
  %3165 = vmatpush1.msra.mxu0 0.0
  %3166 = vmatprep.subr.mxu0 0.0
  %3167 = vmatpush1.msra.mxu0 0.0
  %3168 = vmatprep.subr.mxu0 0.0
  %3169 = vmatpush1.msra.mxu0 0.0
  %3170 = vmatprep.subr.mxu0 0.0
  %3171 = vmatpush1.msra.mxu0 0.0
  %3172 = vmatprep.subr.mxu0 0.0
  %3173 = vmatpush1.msra.mxu0 0.0
  %3174 = vmatprep.subr.mxu0 0.0
  %3175 = vmatpush1.msra.mxu0 0.0
  %3176 = vmatprep.subr.mxu0 0.0
  %3177 = vmatpush1.msra.mxu0 0.0
  %3178 = vmatprep.subr.mxu0 0.0
  %3179 = vmatpush1.msra.mxu0 0.0
  %3180 = vmatprep.subr.mxu0 0.0
  %3181 = vmatpush1.msra.mxu0 0.0
  %3182 = vmatprep.subr.mxu0 0.0
  %3183 = vmatpush1.msra.mxu0 0.0
  %3184 = vmatprep.subr.mxu0 0.0
  %3185 = vmatpush1.msra.mxu0 0.0
  %3186 = vmatprep.subr.mxu0 0.0
  %3187 = vmatpush1.msra.mxu0 0.0
  %3188 = vmatprep.subr.mxu0 0.0
  %3189 = vmatpush1.msra.mxu0 0.0
  %3190 = vmatprep.subr.mxu0 0.0
  %3191 = vmatpush1.msra.mxu0 0.0
  %3192 = vmatprep.subr.mxu0 0.0
  %3193 = vmatpush1.msra.mxu0 0.0
  %3194 = vmatprep.subr.mxu0 0.0
  %3195 = vmatpush1.msra.mxu0 0.0
  %3196 = vmatprep.subr.mxu0 0.0
  %3197 = vmatpush1.msra.mxu0 0.0
  %3198 = vmatprep.subr.mxu0 0.0
  %3199 = vmatpush1.msra.mxu0 0.0
  %3200 = vmatprep.subr.mxu0 0.0
  %3201 = vmatpush1.msra.mxu0 0.0
  %3202 = vmatprep.subr.mxu0 0.0
  %3203 = vmatpush1.msra.mxu0 0.0
  %3204 = vmatprep.subr.mxu0 0.0
  %3205 = vmatpush1.msra.mxu0 0.0
  %3206 = vmatprep.subr.mxu0 0.0
  %3207 = vmatpush1.msra.mxu0 0.0
  %3208 = vmatprep.subr.mxu0 0.0
  %3209 = vmatpush1.msra.mxu0 0.0
  %3210 = vmatprep.mubr.f32.mxu0 0.0
  %3211 = vmatmul.mubr.f32.gmra.mrb[0].mxu0 %v3049
  %v3212 = vpop.f32.mrb[0].mxu0
  %v3213 = vadd.f32 %v196, %v3212
  %v3214 = vpop.f32.mrb[0].mxu0
  %3215 = vdwg.mxu0
  %3217 = vrot.lane.b32.xlu0 %v2703, 32
  %v3218 = vpop.permute.xlu0 %3217
  %v3219 = vsel %vm211, %v3218, 0
  %3221 = vmatprep.subr.mxu0 0.0
  %3222 = vmatpush1.msra.mxu0 %v934
  %3223 = vmatprep.subr.mxu0 0.0
  %3224 = vmatpush1.msra.mxu0 %v935
  %3225 = vmatprep.subr.mxu0 0.0
  %3226 = vmatpush1.msra.mxu0 %v936
  %3227 = vmatprep.subr.mxu0 0.0
  %3228 = vmatpush1.msra.mxu0 %v937
  %3229 = vmatprep.subr.mxu0 0.0
  %3230 = vmatpush1.msra.mxu0 0.0
  %3231 = vmatprep.subr.mxu0 0.0
  %3232 = vmatpush1.msra.mxu0 0.0
  %3233 = vmatprep.subr.mxu0 0.0
  %3234 = vmatpush1.msra.mxu0 0.0
  %3235 = vmatprep.subr.mxu0 0.0
  %3236 = vmatpush1.msra.mxu0 0.0
  %3237 = vmatprep.subr.mxu0 0.0
  %3238 = vmatpush1.msra.mxu0 0.0
  %3239 = vmatprep.subr.mxu0 0.0
  %3240 = vmatpush1.msra.mxu0 0.0
  %3241 = vmatprep.subr.mxu0 0.0
  %3242 = vmatpush1.msra.mxu0 0.0
  %3243 = vmatprep.subr.mxu0 0.0
  %3244 = vmatpush1.msra.mxu0 0.0
  %3245 = vmatprep.subr.mxu0 0.0
  %3246 = vmatpush1.msra.mxu0 0.0
  %3247 = vmatprep.subr.mxu0 0.0
  %3248 = vmatpush1.msra.mxu0 0.0
  %3249 = vmatprep.subr.mxu0 0.0
  %3250 = vmatpush1.msra.mxu0 0.0
  %3251 = vmatprep.subr.mxu0 0.0
  %3252 = vmatpush1.msra.mxu0 0.0
  %3253 = vmatprep.subr.mxu0 0.0
  %3254 = vmatpush1.msra.mxu0 0.0
  %3255 = vmatprep.subr.mxu0 0.0
  %3256 = vmatpush1.msra.mxu0 0.0
  %3257 = vmatprep.subr.mxu0 0.0
  %3258 = vmatpush1.msra.mxu0 0.0
  %3259 = vmatprep.subr.mxu0 0.0
  %3260 = vmatpush1.msra.mxu0 0.0
  %3261 = vmatprep.subr.mxu0 0.0
  %3262 = vmatpush1.msra.mxu0 0.0
  %3263 = vmatprep.subr.mxu0 0.0
  %3264 = vmatpush1.msra.mxu0 0.0
  %3265 = vmatprep.subr.mxu0 0.0
  %3266 = vmatpush1.msra.mxu0 0.0
  %3267 = vmatprep.subr.mxu0 0.0
  %3268 = vmatpush1.msra.mxu0 0.0
  %3269 = vmatprep.subr.mxu0 0.0
  %3270 = vmatpush1.msra.mxu0 0.0
  %3271 = vmatprep.subr.mxu0 0.0
  %3272 = vmatpush1.msra.mxu0 0.0
  %3273 = vmatprep.subr.mxu0 0.0
  %3274 = vmatpush1.msra.mxu0 0.0
  %3275 = vmatprep.subr.mxu0 0.0
  %3276 = vmatpush1.msra.mxu0 0.0
  %3277 = vmatprep.subr.mxu0 0.0
  %3278 = vmatpush1.msra.mxu0 0.0
  %3279 = vmatprep.subr.mxu0 0.0
  %3280 = vmatpush1.msra.mxu0 0.0
  %3281 = vmatprep.subr.mxu0 0.0
  %3282 = vmatpush1.msra.mxu0 0.0
  %3283 = vmatprep.subr.mxu0 0.0
  %3284 = vmatpush1.msra.mxu0 0.0
  %3285 = vmatprep.mubr.f32.mxu0 0.0
  %3286 = vmatmul.mubr.f32.gmra.mrb[0].mxu0 %v3219
  %v3287 = vpop.f32.mrb[0].mxu0
  %v3288 = vadd.f32 0.0, %v3287
  %v3289 = vpop.f32.mrb[0].mxu0
  %3290 = vdwg.mxu0
  %v3291 = vadd.f32 %v3213, %v3288
  %v3292 = vxor.u32 %v3291, 2147483648
  %v3293 = vmul.f32 %v3292, 1.442695
  %v3294 = vpow.pop %v3293
  %v3295 = vadd.f32 %v3294, 1.0
  %v3296 = vrcp.pop %v3295
  %v3297 = vmul.f32 1.0, %v3296
  %v3298 = vtanh.pop %v3291
  %v3299 = vmul.f32 %v3297, %v2697
  %3301 = vrot.lane.b32.xlu0 %v3298, 64
  %v3302 = vpop.permute.xlu0 %3301
  %v3304 = vmul.f32 %v3297, %v3302
  %3306 = vrot.lane.b32.xlu0 %v3304, 32
  %v3307 = vpop.permute.xlu0 %3306
  %v3309 = vadd.f32 %v3299, %v3307
  %v3310 = vtanh.pop %v3309
  %3312 = vrot.lane.b32.xlu0 %v3310, 64
  %v3313 = vpop.permute.xlu0 %3312
  %v3315 = vmul.f32 %v3297, %v3313
  %3316 = vmatprep.subr.mxu0 0.0
  %3317 = vmatpush1.msra.mxu0 %v1476
  %3318 = vmatprep.subr.mxu0 0.0
  %3319 = vmatpush1.msra.mxu0 %v1477
  %3320 = vmatprep.subr.mxu0 0.0
  %3321 = vmatpush1.msra.mxu0 %v1478
  %3322 = vmatprep.subr.mxu0 0.0
  %3323 = vmatpush1.msra.mxu0 %v1479
  %3324 = vmatprep.subr.mxu0 0.0
  %3325 = vmatpush1.msra.mxu0 0.0
  %3326 = vmatprep.subr.mxu0 0.0
  %3327 = vmatpush1.msra.mxu0 0.0
  %3328 = vmatprep.subr.mxu0 0.0
  %3329 = vmatpush1.msra.mxu0 0.0
  %3330 = vmatprep.subr.mxu0 0.0
  %3331 = vmatpush1.msra.mxu0 0.0
  %3332 = vmatprep.subr.mxu0 0.0
  %3333 = vmatpush1.msra.mxu0 0.0
  %3334 = vmatprep.subr.mxu0 0.0
  %3335 = vmatpush1.msra.mxu0 0.0
  %3336 = vmatprep.subr.mxu0 0.0
  %3337 = vmatpush1.msra.mxu0 0.0
  %3338 = vmatprep.subr.mxu0 0.0
  %3339 = vmatpush1.msra.mxu0 0.0
  %3340 = vmatprep.subr.mxu0 0.0
  %3341 = vmatpush1.msra.mxu0 0.0
  %3342 = vmatprep.subr.mxu0 0.0
  %3343 = vmatpush1.msra.mxu0 0.0
  %3344 = vmatprep.subr.mxu0 0.0
  %3345 = vmatpush1.msra.mxu0 0.0
  %3346 = vmatprep.subr.mxu0 0.0
  %3347 = vmatpush1.msra.mxu0 0.0
  %3348 = vmatprep.subr.mxu0 0.0
  %3349 = vmatpush1.msra.mxu0 0.0
  %3350 = vmatprep.subr.mxu0 0.0
  %3351 = vmatpush1.msra.mxu0 0.0
  %3352 = vmatprep.subr.mxu0 0.0
  %3353 = vmatpush1.msra.mxu0 0.0
  %3354 = vmatprep.subr.mxu0 0.0
  %3355 = vmatpush1.msra.mxu0 0.0
  %3356 = vmatprep.subr.mxu0 0.0
  %3357 = vmatpush1.msra.mxu0 0.0
  %3358 = vmatprep.subr.mxu0 0.0
  %3359 = vmatpush1.msra.mxu0 0.0
  %3360 = vmatprep.subr.mxu0 0.0
  %3361 = vmatpush1.msra.mxu0 0.0
  %3362 = vmatprep.subr.mxu0 0.0
  %3363 = vmatpush1.msra.mxu0 0.0
  %3364 = vmatprep.subr.mxu0 0.0
  %3365 = vmatpush1.msra.mxu0 0.0
  %3366 = vmatprep.subr.mxu0 0.0
  %3367 = vmatpush1.msra.mxu0 0.0
  %3368 = vmatprep.subr.mxu0 0.0
  %3369 = vmatpush1.msra.mxu0 0.0
  %3370 = vmatprep.subr.mxu0 0.0
  %3371 = vmatpush1.msra.mxu0 0.0
  %3372 = vmatprep.subr.mxu0 0.0
  %3373 = vmatpush1.msra.mxu0 0.0
  %3374 = vmatprep.subr.mxu0 0.0
  %3375 = vmatpush1.msra.mxu0 0.0
  %3376 = vmatprep.subr.mxu0 0.0
  %3377 = vmatpush1.msra.mxu0 0.0
  %3378 = vmatprep.subr.mxu0 0.0
  %3379 = vmatpush1.msra.mxu0 0.0
  %3380 = vmatprep.mubr.f32.mxu0 0.0
  %3381 = vmatmul.mubr.f32.gmra.mrb[0].mxu0 %v3219
  %v3382 = vpop.f32.mrb[0].mxu0
  %v3383 = vadd.f32 %v204, %v3382
  %v3384 = vpop.f32.mrb[0].mxu0
  %3385 = vdwg.mxu0
  %3387 = vrot.lane.b32.xlu0 %v2873, 32
  %v3388 = vpop.permute.xlu0 %3387
  %v3389 = vsel %vm211, %v3388, 0
  %3391 = vmatprep.subr.mxu0 0.0
  %3392 = vmatpush1.msra.mxu0 %v1551
  %3393 = vmatprep.subr.mxu0 0.0
  %3394 = vmatpush1.msra.mxu0 %v1552
  %3395 = vmatprep.subr.mxu0 0.0
  %3396 = vmatpush1.msra.mxu0 %v1553
  %3397 = vmatprep.subr.mxu0 0.0
  %3398 = vmatpush1.msra.mxu0 %v1554
  %3399 = vmatprep.subr.mxu0 0.0
  %3400 = vmatpush1.msra.mxu0 0.0
  %3401 = vmatprep.subr.mxu0 0.0
  %3402 = vmatpush1.msra.mxu0 0.0
  %3403 = vmatprep.subr.mxu0 0.0
  %3404 = vmatpush1.msra.mxu0 0.0
  %3405 = vmatprep.subr.mxu0 0.0
  %3406 = vmatpush1.msra.mxu0 0.0
  %3407 = vmatprep.subr.mxu0 0.0
  %3408 = vmatpush1.msra.mxu0 0.0
  %3409 = vmatprep.subr.mxu0 0.0
  %3410 = vmatpush1.msra.mxu0 0.0
  %3411 = vmatprep.subr.mxu0 0.0
  %3412 = vmatpush1.msra.mxu0 0.0
  %3413 = vmatprep.subr.mxu0 0.0
  %3414 = vmatpush1.msra.mxu0 0.0
  %3415 = vmatprep.subr.mxu0 0.0
  %3416 = vmatpush1.msra.mxu0 0.0
  %3417 = vmatprep.subr.mxu0 0.0
  %3418 = vmatpush1.msra.mxu0 0.0
  %3419 = vmatprep.subr.mxu0 0.0
  %3420 = vmatpush1.msra.mxu0 0.0
  %3421 = vmatprep.subr.mxu0 0.0
  %3422 = vmatpush1.msra.mxu0 0.0
  %3423 = vmatprep.subr.mxu0 0.0
  %3424 = vmatpush1.msra.mxu0 0.0
  %3425 = vmatprep.subr.mxu0 0.0
  %3426 = vmatpush1.msra.mxu0 0.0
  %3427 = vmatprep.subr.mxu0 0.0
  %3428 = vmatpush1.msra.mxu0 0.0
  %3429 = vmatprep.subr.mxu0 0.0
  %3430 = vmatpush1.msra.mxu0 0.0
  %3431 = vmatprep.subr.mxu0 0.0
  %3432 = vmatpush1.msra.mxu0 0.0
  %3433 = vmatprep.subr.mxu0 0.0
  %3434 = vmatpush1.msra.mxu0 0.0
  %3435 = vmatprep.subr.mxu0 0.0
  %3436 = vmatpush1.msra.mxu0 0.0
  %3437 = vmatprep.subr.mxu0 0.0
  %3438 = vmatpush1.msra.mxu0 0.0
  %3439 = vmatprep.subr.mxu0 0.0
  %3440 = vmatpush1.msra.mxu0 0.0
  %3441 = vmatprep.subr.mxu0 0.0
  %3442 = vmatpush1.msra.mxu0 0.0
  %3443 = vmatprep.subr.mxu0 0.0
  %3444 = vmatpush1.msra.mxu0 0.0
  %3445 = vmatprep.subr.mxu0 0.0
  %3446 = vmatpush1.msra.mxu0 0.0
  %3447 = vmatprep.subr.mxu0 0.0
  %3448 = vmatpush1.msra.mxu0 0.0
  %3449 = vmatprep.subr.mxu0 0.0
  %3450 = vmatpush1.msra.mxu0 0.0
  %3451 = vmatprep.subr.mxu0 0.0
  %3452 = vmatpush1.msra.mxu0 0.0
  %3453 = vmatprep.subr.mxu0 0.0
  %3454 = vmatpush1.msra.mxu0 0.0
  %3455 = vmatprep.mubr.f32.mxu0 0.0
  %3456 = vmatmul.mubr.f32.gmra.mrb[0].mxu0 %v3389
  %v3457 = vpop.f32.mrb[0].mxu0
  %v3458 = vadd.f32 0.0, %v3457
  %v3459 = vpop.f32.mrb[0].mxu0
  %3460 = vdwg.mxu0
  %v3461 = vadd.f32 %v3383, %v3458
  %v3462 = vxor.u32 %v3461, 2147483648
  %v3463 = vmul.f32 %v3462, 1.442695
  %v3464 = vpow.pop %v3463
  %v3465 = vadd.f32 %v3464, 1.0
  %v3466 = vrcp.pop %v3465
  %v3467 = vmul.f32 1.0, %v3466
  %v3468 = vtanh.pop %v3461
  %v3469 = vmul.f32 %v3467, %v2867
  %3471 = vrot.lane.b32.xlu0 %v3468, 64
  %v3472 = vpop.permute.xlu0 %3471
  %v3474 = vmul.f32 %v3467, %v3472
  %3476 = vrot.lane.b32.xlu0 %v3474, 32
  %v3477 = vpop.permute.xlu0 %3476
  %v3479 = vadd.f32 %v3469, %v3477
  %v3480 = vtanh.pop %v3479
  %3482 = vrot.lane.b32.xlu0 %v3480, 64
  %v3483 = vpop.permute.xlu0 %3482
  %v3485 = vmul.f32 %v3467, %v3483
  %s3486 = scalar_lea.vmem [#allocation2], 56
  %v3487 = vld [vmem:[%s3486] sm:$0xff]
  %3489 = vrot.lane.b32.xlu0 %v2975, 32
  %v3490 = vpop.permute.xlu0 %3489
  %v3491 = vsel %vm211, %v3490, 0
  %3493 = vmatprep.subr.mxu0 0.0
  %3494 = vmatpush1.msra.mxu0 %v207
  %3495 = vmatprep.subr.mxu0 0.0
  %3496 = vmatpush1.msra.mxu0 %v208
  %3497 = vmatprep.subr.mxu0 0.0
  %3498 = vmatpush1.msra.mxu0 %v209
  %3499 = vmatprep.subr.mxu0 0.0
  %3500 = vmatpush1.msra.mxu0 %v210
  %3501 = vmatprep.subr.mxu0 0.0
  %3502 = vmatpush1.msra.mxu0 0.0
  %3503 = vmatprep.subr.mxu0 0.0
  %3504 = vmatpush1.msra.mxu0 0.0
  %3505 = vmatprep.subr.mxu0 0.0
  %3506 = vmatpush1.msra.mxu0 0.0
  %3507 = vmatprep.subr.mxu0 0.0
  %3508 = vmatpush1.msra.mxu0 0.0
  %3509 = vmatprep.subr.mxu0 0.0
  %3510 = vmatpush1.msra.mxu0 0.0
  %3511 = vmatprep.subr.mxu0 0.0
  %3512 = vmatpush1.msra.mxu0 0.0
  %3513 = vmatprep.subr.mxu0 0.0
  %3514 = vmatpush1.msra.mxu0 0.0
  %3515 = vmatprep.subr.mxu0 0.0
  %3516 = vmatpush1.msra.mxu0 0.0
  %3517 = vmatprep.subr.mxu0 0.0
  %3518 = vmatpush1.msra.mxu0 0.0
  %3519 = vmatprep.subr.mxu0 0.0
  %3520 = vmatpush1.msra.mxu0 0.0
  %3521 = vmatprep.subr.mxu0 0.0
  %3522 = vmatpush1.msra.mxu0 0.0
  %3523 = vmatprep.subr.mxu0 0.0
  %3524 = vmatpush1.msra.mxu0 0.0
  %3525 = vmatprep.subr.mxu0 0.0
  %3526 = vmatpush1.msra.mxu0 0.0
  %3527 = vmatprep.subr.mxu0 0.0
  %3528 = vmatpush1.msra.mxu0 0.0
  %3529 = vmatprep.subr.mxu0 0.0
  %3530 = vmatpush1.msra.mxu0 0.0
  %3531 = vmatprep.subr.mxu0 0.0
  %3532 = vmatpush1.msra.mxu0 0.0
  %3533 = vmatprep.subr.mxu0 0.0
  %3534 = vmatpush1.msra.mxu0 0.0
  %3535 = vmatprep.subr.mxu0 0.0
  %3536 = vmatpush1.msra.mxu0 0.0
  %3537 = vmatprep.subr.mxu0 0.0
  %3538 = vmatpush1.msra.mxu0 0.0
  %3539 = vmatprep.subr.mxu0 0.0
  %3540 = vmatpush1.msra.mxu0 0.0
  %3541 = vmatprep.subr.mxu0 0.0
  %3542 = vmatpush1.msra.mxu0 0.0
  %3543 = vmatprep.subr.mxu0 0.0
  %3544 = vmatpush1.msra.mxu0 0.0
  %3545 = vmatprep.subr.mxu0 0.0
  %3546 = vmatpush1.msra.mxu0 0.0
  %3547 = vmatprep.subr.mxu0 0.0
  %3548 = vmatpush1.msra.mxu0 0.0
  %3549 = vmatprep.subr.mxu0 0.0
  %3550 = vmatpush1.msra.mxu0 0.0
  %3551 = vmatprep.subr.mxu0 0.0
  %3552 = vmatpush1.msra.mxu0 0.0
  %3553 = vmatprep.subr.mxu0 0.0
  %3554 = vmatpush1.msra.mxu0 0.0
  %3555 = vmatprep.subr.mxu0 0.0
  %3556 = vmatpush1.msra.mxu0 0.0
  %3557 = vmatprep.mubr.f32.mxu0 0.0
  %3558 = vmatmul.mubr.f32.gmra.mrb[0].mxu0 %v3491
  %v3559 = vpop.f32.mrb[0].mxu0
  %v3560 = vadd.f32 0.0, %v3559
  %v3561 = vpop.f32.mrb[0].mxu0
  %3562 = vdwg.mxu0
  %v3563 = vadd.f32 %v3487, %v3560
  %v3564 = vxor.u32 %v3563, 2147483648
  %v3565 = vmul.f32 %v3564, 1.442695
  %v3566 = vpow.pop %v3565
  %v3567 = vadd.f32 %v3566, 1.0
  %v3568 = vrcp.pop %v3567
  %v3569 = vmul.f32 1.0, %v3568
  %v3570 = vtanh.pop %v3563
  %v3571 = vmul.f32 %v3569, %v2969
  %3573 = vrot.lane.b32.xlu0 %v3570, 64
  %v3574 = vpop.permute.xlu0 %3573
  %v3576 = vmul.f32 %v3569, %v3574
  %3578 = vrot.lane.b32.xlu0 %v3576, 32
  %v3579 = vpop.permute.xlu0 %3578
  %v3581 = vadd.f32 %v3571, %v3579
  %v3582 = vtanh.pop %v3581
  %3584 = vrot.lane.b32.xlu0 %v3582, 64
  %v3585 = vpop.permute.xlu0 %3584
  %v3587 = vmul.f32 %v3569, %v3585
  %3588 = vmatprep.subr.mxu0 0.0
  %3589 = vmatpush1.msra.mxu0 %v412
  %3590 = vmatprep.subr.mxu0 0.0
  %3591 = vmatpush1.msra.mxu0 %v413
  %3592 = vmatprep.subr.mxu0 0.0
  %3593 = vmatpush1.msra.mxu0 %v414
  %3594 = vmatprep.subr.mxu0 0.0
  %3595 = vmatpush1.msra.mxu0 %v415
  %3596 = vmatprep.subr.mxu0 0.0
  %3597 = vmatpush1.msra.mxu0 0.0
  %3598 = vmatprep.subr.mxu0 0.0
  %3599 = vmatpush1.msra.mxu0 0.0
  %3600 = vmatprep.subr.mxu0 0.0
  %3601 = vmatpush1.msra.mxu0 0.0
  %3602 = vmatprep.subr.mxu0 0.0
  %3603 = vmatpush1.msra.mxu0 0.0
  %3604 = vmatprep.subr.mxu0 0.0
  %3605 = vmatpush1.msra.mxu0 0.0
  %3606 = vmatprep.subr.mxu0 0.0
  %3607 = vmatpush1.msra.mxu0 0.0
  %3608 = vmatprep.subr.mxu0 0.0
  %3609 = vmatpush1.msra.mxu0 0.0
  %3610 = vmatprep.subr.mxu0 0.0
  %3611 = vmatpush1.msra.mxu0 0.0
  %3612 = vmatprep.subr.mxu0 0.0
  %3613 = vmatpush1.msra.mxu0 0.0
  %3614 = vmatprep.subr.mxu0 0.0
  %3615 = vmatpush1.msra.mxu0 0.0
  %3616 = vmatprep.subr.mxu0 0.0
  %3617 = vmatpush1.msra.mxu0 0.0
  %3618 = vmatprep.subr.mxu0 0.0
  %3619 = vmatpush1.msra.mxu0 0.0
  %3620 = vmatprep.subr.mxu0 0.0
  %3621 = vmatpush1.msra.mxu0 0.0
  %3622 = vmatprep.subr.mxu0 0.0
  %3623 = vmatpush1.msra.mxu0 0.0
  %3624 = vmatprep.subr.mxu0 0.0
  %3625 = vmatpush1.msra.mxu0 0.0
  %3626 = vmatprep.subr.mxu0 0.0
  %3627 = vmatpush1.msra.mxu0 0.0
  %3628 = vmatprep.subr.mxu0 0.0
  %3629 = vmatpush1.msra.mxu0 0.0
  %3630 = vmatprep.subr.mxu0 0.0
  %3631 = vmatpush1.msra.mxu0 0.0
  %3632 = vmatprep.subr.mxu0 0.0
  %3633 = vmatpush1.msra.mxu0 0.0
  %3634 = vmatprep.subr.mxu0 0.0
  %3635 = vmatpush1.msra.mxu0 0.0
  %3636 = vmatprep.subr.mxu0 0.0
  %3637 = vmatpush1.msra.mxu0 0.0
  %3638 = vmatprep.subr.mxu0 0.0
  %3639 = vmatpush1.msra.mxu0 0.0
  %3640 = vmatprep.subr.mxu0 0.0
  %3641 = vmatpush1.msra.mxu0 0.0
  %3642 = vmatprep.subr.mxu0 0.0
  %3643 = vmatpush1.msra.mxu0 0.0
  %3644 = vmatprep.subr.mxu0 0.0
  %3645 = vmatpush1.msra.mxu0 0.0
  %3646 = vmatprep.subr.mxu0 0.0
  %3647 = vmatpush1.msra.mxu0 0.0
  %3648 = vmatprep.subr.mxu0 0.0
  %3649 = vmatpush1.msra.mxu0 0.0
  %3650 = vmatprep.subr.mxu0 0.0
  %3651 = vmatpush1.msra.mxu0 0.0
  %3652 = vmatprep.mubr.f32.mxu0 0.0
  %3653 = vmatmul.mubr.f32.gmra.mrb[0].mxu0 %v3491
  %v3654 = vpop.f32.mrb[0].mxu0
  %v3655 = vadd.f32 %v188, %v3654
  %v3656 = vpop.f32.mrb[0].mxu0
  %3657 = vdwg.mxu0
  %3659 = vrot.lane.b32.xlu0 %v3145, 32
  %v3660 = vpop.permute.xlu0 %3659
  %v3661 = vsel %vm211, %v3660, 0
  %3663 = vmatprep.subr.mxu0 0.0
  %3664 = vmatpush1.msra.mxu0 %v487
  %3665 = vmatprep.subr.mxu0 0.0
  %3666 = vmatpush1.msra.mxu0 %v488
  %3667 = vmatprep.subr.mxu0 0.0
  %3668 = vmatpush1.msra.mxu0 %v489
  %3669 = vmatprep.subr.mxu0 0.0
  %3670 = vmatpush1.msra.mxu0 %v490
  %3671 = vmatprep.subr.mxu0 0.0
  %3672 = vmatpush1.msra.mxu0 0.0
  %3673 = vmatprep.subr.mxu0 0.0
  %3674 = vmatpush1.msra.mxu0 0.0
  %3675 = vmatprep.subr.mxu0 0.0
  %3676 = vmatpush1.msra.mxu0 0.0
  %3677 = vmatprep.subr.mxu0 0.0
  %3678 = vmatpush1.msra.mxu0 0.0
  %3679 = vmatprep.subr.mxu0 0.0
  %3680 = vmatpush1.msra.mxu0 0.0
  %3681 = vmatprep.subr.mxu0 0.0
  %3682 = vmatpush1.msra.mxu0 0.0
  %3683 = vmatprep.subr.mxu0 0.0
  %3684 = vmatpush1.msra.mxu0 0.0
  %3685 = vmatprep.subr.mxu0 0.0
  %3686 = vmatpush1.msra.mxu0 0.0
  %3687 = vmatprep.subr.mxu0 0.0
  %3688 = vmatpush1.msra.mxu0 0.0
  %3689 = vmatprep.subr.mxu0 0.0
  %3690 = vmatpush1.msra.mxu0 0.0
  %3691 = vmatprep.subr.mxu0 0.0
  %3692 = vmatpush1.msra.mxu0 0.0
  %3693 = vmatprep.subr.mxu0 0.0
  %3694 = vmatpush1.msra.mxu0 0.0
  %3695 = vmatprep.subr.mxu0 0.0
  %3696 = vmatpush1.msra.mxu0 0.0
  %3697 = vmatprep.subr.mxu0 0.0
  %3698 = vmatpush1.msra.mxu0 0.0
  %3699 = vmatprep.subr.mxu0 0.0
  %3700 = vmatpush1.msra.mxu0 0.0
  %3701 = vmatprep.subr.mxu0 0.0
  %3702 = vmatpush1.msra.mxu0 0.0
  %3703 = vmatprep.subr.mxu0 0.0
  %3704 = vmatpush1.msra.mxu0 0.0
  %3705 = vmatprep.subr.mxu0 0.0
  %3706 = vmatpush1.msra.mxu0 0.0
  %3707 = vmatprep.subr.mxu0 0.0
  %3708 = vmatpush1.msra.mxu0 0.0
  %3709 = vmatprep.subr.mxu0 0.0
  %3710 = vmatpush1.msra.mxu0 0.0
  %3711 = vmatprep.subr.mxu0 0.0
  %3712 = vmatpush1.msra.mxu0 0.0
  %3713 = vmatprep.subr.mxu0 0.0
  %3714 = vmatpush1.msra.mxu0 0.0
  %3715 = vmatprep.subr.mxu0 0.0
  %3716 = vmatpush1.msra.mxu0 0.0
  %3717 = vmatprep.subr.mxu0 0.0
  %3718 = vmatpush1.msra.mxu0 0.0
  %3719 = vmatprep.subr.mxu0 0.0
  %3720 = vmatpush1.msra.mxu0 0.0
  %3721 = vmatprep.subr.mxu0 0.0
  %3722 = vmatpush1.msra.mxu0 0.0
  %3723 = vmatprep.subr.mxu0 0.0
  %3724 = vmatpush1.msra.mxu0 0.0
  %3725 = vmatprep.subr.mxu0 0.0
  %3726 = vmatpush1.msra.mxu0 0.0
  %3727 = vmatprep.mubr.f32.mxu0 0.0
  %3728 = vmatmul.mubr.f32.gmra.mrb[0].mxu0 %v3661
  %v3729 = vpop.f32.mrb[0].mxu0
  %v3730 = vadd.f32 0.0, %v3729
  %v3731 = vpop.f32.mrb[0].mxu0
  %3732 = vdwg.mxu0
  %v3733 = vadd.f32 %v3655, %v3730
  %v3734 = vxor.u32 %v3733, 2147483648
  %v3735 = vmul.f32 %v3734, 1.442695
  %v3736 = vpow.pop %v3735
  %v3737 = vadd.f32 %v3736, 1.0
  %v3738 = vrcp.pop %v3737
  %v3739 = vmul.f32 1.0, %v3738
  %v3740 = vtanh.pop %v3733
  %v3741 = vmul.f32 %v3739, %v3139
  %3743 = vrot.lane.b32.xlu0 %v3740, 64
  %v3744 = vpop.permute.xlu0 %3743
  %v3746 = vmul.f32 %v3739, %v3744
  %3748 = vrot.lane.b32.xlu0 %v3746, 32
  %v3749 = vpop.permute.xlu0 %3748
  %v3751 = vadd.f32 %v3741, %v3749
  %v3752 = vtanh.pop %v3751
  %3754 = vrot.lane.b32.xlu0 %v3752, 64
  %v3755 = vpop.permute.xlu0 %3754
  %v3757 = vmul.f32 %v3739, %v3755
  %3758 = vmatprep.subr.mxu0 0.0
  %3759 = vmatpush1.msra.mxu0 %v859
  %3760 = vmatprep.subr.mxu0 0.0
  %3761 = vmatpush1.msra.mxu0 %v860
  %3762 = vmatprep.subr.mxu0 0.0
  %3763 = vmatpush1.msra.mxu0 %v861
  %3764 = vmatprep.subr.mxu0 0.0
  %3765 = vmatpush1.msra.mxu0 %v862
  %3766 = vmatprep.subr.mxu0 0.0
  %3767 = vmatpush1.msra.mxu0 0.0
  %3768 = vmatprep.subr.mxu0 0.0
  %3769 = vmatpush1.msra.mxu0 0.0
  %3770 = vmatprep.subr.mxu0 0.0
  %3771 = vmatpush1.msra.mxu0 0.0
  %3772 = vmatprep.subr.mxu0 0.0
  %3773 = vmatpush1.msra.mxu0 0.0
  %3774 = vmatprep.subr.mxu0 0.0
  %3775 = vmatpush1.msra.mxu0 0.0
  %3776 = vmatprep.subr.mxu0 0.0
  %3777 = vmatpush1.msra.mxu0 0.0
  %3778 = vmatprep.subr.mxu0 0.0
  %3779 = vmatpush1.msra.mxu0 0.0
  %3780 = vmatprep.subr.mxu0 0.0
  %3781 = vmatpush1.msra.mxu0 0.0
  %3782 = vmatprep.subr.mxu0 0.0
  %3783 = vmatpush1.msra.mxu0 0.0
  %3784 = vmatprep.subr.mxu0 0.0
  %3785 = vmatpush1.msra.mxu0 0.0
  %3786 = vmatprep.subr.mxu0 0.0
  %3787 = vmatpush1.msra.mxu0 0.0
  %3788 = vmatprep.subr.mxu0 0.0
  %3789 = vmatpush1.msra.mxu0 0.0
  %3790 = vmatprep.subr.mxu0 0.0
  %3791 = vmatpush1.msra.mxu0 0.0
  %3792 = vmatprep.subr.mxu0 0.0
  %3793 = vmatpush1.msra.mxu0 0.0
  %3794 = vmatprep.subr.mxu0 0.0
  %3795 = vmatpush1.msra.mxu0 0.0
  %3796 = vmatprep.subr.mxu0 0.0
  %3797 = vmatpush1.msra.mxu0 0.0
  %3798 = vmatprep.subr.mxu0 0.0
  %3799 = vmatpush1.msra.mxu0 0.0
  %3800 = vmatprep.subr.mxu0 0.0
  %3801 = vmatpush1.msra.mxu0 0.0
  %3802 = vmatprep.subr.mxu0 0.0
  %3803 = vmatpush1.msra.mxu0 0.0
  %3804 = vmatprep.subr.mxu0 0.0
  %3805 = vmatpush1.msra.mxu0 0.0
  %3806 = vmatprep.subr.mxu0 0.0
  %3807 = vmatpush1.msra.mxu0 0.0
  %3808 = vmatprep.subr.mxu0 0.0
  %3809 = vmatpush1.msra.mxu0 0.0
  %3810 = vmatprep.subr.mxu0 0.0
  %3811 = vmatpush1.msra.mxu0 0.0
  %3812 = vmatprep.subr.mxu0 0.0
  %3813 = vmatpush1.msra.mxu0 0.0
  %3814 = vmatprep.subr.mxu0 0.0
  %3815 = vmatpush1.msra.mxu0 0.0
  %3816 = vmatprep.subr.mxu0 0.0
  %3817 = vmatpush1.msra.mxu0 0.0
  %3818 = vmatprep.subr.mxu0 0.0
  %3819 = vmatpush1.msra.mxu0 0.0
  %3820 = vmatprep.subr.mxu0 0.0
  %3821 = vmatpush1.msra.mxu0 0.0
  %3822 = vmatprep.mubr.f32.mxu0 0.0
  %3823 = vmatmul.mubr.f32.gmra.mrb[0].mxu0 %v3661
  %v3824 = vpop.f32.mrb[0].mxu0
  %v3825 = vadd.f32 %v196, %v3824
  %v3826 = vpop.f32.mrb[0].mxu0
  %3827 = vdwg.mxu0
  %3829 = vrot.lane.b32.xlu0 %v3315, 32
  %v3830 = vpop.permute.xlu0 %3829
  %v3831 = vsel %vm211, %v3830, 0
  %3833 = vmatprep.subr.mxu0 0.0
  %3834 = vmatpush1.msra.mxu0 %v934
  %3835 = vmatprep.subr.mxu0 0.0
  %3836 = vmatpush1.msra.mxu0 %v935
  %3837 = vmatprep.subr.mxu0 0.0
  %3838 = vmatpush1.msra.mxu0 %v936
  %3839 = vmatprep.subr.mxu0 0.0
  %3840 = vmatpush1.msra.mxu0 %v937
  %3841 = vmatprep.subr.mxu0 0.0
  %3842 = vmatpush1.msra.mxu0 0.0
  %3843 = vmatprep.subr.mxu0 0.0
  %3844 = vmatpush1.msra.mxu0 0.0
  %3845 = vmatprep.subr.mxu0 0.0
  %3846 = vmatpush1.msra.mxu0 0.0
  %3847 = vmatprep.subr.mxu0 0.0
  %3848 = vmatpush1.msra.mxu0 0.0
  %3849 = vmatprep.subr.mxu0 0.0
  %3850 = vmatpush1.msra.mxu0 0.0
  %3851 = vmatprep.subr.mxu0 0.0
  %3852 = vmatpush1.msra.mxu0 0.0
  %3853 = vmatprep.subr.mxu0 0.0
  %3854 = vmatpush1.msra.mxu0 0.0
  %3855 = vmatprep.subr.mxu0 0.0
  %3856 = vmatpush1.msra.mxu0 0.0
  %3857 = vmatprep.subr.mxu0 0.0
  %3858 = vmatpush1.msra.mxu0 0.0
  %3859 = vmatprep.subr.mxu0 0.0
  %3860 = vmatpush1.msra.mxu0 0.0
  %3861 = vmatprep.subr.mxu0 0.0
  %3862 = vmatpush1.msra.mxu0 0.0
  %3863 = vmatprep.subr.mxu0 0.0
  %3864 = vmatpush1.msra.mxu0 0.0
  %3865 = vmatprep.subr.mxu0 0.0
  %3866 = vmatpush1.msra.mxu0 0.0
  %3867 = vmatprep.subr.mxu0 0.0
  %3868 = vmatpush1.msra.mxu0 0.0
  %3869 = vmatprep.subr.mxu0 0.0
  %3870 = vmatpush1.msra.mxu0 0.0
  %3871 = vmatprep.subr.mxu0 0.0
  %3872 = vmatpush1.msra.mxu0 0.0
  %3873 = vmatprep.subr.mxu0 0.0
  %3874 = vmatpush1.msra.mxu0 0.0
  %3875 = vmatprep.subr.mxu0 0.0
  %3876 = vmatpush1.msra.mxu0 0.0
  %3877 = vmatprep.subr.mxu0 0.0
  %3878 = vmatpush1.msra.mxu0 0.0
  %3879 = vmatprep.subr.mxu0 0.0
  %3880 = vmatpush1.msra.mxu0 0.0
  %3881 = vmatprep.subr.mxu0 0.0
  %3882 = vmatpush1.msra.mxu0 0.0
  %3883 = vmatprep.subr.mxu0 0.0
  %3884 = vmatpush1.msra.mxu0 0.0
  %3885 = vmatprep.subr.mxu0 0.0
  %3886 = vmatpush1.msra.mxu0 0.0
  %3887 = vmatprep.subr.mxu0 0.0
  %3888 = vmatpush1.msra.mxu0 0.0
  %3889 = vmatprep.subr.mxu0 0.0
  %3890 = vmatpush1.msra.mxu0 0.0
  %3891 = vmatprep.subr.mxu0 0.0
  %3892 = vmatpush1.msra.mxu0 0.0
  %3893 = vmatprep.subr.mxu0 0.0
  %3894 = vmatpush1.msra.mxu0 0.0
  %3895 = vmatprep.subr.mxu0 0.0
  %3896 = vmatpush1.msra.mxu0 0.0
  %3897 = vmatprep.mubr.f32.mxu0 0.0
  %3898 = vmatmul.mubr.f32.gmra.mrb[0].mxu0 %v3831
  %v3899 = vpop.f32.mrb[0].mxu0
  %v3900 = vadd.f32 0.0, %v3899
  %v3901 = vpop.f32.mrb[0].mxu0
  %3902 = vdwg.mxu0
  %v3903 = vadd.f32 %v3825, %v3900
  %v3904 = vxor.u32 %v3903, 2147483648
  %v3905 = vmul.f32 %v3904, 1.442695
  %v3906 = vpow.pop %v3905
  %v3907 = vadd.f32 %v3906, 1.0
  %v3908 = vrcp.pop %v3907
  %v3909 = vmul.f32 1.0, %v3908
  %v3910 = vtanh.pop %v3903
  %v3911 = vmul.f32 %v3909, %v3309
  %3913 = vrot.lane.b32.xlu0 %v3910, 64
  %v3914 = vpop.permute.xlu0 %3913
  %v3916 = vmul.f32 %v3909, %v3914
  %3918 = vrot.lane.b32.xlu0 %v3916, 32
  %v3919 = vpop.permute.xlu0 %3918
  %v3921 = vadd.f32 %v3911, %v3919
  %v3922 = vtanh.pop %v3921
  %3924 = vrot.lane.b32.xlu0 %v3922, 64
  %v3925 = vpop.permute.xlu0 %3924
  %v3927 = vmul.f32 %v3909, %v3925
  %3928 = vmatprep.subr.mxu0 0.0
  %3929 = vmatpush1.msra.mxu0 %v1476
  %3930 = vmatprep.subr.mxu0 0.0
  %3931 = vmatpush1.msra.mxu0 %v1477
  %3932 = vmatprep.subr.mxu0 0.0
  %3933 = vmatpush1.msra.mxu0 %v1478
  %3934 = vmatprep.subr.mxu0 0.0
  %3935 = vmatpush1.msra.mxu0 %v1479
  %3936 = vmatprep.subr.mxu0 0.0
  %3937 = vmatpush1.msra.mxu0 0.0
  %3938 = vmatprep.subr.mxu0 0.0
  %3939 = vmatpush1.msra.mxu0 0.0
  %3940 = vmatprep.subr.mxu0 0.0
  %3941 = vmatpush1.msra.mxu0 0.0
  %3942 = vmatprep.subr.mxu0 0.0
  %3943 = vmatpush1.msra.mxu0 0.0
  %3944 = vmatprep.subr.mxu0 0.0
  %3945 = vmatpush1.msra.mxu0 0.0
  %3946 = vmatprep.subr.mxu0 0.0
  %3947 = vmatpush1.msra.mxu0 0.0
  %3948 = vmatprep.subr.mxu0 0.0
  %3949 = vmatpush1.msra.mxu0 0.0
  %3950 = vmatprep.subr.mxu0 0.0
  %3951 = vmatpush1.msra.mxu0 0.0
  %3952 = vmatprep.subr.mxu0 0.0
  %3953 = vmatpush1.msra.mxu0 0.0
  %3954 = vmatprep.subr.mxu0 0.0
  %3955 = vmatpush1.msra.mxu0 0.0
  %3956 = vmatprep.subr.mxu0 0.0
  %3957 = vmatpush1.msra.mxu0 0.0
  %3958 = vmatprep.subr.mxu0 0.0
  %3959 = vmatpush1.msra.mxu0 0.0
  %3960 = vmatprep.subr.mxu0 0.0
  %3961 = vmatpush1.msra.mxu0 0.0
  %3962 = vmatprep.subr.mxu0 0.0
  %3963 = vmatpush1.msra.mxu0 0.0
  %3964 = vmatprep.subr.mxu0 0.0
  %3965 = vmatpush1.msra.mxu0 0.0
  %3966 = vmatprep.subr.mxu0 0.0
  %3967 = vmatpush1.msra.mxu0 0.0
  %3968 = vmatprep.subr.mxu0 0.0
  %3969 = vmatpush1.msra.mxu0 0.0
  %3970 = vmatprep.subr.mxu0 0.0
  %3971 = vmatpush1.msra.mxu0 0.0
  %3972 = vmatprep.subr.mxu0 0.0
  %3973 = vmatpush1.msra.mxu0 0.0
  %3974 = vmatprep.subr.mxu0 0.0
  %3975 = vmatpush1.msra.mxu0 0.0
  %3976 = vmatprep.subr.mxu0 0.0
  %3977 = vmatpush1.msra.mxu0 0.0
  %3978 = vmatprep.subr.mxu0 0.0
  %3979 = vmatpush1.msra.mxu0 0.0
  %3980 = vmatprep.subr.mxu0 0.0
  %3981 = vmatpush1.msra.mxu0 0.0
  %3982 = vmatprep.subr.mxu0 0.0
  %3983 = vmatpush1.msra.mxu0 0.0
  %3984 = vmatprep.subr.mxu0 0.0
  %3985 = vmatpush1.msra.mxu0 0.0
  %3986 = vmatprep.subr.mxu0 0.0
  %3987 = vmatpush1.msra.mxu0 0.0
  %3988 = vmatprep.subr.mxu0 0.0
  %3989 = vmatpush1.msra.mxu0 0.0
  %3990 = vmatprep.subr.mxu0 0.0
  %3991 = vmatpush1.msra.mxu0 0.0
  %3992 = vmatprep.mubr.f32.mxu0 0.0
  %3993 = vmatmul.mubr.f32.gmra.mrb[0].mxu0 %v3831
  %v3994 = vpop.f32.mrb[0].mxu0
  %v3995 = vadd.f32 %v204, %v3994
  %v3996 = vpop.f32.mrb[0].mxu0
  %3997 = vdwg.mxu0
  %3999 = vrot.lane.b32.xlu0 %v3485, 32
  %v4000 = vpop.permute.xlu0 %3999
  %v4001 = vsel %vm211, %v4000, 0
  %4003 = vmatprep.subr.mxu0 0.0
  %4004 = vmatpush1.msra.mxu0 %v1551
  %4005 = vmatprep.subr.mxu0 0.0
  %4006 = vmatpush1.msra.mxu0 %v1552
  %4007 = vmatprep.subr.mxu0 0.0
  %4008 = vmatpush1.msra.mxu0 %v1553
  %4009 = vmatprep.subr.mxu0 0.0
  %4010 = vmatpush1.msra.mxu0 %v1554
  %4011 = vmatprep.subr.mxu0 0.0
  %4012 = vmatpush1.msra.mxu0 0.0
  %4013 = vmatprep.subr.mxu0 0.0
  %4014 = vmatpush1.msra.mxu0 0.0
  %4015 = vmatprep.subr.mxu0 0.0
  %4016 = vmatpush1.msra.mxu0 0.0
  %4017 = vmatprep.subr.mxu0 0.0
  %4018 = vmatpush1.msra.mxu0 0.0
  %4019 = vmatprep.subr.mxu0 0.0
  %4020 = vmatpush1.msra.mxu0 0.0
  %4021 = vmatprep.subr.mxu0 0.0
  %4022 = vmatpush1.msra.mxu0 0.0
  %4023 = vmatprep.subr.mxu0 0.0
  %4024 = vmatpush1.msra.mxu0 0.0
  %4025 = vmatprep.subr.mxu0 0.0
  %4026 = vmatpush1.msra.mxu0 0.0
  %4027 = vmatprep.subr.mxu0 0.0
  %4028 = vmatpush1.msra.mxu0 0.0
  %4029 = vmatprep.subr.mxu0 0.0
  %4030 = vmatpush1.msra.mxu0 0.0
  %4031 = vmatprep.subr.mxu0 0.0
  %4032 = vmatpush1.msra.mxu0 0.0
  %4033 = vmatprep.subr.mxu0 0.0
  %4034 = vmatpush1.msra.mxu0 0.0
  %4035 = vmatprep.subr.mxu0 0.0
  %4036 = vmatpush1.msra.mxu0 0.0
  %4037 = vmatprep.subr.mxu0 0.0
  %4038 = vmatpush1.msra.mxu0 0.0
  %4039 = vmatprep.subr.mxu0 0.0
  %4040 = vmatpush1.msra.mxu0 0.0
  %4041 = vmatprep.subr.mxu0 0.0
  %4042 = vmatpush1.msra.mxu0 0.0
  %4043 = vmatprep.subr.mxu0 0.0
  %4044 = vmatpush1.msra.mxu0 0.0
  %4045 = vmatprep.subr.mxu0 0.0
  %4046 = vmatpush1.msra.mxu0 0.0
  %4047 = vmatprep.subr.mxu0 0.0
  %4048 = vmatpush1.msra.mxu0 0.0
  %4049 = vmatprep.subr.mxu0 0.0
  %4050 = vmatpush1.msra.mxu0 0.0
  %4051 = vmatprep.subr.mxu0 0.0
  %4052 = vmatpush1.msra.mxu0 0.0
  %4053 = vmatprep.subr.mxu0 0.0
  %4054 = vmatpush1.msra.mxu0 0.0
  %4055 = vmatprep.subr.mxu0 0.0
  %4056 = vmatpush1.msra.mxu0 0.0
  %4057 = vmatprep.subr.mxu0 0.0
  %4058 = vmatpush1.msra.mxu0 0.0
  %4059 = vmatprep.subr.mxu0 0.0
  %4060 = vmatpush1.msra.mxu0 0.0
  %4061 = vmatprep.subr.mxu0 0.0
  %4062 = vmatpush1.msra.mxu0 0.0
  %4063 = vmatprep.subr.mxu0 0.0
  %4064 = vmatpush1.msra.mxu0 0.0
  %4065 = vmatprep.subr.mxu0 0.0
  %4066 = vmatpush1.msra.mxu0 0.0
  %4067 = vmatprep.mubr.f32.mxu0 0.0
  %4068 = vmatmul.mubr.f32.gmra.mrb[0].mxu0 %v4001
  %v4069 = vpop.f32.mrb[0].mxu0
  %v4070 = vadd.f32 0.0, %v4069
  %v4071 = vpop.f32.mrb[0].mxu0
  %4072 = vdwg.mxu0
  %v4073 = vadd.f32 %v3995, %v4070
  %v4074 = vxor.u32 %v4073, 2147483648
  %v4075 = vmul.f32 %v4074, 1.442695
  %v4076 = vpow.pop %v4075
  %v4077 = vadd.f32 %v4076, 1.0
  %v4078 = vrcp.pop %v4077
  %v4079 = vmul.f32 1.0, %v4078
  %v4080 = vtanh.pop %v4073
  %v4081 = vmul.f32 %v4079, %v3479
  %4083 = vrot.lane.b32.xlu0 %v4080, 64
  %v4084 = vpop.permute.xlu0 %4083
  %v4086 = vmul.f32 %v4079, %v4084
  %4088 = vrot.lane.b32.xlu0 %v4086, 32
  %v4089 = vpop.permute.xlu0 %4088
  %v4091 = vadd.f32 %v4081, %v4089
  %v4092 = vtanh.pop %v4091
  %4094 = vrot.lane.b32.xlu0 %v4092, 64
  %v4095 = vpop.permute.xlu0 %4094
  %v4097 = vmul.f32 %v4079, %v4095
  %4099 = vrot.lane.b32.xlu0 %v3587, 32
  %v4100 = vpop.permute.xlu0 %4099
  %v4101 = vsel %vm211, %v4100, 0
  %4103 = vmatprep.subr.mxu0 0.0
  %4104 = vmatpush1.msra.mxu0 %v412
  %4105 = vmatprep.subr.mxu0 0.0
  %4106 = vmatpush1.msra.mxu0 %v413
  %4107 = vmatprep.subr.mxu0 0.0
  %4108 = vmatpush1.msra.mxu0 %v414
  %4109 = vmatprep.subr.mxu0 0.0
  %4110 = vmatpush1.msra.mxu0 %v415
  %4111 = vmatprep.subr.mxu0 0.0
  %4112 = vmatpush1.msra.mxu0 0.0
  %4113 = vmatprep.subr.mxu0 0.0
  %4114 = vmatpush1.msra.mxu0 0.0
  %4115 = vmatprep.subr.mxu0 0.0
  %4116 = vmatpush1.msra.mxu0 0.0
  %4117 = vmatprep.subr.mxu0 0.0
  %4118 = vmatpush1.msra.mxu0 0.0
  %4119 = vmatprep.subr.mxu0 0.0
  %4120 = vmatpush1.msra.mxu0 0.0
  %4121 = vmatprep.subr.mxu0 0.0
  %4122 = vmatpush1.msra.mxu0 0.0
  %4123 = vmatprep.subr.mxu0 0.0
  %4124 = vmatpush1.msra.mxu0 0.0
  %4125 = vmatprep.subr.mxu0 0.0
  %4126 = vmatpush1.msra.mxu0 0.0
  %4127 = vmatprep.subr.mxu0 0.0
  %4128 = vmatpush1.msra.mxu0 0.0
  %4129 = vmatprep.subr.mxu0 0.0
  %4130 = vmatpush1.msra.mxu0 0.0
  %4131 = vmatprep.subr.mxu0 0.0
  %4132 = vmatpush1.msra.mxu0 0.0
  %4133 = vmatprep.subr.mxu0 0.0
  %4134 = vmatpush1.msra.mxu0 0.0
  %4135 = vmatprep.subr.mxu0 0.0
  %4136 = vmatpush1.msra.mxu0 0.0
  %4137 = vmatprep.subr.mxu0 0.0
  %4138 = vmatpush1.msra.mxu0 0.0
  %4139 = vmatprep.subr.mxu0 0.0
  %4140 = vmatpush1.msra.mxu0 0.0
  %4141 = vmatprep.subr.mxu0 0.0
  %4142 = vmatpush1.msra.mxu0 0.0
  %4143 = vmatprep.subr.mxu0 0.0
  %4144 = vmatpush1.msra.mxu0 0.0
  %4145 = vmatprep.subr.mxu0 0.0
  %4146 = vmatpush1.msra.mxu0 0.0
  %4147 = vmatprep.subr.mxu0 0.0
  %4148 = vmatpush1.msra.mxu0 0.0
  %4149 = vmatprep.subr.mxu0 0.0
  %4150 = vmatpush1.msra.mxu0 0.0
  %4151 = vmatprep.subr.mxu0 0.0
  %4152 = vmatpush1.msra.mxu0 0.0
  %4153 = vmatprep.subr.mxu0 0.0
  %4154 = vmatpush1.msra.mxu0 0.0
  %4155 = vmatprep.subr.mxu0 0.0
  %4156 = vmatpush1.msra.mxu0 0.0
  %4157 = vmatprep.subr.mxu0 0.0
  %4158 = vmatpush1.msra.mxu0 0.0
  %4159 = vmatprep.subr.mxu0 0.0
  %4160 = vmatpush1.msra.mxu0 0.0
  %4161 = vmatprep.subr.mxu0 0.0
  %4162 = vmatpush1.msra.mxu0 0.0
  %4163 = vmatprep.subr.mxu0 0.0
  %4164 = vmatpush1.msra.mxu0 0.0
  %4165 = vmatprep.subr.mxu0 0.0
  %4166 = vmatpush1.msra.mxu0 0.0
  %4167 = vmatprep.mubr.f32.mxu0 0.0
  %4168 = vmatmul.mubr.f32.gmra.mrb[0].mxu0 %v4101
  %v4169 = vpop.f32.mrb[0].mxu0
  %v4170 = vadd.f32 %v188, %v4169
  %v4171 = vpop.f32.mrb[0].mxu0
  %4172 = vdwg.mxu0
  %4174 = vrot.lane.b32.xlu0 %v3757, 32
  %v4175 = vpop.permute.xlu0 %4174
  %v4176 = vsel %vm211, %v4175, 0
  %4178 = vmatprep.subr.mxu0 0.0
  %4179 = vmatpush1.msra.mxu0 %v487
  %4180 = vmatprep.subr.mxu0 0.0
  %4181 = vmatpush1.msra.mxu0 %v488
  %4182 = vmatprep.subr.mxu0 0.0
  %4183 = vmatpush1.msra.mxu0 %v489
  %4184 = vmatprep.subr.mxu0 0.0
  %4185 = vmatpush1.msra.mxu0 %v490
  %4186 = vmatprep.subr.mxu0 0.0
  %4187 = vmatpush1.msra.mxu0 0.0
  %4188 = vmatprep.subr.mxu0 0.0
  %4189 = vmatpush1.msra.mxu0 0.0
  %4190 = vmatprep.subr.mxu0 0.0
  %4191 = vmatpush1.msra.mxu0 0.0
  %4192 = vmatprep.subr.mxu0 0.0
  %4193 = vmatpush1.msra.mxu0 0.0
  %4194 = vmatprep.subr.mxu0 0.0
  %4195 = vmatpush1.msra.mxu0 0.0
  %4196 = vmatprep.subr.mxu0 0.0
  %4197 = vmatpush1.msra.mxu0 0.0
  %4198 = vmatprep.subr.mxu0 0.0
  %4199 = vmatpush1.msra.mxu0 0.0
  %4200 = vmatprep.subr.mxu0 0.0
  %4201 = vmatpush1.msra.mxu0 0.0
  %4202 = vmatprep.subr.mxu0 0.0
  %4203 = vmatpush1.msra.mxu0 0.0
  %4204 = vmatprep.subr.mxu0 0.0
  %4205 = vmatpush1.msra.mxu0 0.0
  %4206 = vmatprep.subr.mxu0 0.0
  %4207 = vmatpush1.msra.mxu0 0.0
  %4208 = vmatprep.subr.mxu0 0.0
  %4209 = vmatpush1.msra.mxu0 0.0
  %4210 = vmatprep.subr.mxu0 0.0
  %4211 = vmatpush1.msra.mxu0 0.0
  %4212 = vmatprep.subr.mxu0 0.0
  %4213 = vmatpush1.msra.mxu0 0.0
  %4214 = vmatprep.subr.mxu0 0.0
  %4215 = vmatpush1.msra.mxu0 0.0
  %4216 = vmatprep.subr.mxu0 0.0
  %4217 = vmatpush1.msra.mxu0 0.0
  %4218 = vmatprep.subr.mxu0 0.0
  %4219 = vmatpush1.msra.mxu0 0.0
  %4220 = vmatprep.subr.mxu0 0.0
  %4221 = vmatpush1.msra.mxu0 0.0
  %4222 = vmatprep.subr.mxu0 0.0
  %4223 = vmatpush1.msra.mxu0 0.0
  %4224 = vmatprep.subr.mxu0 0.0
  %4225 = vmatpush1.msra.mxu0 0.0
  %4226 = vmatprep.subr.mxu0 0.0
  %4227 = vmatpush1.msra.mxu0 0.0
  %4228 = vmatprep.subr.mxu0 0.0
  %4229 = vmatpush1.msra.mxu0 0.0
  %4230 = vmatprep.subr.mxu0 0.0
  %4231 = vmatpush1.msra.mxu0 0.0
  %4232 = vmatprep.subr.mxu0 0.0
  %4233 = vmatpush1.msra.mxu0 0.0
  %4234 = vmatprep.subr.mxu0 0.0
  %4235 = vmatpush1.msra.mxu0 0.0
  %4236 = vmatprep.subr.mxu0 0.0
  %4237 = vmatpush1.msra.mxu0 0.0
  %4238 = vmatprep.subr.mxu0 0.0
  %4239 = vmatpush1.msra.mxu0 0.0
  %4240 = vmatprep.subr.mxu0 0.0
  %4241 = vmatpush1.msra.mxu0 0.0
  %4242 = vmatprep.mubr.f32.mxu0 0.0
  %4243 = vmatmul.mubr.f32.gmra.mrb[0].mxu0 %v4176
  %v4244 = vpop.f32.mrb[0].mxu0
  %v4245 = vadd.f32 0.0, %v4244
  %v4246 = vpop.f32.mrb[0].mxu0
  %4247 = vdwg.mxu0
  %v4248 = vadd.f32 %v4170, %v4245
  %v4249 = vxor.u32 %v4248, 2147483648
  %v4250 = vmul.f32 %v4249, 1.442695
  %v4251 = vpow.pop %v4250
  %v4252 = vadd.f32 %v4251, 1.0
  %v4253 = vrcp.pop %v4252
  %v4254 = vmul.f32 1.0, %v4253
  %v4255 = vtanh.pop %v4248
  %v4256 = vmul.f32 %v4254, %v3751
  %4258 = vrot.lane.b32.xlu0 %v4255, 64
  %v4259 = vpop.permute.xlu0 %4258
  %v4261 = vmul.f32 %v4254, %v4259
  %4263 = vrot.lane.b32.xlu0 %v4261, 32
  %v4264 = vpop.permute.xlu0 %4263
  %v4266 = vadd.f32 %v4256, %v4264
  %v4267 = vtanh.pop %v4266
  %4269 = vrot.lane.b32.xlu0 %v4267, 64
  %v4270 = vpop.permute.xlu0 %4269
  %v4272 = vmul.f32 %v4254, %v4270
  %4273 = vmatprep.subr.mxu0 0.0
  %4274 = vmatpush1.msra.mxu0 %v859
  %4275 = vmatprep.subr.mxu0 0.0
  %4276 = vmatpush1.msra.mxu0 %v860
  %4277 = vmatprep.subr.mxu0 0.0
  %4278 = vmatpush1.msra.mxu0 %v861
  %4279 = vmatprep.subr.mxu0 0.0
  %4280 = vmatpush1.msra.mxu0 %v862
  %4281 = vmatprep.subr.mxu0 0.0
  %4282 = vmatpush1.msra.mxu0 0.0
  %4283 = vmatprep.subr.mxu0 0.0
  %4284 = vmatpush1.msra.mxu0 0.0
  %4285 = vmatprep.subr.mxu0 0.0
  %4286 = vmatpush1.msra.mxu0 0.0
  %4287 = vmatprep.subr.mxu0 0.0
  %4288 = vmatpush1.msra.mxu0 0.0
  %4289 = vmatprep.subr.mxu0 0.0
  %4290 = vmatpush1.msra.mxu0 0.0
  %4291 = vmatprep.subr.mxu0 0.0
  %4292 = vmatpush1.msra.mxu0 0.0
  %4293 = vmatprep.subr.mxu0 0.0
  %4294 = vmatpush1.msra.mxu0 0.0
  %4295 = vmatprep.subr.mxu0 0.0
  %4296 = vmatpush1.msra.mxu0 0.0
  %4297 = vmatprep.subr.mxu0 0.0
  %4298 = vmatpush1.msra.mxu0 0.0
  %4299 = vmatprep.subr.mxu0 0.0
  %4300 = vmatpush1.msra.mxu0 0.0
  %4301 = vmatprep.subr.mxu0 0.0
  %4302 = vmatpush1.msra.mxu0 0.0
  %4303 = vmatprep.subr.mxu0 0.0
  %4304 = vmatpush1.msra.mxu0 0.0
  %4305 = vmatprep.subr.mxu0 0.0
  %4306 = vmatpush1.msra.mxu0 0.0
  %4307 = vmatprep.subr.mxu0 0.0
  %4308 = vmatpush1.msra.mxu0 0.0
  %4309 = vmatprep.subr.mxu0 0.0
  %4310 = vmatpush1.msra.mxu0 0.0
  %4311 = vmatprep.subr.mxu0 0.0
  %4312 = vmatpush1.msra.mxu0 0.0
  %4313 = vmatprep.subr.mxu0 0.0
  %4314 = vmatpush1.msra.mxu0 0.0
  %4315 = vmatprep.subr.mxu0 0.0
  %4316 = vmatpush1.msra.mxu0 0.0
  %4317 = vmatprep.subr.mxu0 0.0
  %4318 = vmatpush1.msra.mxu0 0.0
  %4319 = vmatprep.subr.mxu0 0.0
  %4320 = vmatpush1.msra.mxu0 0.0
  %4321 = vmatprep.subr.mxu0 0.0
  %4322 = vmatpush1.msra.mxu0 0.0
  %4323 = vmatprep.subr.mxu0 0.0
  %4324 = vmatpush1.msra.mxu0 0.0
  %4325 = vmatprep.subr.mxu0 0.0
  %4326 = vmatpush1.msra.mxu0 0.0
  %4327 = vmatprep.subr.mxu0 0.0
  %4328 = vmatpush1.msra.mxu0 0.0
  %4329 = vmatprep.subr.mxu0 0.0
  %4330 = vmatpush1.msra.mxu0 0.0
  %4331 = vmatprep.subr.mxu0 0.0
  %4332 = vmatpush1.msra.mxu0 0.0
  %4333 = vmatprep.subr.mxu0 0.0
  %4334 = vmatpush1.msra.mxu0 0.0
  %4335 = vmatprep.subr.mxu0 0.0
  %4336 = vmatpush1.msra.mxu0 0.0
  %4337 = vmatprep.mubr.f32.mxu0 0.0
  %4338 = vmatmul.mubr.f32.gmra.mrb[0].mxu0 %v4176
  %v4339 = vpop.f32.mrb[0].mxu0
  %v4340 = vadd.f32 %v196, %v4339
  %v4341 = vpop.f32.mrb[0].mxu0
  %4342 = vdwg.mxu0
  %4344 = vrot.lane.b32.xlu0 %v3927, 32
  %v4345 = vpop.permute.xlu0 %4344
  %v4346 = vsel %vm211, %v4345, 0
  %4348 = vmatprep.subr.mxu0 0.0
  %4349 = vmatpush1.msra.mxu0 %v934
  %4350 = vmatprep.subr.mxu0 0.0
  %4351 = vmatpush1.msra.mxu0 %v935
  %4352 = vmatprep.subr.mxu0 0.0
  %4353 = vmatpush1.msra.mxu0 %v936
  %4354 = vmatprep.subr.mxu0 0.0
  %4355 = vmatpush1.msra.mxu0 %v937
  %4356 = vmatprep.subr.mxu0 0.0
  %4357 = vmatpush1.msra.mxu0 0.0
  %4358 = vmatprep.subr.mxu0 0.0
  %4359 = vmatpush1.msra.mxu0 0.0
  %4360 = vmatprep.subr.mxu0 0.0
  %4361 = vmatpush1.msra.mxu0 0.0
  %4362 = vmatprep.subr.mxu0 0.0
  %4363 = vmatpush1.msra.mxu0 0.0
  %4364 = vmatprep.subr.mxu0 0.0
  %4365 = vmatpush1.msra.mxu0 0.0
  %4366 = vmatprep.subr.mxu0 0.0
  %4367 = vmatpush1.msra.mxu0 0.0
  %4368 = vmatprep.subr.mxu0 0.0
  %4369 = vmatpush1.msra.mxu0 0.0
  %4370 = vmatprep.subr.mxu0 0.0
  %4371 = vmatpush1.msra.mxu0 0.0
  %4372 = vmatprep.subr.mxu0 0.0
  %4373 = vmatpush1.msra.mxu0 0.0
  %4374 = vmatprep.subr.mxu0 0.0
  %4375 = vmatpush1.msra.mxu0 0.0
  %4376 = vmatprep.subr.mxu0 0.0
  %4377 = vmatpush1.msra.mxu0 0.0
  %4378 = vmatprep.subr.mxu0 0.0
  %4379 = vmatpush1.msra.mxu0 0.0
  %4380 = vmatprep.subr.mxu0 0.0
  %4381 = vmatpush1.msra.mxu0 0.0
  %4382 = vmatprep.subr.mxu0 0.0
  %4383 = vmatpush1.msra.mxu0 0.0
  %4384 = vmatprep.subr.mxu0 0.0
  %4385 = vmatpush1.msra.mxu0 0.0
  %4386 = vmatprep.subr.mxu0 0.0
  %4387 = vmatpush1.msra.mxu0 0.0
  %4388 = vmatprep.subr.mxu0 0.0
  %4389 = vmatpush1.msra.mxu0 0.0
  %4390 = vmatprep.subr.mxu0 0.0
  %4391 = vmatpush1.msra.mxu0 0.0
  %4392 = vmatprep.subr.mxu0 0.0
  %4393 = vmatpush1.msra.mxu0 0.0
  %4394 = vmatprep.subr.mxu0 0.0
  %4395 = vmatpush1.msra.mxu0 0.0
  %4396 = vmatprep.subr.mxu0 0.0
  %4397 = vmatpush1.msra.mxu0 0.0
  %4398 = vmatprep.subr.mxu0 0.0
  %4399 = vmatpush1.msra.mxu0 0.0
  %4400 = vmatprep.subr.mxu0 0.0
  %4401 = vmatpush1.msra.mxu0 0.0
  %4402 = vmatprep.subr.mxu0 0.0
  %4403 = vmatpush1.msra.mxu0 0.0
  %4404 = vmatprep.subr.mxu0 0.0
  %4405 = vmatpush1.msra.mxu0 0.0
  %4406 = vmatprep.subr.mxu0 0.0
  %4407 = vmatpush1.msra.mxu0 0.0
  %4408 = vmatprep.subr.mxu0 0.0
  %4409 = vmatpush1.msra.mxu0 0.0
  %4410 = vmatprep.subr.mxu0 0.0
  %4411 = vmatpush1.msra.mxu0 0.0
  %4412 = vmatprep.mubr.f32.mxu0 0.0
  %4413 = vmatmul.mubr.f32.gmra.mrb[0].mxu0 %v4346
  %v4414 = vpop.f32.mrb[0].mxu0
  %v4415 = vadd.f32 0.0, %v4414
  %v4416 = vpop.f32.mrb[0].mxu0
  %4417 = vdwg.mxu0
  %v4418 = vadd.f32 %v4340, %v4415
  %v4419 = vxor.u32 %v4418, 2147483648
  %v4420 = vmul.f32 %v4419, 1.442695
  %v4421 = vpow.pop %v4420
  %v4422 = vadd.f32 %v4421, 1.0
  %v4423 = vrcp.pop %v4422
  %v4424 = vmul.f32 1.0, %v4423
  %v4425 = vtanh.pop %v4418
  %v4426 = vmul.f32 %v4424, %v3921
  %4428 = vrot.lane.b32.xlu0 %v4425, 64
  %v4429 = vpop.permute.xlu0 %4428
  %v4431 = vmul.f32 %v4424, %v4429
  %4433 = vrot.lane.b32.xlu0 %v4431, 32
  %v4434 = vpop.permute.xlu0 %4433
  %v4436 = vadd.f32 %v4426, %v4434
  %v4437 = vtanh.pop %v4436
  %4439 = vrot.lane.b32.xlu0 %v4437, 64
  %v4440 = vpop.permute.xlu0 %4439
  %v4442 = vmul.f32 %v4424, %v4440
  %4443 = vmatprep.subr.mxu0 0.0
  %4444 = vmatpush1.msra.mxu0 %v1476
  %4445 = vmatprep.subr.mxu0 0.0
  %4446 = vmatpush1.msra.mxu0 %v1477
  %4447 = vmatprep.subr.mxu0 0.0
  %4448 = vmatpush1.msra.mxu0 %v1478
  %4449 = vmatprep.subr.mxu0 0.0
  %4450 = vmatpush1.msra.mxu0 %v1479
  %4451 = vmatprep.subr.mxu0 0.0
  %4452 = vmatpush1.msra.mxu0 0.0
  %4453 = vmatprep.subr.mxu0 0.0
  %4454 = vmatpush1.msra.mxu0 0.0
  %4455 = vmatprep.subr.mxu0 0.0
  %4456 = vmatpush1.msra.mxu0 0.0
  %4457 = vmatprep.subr.mxu0 0.0
  %4458 = vmatpush1.msra.mxu0 0.0
  %4459 = vmatprep.subr.mxu0 0.0
  %4460 = vmatpush1.msra.mxu0 0.0
  %4461 = vmatprep.subr.mxu0 0.0
  %4462 = vmatpush1.msra.mxu0 0.0
  %4463 = vmatprep.subr.mxu0 0.0
  %4464 = vmatpush1.msra.mxu0 0.0
  %4465 = vmatprep.subr.mxu0 0.0
  %4466 = vmatpush1.msra.mxu0 0.0
  %4467 = vmatprep.subr.mxu0 0.0
  %4468 = vmatpush1.msra.mxu0 0.0
  %4469 = vmatprep.subr.mxu0 0.0
  %4470 = vmatpush1.msra.mxu0 0.0
  %4471 = vmatprep.subr.mxu0 0.0
  %4472 = vmatpush1.msra.mxu0 0.0
  %4473 = vmatprep.subr.mxu0 0.0
  %4474 = vmatpush1.msra.mxu0 0.0
  %4475 = vmatprep.subr.mxu0 0.0
  %4476 = vmatpush1.msra.mxu0 0.0
  %4477 = vmatprep.subr.mxu0 0.0
  %4478 = vmatpush1.msra.mxu0 0.0
  %4479 = vmatprep.subr.mxu0 0.0
  %4480 = vmatpush1.msra.mxu0 0.0
  %4481 = vmatprep.subr.mxu0 0.0
  %4482 = vmatpush1.msra.mxu0 0.0
  %4483 = vmatprep.subr.mxu0 0.0
  %4484 = vmatpush1.msra.mxu0 0.0
  %4485 = vmatprep.subr.mxu0 0.0
  %4486 = vmatpush1.msra.mxu0 0.0
  %4487 = vmatprep.subr.mxu0 0.0
  %4488 = vmatpush1.msra.mxu0 0.0
  %4489 = vmatprep.subr.mxu0 0.0
  %4490 = vmatpush1.msra.mxu0 0.0
  %4491 = vmatprep.subr.mxu0 0.0
  %4492 = vmatpush1.msra.mxu0 0.0
  %4493 = vmatprep.subr.mxu0 0.0
  %4494 = vmatpush1.msra.mxu0 0.0
  %4495 = vmatprep.subr.mxu0 0.0
  %4496 = vmatpush1.msra.mxu0 0.0
  %4497 = vmatprep.subr.mxu0 0.0
  %4498 = vmatpush1.msra.mxu0 0.0
  %4499 = vmatprep.subr.mxu0 0.0
  %4500 = vmatpush1.msra.mxu0 0.0
  %4501 = vmatprep.subr.mxu0 0.0
  %4502 = vmatpush1.msra.mxu0 0.0
  %4503 = vmatprep.subr.mxu0 0.0
  %4504 = vmatpush1.msra.mxu0 0.0
  %4505 = vmatprep.subr.mxu0 0.0
  %4506 = vmatpush1.msra.mxu0 0.0
  %4507 = vmatprep.mubr.f32.mxu0 0.0
  %4508 = vmatmul.mubr.f32.gmra.mrb[0].mxu0 %v4346
  %v4509 = vpop.f32.mrb[0].mxu0
  %v4510 = vadd.f32 %v204, %v4509
  %v4511 = vpop.f32.mrb[0].mxu0
  %4512 = vdwg.mxu0
  %4514 = vrot.lane.b32.xlu0 %v4097, 32
  %v4515 = vpop.permute.xlu0 %4514
  %v4516 = vsel %vm211, %v4515, 0
  %4518 = vmatprep.subr.mxu0 0.0
  %4519 = vmatpush1.msra.mxu0 %v1551
  %4520 = vmatprep.subr.mxu0 0.0
  %4521 = vmatpush1.msra.mxu0 %v1552
  %4522 = vmatprep.subr.mxu0 0.0
  %4523 = vmatpush1.msra.mxu0 %v1553
  %4524 = vmatprep.subr.mxu0 0.0
  %4525 = vmatpush1.msra.mxu0 %v1554
  %4526 = vmatprep.subr.mxu0 0.0
  %4527 = vmatpush1.msra.mxu0 0.0
  %4528 = vmatprep.subr.mxu0 0.0
  %4529 = vmatpush1.msra.mxu0 0.0
  %4530 = vmatprep.subr.mxu0 0.0
  %4531 = vmatpush1.msra.mxu0 0.0
  %4532 = vmatprep.subr.mxu0 0.0
  %4533 = vmatpush1.msra.mxu0 0.0
  %4534 = vmatprep.subr.mxu0 0.0
  %4535 = vmatpush1.msra.mxu0 0.0
  %4536 = vmatprep.subr.mxu0 0.0
  %4537 = vmatpush1.msra.mxu0 0.0
  %4538 = vmatprep.subr.mxu0 0.0
  %4539 = vmatpush1.msra.mxu0 0.0
  %4540 = vmatprep.subr.mxu0 0.0
  %4541 = vmatpush1.msra.mxu0 0.0
  %4542 = vmatprep.subr.mxu0 0.0
  %4543 = vmatpush1.msra.mxu0 0.0
  %4544 = vmatprep.subr.mxu0 0.0
  %4545 = vmatpush1.msra.mxu0 0.0
  %4546 = vmatprep.subr.mxu0 0.0
  %4547 = vmatpush1.msra.mxu0 0.0
  %4548 = vmatprep.subr.mxu0 0.0
  %4549 = vmatpush1.msra.mxu0 0.0
  %4550 = vmatprep.subr.mxu0 0.0
  %4551 = vmatpush1.msra.mxu0 0.0
  %4552 = vmatprep.subr.mxu0 0.0
  %4553 = vmatpush1.msra.mxu0 0.0
  %4554 = vmatprep.subr.mxu0 0.0
  %4555 = vmatpush1.msra.mxu0 0.0
  %4556 = vmatprep.subr.mxu0 0.0
  %4557 = vmatpush1.msra.mxu0 0.0
  %4558 = vmatprep.subr.mxu0 0.0
  %4559 = vmatpush1.msra.mxu0 0.0
  %4560 = vmatprep.subr.mxu0 0.0
  %4561 = vmatpush1.msra.mxu0 0.0
  %4562 = vmatprep.subr.mxu0 0.0
  %4563 = vmatpush1.msra.mxu0 0.0
  %4564 = vmatprep.subr.mxu0 0.0
  %4565 = vmatpush1.msra.mxu0 0.0
  %4566 = vmatprep.subr.mxu0 0.0
  %4567 = vmatpush1.msra.mxu0 0.0
  %4568 = vmatprep.subr.mxu0 0.0
  %4569 = vmatpush1.msra.mxu0 0.0
  %4570 = vmatprep.subr.mxu0 0.0
  %4571 = vmatpush1.msra.mxu0 0.0
  %4572 = vmatprep.subr.mxu0 0.0
  %4573 = vmatpush1.msra.mxu0 0.0
  %4574 = vmatprep.subr.mxu0 0.0
  %4575 = vmatpush1.msra.mxu0 0.0
  %4576 = vmatprep.subr.mxu0 0.0
  %4577 = vmatpush1.msra.mxu0 0.0
  %4578 = vmatprep.subr.mxu0 0.0
  %4579 = vmatpush1.msra.mxu0 0.0
  %4580 = vmatprep.subr.mxu0 0.0
  %4581 = vmatpush1.msra.mxu0 0.0
  %4582 = vmatprep.mubr.f32.mxu0 0.0
  %4583 = vmatmul.mubr.f32.gmra.mrb[0].mxu0 %v4516
  %v4584 = vpop.f32.mrb[0].mxu0
  %v4585 = vadd.f32 0.0, %v4584
  %v4586 = vpop.f32.mrb[0].mxu0
  %4587 = vdwg.mxu0
  %v4588 = vadd.f32 %v4510, %v4585
  %v4589 = vxor.u32 %v4588, 2147483648
  %v4590 = vmul.f32 %v4589, 1.442695
  %v4591 = vpow.pop %v4590
  %v4592 = vadd.f32 %v4591, 1.0
  %v4593 = vrcp.pop %v4592
  %v4594 = vmul.f32 1.0, %v4593
  %v4595 = vtanh.pop %v4588
  %v4596 = vmul.f32 %v4594, %v4091
  %4598 = vrot.lane.b32.xlu0 %v4595, 64
  %v4599 = vpop.permute.xlu0 %4598
  %v4601 = vmul.f32 %v4594, %v4599
  %4603 = vrot.lane.b32.xlu0 %v4601, 32
  %v4604 = vpop.permute.xlu0 %4603
  %v4606 = vadd.f32 %v4596, %v4604
  %v4607 = vtanh.pop %v4606
  %4609 = vrot.lane.b32.xlu0 %v4607, 64
  %v4610 = vpop.permute.xlu0 %4609
  %v4612 = vmul.f32 %v4594, %v4610
  %4614 = vrot.lane.b32.xlu0 %v4272, 32
  %v4615 = vpop.permute.xlu0 %4614
  %v4616 = vsel %vm211, %v4615, 0
  %4618 = vmatprep.subr.mxu0 0.0
  %4619 = vmatpush1.msra.mxu0 %v859
  %4620 = vmatprep.subr.mxu0 0.0
  %4621 = vmatpush1.msra.mxu0 %v860
  %4622 = vmatprep.subr.mxu0 0.0
  %4623 = vmatpush1.msra.mxu0 %v861
  %4624 = vmatprep.subr.mxu0 0.0
  %4625 = vmatpush1.msra.mxu0 %v862
  %4626 = vmatprep.subr.mxu0 0.0
  %4627 = vmatpush1.msra.mxu0 0.0
  %4628 = vmatprep.subr.mxu0 0.0
  %4629 = vmatpush1.msra.mxu0 0.0
  %4630 = vmatprep.subr.mxu0 0.0
  %4631 = vmatpush1.msra.mxu0 0.0
  %4632 = vmatprep.subr.mxu0 0.0
  %4633 = vmatpush1.msra.mxu0 0.0
  %4634 = vmatprep.subr.mxu0 0.0
  %4635 = vmatpush1.msra.mxu0 0.0
  %4636 = vmatprep.subr.mxu0 0.0
  %4637 = vmatpush1.msra.mxu0 0.0
  %4638 = vmatprep.subr.mxu0 0.0
  %4639 = vmatpush1.msra.mxu0 0.0
  %4640 = vmatprep.subr.mxu0 0.0
  %4641 = vmatpush1.msra.mxu0 0.0
  %4642 = vmatprep.subr.mxu0 0.0
  %4643 = vmatpush1.msra.mxu0 0.0
  %4644 = vmatprep.subr.mxu0 0.0
  %4645 = vmatpush1.msra.mxu0 0.0
  %4646 = vmatprep.subr.mxu0 0.0
  %4647 = vmatpush1.msra.mxu0 0.0
  %4648 = vmatprep.subr.mxu0 0.0
  %4649 = vmatpush1.msra.mxu0 0.0
  %4650 = vmatprep.subr.mxu0 0.0
  %4651 = vmatpush1.msra.mxu0 0.0
  %4652 = vmatprep.subr.mxu0 0.0
  %4653 = vmatpush1.msra.mxu0 0.0
  %4654 = vmatprep.subr.mxu0 0.0
  %4655 = vmatpush1.msra.mxu0 0.0
  %4656 = vmatprep.subr.mxu0 0.0
  %4657 = vmatpush1.msra.mxu0 0.0
  %4658 = vmatprep.subr.mxu0 0.0
  %4659 = vmatpush1.msra.mxu0 0.0
  %4660 = vmatprep.subr.mxu0 0.0
  %4661 = vmatpush1.msra.mxu0 0.0
  %4662 = vmatprep.subr.mxu0 0.0
  %4663 = vmatpush1.msra.mxu0 0.0
  %4664 = vmatprep.subr.mxu0 0.0
  %4665 = vmatpush1.msra.mxu0 0.0
  %4666 = vmatprep.subr.mxu0 0.0
  %4667 = vmatpush1.msra.mxu0 0.0
  %4668 = vmatprep.subr.mxu0 0.0
  %4669 = vmatpush1.msra.mxu0 0.0
  %4670 = vmatprep.subr.mxu0 0.0
  %4671 = vmatpush1.msra.mxu0 0.0
  %4672 = vmatprep.subr.mxu0 0.0
  %4673 = vmatpush1.msra.mxu0 0.0
  %4674 = vmatprep.subr.mxu0 0.0
  %4675 = vmatpush1.msra.mxu0 0.0
  %4676 = vmatprep.subr.mxu0 0.0
  %4677 = vmatpush1.msra.mxu0 0.0
  %4678 = vmatprep.subr.mxu0 0.0
  %4679 = vmatpush1.msra.mxu0 0.0
  %4680 = vmatprep.subr.mxu0 0.0
  %4681 = vmatpush1.msra.mxu0 0.0
  %4682 = vmatprep.mubr.f32.mxu0 0.0
  %4683 = vmatmul.mubr.f32.gmra.mrb[0].mxu0 %v4616
  %v4684 = vpop.f32.mrb[0].mxu0
  %v4685 = vadd.f32 %v196, %v4684
  %v4686 = vpop.f32.mrb[0].mxu0
  %4687 = vdwg.mxu0
  %4689 = vrot.lane.b32.xlu0 %v4442, 32
  %v4690 = vpop.permute.xlu0 %4689
  %v4691 = vsel %vm211, %v4690, 0
  %4693 = vmatprep.subr.mxu0 0.0
  %4694 = vmatpush1.msra.mxu0 %v934
  %4695 = vmatprep.subr.mxu0 0.0
  %4696 = vmatpush1.msra.mxu0 %v935
  %4697 = vmatprep.subr.mxu0 0.0
  %4698 = vmatpush1.msra.mxu0 %v936
  %4699 = vmatprep.subr.mxu0 0.0
  %4700 = vmatpush1.msra.mxu0 %v937
  %4701 = vmatprep.subr.mxu0 0.0
  %4702 = vmatpush1.msra.mxu0 0.0
  %4703 = vmatprep.subr.mxu0 0.0
  %4704 = vmatpush1.msra.mxu0 0.0
  %4705 = vmatprep.subr.mxu0 0.0
  %4706 = vmatpush1.msra.mxu0 0.0
  %4707 = vmatprep.subr.mxu0 0.0
  %4708 = vmatpush1.msra.mxu0 0.0
  %4709 = vmatprep.subr.mxu0 0.0
  %4710 = vmatpush1.msra.mxu0 0.0
  %4711 = vmatprep.subr.mxu0 0.0
  %4712 = vmatpush1.msra.mxu0 0.0
  %4713 = vmatprep.subr.mxu0 0.0
  %4714 = vmatpush1.msra.mxu0 0.0
  %4715 = vmatprep.subr.mxu0 0.0
  %4716 = vmatpush1.msra.mxu0 0.0
  %4717 = vmatprep.subr.mxu0 0.0
  %4718 = vmatpush1.msra.mxu0 0.0
  %4719 = vmatprep.subr.mxu0 0.0
  %4720 = vmatpush1.msra.mxu0 0.0
  %4721 = vmatprep.subr.mxu0 0.0
  %4722 = vmatpush1.msra.mxu0 0.0
  %4723 = vmatprep.subr.mxu0 0.0
  %4724 = vmatpush1.msra.mxu0 0.0
  %4725 = vmatprep.subr.mxu0 0.0
  %4726 = vmatpush1.msra.mxu0 0.0
  %4727 = vmatprep.subr.mxu0 0.0
  %4728 = vmatpush1.msra.mxu0 0.0
  %4729 = vmatprep.subr.mxu0 0.0
  %4730 = vmatpush1.msra.mxu0 0.0
  %4731 = vmatprep.subr.mxu0 0.0
  %4732 = vmatpush1.msra.mxu0 0.0
  %4733 = vmatprep.subr.mxu0 0.0
  %4734 = vmatpush1.msra.mxu0 0.0
  %4735 = vmatprep.subr.mxu0 0.0
  %4736 = vmatpush1.msra.mxu0 0.0
  %4737 = vmatprep.subr.mxu0 0.0
  %4738 = vmatpush1.msra.mxu0 0.0
  %4739 = vmatprep.subr.mxu0 0.0
  %4740 = vmatpush1.msra.mxu0 0.0
  %4741 = vmatprep.subr.mxu0 0.0
  %4742 = vmatpush1.msra.mxu0 0.0
  %4743 = vmatprep.subr.mxu0 0.0
  %4744 = vmatpush1.msra.mxu0 0.0
  %4745 = vmatprep.subr.mxu0 0.0
  %4746 = vmatpush1.msra.mxu0 0.0
  %4747 = vmatprep.subr.mxu0 0.0
  %4748 = vmatpush1.msra.mxu0 0.0
  %4749 = vmatprep.subr.mxu0 0.0
  %4750 = vmatpush1.msra.mxu0 0.0
  %4751 = vmatprep.subr.mxu0 0.0
  %4752 = vmatpush1.msra.mxu0 0.0
  %4753 = vmatprep.subr.mxu0 0.0
  %4754 = vmatpush1.msra.mxu0 0.0
  %4755 = vmatprep.subr.mxu0 0.0
  %4756 = vmatpush1.msra.mxu0 0.0
  %4757 = vmatprep.mubr.f32.mxu0 0.0
  %4758 = vmatmul.mubr.f32.gmra.mrb[0].mxu0 %v4691
  %v4759 = vpop.f32.mrb[0].mxu0
  %v4760 = vadd.f32 0.0, %v4759
  %v4761 = vpop.f32.mrb[0].mxu0
  %4762 = vdwg.mxu0
  %v4763 = vadd.f32 %v4685, %v4760
  %v4764 = vxor.u32 %v4763, 2147483648
  %v4765 = vmul.f32 %v4764, 1.442695
  %v4766 = vpow.pop %v4765
  %v4767 = vadd.f32 %v4766, 1.0
  %v4768 = vrcp.pop %v4767
  %v4769 = vmul.f32 1.0, %v4768
  %v4770 = vtanh.pop %v4763
  %v4771 = vmul.f32 %v4769, %v4436
  %4773 = vrot.lane.b32.xlu0 %v4770, 64
  %v4774 = vpop.permute.xlu0 %4773
  %v4776 = vmul.f32 %v4769, %v4774
  %4778 = vrot.lane.b32.xlu0 %v4776, 32
  %v4779 = vpop.permute.xlu0 %4778
  %v4781 = vadd.f32 %v4771, %v4779
  %v4782 = vtanh.pop %v4781
  %4784 = vrot.lane.b32.xlu0 %v4782, 64
  %v4785 = vpop.permute.xlu0 %4784
  %v4787 = vmul.f32 %v4769, %v4785
  %4788 = vmatprep.subr.mxu0 0.0
  %4789 = vmatpush1.msra.mxu0 %v1476
  %4790 = vmatprep.subr.mxu0 0.0
  %4791 = vmatpush1.msra.mxu0 %v1477
  %4792 = vmatprep.subr.mxu0 0.0
  %4793 = vmatpush1.msra.mxu0 %v1478
  %4794 = vmatprep.subr.mxu0 0.0
  %4795 = vmatpush1.msra.mxu0 %v1479
  %4796 = vmatprep.subr.mxu0 0.0
  %4797 = vmatpush1.msra.mxu0 0.0
  %4798 = vmatprep.subr.mxu0 0.0
  %4799 = vmatpush1.msra.mxu0 0.0
  %4800 = vmatprep.subr.mxu0 0.0
  %4801 = vmatpush1.msra.mxu0 0.0
  %4802 = vmatprep.subr.mxu0 0.0
  %4803 = vmatpush1.msra.mxu0 0.0
  %4804 = vmatprep.subr.mxu0 0.0
  %4805 = vmatpush1.msra.mxu0 0.0
  %4806 = vmatprep.subr.mxu0 0.0
  %4807 = vmatpush1.msra.mxu0 0.0
  %4808 = vmatprep.subr.mxu0 0.0
  %4809 = vmatpush1.msra.mxu0 0.0
  %4810 = vmatprep.subr.mxu0 0.0
  %4811 = vmatpush1.msra.mxu0 0.0
  %4812 = vmatprep.subr.mxu0 0.0
  %4813 = vmatpush1.msra.mxu0 0.0
  %4814 = vmatprep.subr.mxu0 0.0
  %4815 = vmatpush1.msra.mxu0 0.0
  %4816 = vmatprep.subr.mxu0 0.0
  %4817 = vmatpush1.msra.mxu0 0.0
  %4818 = vmatprep.subr.mxu0 0.0
  %4819 = vmatpush1.msra.mxu0 0.0
  %4820 = vmatprep.subr.mxu0 0.0
  %4821 = vmatpush1.msra.mxu0 0.0
  %4822 = vmatprep.subr.mxu0 0.0
  %4823 = vmatpush1.msra.mxu0 0.0
  %4824 = vmatprep.subr.mxu0 0.0
  %4825 = vmatpush1.msra.mxu0 0.0
  %4826 = vmatprep.subr.mxu0 0.0
  %4827 = vmatpush1.msra.mxu0 0.0
  %4828 = vmatprep.subr.mxu0 0.0
  %4829 = vmatpush1.msra.mxu0 0.0
  %4830 = vmatprep.subr.mxu0 0.0
  %4831 = vmatpush1.msra.mxu0 0.0
  %4832 = vmatprep.subr.mxu0 0.0
  %4833 = vmatpush1.msra.mxu0 0.0
  %4834 = vmatprep.subr.mxu0 0.0
  %4835 = vmatpush1.msra.mxu0 0.0
  %4836 = vmatprep.subr.mxu0 0.0
  %4837 = vmatpush1.msra.mxu0 0.0
  %4838 = vmatprep.subr.mxu0 0.0
  %4839 = vmatpush1.msra.mxu0 0.0
  %4840 = vmatprep.subr.mxu0 0.0
  %4841 = vmatpush1.msra.mxu0 0.0
  %4842 = vmatprep.subr.mxu0 0.0
  %4843 = vmatpush1.msra.mxu0 0.0
  %4844 = vmatprep.subr.mxu0 0.0
  %4845 = vmatpush1.msra.mxu0 0.0
  %4846 = vmatprep.subr.mxu0 0.0
  %4847 = vmatpush1.msra.mxu0 0.0
  %4848 = vmatprep.subr.mxu0 0.0
  %4849 = vmatpush1.msra.mxu0 0.0
  %4850 = vmatprep.subr.mxu0 0.0
  %4851 = vmatpush1.msra.mxu0 0.0
  %4852 = vmatprep.mubr.f32.mxu0 0.0
  %4853 = vmatmul.mubr.f32.gmra.mrb[0].mxu0 %v4691
  %v4854 = vpop.f32.mrb[0].mxu0
  %v4855 = vadd.f32 %v204, %v4854
  %v4856 = vpop.f32.mrb[0].mxu0
  %4857 = vdwg.mxu0
  %4859 = vrot.lane.b32.xlu0 %v4612, 32
  %v4860 = vpop.permute.xlu0 %4859
  %v4861 = vsel %vm211, %v4860, 0
  %4863 = vmatprep.subr.mxu0 0.0
  %4864 = vmatpush1.msra.mxu0 %v1551
  %4865 = vmatprep.subr.mxu0 0.0
  %4866 = vmatpush1.msra.mxu0 %v1552
  %4867 = vmatprep.subr.mxu0 0.0
  %4868 = vmatpush1.msra.mxu0 %v1553
  %4869 = vmatprep.subr.mxu0 0.0
  %4870 = vmatpush1.msra.mxu0 %v1554
  %4871 = vmatprep.subr.mxu0 0.0
  %4872 = vmatpush1.msra.mxu0 0.0
  %4873 = vmatprep.subr.mxu0 0.0
  %4874 = vmatpush1.msra.mxu0 0.0
  %4875 = vmatprep.subr.mxu0 0.0
  %4876 = vmatpush1.msra.mxu0 0.0
  %4877 = vmatprep.subr.mxu0 0.0
  %4878 = vmatpush1.msra.mxu0 0.0
  %4879 = vmatprep.subr.mxu0 0.0
  %4880 = vmatpush1.msra.mxu0 0.0
  %4881 = vmatprep.subr.mxu0 0.0
  %4882 = vmatpush1.msra.mxu0 0.0
  %4883 = vmatprep.subr.mxu0 0.0
  %4884 = vmatpush1.msra.mxu0 0.0
  %4885 = vmatprep.subr.mxu0 0.0
  %4886 = vmatpush1.msra.mxu0 0.0
  %4887 = vmatprep.subr.mxu0 0.0
  %4888 = vmatpush1.msra.mxu0 0.0
  %4889 = vmatprep.subr.mxu0 0.0
  %4890 = vmatpush1.msra.mxu0 0.0
  %4891 = vmatprep.subr.mxu0 0.0
  %4892 = vmatpush1.msra.mxu0 0.0
  %4893 = vmatprep.subr.mxu0 0.0
  %4894 = vmatpush1.msra.mxu0 0.0
  %4895 = vmatprep.subr.mxu0 0.0
  %4896 = vmatpush1.msra.mxu0 0.0
  %4897 = vmatprep.subr.mxu0 0.0
  %4898 = vmatpush1.msra.mxu0 0.0
  %4899 = vmatprep.subr.mxu0 0.0
  %4900 = vmatpush1.msra.mxu0 0.0
  %4901 = vmatprep.subr.mxu0 0.0
  %4902 = vmatpush1.msra.mxu0 0.0
  %4903 = vmatprep.subr.mxu0 0.0
  %4904 = vmatpush1.msra.mxu0 0.0
  %4905 = vmatprep.subr.mxu0 0.0
  %4906 = vmatpush1.msra.mxu0 0.0
  %4907 = vmatprep.subr.mxu0 0.0
  %4908 = vmatpush1.msra.mxu0 0.0
  %4909 = vmatprep.subr.mxu0 0.0
  %4910 = vmatpush1.msra.mxu0 0.0
  %4911 = vmatprep.subr.mxu0 0.0
  %4912 = vmatpush1.msra.mxu0 0.0
  %4913 = vmatprep.subr.mxu0 0.0
  %4914 = vmatpush1.msra.mxu0 0.0
  %4915 = vmatprep.subr.mxu0 0.0
  %4916 = vmatpush1.msra.mxu0 0.0
  %4917 = vmatprep.subr.mxu0 0.0
  %4918 = vmatpush1.msra.mxu0 0.0
  %4919 = vmatprep.subr.mxu0 0.0
  %4920 = vmatpush1.msra.mxu0 0.0
  %4921 = vmatprep.subr.mxu0 0.0
  %4922 = vmatpush1.msra.mxu0 0.0
  %4923 = vmatprep.subr.mxu0 0.0
  %4924 = vmatpush1.msra.mxu0 0.0
  %4925 = vmatprep.subr.mxu0 0.0
  %4926 = vmatpush1.msra.mxu0 0.0
  %4927 = vmatprep.mubr.f32.mxu0 0.0
  %4928 = vmatmul.mubr.f32.gmra.mrb[0].mxu0 %v4861
  %v4929 = vpop.f32.mrb[0].mxu0
  %v4930 = vadd.f32 0.0, %v4929
  %v4931 = vpop.f32.mrb[0].mxu0
  %4932 = vdwg.mxu0
  %v4933 = vadd.f32 %v4855, %v4930
  %v4934 = vxor.u32 %v4933, 2147483648
  %v4935 = vmul.f32 %v4934, 1.442695
  %v4936 = vpow.pop %v4935
  %v4937 = vadd.f32 %v4936, 1.0
  %v4938 = vrcp.pop %v4937
  %v4939 = vmul.f32 1.0, %v4938
  %v4940 = vtanh.pop %v4933
  %v4941 = vmul.f32 %v4939, %v4606
  %4943 = vrot.lane.b32.xlu0 %v4940, 64
  %v4944 = vpop.permute.xlu0 %4943
  %v4946 = vmul.f32 %v4939, %v4944
  %4948 = vrot.lane.b32.xlu0 %v4946, 32
  %v4949 = vpop.permute.xlu0 %4948
  %v4951 = vadd.f32 %v4941, %v4949
  %v4952 = vtanh.pop %v4951
  %4954 = vrot.lane.b32.xlu0 %v4952, 64
  %v4955 = vpop.permute.xlu0 %4954
  %v4957 = vmul.f32 %v4939, %v4955
  %4959 = vrot.lane.b32.xlu0 %v4787, 32
  %v4960 = vpop.permute.xlu0 %4959
  %v4961 = vsel %vm211, %v4960, 0
  %4963 = vmatprep.subr.mxu0 0.0
  %4964 = vmatpush1.msra.mxu0 %v1476
  %4965 = vmatprep.subr.mxu0 0.0
  %4966 = vmatpush1.msra.mxu0 %v1477
  %4967 = vmatprep.subr.mxu0 0.0
  %4968 = vmatpush1.msra.mxu0 %v1478
  %4969 = vmatprep.subr.mxu0 0.0
  %4970 = vmatpush1.msra.mxu0 %v1479
  %4971 = vmatprep.subr.mxu0 0.0
  %4972 = vmatpush1.msra.mxu0 0.0
  %4973 = vmatprep.subr.mxu0 0.0
  %4974 = vmatpush1.msra.mxu0 0.0
  %4975 = vmatprep.subr.mxu0 0.0
  %4976 = vmatpush1.msra.mxu0 0.0
  %4977 = vmatprep.subr.mxu0 0.0
  %4978 = vmatpush1.msra.mxu0 0.0
  %4979 = vmatprep.subr.mxu0 0.0
  %4980 = vmatpush1.msra.mxu0 0.0
  %4981 = vmatprep.subr.mxu0 0.0
  %4982 = vmatpush1.msra.mxu0 0.0
  %4983 = vmatprep.subr.mxu0 0.0
  %4984 = vmatpush1.msra.mxu0 0.0
  %4985 = vmatprep.subr.mxu0 0.0
  %4986 = vmatpush1.msra.mxu0 0.0
  %4987 = vmatprep.subr.mxu0 0.0
  %4988 = vmatpush1.msra.mxu0 0.0
  %4989 = vmatprep.subr.mxu0 0.0
  %4990 = vmatpush1.msra.mxu0 0.0
  %4991 = vmatprep.subr.mxu0 0.0
  %4992 = vmatpush1.msra.mxu0 0.0
  %4993 = vmatprep.subr.mxu0 0.0
  %4994 = vmatpush1.msra.mxu0 0.0
  %4995 = vmatprep.subr.mxu0 0.0
  %4996 = vmatpush1.msra.mxu0 0.0
  %4997 = vmatprep.subr.mxu0 0.0
  %4998 = vmatpush1.msra.mxu0 0.0
  %4999 = vmatprep.subr.mxu0 0.0
  %5000 = vmatpush1.msra.mxu0 0.0
  %5001 = vmatprep.subr.mxu0 0.0
  %5002 = vmatpush1.msra.mxu0 0.0
  %5003 = vmatprep.subr.mxu0 0.0
  %5004 = vmatpush1.msra.mxu0 0.0
  %5005 = vmatprep.subr.mxu0 0.0
  %5006 = vmatpush1.msra.mxu0 0.0
  %5007 = vmatprep.subr.mxu0 0.0
  %5008 = vmatpush1.msra.mxu0 0.0
  %5009 = vmatprep.subr.mxu0 0.0
  %5010 = vmatpush1.msra.mxu0 0.0
  %5011 = vmatprep.subr.mxu0 0.0
  %5012 = vmatpush1.msra.mxu0 0.0
  %5013 = vmatprep.subr.mxu0 0.0
  %5014 = vmatpush1.msra.mxu0 0.0
  %5015 = vmatprep.subr.mxu0 0.0
  %5016 = vmatpush1.msra.mxu0 0.0
  %5017 = vmatprep.subr.mxu0 0.0
  %5018 = vmatpush1.msra.mxu0 0.0
  %5019 = vmatprep.subr.mxu0 0.0
  %5020 = vmatpush1.msra.mxu0 0.0
  %5021 = vmatprep.subr.mxu0 0.0
  %5022 = vmatpush1.msra.mxu0 0.0
  %5023 = vmatprep.subr.mxu0 0.0
  %5024 = vmatpush1.msra.mxu0 0.0
  %5025 = vmatprep.subr.mxu0 0.0
  %5026 = vmatpush1.msra.mxu0 0.0
  %5027 = vmatprep.mubr.f32.mxu0 0.0
  %5028 = vmatmul.mubr.f32.gmra.mrb[0].mxu0 %v4961
  %v5029 = vpop.f32.mrb[0].mxu0
  %v5030 = vadd.f32 %v204, %v5029
  %v5031 = vpop.f32.mrb[0].mxu0
  %5032 = vdwg.mxu0
  %5034 = vrot.lane.b32.xlu0 %v4957, 32
  %v5035 = vpop.permute.xlu0 %5034
  %v5036 = vsel %vm211, %v5035, 0
  %5038 = vmatprep.subr.mxu0 0.0
  %5039 = vmatpush1.msra.mxu0 %v1551
  %5040 = vmatprep.subr.mxu0 0.0
  %5041 = vmatpush1.msra.mxu0 %v1552
  %5042 = vmatprep.subr.mxu0 0.0
  %5043 = vmatpush1.msra.mxu0 %v1553
  %5044 = vmatprep.subr.mxu0 0.0
  %5045 = vmatpush1.msra.mxu0 %v1554
  %5046 = vmatprep.subr.mxu0 0.0
  %5047 = vmatpush1.msra.mxu0 0.0
  %5048 = vmatprep.subr.mxu0 0.0
  %5049 = vmatpush1.msra.mxu0 0.0
  %5050 = vmatprep.subr.mxu0 0.0
  %5051 = vmatpush1.msra.mxu0 0.0
  %5052 = vmatprep.subr.mxu0 0.0
  %5053 = vmatpush1.msra.mxu0 0.0
  %5054 = vmatprep.subr.mxu0 0.0
  %5055 = vmatpush1.msra.mxu0 0.0
  %5056 = vmatprep.subr.mxu0 0.0
  %5057 = vmatpush1.msra.mxu0 0.0
  %5058 = vmatprep.subr.mxu0 0.0
  %5059 = vmatpush1.msra.mxu0 0.0
  %5060 = vmatprep.subr.mxu0 0.0
  %5061 = vmatpush1.msra.mxu0 0.0
  %5062 = vmatprep.subr.mxu0 0.0
  %5063 = vmatpush1.msra.mxu0 0.0
  %5064 = vmatprep.subr.mxu0 0.0
  %5065 = vmatpush1.msra.mxu0 0.0
  %5066 = vmatprep.subr.mxu0 0.0
  %5067 = vmatpush1.msra.mxu0 0.0
  %5068 = vmatprep.subr.mxu0 0.0
  %5069 = vmatpush1.msra.mxu0 0.0
  %5070 = vmatprep.subr.mxu0 0.0
  %5071 = vmatpush1.msra.mxu0 0.0
  %5072 = vmatprep.subr.mxu0 0.0
  %5073 = vmatpush1.msra.mxu0 0.0
  %5074 = vmatprep.subr.mxu0 0.0
  %5075 = vmatpush1.msra.mxu0 0.0
  %5076 = vmatprep.subr.mxu0 0.0
  %5077 = vmatpush1.msra.mxu0 0.0
  %5078 = vmatprep.subr.mxu0 0.0
  %5079 = vmatpush1.msra.mxu0 0.0
  %5080 = vmatprep.subr.mxu0 0.0
  %5081 = vmatpush1.msra.mxu0 0.0
  %5082 = vmatprep.subr.mxu0 0.0
  %5083 = vmatpush1.msra.mxu0 0.0
  %5084 = vmatprep.subr.mxu0 0.0
  %5085 = vmatpush1.msra.mxu0 0.0
  %5086 = vmatprep.subr.mxu0 0.0
  %5087 = vmatpush1.msra.mxu0 0.0
  %5088 = vmatprep.subr.mxu0 0.0
  %5089 = vmatpush1.msra.mxu0 0.0
  %5090 = vmatprep.subr.mxu0 0.0
  %5091 = vmatpush1.msra.mxu0 0.0
  %5092 = vmatprep.subr.mxu0 0.0
  %5093 = vmatpush1.msra.mxu0 0.0
  %5094 = vmatprep.subr.mxu0 0.0
  %5095 = vmatpush1.msra.mxu0 0.0
  %5096 = vmatprep.subr.mxu0 0.0
  %5097 = vmatpush1.msra.mxu0 0.0
  %5098 = vmatprep.subr.mxu0 0.0
  %5099 = vmatpush1.msra.mxu0 0.0
  %5100 = vmatprep.subr.mxu0 0.0
  %5101 = vmatpush1.msra.mxu0 0.0
  %5102 = vmatprep.mubr.f32.mxu0 0.0
  %5103 = vmatmul.mubr.f32.gmra.mrb[0].mxu0 %v5036
  %v5104 = vpop.f32.mrb[0].mxu0
  %v5105 = vadd.f32 0.0, %v5104
  %v5106 = vpop.f32.mrb[0].mxu0
  %5107 = vdwg.mxu0
  %v5108 = vadd.f32 %v5030, %v5105
  %v5109 = vxor.u32 %v5108, 2147483648
  %v5110 = vmul.f32 %v5109, 1.442695
  %v5111 = vpow.pop %v5110
  %v5112 = vadd.f32 %v5111, 1.0
  %v5113 = vrcp.pop %v5112
  %v5114 = vmul.f32 1.0, %v5113
  %v5115 = vtanh.pop %v5108
  %v5116 = vmul.f32 %v5114, %v4951
  %5118 = vrot.lane.b32.xlu0 %v5115, 64
  %v5119 = vpop.permute.xlu0 %5118
  %v5121 = vmul.f32 %v5114, %v5119
  %5123 = vrot.lane.b32.xlu0 %v5121, 32
  %v5124 = vpop.permute.xlu0 %5123
  %v5126 = vadd.f32 %v5116, %v5124
  %v5127 = vtanh.pop %v5126
  %5129 = vrot.lane.b32.xlu0 %v5127, 64
  %v5130 = vpop.permute.xlu0 %5129
  %v5132 = vmul.f32 %v5114, %v5130
  %v5133 = vld [vmem:[%s5] sm:$0x1]
  %v5135 = vlaneseq
  %v5136 = vshrl.u32 %v5135, 7
  %v5137 = vsub.s32 0, %v5136
  %v5138 = vrot.slane %v5133, %v5137
  %5139 = vrot.lane.b32.xlu0 %v5138, 96
  %v5140 = vpop.permute.xlu0 %5139
  %v5142 = vmul.f32 %v5132, %v5140
  %5144 = vrot.lane.b32.xlu0 %v5142, 32
  %v5145 = vpop.permute.xlu0 %5144
  %v5147 = vsel %vm211, %v5145, 0.0
  %5148 = vadd.xlane.f32.xlu0 %v5147
  %v5149 = vpop.xlane.xlu0 %5148
  %v5150 = vld [vmem:[#allocation3] sm:$0x1]
  %v5152 = vlaneseq
  %v5153 = vshrl.u32 %v5152, 7
  %v5154 = vsub.s32 0, %v5153
  %v5155 = vrot.slane %v5150, %v5154
  %v5157 = vadd.f32 %v5149, %v5155
  %vm5158 = vcmask 7168
  %5159 = vst.msk [vmem:[%s7] sm:$0xff] %vm5158, %v5157
  // Predicated region
  $region30: #{sequence_forward.1} parent=0 // pred_check
    _
  $region31: #{sequence_forward.1} parent=0 // pred_check_branch
    %5161 = sbr.rel (0) target = $region33
  $region32: #{sequence_forward.1} parent=0 // pred_region
    _
  $region33: #{sequence_forward.1} parent=0 // pred_fallthru
    _
  // Predicated region
  $region34: #{sequence_forward.1} parent=0 // pred_check
    _
  $region35: #{sequence_forward.1} parent=0 // pred_check_branch
    %5163 = sbr.rel (0) target = $region37
  $region36: #{sequence_forward.1} parent=0 // pred_region
    _
  $region37: #{sequence_forward.1} parent=0 // pred_fallthru
    _

</llo_original>
